<compile_context>
chip_gen: v7x
topology: tpu7x:2x2x1
jax: 0.10.0
libtpu: 0.0.40
codegen_flags: <defaults>
</compile_context>

<pallas_src>
import functools

import jax
import jax.numpy as jnp
from jax import lax
from jax.experimental import pallas as pl
from jax.experimental.pallas import tpu as pltpu


def _scores_kernel(lhs_pos_ref, rhs_pos_ref, lhs_uni_ref, rhs_uni_ref, diag_ref,
                   pos_ref, lneg_ref, rneg_ref):
    """Cb chunks of the MultiRelationEmbedder score computation.

    Shapes:
      lhs_pos_ref, rhs_pos_ref : (Cb, P, D)            bf16
      lhs_uni_ref, rhs_uni_ref : (Cb, U, D)            bf16
      diag_ref                 : (1, D)                f32  (rhs diagonal op)
      pos_ref                  : (Cb, P) or (Cb, 1, P) f32
      lneg_ref, rneg_ref       : (Cb, P, P+U)          f32 (or bf16 if opted in)
    """
    cb, p, d = lhs_pos_ref.shape
    f32 = jnp.float32
    bf16 = jnp.bfloat16
    out_dt = lneg_ref.dtype

    diag = diag_ref[...][None, :, :]                       # (1, 1, D) f32

    # adjust_embs: identity on lhs, diagonal operator on rhs (scale in f32).
    lhs_pos = lhs_pos_ref[...]                             # (Cb, P, D) bf16
    lhs_pos_f = lhs_pos.astype(f32)
    rhs_pos_f = rhs_pos_ref[...].astype(f32) * diag        # (Cb, P, D) f32
    rhs_pos = rhs_pos_f.astype(bf16)                       # bf16 MXU operand
    rhs_uni = (rhs_uni_ref[...].astype(f32) * diag).astype(bf16)
    lhs_uni = lhs_uni_ref[...]                             # (Cb, U, D) bf16

    # DotComparator positives: full f32 on the VPU (no MXU quantization of the
    # per-edge scores).
    pos = jnp.sum(lhs_pos_f * rhs_pos_f, axis=-1)          # (Cb, P) f32
    pos_ref[...] = pos.reshape(pos_ref.shape)

    # BATCH_UNIFORM negatives: three MXU contractions (was four).  The
    # batch-negative block of rneg is the transpose of the lneg one, so it is
    # produced on the XLU instead of the MXU.  Contraction is on the trailing
    # D dim of both operands (flash-attention q.kT pattern -- no transpose of
    # the operands is needed) with bf16 operands and explicit f32 accumulation.
    dn = (((2,), (2,)), ((0,), (0,)))                      # contract D, batch Cb
    lneg_pos = lax.dot_general(rhs_pos, lhs_pos, dn,
                               preferred_element_type=f32)  # (Cb, P, P)
    lneg_uni = lax.dot_general(rhs_pos, lhs_uni, dn,
                               preferred_element_type=f32)  # (Cb, P, U)
    rneg_uni = lax.dot_general(lhs_pos, rhs_uni, dn,
                               preferred_element_type=f32)  # (Cb, P, U)

    # ignore_mask for BATCH_UNIFORM: only the batch-negative diagonal (a
    # positive scored against itself) is masked, i.e. only the first P columns.
    # The mask is symmetric, so it commutes with the transpose below.
    rows = lax.broadcasted_iota(jnp.int32, (p, p), 0)
    cols = lax.broadcasted_iota(jnp.int32, (p, p), 1)
    diag_mask = (rows == cols)[None, :, :]
    lneg_pos_masked = jnp.where(diag_mask, jnp.float32(-1e9), lneg_pos)

    # P and U are multiples of 128, so both halves are lane-aligned stores.
    lneg_ref[:, :, :p] = lneg_pos_masked.astype(out_dt)
    lneg_ref[:, :, p:] = lneg_uni.astype(out_dt)
    rneg_ref[:, :, :p] = jnp.swapaxes(lneg_pos_masked, 1, 2).astype(out_dt)
    rneg_ref[:, :, p:] = rneg_uni.astype(out_dt)


def _per_chunk_io_bytes(P, U, D, NEG, neg_bytes):
    in_bytes = 2 * (P + U) * D * 2                      # bf16 inputs, both sides
    out_bytes = P * 4 + 2 * P * NEG * neg_bytes         # f32 pos + 2 neg blocks
    return in_bytes + out_bytes


def _vmem_footprint_bytes(Cb, P, U, D, NEG, neg_bytes):
    """Rough per-step VMEM footprint: double-buffered pipeline blocks plus the
    in-kernel f32 temporaries (upcasts, scaled copies, matmul results)."""
    in_blocks = 2 * (2 * Cb * P * D + 2 * Cb * U * D) * 2 + 2 * D * 4
    out_blocks = 2 * (Cb * P * 4 + 2 * Cb * P * NEG * neg_bytes)
    temps = (2 * Cb * P * D + 2 * Cb * U * D) * 4        # f32 upcasts / scaled copies
    temps += (2 * Cb * P * P + 2 * Cb * P * U) * 4       # matmul results + masked/transposed
    return in_blocks + out_blocks + temps


def _pick_chunk_batch(num_chunks, P, U, D, NEG, neg_bytes, *,
                      target_io_bytes=4 << 20, vmem_budget=24 << 20,
                      min_steps=4):
    """Chunks per grid step.  Constraints:
      * >= min_steps grid steps (>= 2 per TensorCore on v7x's 2 TCs) so each
        core keeps a full prefetch/writeback pipeline;
      * per-step HBM payload <= target_io_bytes (amortizes ~0.35 us step cost);
      * estimated per-step VMEM footprint <= vmem_budget (sized against v7x's
        64 MiB per-TC VMEM rather than the 128 MiB of v5e/v6e).
    Among valid divisors of num_chunks, prefer Cb % 8 == 0 (sublane-dense
    (Cb, P) positive block), then the largest Cb."""
    per_chunk = _per_chunk_io_bytes(P, U, D, NEG, neg_bytes)
    floor_steps = min(min_steps, num_chunks)
    candidates = []
    for cb in range(1, num_chunks + 1):
        if num_chunks % cb:
            continue
        if num_chunks // cb < floor_steps:
            continue
        if cb * per_chunk > target_io_bytes:
            continue
        if _vmem_footprint_bytes(cb, P, U, D, NEG, neg_bytes) > vmem_budget:
            continue
        candidates.append(cb)
    if not candidates:
        return 1
    return max(candidates, key=lambda cb: (cb % 8 == 0, cb))


@functools.partial(jax.jit, static_argnames=("chunk_size", "neg_scores_dtype"))
def multi_relation_embedder_forward(lhs_idx, rhs_idx, lhs_uni_idx, rhs_uni_idx,
                                    lhs_emb, rhs_emb, rhs_diag, *, chunk_size,
                                    neg_scores_dtype=jnp.float32):
    """Returns Scores(lhs_pos, rhs_pos, lhs_neg, rhs_neg) as a tuple.

    neg_scores_dtype: dtype of the negative-score outputs.  float32 (default)
    matches the module's `.float()` semantics; bfloat16 halves the dominant
    HBM store traffic if the downstream loss tolerates it (subtract the row
    max before softmax so the -1e9 mask stays safe).
    """
    num_pos = lhs_idx.shape[0]
    assert num_pos % chunk_size == 0, "TODO(synk): partial last chunk padding"
    C = num_pos // chunk_size
    D = lhs_emb.shape[1]
    U = lhs_uni_idx.shape[1]
    P = chunk_size
    NEG = P + U

    # Embedding lookups (SimpleEmbedding.get) -- stays as an XLA gather.
    # Gathered rows are streamed to the kernel as bf16 (halves HBM/DMA bytes).
    # TODO(synk): fuse the gather into the kernel (VMEM-resident tables +
    # scalar-prefetched indices when the tables fit, coarse DMA gather
    # otherwise) to kill the HBM write+re-read of these intermediates.
    bf16 = jnp.bfloat16
    lhs_pos = jnp.take(lhs_emb, lhs_idx, axis=0).astype(bf16).reshape(C, P, D)
    rhs_pos = jnp.take(rhs_emb, rhs_idx, axis=0).astype(bf16).reshape(C, P, D)
    lhs_uni = jnp.take(lhs_emb, lhs_uni_idx.reshape(-1),
                       axis=0).astype(bf16).reshape(C, U, D)
    rhs_uni = jnp.take(rhs_emb, rhs_uni_idx.reshape(-1),
                       axis=0).astype(bf16).reshape(C, U, D)
    diag = rhs_diag.astype(jnp.float32).reshape(1, D)

    neg_dtype = jnp.dtype(neg_scores_dtype)
    neg_bytes = neg_dtype.itemsize
    Cb = _pick_chunk_batch(C, P, U, D, NEG, neg_bytes)

    # Positive scores: 2-D (C, P) with a sublane-dense (Cb, P) block when Cb is
    # a multiple of 8 (fully unmasked vst); otherwise the (C, 1, P) layout,
    # whose (Cb, 1, P) block keeps the last two dims (1, P) legal.
    pos_dense = (Cb % 8 == 0) or (Cb == C)
    if pos_dense:
        pos_shape = (C, P)
        pos_spec = pl.BlockSpec((Cb, P), lambda c: (c, 0))
    else:
        pos_shape = (C, 1, P)
        pos_spec = pl.BlockSpec((Cb, 1, P), lambda c: (c, 0, 0))

    out_shapes = (
        jax.ShapeDtypeStruct(pos_shape, jnp.float32),
        jax.ShapeDtypeStruct((C, P, NEG), neg_dtype),
        jax.ShapeDtypeStruct((C, P, NEG), neg_dtype),
    )
    grid_spec = pltpu.PrefetchScalarGridSpec(
        num_scalar_prefetch=0,
        grid=(C // Cb,),
        in_specs=[
            pl.BlockSpec((Cb, P, D), lambda c: (c, 0, 0)),
            pl.BlockSpec((Cb, P, D), lambda c: (c, 0, 0)),
            pl.BlockSpec((Cb, U, D), lambda c: (c, 0, 0)),
            pl.BlockSpec((Cb, U, D), lambda c: (c, 0, 0)),
            pl.BlockSpec((1, D), lambda c: (0, 0)),
        ],
        out_specs=[
            pos_spec,
            pl.BlockSpec((Cb, P, NEG), lambda c: (c, 0, 0)),
            pl.BlockSpec((Cb, P, NEG), lambda c: (c, 0, 0)),
        ],
    )
    pos_c, lneg_c, rneg_c = pl.pallas_call(
        _scores_kernel,
        out_shape=out_shapes,
        grid_spec=grid_spec,
        compiler_params=pltpu.CompilerParams(
            dimension_semantics=("parallel",),
            # 32 MiB is safe everywhere incl. v7x's 64 MiB per-TC VMEM; the Cb
            # picker already budgets the real per-step footprint vs. 24 MiB.
            vmem_limit_bytes=32 * 1024 * 1024),
    )(lhs_pos, rhs_pos, lhs_uni, rhs_uni, diag)

    # flatten(0, 1)[:num_pos]
    pos_scores = pos_c.reshape(C * P)[:num_pos]
    lhs_neg_scores = lneg_c.reshape(C * P, NEG)[:num_pos]
    rhs_neg_scores = rneg_c.reshape(C * P, NEG)[:num_pos]
    # Non-dynamic path: lhs_pos_scores == rhs_pos_scores == pos_scores.
    return pos_scores, pos_scores, lhs_neg_scores, rhs_neg_scores


def _reference_forward(lhs_idx, rhs_idx, lhs_uni_idx, rhs_uni_idx,
                       lhs_emb, rhs_emb, rhs_diag, chunk_size):
    """Pure-JAX reference mirroring the PyTorch forward semantics.

    Embeddings are stored in bf16 (the kernel's streaming dtype). The comparator
    matmuls use bf16 operands with f32 accumulation -- the kernel's explicit
    MXU precision policy -- evaluated here with HIGHEST-precision f32 math so
    only accumulation-order noise separates kernel and reference.
    """
    f32 = jnp.float32
    num_pos = lhs_idx.shape[0]
    C = num_pos // chunk_size
    D = lhs_emb.shape[1]
    U = lhs_uni_idx.shape[1]
    NEG = chunk_size + U
    diag = rhs_diag.astype(f32)
    q = lambda x: x.astype(jnp.bfloat16).astype(f32)   # bf16 MXU operand

    lhs_pos = lhs_emb[lhs_idx].astype(f32).reshape(C, chunk_size, D)
    rhs_pos = (rhs_emb[rhs_idx].astype(f32) * diag).reshape(C, chunk_size, D)
    lhs_uni = lhs_emb[lhs_uni_idx.reshape(-1)].astype(f32).reshape(C, U, D)
    rhs_uni = (rhs_emb[rhs_uni_idx.reshape(-1)].astype(f32)
               * diag).reshape(C, U, D)

    lhs_neg = jnp.concatenate([q(lhs_pos), q(lhs_uni)], axis=1)
    rhs_neg = jnp.concatenate([q(rhs_pos), q(rhs_uni)], axis=1)

    pos = jnp.sum(lhs_pos * rhs_pos, axis=-1)
    hi = lax.Precision.HIGHEST
    lneg = jnp.einsum("cpd,cld->cpl", q(rhs_pos), lhs_neg, precision=hi)
    rneg = jnp.einsum("cpd,crd->cpr", q(lhs_pos), rhs_neg, precision=hi)

    rows = jnp.arange(chunk_size)[:, None]
    cols = jnp.arange(NEG)[None, :]
    mask = (rows == cols)[None]
    lneg = jnp.where(mask, -1e9, lneg)
    rneg = jnp.where(mask, -1e9, rneg)
    return (pos.reshape(-1)[:num_pos],
            pos.reshape(-1)[:num_pos],
            lneg.reshape(num_pos, NEG),
            rneg.reshape(num_pos, NEG))


if __name__ == "__main__":
    key = jax.random.PRNGKey(0)
    k1, k2, k3, k4, k5, k6, k7 = jax.random.split(key, 7)

    num_entities = 2048      # entities per type
    D = 128                  # embedding dim (multiple of 128 for full lanes)
    num_pos = 4096           # batch of edges -> C = 32 chunks, Cb = 8, 4 steps
    chunk_size = 128         # num_batch_negs (multiple of 128: MXU/lane dense)
    num_uniform_negs = 128   # multiple of 128: NEG = 256 is lane dense
    C = num_pos // chunk_size

    lhs_emb = jax.random.normal(k1, (num_entities, D),
                                dtype=jnp.float32).astype(jnp.bfloat16)
    rhs_emb = jax.random.normal(k2, (num_entities, D),
                                dtype=jnp.float32).astype(jnp.bfloat16)
    rhs_diag = jax.random.normal(k3, (D,), dtype=jnp.float32)  # diagonal op

    lhs_idx = jax.random.randint(k4, (num_pos,), 0, num_entities)
    rhs_idx = jax.random.randint(k5, (num_pos,), 0, num_entities)
    lhs_uni_idx = jax.random.randint(k6, (C, num_uniform_negs), 0, num_entities)
    rhs_uni_idx = jax.random.randint(k7, (C, num_uniform_negs), 0, num_entities)

    out = multi_relation_embedder_forward(
        lhs_idx, rhs_idx, lhs_uni_idx, rhs_uni_idx,
        lhs_emb, rhs_emb, rhs_diag, chunk_size=chunk_size)
    out = jax.block_until_ready(out)

    ref = _reference_forward(lhs_idx, rhs_idx, lhs_uni_idx, rhs_uni_idx,
                             lhs_emb, rhs_emb, rhs_diag, chunk_size)
    names = ("lhs_pos", "rhs_pos", "lhs_neg", "rhs_neg")
    for name, got, want in zip(names, out, ref):
        assert got.shape == want.shape, (name, got.shape, want.shape)
        assert got.dtype == jnp.float32, (name, got.dtype)
        assert jnp.allclose(got, want, rtol=2e-3, atol=2e-2), (
            name, float(jnp.max(jnp.abs(got - want))))

    print("KERNEL_OK")
</pallas_src>

<mosaic_0001>
module attributes {stable_mosaic.version = 11 : i64} {
  func.func @_scores_kernel(%arg0: i32, %arg1: memref<8x128x128xbf16, #tpu.memory_space<vmem>>, %arg2: memref<8x128x128xbf16, #tpu.memory_space<vmem>>, %arg3: memref<8x128x128xbf16, #tpu.memory_space<vmem>>, %arg4: memref<8x128x128xbf16, #tpu.memory_space<vmem>>, %arg5: memref<1x128xf32, #tpu.memory_space<vmem>>, %arg6: memref<8x128xf32, #tpu.memory_space<vmem>>, %arg7: memref<8x128x256xf32, #tpu.memory_space<vmem>>, %arg8: memref<8x128x256xf32, #tpu.memory_space<vmem>>) attributes {dimension_semantics = [#tpu.dimension_semantics<parallel>], iteration_bounds = array<i64: 4>, scalar_prefetch = 0 : i64, scratch_operands = 0 : i64, tpu.core_type = #tpu.core_type<tc>, window_params = [{transform_indices = @transform_0, window_bounds = array<i64: 8, 128, 128>}, {transform_indices = @transform_1, window_bounds = array<i64: 8, 128, 128>}, {transform_indices = @transform_2, window_bounds = array<i64: 8, 128, 128>}, {transform_indices = @transform_3, window_bounds = array<i64: 8, 128, 128>}, {pipeline_mode = #tpu.pipeline_mode<synchronous>, transform_indices = @transform_4, window_bounds = array<i64: 1, 128>}, {transform_indices = @transform_5, window_bounds = array<i64: 8, 128>}, {transform_indices = @transform_6, window_bounds = array<i64: 8, 128, 256>}, {transform_indices = @transform_7, window_bounds = array<i64: 8, 128, 256>}]} {
    %c0 = arith.constant 0 : index
    %c0_0 = arith.constant 0 : index
    %0 = vector.load %arg5[%c0, %c0_0] : memref<1x128xf32, #tpu.memory_space<vmem>>, vector<1x128xf32>
    %1 = vector.shape_cast %0 : vector<1x128xf32> to vector<1x1x128xf32>
    %c0_1 = arith.constant 0 : index
    %c0_2 = arith.constant 0 : index
    %c0_3 = arith.constant 0 : index
    %2 = vector.load %arg1[%c0_1, %c0_2, %c0_3] : memref<8x128x128xbf16, #tpu.memory_space<vmem>>, vector<8x128x128xbf16>
    %3 = arith.extf %2 : vector<8x128x128xbf16> to vector<8x128x128xf32>
    %c0_4 = arith.constant 0 : index
    %c0_5 = arith.constant 0 : index
    %c0_6 = arith.constant 0 : index
    %4 = vector.load %arg2[%c0_4, %c0_5, %c0_6] : memref<8x128x128xbf16, #tpu.memory_space<vmem>>, vector<8x128x128xbf16>
    %5 = arith.extf %4 : vector<8x128x128xbf16> to vector<8x128x128xf32>
    %6 = vector.broadcast %1 : vector<1x1x128xf32> to vector<8x128x128xf32>
    %7 = arith.mulf %5, %6 : vector<8x128x128xf32>
    %8 = arith.truncf %7 : vector<8x128x128xf32> to vector<8x128x128xbf16>
    %c0_7 = arith.constant 0 : index
    %c0_8 = arith.constant 0 : index
    %c0_9 = arith.constant 0 : index
    %9 = vector.load %arg4[%c0_7, %c0_8, %c0_9] : memref<8x128x128xbf16, #tpu.memory_space<vmem>>, vector<8x128x128xbf16>
    %10 = arith.extf %9 : vector<8x128x128xbf16> to vector<8x128x128xf32>
    %11 = vector.broadcast %1 : vector<1x1x128xf32> to vector<8x128x128xf32>
    %12 = arith.mulf %10, %11 : vector<8x128x128xf32>
    %13 = arith.truncf %12 : vector<8x128x128xf32> to vector<8x128x128xbf16>
    %c0_10 = arith.constant 0 : index
    %c0_11 = arith.constant 0 : index
    %c0_12 = arith.constant 0 : index
    %14 = vector.load %arg3[%c0_10, %c0_11, %c0_12] : memref<8x128x128xbf16, #tpu.memory_space<vmem>>, vector<8x128x128xbf16>
    %15 = arith.mulf %3, %7 : vector<8x128x128xf32>
    %cst = arith.constant dense<0.000000e+00> : vector<8x128xf32>
    %16 = vector.multi_reduction <add>, %15, %cst [2] : vector<8x128x128xf32> to vector<8x128xf32>
    %c0_13 = arith.constant 0 : index
    %c0_14 = arith.constant 0 : index
    %17 = vector.load %arg6[%c0_13, %c0_14] : memref<8x128xf32, #tpu.memory_space<vmem>>, vector<8x128xf32>
    tpu.vector_store %arg6[%c0_13, %c0_14], %16 {strides = array<i32>} : memref<8x128xf32, #tpu.memory_space<vmem>>, vector<8x128xf32>,
    %cst_15 = arith.constant dense<0.000000e+00> : vector<8x128x128xf32>
    %18 = tpu.matmul %8, %2, %cst_15 {dimension_numbers = #tpu.dot_dimension_numbers<[2], [2], [1], [1], [0, 0, 0, 1, 1, 1], [0], [0]>} : vector<8x128x128xbf16>, vector<8x128x128xbf16>, vector<8x128x128xf32> -> vector<8x128x128xf32>
    %cst_16 = arith.constant dense<0.000000e+00> : vector<8x128x128xf32>
    %19 = tpu.matmul %8, %14, %cst_16 {dimension_numbers = #tpu.dot_dimension_numbers<[2], [2], [1], [1], [0, 0, 0, 1, 1, 1], [0], [0]>} : vector<8x128x128xbf16>, vector<8x128x128xbf16>, vector<8x128x128xf32> -> vector<8x128x128xf32>
    %cst_17 = arith.constant dense<0.000000e+00> : vector<8x128x128xf32>
    %20 = tpu.matmul %2, %13, %cst_17 {dimension_numbers = #tpu.dot_dimension_numbers<[2], [2], [1], [1], [0, 0, 0, 1, 1, 1], [0], [0]>} : vector<8x128x128xbf16>, vector<8x128x128xbf16>, vector<8x128x128xf32> -> vector<8x128x128xf32>
    %21 = tpu.iota {dimensions = array<i32: 0>} : vector<128x128xi32>
    %22 = tpu.iota {dimensions = array<i32: 1>} : vector<128x128xi32>
    %23 = arith.cmpi eq, %21, %22 : vector<128x128xi32>
    %24 = vector.shape_cast %23 : vector<128x128xi1> to vector<1x128x128xi1>
    %cst_18 = arith.constant -1.000000e+09 : f32
    %25 = vector.shape_cast %24 : vector<1x128x128xi1> to vector<1x128x128xi1>
    %26 = vector.broadcast %25 : vector<1x128x128xi1> to vector<8x128x128xi1>
    %27 = vector.broadcast %cst_18 : f32 to vector<8x128x128xf32>
    %28 = arith.select %26, %27, %18 : vector<8x128x128xi1>, vector<8x128x128xf32>
    %c0_19 = arith.constant 0 : index
    %c0_20 = arith.constant 0 : index
    %c0_21 = arith.constant 0 : index
    %29 = vector.load %arg7[%c0_19, %c0_20, %c0_21] : memref<8x128x256xf32, #tpu.memory_space<vmem>>, vector<8x128x128xf32>
    tpu.vector_store %arg7[%c0_19, %c0_20, %c0_21], %28 {strides = array<i32>} : memref<8x128x256xf32, #tpu.memory_space<vmem>>, vector<8x128x128xf32>,
    %c0_22 = arith.constant 0 : index
    %c0_23 = arith.constant 0 : index
    %c128 = arith.constant 128 : index
    %30 = vector.load %arg7[%c0_22, %c0_23, %c128] : memref<8x128x256xf32, #tpu.memory_space<vmem>>, vector<8x128x128xf32>
    tpu.vector_store %arg7[%c0_22, %c0_23, %c128], %19 {strides = array<i32>} : memref<8x128x256xf32, #tpu.memory_space<vmem>>, vector<8x128x128xf32>,
    %31 = tpu.transpose %28, [0, 2, 1] : vector<8x128x128xf32> -> vector<8x128x128xf32>
    %c0_24 = arith.constant 0 : index
    %c0_25 = arith.constant 0 : index
    %c0_26 = arith.constant 0 : index
    %32 = vector.load %arg8[%c0_24, %c0_25, %c0_26] : memref<8x128x256xf32, #tpu.memory_space<vmem>>, vector<8x128x128xf32>
    tpu.vector_store %arg8[%c0_24, %c0_25, %c0_26], %31 {strides = array<i32>} : memref<8x128x256xf32, #tpu.memory_space<vmem>>, vector<8x128x128xf32>,
    %c0_27 = arith.constant 0 : index
    %c0_28 = arith.constant 0 : index
    %c128_29 = arith.constant 128 : index
    %33 = vector.load %arg8[%c0_27, %c0_28, %c128_29] : memref<8x128x256xf32, #tpu.memory_space<vmem>>, vector<8x128x128xf32>
    tpu.vector_store %arg8[%c0_27, %c0_28, %c128_29], %20 {strides = array<i32>} : memref<8x128x256xf32, #tpu.memory_space<vmem>>, vector<8x128x128xf32>,
    return
  }
  func.func @transform_0(%arg0: i32) -> (i32, i32, i32) {
    %c0_i32 = arith.constant 0 : i32
    %c0_i32_0 = arith.constant 0 : i32
    %c0_i32_1 = arith.constant 0 : i32
    return %arg0, %c0_i32, %c0_i32_0 : i32, i32, i32
  }
  func.func @transform_1(%arg0: i32) -> (i32, i32, i32) {
    %c0_i32 = arith.constant 0 : i32
    %c0_i32_0 = arith.constant 0 : i32
    %c0_i32_1 = arith.constant 0 : i32
    return %arg0, %c0_i32, %c0_i32_0 : i32, i32, i32
  }
  func.func @transform_2(%arg0: i32) -> (i32, i32, i32) {
    %c0_i32 = arith.constant 0 : i32
    %c0_i32_0 = arith.constant 0 : i32
    %c0_i32_1 = arith.constant 0 : i32
    return %arg0, %c0_i32, %c0_i32_0 : i32, i32, i32
  }
  func.func @transform_3(%arg0: i32) -> (i32, i32, i32) {
    %c0_i32 = arith.constant 0 : i32
    %c0_i32_0 = arith.constant 0 : i32
    %c0_i32_1 = arith.constant 0 : i32
    return %arg0, %c0_i32, %c0_i32_0 : i32, i32, i32
  }
  func.func @transform_4(%arg0: i32) -> (i32, i32) {
    %c0_i32 = arith.constant 0 : i32
    %c0_i32_0 = arith.constant 0 : i32
    %c0_i32_1 = arith.constant 0 : i32
    return %c0_i32, %c0_i32_0 : i32, i32
  }
  func.func @transform_5(%arg0: i32) -> (i32, i32) {
    %c0_i32 = arith.constant 0 : i32
    %c0_i32_0 = arith.constant 0 : i32
    return %arg0, %c0_i32 : i32, i32
  }
  func.func @transform_6(%arg0: i32) -> (i32, i32, i32) {
    %c0_i32 = arith.constant 0 : i32
    %c0_i32_0 = arith.constant 0 : i32
    %c0_i32_1 = arith.constant 0 : i32
    return %arg0, %c0_i32, %c0_i32_0 : i32, i32, i32
  }
  func.func @transform_7(%arg0: i32) -> (i32, i32, i32) {
    %c0_i32 = arith.constant 0 : i32
    %c0_i32_0 = arith.constant 0 : i32
    %c0_i32_1 = arith.constant 0 : i32
    return %arg0, %c0_i32, %c0_i32_0 : i32, i32, i32
  }
}

</mosaic_0001>

<llo_original>
// kernel: multi_relation_embedder_forward.1
$region0: #{multi_relation_embedder_forward.1}
  #allocation0 [shape = 'u32[]', space=smem, size = 0x4, offset = 0x4, fixed_abs, tag = 'smem constant byte address 0x4 - core index']
  #allocation1 [shape = 'u32[144,128]{1,0:T(1,128)}', space=vmem, size = 0x12000, scoped, tag = 'internal scratch']
  %s0 = inlined_call_operand.vmem [shape: bf16[32,128,128], index: 0, kind: input, shape index: {}]
  %s1 = inlined_call_operand.vmem [shape: bf16[32,128,128], index: 1, kind: input, shape index: {}]
  %s2 = inlined_call_operand.vmem [shape: bf16[32,128,128], index: 2, kind: input, shape index: {}]
  %s3 = inlined_call_operand.vmem [shape: bf16[32,128,128], index: 3, kind: input, shape index: {}]
  %s4 = inlined_call_operand.vmem [shape: f32[1,128], index: 4, kind: input, shape index: {}]
  %s5 = inlined_call_operand.vmem [shape: f32[32,128], index: 5, kind: output, shape index: {0}]
  %s6 = inlined_call_operand.hbm [shape: f32[32,128,256], index: 6, kind: output, shape index: {1}]
  %s7 = inlined_call_operand.hbm [shape: f32[32,128,256], index: 7, kind: output, shape index: {2}]
  %8 = xla_tuple %s5, %s6, %s7
  %s9 = sld [smem:[#allocation0]]
  $region69: #{multi_relation_embedder_forward.1} parent=0
    _
  %s11 = ssub.s32 1, %s9
  %s12 = scalar_select 0, %s11, %s9
  $region1: #{multi_relation_embedder_forward.1} parent=0
    #allocation2 [shape = 'u8[2097152]{0}', space=vmem, size = 0x200000, scoped, tag = 'output window, operand 1']
    #allocation3 [shape = 's32[2]{0}', space=sflag, size = 0x8, scoped, tag = 'scoped memory for multi_relation_embedder_forward.1']
    #allocation4 [shape = 'u8[2097152]{0}', space=vmem, size = 0x200000, scoped, tag = 'output window, operand 2']
    #allocation5 [shape = 's32[2]{0}', space=sflag, size = 0x8, scoped, tag = 'scoped memory for multi_relation_embedder_forward.1']
    %13 = vsyncpa [#allocation3], 0
    %s14 = scalar_lea.sflag [#allocation3], 1
    %15 = vsyncpa %s14, 0
    %16 = vsyncpa [#allocation5], 0
    %s17 = scalar_lea.sflag [#allocation5], 1
    %18 = vsyncpa %s17, 0
    loop: start=0, step=1, limit=6
    $region2: #{multi_relation_embedder_forward.1} parent=1 // loop_pre_header
      _
    $region3: #{multi_relation_embedder_forward.1} parent=1 // loop_header
      %s20 = sphi 0, %s24
      %p21 = scmp.ge.s32.totalorder %s20, 6
      %s30 = sphi 0, %s32
      %s33 = sphi 0, %s30
      %s34 = sphi 0, %s33
      %s50 = sphi 0, %s34
      %s56 = sphi 0, %s58
      %s59 = sphi 0, %s56
      %s60 = sphi 0, %s59
      %s76 = sphi 0, %s60
      %s82 = sphi 0, %s84
      %s85 = sphi 0, %s82
      %s86 = sphi 0, %s85
      %s102 = sphi 0, %s86
      %s108 = sphi 0, %s110
      %s111 = sphi 0, %s108
      %s112 = sphi 0, %s111
      %s128 = sphi 0, %s112
      %s132 = sphi 0, %s132
      %s134 = sphi 0, %s132
      %s135 = sphi 0, %s134
      %s149 = sphi 0, %s135
      %s155 = sphi 0, %s157
      %s158 = sphi 0, %s155
      %s159 = sphi 0, %s158
      %s175 = sphi 0, %s159
      %s181 = sphi 0, %s183
      %s184 = sphi 0, %s181
      %s185 = sphi 0, %s184
      %s201 = sphi 0, %s185
      %s207 = sphi 0, %s209
      %s210 = sphi 0, %s207
      %s211 = sphi 0, %s210
      %s227 = sphi 0, %s211
    $region4: #{multi_relation_embedder_forward.1} parent=1 // loop_header_branch
      %23 = sbr.rel (%p21) target = $region8
    $region5: #{multi_relation_embedder_forward.1} parent=1 // loop_body
      %s25 = ssub.s32 %s20, 1
      %s26 = ssub.s32 %s20, 2
      %s27 = sadd.s32 %s20, 1
      %s28 = ssub.s32 %s20, %s27
      %p29 = scmp.eq.s32.totalorder %s28, 0
      %s31 = sadd.s32 %s30, 1
      %s32 = scalar_select %p29, %s30, %s31
      %p35 = pneg %p29
      %p36 = scmp.eq.s32.totalorder %s20, 3
      %p37 = por %p35, %p36
      %p38 = scmp.ne.s32.totalorder %s30, %s33
      %p39 = scmp.eq.s32.totalorder %s20, 0
      %p40 = por %p38, %p39
      %p41 = scmp.ne.s32.totalorder %s30, %s33
      %p42 = scmp.eq.s32.totalorder %s25, 3
      %p43 = por %p41, %p42
      %p44 = scmp.ne.s32.totalorder %s33, %s34
      %p45 = scmp.eq.s32.totalorder %s25, 0
      %p46 = por %p44, %p45
      %p47 = scmp.ne.s32.totalorder %s33, %s34
      %p48 = scmp.eq.s32.totalorder %s26, 3
      %p49 = por %p47, %p48
      %p51 = scmp.ne.s32.totalorder %s34, %s50
      %p52 = scmp.eq.s32.totalorder %s26, 0
      %p53 = por %p51, %p52
      %s54 = ssub.s32 %s20, %s27
      %p55 = scmp.eq.s32.totalorder %s54, 0
      %s57 = sadd.s32 %s56, 1
      %s58 = scalar_select %p55, %s56, %s57
      %p61 = pneg %p55
      %p62 = scmp.eq.s32.totalorder %s20, 3
      %p63 = por %p61, %p62
      %p64 = scmp.ne.s32.totalorder %s56, %s59
      %p65 = scmp.eq.s32.totalorder %s20, 0
      %p66 = por %p64, %p65
      %p67 = scmp.ne.s32.totalorder %s56, %s59
      %p68 = scmp.eq.s32.totalorder %s25, 3
      %p69 = por %p67, %p68
      %p70 = scmp.ne.s32.totalorder %s59, %s60
      %p71 = scmp.eq.s32.totalorder %s25, 0
      %p72 = por %p70, %p71
      %p73 = scmp.ne.s32.totalorder %s59, %s60
      %p74 = scmp.eq.s32.totalorder %s26, 3
      %p75 = por %p73, %p74
      %p77 = scmp.ne.s32.totalorder %s60, %s76
      %p78 = scmp.eq.s32.totalorder %s26, 0
      %p79 = por %p77, %p78
      %s80 = ssub.s32 %s20, %s27
      %p81 = scmp.eq.s32.totalorder %s80, 0
      %s83 = sadd.s32 %s82, 1
      %s84 = scalar_select %p81, %s82, %s83
      %p87 = pneg %p81
      %p88 = scmp.eq.s32.totalorder %s20, 3
      %p89 = por %p87, %p88
      %p90 = scmp.ne.s32.totalorder %s82, %s85
      %p91 = scmp.eq.s32.totalorder %s20, 0
      %p92 = por %p90, %p91
      %p93 = scmp.ne.s32.totalorder %s82, %s85
      %p94 = scmp.eq.s32.totalorder %s25, 3
      %p95 = por %p93, %p94
      %p96 = scmp.ne.s32.totalorder %s85, %s86
      %p97 = scmp.eq.s32.totalorder %s25, 0
      %p98 = por %p96, %p97
      %p99 = scmp.ne.s32.totalorder %s85, %s86
      %p100 = scmp.eq.s32.totalorder %s26, 3
      %p101 = por %p99, %p100
      %p103 = scmp.ne.s32.totalorder %s86, %s102
      %p104 = scmp.eq.s32.totalorder %s26, 0
      %p105 = por %p103, %p104
      %s106 = ssub.s32 %s20, %s27
      %p107 = scmp.eq.s32.totalorder %s106, 0
      %s109 = sadd.s32 %s108, 1
      %s110 = scalar_select %p107, %s108, %s109
      %p113 = pneg %p107
      %p114 = scmp.eq.s32.totalorder %s20, 3
      %p115 = por %p113, %p114
      %p116 = scmp.ne.s32.totalorder %s108, %s111
      %p117 = scmp.eq.s32.totalorder %s20, 0
      %p118 = por %p116, %p117
      %p119 = scmp.ne.s32.totalorder %s108, %s111
      %p120 = scmp.eq.s32.totalorder %s25, 3
      %p121 = por %p119, %p120
      %p122 = scmp.ne.s32.totalorder %s111, %s112
      %p123 = scmp.eq.s32.totalorder %s25, 0
      %p124 = por %p122, %p123
      %p125 = scmp.ne.s32.totalorder %s111, %s112
      %p126 = scmp.eq.s32.totalorder %s26, 3
      %p127 = por %p125, %p126
      %p129 = scmp.ne.s32.totalorder %s112, %s128
      %p130 = scmp.eq.s32.totalorder %s26, 0
      %p131 = por %p129, %p130
      %s133 = sadd.s32 %s132, 1
      %p136 = scmp.eq.s32.totalorder %s20, 3
      %p137 = scmp.ne.s32.totalorder %s132, %s134
      %p138 = scmp.eq.s32.totalorder %s20, 0
      %p139 = por %p137, %p138
      %p140 = scmp.ne.s32.totalorder %s132, %s134
      %p141 = scmp.eq.s32.totalorder %s25, 3
      %p142 = por %p140, %p141
      %p143 = scmp.ne.s32.totalorder %s134, %s135
      %p144 = scmp.eq.s32.totalorder %s25, 0
      %p145 = por %p143, %p144
      %p146 = scmp.ne.s32.totalorder %s134, %s135
      %p147 = scmp.eq.s32.totalorder %s26, 3
      %p148 = por %p146, %p147
      %p150 = scmp.ne.s32.totalorder %s135, %s149
      %p151 = scmp.eq.s32.totalorder %s26, 0
      %p152 = por %p150, %p151
      %s153 = ssub.s32 %s20, %s27
      %p154 = scmp.eq.s32.totalorder %s153, 0
      %s156 = sadd.s32 %s155, 1
      %s157 = scalar_select %p154, %s155, %s156
      %p160 = pneg %p154
      %p161 = scmp.eq.s32.totalorder %s20, 3
      %p162 = por %p160, %p161
      %p163 = scmp.ne.s32.totalorder %s155, %s158
      %p164 = scmp.eq.s32.totalorder %s20, 0
      %p165 = por %p163, %p164
      %p166 = scmp.ne.s32.totalorder %s155, %s158
      %p167 = scmp.eq.s32.totalorder %s25, 3
      %p168 = por %p166, %p167
      %p169 = scmp.ne.s32.totalorder %s158, %s159
      %p170 = scmp.eq.s32.totalorder %s25, 0
      %p171 = por %p169, %p170
      %p172 = scmp.ne.s32.totalorder %s158, %s159
      %p173 = scmp.eq.s32.totalorder %s26, 3
      %p174 = por %p172, %p173
      %p176 = scmp.ne.s32.totalorder %s159, %s175
      %p177 = scmp.eq.s32.totalorder %s26, 0
      %p178 = por %p176, %p177
      %s179 = ssub.s32 %s20, %s27
      %p180 = scmp.eq.s32.totalorder %s179, 0
      %s182 = sadd.s32 %s181, 1
      %s183 = scalar_select %p180, %s181, %s182
      %p186 = pneg %p180
      %p187 = scmp.eq.s32.totalorder %s20, 3
      %p188 = por %p186, %p187
      %p189 = scmp.ne.s32.totalorder %s181, %s184
      %p190 = scmp.eq.s32.totalorder %s20, 0
      %p191 = por %p189, %p190
      %p192 = scmp.ne.s32.totalorder %s181, %s184
      %p193 = scmp.eq.s32.totalorder %s25, 3
      %p194 = por %p192, %p193
      %p195 = scmp.ne.s32.totalorder %s184, %s185
      %p196 = scmp.eq.s32.totalorder %s25, 0
      %p197 = por %p195, %p196
      %p198 = scmp.ne.s32.totalorder %s184, %s185
      %p199 = scmp.eq.s32.totalorder %s26, 3
      %p200 = por %p198, %p199
      %p202 = scmp.ne.s32.totalorder %s185, %s201
      %p203 = scmp.eq.s32.totalorder %s26, 0
      %p204 = por %p202, %p203
      %s205 = ssub.s32 %s20, %s27
      %p206 = scmp.eq.s32.totalorder %s205, 0
      %s208 = sadd.s32 %s207, 1
      %s209 = scalar_select %p206, %s207, %s208
      %p212 = pneg %p206
      %p213 = scmp.eq.s32.totalorder %s20, 3
      %p214 = por %p212, %p213
      %p215 = scmp.ne.s32.totalorder %s207, %s210
      %p216 = scmp.eq.s32.totalorder %s20, 0
      %p217 = por %p215, %p216
      %p218 = scmp.ne.s32.totalorder %s207, %s210
      %p219 = scmp.eq.s32.totalorder %s25, 3
      %p220 = por %p218, %p219
      %p221 = scmp.ne.s32.totalorder %s210, %s211
      %p222 = scmp.eq.s32.totalorder %s25, 0
      %p223 = por %p221, %p222
      %p224 = scmp.ne.s32.totalorder %s210, %s211
      %p225 = scmp.eq.s32.totalorder %s26, 3
      %p226 = por %p224, %p225
      %p228 = scmp.ne.s32.totalorder %s211, %s227
      %p229 = scmp.eq.s32.totalorder %s26, 0
      %p230 = por %p228, %p229
      %p231 = scmp.le.s32.totalorder 1, %s20
      %p232 = scmp.lt.s32.totalorder %s20, 5
      %p233 = pnand %p231, %p232
      %p234 = pneg %p233
      // Predicated region
      $region9: #{multi_relation_embedder_forward.1} parent=5 // pred_check
        _
      $region10: #{multi_relation_embedder_forward.1} parent=5 // pred_check_branch
        %236 = sbr.rel (%p233) target = $region12
      $region11: #{multi_relation_embedder_forward.1} parent=5 // pred_region
        %s237 = ssub.s32 %s20, 1
        // Predicated region
        $region13: #{multi_relation_embedder_forward.1} parent=11 // pred_check
          %p238 = pneg %p145
        $region14: #{multi_relation_embedder_forward.1} parent=11 // pred_check_branch
          %240 = sbr.rel (%p238) target = $region16
        $region15: #{multi_relation_embedder_forward.1} parent=11 // pred_region
          _
        $region16: #{multi_relation_embedder_forward.1} parent=11 // pred_fallthru
          _
      $region12: #{multi_relation_embedder_forward.1} parent=5 // pred_fallthru
        _
      %p241 = scmp.lt.s32.totalorder %s20, 4
      // Predicated region
      $region17: #{multi_relation_embedder_forward.1} parent=5 // pred_check
        %p242 = pneg %p241
      $region18: #{multi_relation_embedder_forward.1} parent=5 // pred_check_branch
        %244 = sbr.rel (%p242) target = $region20
      $region19: #{multi_relation_embedder_forward.1} parent=5 // pred_region
        // Predicated region
        $region21: #{multi_relation_embedder_forward.1} parent=19 // pred_check
          %p245 = pneg %p40
        $region22: #{multi_relation_embedder_forward.1} parent=19 // pred_check_branch
          %247 = sbr.rel (%p245) target = $region24
        $region23: #{multi_relation_embedder_forward.1} parent=19 // pred_region
          %s248 = smul.u32 8, %s20
          %p249 = scmp.lt.s32.totalorder %s248, 31
          %s250 = scalar_select %p249, %s248, 31
          %s251 = smul.addr %s250, 16
          %s252 = smul.addr %s251, 4
          %s253 = scalar_lea.vmem %s0, %s252
          %s254 = smul.u32 8, %s20
        $region24: #{multi_relation_embedder_forward.1} parent=19 // pred_fallthru
          _
        // Predicated region
        $region25: #{multi_relation_embedder_forward.1} parent=19 // pred_check
          %p255 = pneg %p66
        $region26: #{multi_relation_embedder_forward.1} parent=19 // pred_check_branch
          %257 = sbr.rel (%p255) target = $region28
        $region27: #{multi_relation_embedder_forward.1} parent=19 // pred_region
          %s258 = smul.u32 8, %s20
          %p259 = scmp.lt.s32.totalorder %s258, 31
          %s260 = scalar_select %p259, %s258, 31
          %s261 = smul.addr %s260, 16
          %s262 = smul.addr %s261, 4
          %s263 = scalar_lea.vmem %s1, %s262
          %s264 = smul.u32 8, %s20
        $region28: #{multi_relation_embedder_forward.1} parent=19 // pred_fallthru
          _
        // Predicated region
        $region29: #{multi_relation_embedder_forward.1} parent=19 // pred_check
          %p265 = pneg %p92
        $region30: #{multi_relation_embedder_forward.1} parent=19 // pred_check_branch
          %267 = sbr.rel (%p265) target = $region32
        $region31: #{multi_relation_embedder_forward.1} parent=19 // pred_region
          %s268 = smul.u32 8, %s20
          %p269 = scmp.lt.s32.totalorder %s268, 31
          %s270 = scalar_select %p269, %s268, 31
          %s271 = smul.addr %s270, 16
          %s272 = smul.addr %s271, 4
          %s273 = scalar_lea.vmem %s2, %s272
          %s274 = smul.u32 8, %s20
        $region32: #{multi_relation_embedder_forward.1} parent=19 // pred_fallthru
          _
        // Predicated region
        $region33: #{multi_relation_embedder_forward.1} parent=19 // pred_check
          %p275 = pneg %p118
        $region34: #{multi_relation_embedder_forward.1} parent=19 // pred_check_branch
          %277 = sbr.rel (%p275) target = $region36
        $region35: #{multi_relation_embedder_forward.1} parent=19 // pred_region
          %s278 = smul.u32 8, %s20
          %p279 = scmp.lt.s32.totalorder %s278, 31
          %s280 = scalar_select %p279, %s278, 31
          %s281 = smul.addr %s280, 16
          %s282 = smul.addr %s281, 4
          %s283 = scalar_lea.vmem %s3, %s282
          %s284 = smul.u32 8, %s20
        $region36: #{multi_relation_embedder_forward.1} parent=19 // pred_fallthru
          _
      $region20: #{multi_relation_embedder_forward.1} parent=5 // pred_fallthru
        _
      %p285 = scmp.le.s32.totalorder 1, %s20
      %p286 = scmp.lt.s32.totalorder %s20, 5
      %p287 = pnand %p285, %p286
      %p288 = pneg %p287
      // Predicated region
      $region37: #{multi_relation_embedder_forward.1} parent=5 // pred_check
        _
      $region38: #{multi_relation_embedder_forward.1} parent=5 // pred_check_branch
        %290 = sbr.rel (%p287) target = $region40
      $region39: #{multi_relation_embedder_forward.1} parent=5 // pred_region
        %s291 = ssub.s32 %s20, 1
        %s292 = smul.u32 8, %s25
        %p293 = scmp.lt.s32.totalorder %s292, 31
        %s294 = scalar_select %p293, %s292, 31
        %s295 = smul.addr %s294, 16
        %s296 = smul.addr %s295, 4
        %s297 = scalar_lea.vmem %s0, %s296
        %p298 = pneg %p46
        %p299 = pneg %p43
        %s300 = smul.u32 8, %s25
        %p301 = scmp.lt.s32.totalorder %s300, 31
        %s302 = scalar_select %p301, %s300, 31
        %s303 = smul.addr %s302, 16
        %s304 = smul.addr %s303, 4
        %s305 = scalar_lea.vmem %s1, %s304
        %p306 = pneg %p72
        %p307 = pneg %p69
        %s308 = smul.u32 8, %s25
        %p309 = scmp.lt.s32.totalorder %s308, 31
        %s310 = scalar_select %p309, %s308, 31
        %s311 = smul.addr %s310, 16
        %s312 = smul.addr %s311, 4
        %s313 = scalar_lea.vmem %s2, %s312
        %p314 = pneg %p98
        %p315 = pneg %p95
        %s316 = smul.u32 8, %s25
        %p317 = scmp.lt.s32.totalorder %s316, 31
        %s318 = scalar_select %p317, %s316, 31
        %s319 = smul.addr %s318, 16
        %s320 = smul.addr %s319, 4
        %s321 = scalar_lea.vmem %s3, %s320
        %p322 = pneg %p124
        %p323 = pneg %p121
        %p324 = pneg %p145
        %p325 = pneg %p142
        %p326 = pneg %p171
        %p327 = pneg %p168
        %p328 = scmp.lt.s32.totalorder %s25, 3
        %s329 = scalar_select %p328, %s25, 3
        %s330 = smul.addr %s329, 8
        %s331 = scalar_lea.vmem %s5, %s330
        %p332 = pneg %p197
        %p333 = pneg %p194
        %s334 = sand.u32 %s184, 1
        %s335 = scalar_lea.sflag [#allocation3], %s334
        %s336 = sand.u32 %s184, 1
        %s337 = smul.addr %s336, 2048
        %s338 = scalar_lea.vmem [#allocation2], %s337
        %p339 = pneg %p223
        %p340 = pneg %p220
        %s341 = sand.u32 %s210, 1
        %s342 = scalar_lea.sflag [#allocation5], %s341
        %s343 = sand.u32 %s210, 1
        %s344 = smul.addr %s343, 2048
        %s345 = scalar_lea.vmem [#allocation4], %s344
        %s346 = smul.u32 8, %s25
        %p347 = scmp.lt.s32.totalorder %s346, 31
        %s348 = scalar_select %p347, %s346, 31
        %s349 = smul.addr %s348, 16
        %s350 = smul.addr %s349, 4
        %s351 = scalar_lea.vmem %s0, %s350
        %s352 = smul.u32 8, %s25
        %s353 = smul.u32 8, %s25
        %p354 = scmp.lt.s32.totalorder %s353, 31
        %s355 = scalar_select %p354, %s353, 31
        %s356 = smul.addr %s355, 16
        %s357 = smul.addr %s356, 4
        %s358 = scalar_lea.vmem %s1, %s357
        %s359 = smul.u32 8, %s25
        %s360 = smul.u32 8, %s25
        %p361 = scmp.lt.s32.totalorder %s360, 31
        %s362 = scalar_select %p361, %s360, 31
        %s363 = smul.addr %s362, 16
        %s364 = smul.addr %s363, 4
        %s365 = scalar_lea.vmem %s2, %s364
        %s366 = smul.u32 8, %s25
        %s367 = smul.u32 8, %s25
        %p368 = scmp.lt.s32.totalorder %s367, 31
        %s369 = scalar_select %p368, %s367, 31
        %s370 = smul.addr %s369, 16
        %s371 = smul.addr %s370, 4
        %s372 = scalar_lea.vmem %s3, %s371
        %s373 = smul.u32 8, %s25
        %p374 = scmp.lt.s32.totalorder %s25, 3
        %s375 = scalar_select %p374, %s25, 3
        %s376 = smul.addr %s375, 8
        %s377 = scalar_lea.vmem %s5, %s376
        %s378 = smul.u32 8, %s25
        %s379 = smul.u32 8, %s25
        %v381 = vld [vmem:[%s4] sm:$0x1]
        %v382 = vld [vmem:[%s351] sm:$0xf]
        %v383 = vld [vmem:[%s351 + $0x4] sm:$0xf]
        %v384 = vld [vmem:[%s351 + $0x8] sm:$0xf]
        %v385 = vld [vmem:[%s351 + $0xc] sm:$0xf]
        %v386 = vld [vmem:[%s351 + $0x10] sm:$0xf]
        %v387 = vld [vmem:[%s351 + $0x14] sm:$0xf]
        %v388 = vld [vmem:[%s351 + $0x18] sm:$0xf]
        %v389 = vld [vmem:[%s351 + $0x1c] sm:$0xf]
        %v390 = vld [vmem:[%s351 + $0x20] sm:$0xf]
        %v391 = vld [vmem:[%s351 + $0x24] sm:$0xf]
        %v392 = vld [vmem:[%s351 + $0x28] sm:$0xf]
        %v393 = vld [vmem:[%s351 + $0x2c] sm:$0xf]
        %v394 = vld [vmem:[%s351 + $0x30] sm:$0xf]
        %v395 = vld [vmem:[%s351 + $0x34] sm:$0xf]
        %v396 = vld [vmem:[%s351 + $0x38] sm:$0xf]
        %v397 = vld [vmem:[%s351 + $0x3c] sm:$0xf]
        %v398 = vld [vmem:[%s351 + $0x40] sm:$0xf]
        %v399 = vld [vmem:[%s351 + $0x44] sm:$0xf]
        %v400 = vld [vmem:[%s351 + $0x48] sm:$0xf]
        %v401 = vld [vmem:[%s351 + $0x4c] sm:$0xf]
        %v402 = vld [vmem:[%s351 + $0x50] sm:$0xf]
        %v403 = vld [vmem:[%s351 + $0x54] sm:$0xf]
        %v404 = vld [vmem:[%s351 + $0x58] sm:$0xf]
        %v405 = vld [vmem:[%s351 + $0x5c] sm:$0xf]
        %v406 = vld [vmem:[%s351 + $0x60] sm:$0xf]
        %v407 = vld [vmem:[%s351 + $0x64] sm:$0xf]
        %v408 = vld [vmem:[%s351 + $0x68] sm:$0xf]
        %v409 = vld [vmem:[%s351 + $0x6c] sm:$0xf]
        %v410 = vld [vmem:[%s351 + $0x70] sm:$0xf]
        %v411 = vld [vmem:[%s351 + $0x74] sm:$0xf]
        %v412 = vld [vmem:[%s351 + $0x78] sm:$0xf]
        %v413 = vld [vmem:[%s351 + $0x7c] sm:$0xf]
        %v414 = vld [vmem:[%s351 + $0x80] sm:$0xf]
        %v415 = vld [vmem:[%s351 + $0x84] sm:$0xf]
        %v416 = vld [vmem:[%s351 + $0x88] sm:$0xf]
        %v417 = vld [vmem:[%s351 + $0x8c] sm:$0xf]
        %v418 = vld [vmem:[%s351 + $0x90] sm:$0xf]
        %v419 = vld [vmem:[%s351 + $0x94] sm:$0xf]
        %v420 = vld [vmem:[%s351 + $0x98] sm:$0xf]
        %v421 = vld [vmem:[%s351 + $0x9c] sm:$0xf]
        %v422 = vld [vmem:[%s351 + $0xa0] sm:$0xf]
        %v423 = vld [vmem:[%s351 + $0xa4] sm:$0xf]
        %v424 = vld [vmem:[%s351 + $0xa8] sm:$0xf]
        %v425 = vld [vmem:[%s351 + $0xac] sm:$0xf]
        %v426 = vld [vmem:[%s351 + $0xb0] sm:$0xf]
        %v427 = vld [vmem:[%s351 + $0xb4] sm:$0xf]
        %v428 = vld [vmem:[%s351 + $0xb8] sm:$0xf]
        %v429 = vld [vmem:[%s351 + $0xbc] sm:$0xf]
        %v430 = vld [vmem:[%s351 + $0xc0] sm:$0xf]
        %v431 = vld [vmem:[%s351 + $0xc4] sm:$0xf]
        %v432 = vld [vmem:[%s351 + $0xc8] sm:$0xf]
        %v433 = vld [vmem:[%s351 + $0xcc] sm:$0xf]
        %v434 = vld [vmem:[%s351 + $0xd0] sm:$0xf]
        %v435 = vld [vmem:[%s351 + $0xd4] sm:$0xf]
        %v436 = vld [vmem:[%s351 + $0xd8] sm:$0xf]
        %v437 = vld [vmem:[%s351 + $0xdc] sm:$0xf]
        %v438 = vld [vmem:[%s351 + $0xe0] sm:$0xf]
        %v439 = vld [vmem:[%s351 + $0xe4] sm:$0xf]
        %v440 = vld [vmem:[%s351 + $0xe8] sm:$0xf]
        %v441 = vld [vmem:[%s351 + $0xec] sm:$0xf]
        %v442 = vld [vmem:[%s351 + $0xf0] sm:$0xf]
        %v443 = vld [vmem:[%s351 + $0xf4] sm:$0xf]
        %v444 = vld [vmem:[%s351 + $0xf8] sm:$0xf]
        %v445 = vld [vmem:[%s351 + $0xfc] sm:$0xf]
        %v446 = vld [vmem:[%s351 + $0x100] sm:$0xf]
        %v447 = vld [vmem:[%s351 + $0x104] sm:$0xf]
        %v448 = vld [vmem:[%s351 + $0x108] sm:$0xf]
        %v449 = vld [vmem:[%s351 + $0x10c] sm:$0xf]
        %v450 = vld [vmem:[%s351 + $0x110] sm:$0xf]
        %v451 = vld [vmem:[%s351 + $0x114] sm:$0xf]
        %v452 = vld [vmem:[%s351 + $0x118] sm:$0xf]
        %v453 = vld [vmem:[%s351 + $0x11c] sm:$0xf]
        %v454 = vld [vmem:[%s351 + $0x120] sm:$0xf]
        %v455 = vld [vmem:[%s351 + $0x124] sm:$0xf]
        %v456 = vld [vmem:[%s351 + $0x128] sm:$0xf]
        %v457 = vld [vmem:[%s351 + $0x12c] sm:$0xf]
        %v458 = vld [vmem:[%s351 + $0x130] sm:$0xf]
        %v459 = vld [vmem:[%s351 + $0x134] sm:$0xf]
        %v460 = vld [vmem:[%s351 + $0x138] sm:$0xf]
        %v461 = vld [vmem:[%s351 + $0x13c] sm:$0xf]
        %v462 = vld [vmem:[%s351 + $0x140] sm:$0xf]
        %v463 = vld [vmem:[%s351 + $0x144] sm:$0xf]
        %v464 = vld [vmem:[%s351 + $0x148] sm:$0xf]
        %v465 = vld [vmem:[%s351 + $0x14c] sm:$0xf]
        %v466 = vld [vmem:[%s351 + $0x150] sm:$0xf]
        %v467 = vld [vmem:[%s351 + $0x154] sm:$0xf]
        %v468 = vld [vmem:[%s351 + $0x158] sm:$0xf]
        %v469 = vld [vmem:[%s351 + $0x15c] sm:$0xf]
        %v470 = vld [vmem:[%s351 + $0x160] sm:$0xf]
        %v471 = vld [vmem:[%s351 + $0x164] sm:$0xf]
        %v472 = vld [vmem:[%s351 + $0x168] sm:$0xf]
        %v473 = vld [vmem:[%s351 + $0x16c] sm:$0xf]
        %v474 = vld [vmem:[%s351 + $0x170] sm:$0xf]
        %v475 = vld [vmem:[%s351 + $0x174] sm:$0xf]
        %v476 = vld [vmem:[%s351 + $0x178] sm:$0xf]
        %v477 = vld [vmem:[%s351 + $0x17c] sm:$0xf]
        %v478 = vld [vmem:[%s351 + $0x180] sm:$0xf]
        %v479 = vld [vmem:[%s351 + $0x184] sm:$0xf]
        %v480 = vld [vmem:[%s351 + $0x188] sm:$0xf]
        %v481 = vld [vmem:[%s351 + $0x18c] sm:$0xf]
        %v482 = vld [vmem:[%s351 + $0x190] sm:$0xf]
        %v483 = vld [vmem:[%s351 + $0x194] sm:$0xf]
        %v484 = vld [vmem:[%s351 + $0x198] sm:$0xf]
        %v485 = vld [vmem:[%s351 + $0x19c] sm:$0xf]
        %v486 = vld [vmem:[%s351 + $0x1a0] sm:$0xf]
        %v487 = vld [vmem:[%s351 + $0x1a4] sm:$0xf]
        %v488 = vld [vmem:[%s351 + $0x1a8] sm:$0xf]
        %v489 = vld [vmem:[%s351 + $0x1ac] sm:$0xf]
        %v490 = vld [vmem:[%s351 + $0x1b0] sm:$0xf]
        %v491 = vld [vmem:[%s351 + $0x1b4] sm:$0xf]
        %v492 = vld [vmem:[%s351 + $0x1b8] sm:$0xf]
        %v493 = vld [vmem:[%s351 + $0x1bc] sm:$0xf]
        %v494 = vld [vmem:[%s351 + $0x1c0] sm:$0xf]
        %v495 = vld [vmem:[%s351 + $0x1c4] sm:$0xf]
        %v496 = vld [vmem:[%s351 + $0x1c8] sm:$0xf]
        %v497 = vld [vmem:[%s351 + $0x1cc] sm:$0xf]
        %v498 = vld [vmem:[%s351 + $0x1d0] sm:$0xf]
        %v499 = vld [vmem:[%s351 + $0x1d4] sm:$0xf]
        %v500 = vld [vmem:[%s351 + $0x1d8] sm:$0xf]
        %v501 = vld [vmem:[%s351 + $0x1dc] sm:$0xf]
        %v502 = vld [vmem:[%s351 + $0x1e0] sm:$0xf]
        %v503 = vld [vmem:[%s351 + $0x1e4] sm:$0xf]
        %v504 = vld [vmem:[%s351 + $0x1e8] sm:$0xf]
        %v505 = vld [vmem:[%s351 + $0x1ec] sm:$0xf]
        %v506 = vld [vmem:[%s351 + $0x1f0] sm:$0xf]
        %v507 = vld [vmem:[%s351 + $0x1f4] sm:$0xf]
        %v508 = vld [vmem:[%s351 + $0x1f8] sm:$0xf]
        %v509 = vld [vmem:[%s351 + $0x1fc] sm:$0xf]
        %v510 = vunpack.c.l.bf16 %v382
        %v511 = vunpack.c.l.bf16 %v383
        %v512 = vunpack.c.l.bf16 %v384
        %v513 = vunpack.c.l.bf16 %v385
        %v514 = vunpack.c.l.bf16 %v386
        %v515 = vunpack.c.l.bf16 %v387
        %v516 = vunpack.c.l.bf16 %v388
        %v517 = vunpack.c.l.bf16 %v389
        %v518 = vunpack.c.l.bf16 %v390
        %v519 = vunpack.c.l.bf16 %v391
        %v520 = vunpack.c.l.bf16 %v392
        %v521 = vunpack.c.l.bf16 %v393
        %v522 = vunpack.c.l.bf16 %v394
        %v523 = vunpack.c.l.bf16 %v395
        %v524 = vunpack.c.l.bf16 %v396
        %v525 = vunpack.c.l.bf16 %v397
        %v526 = vunpack.c.l.bf16 %v398
        %v527 = vunpack.c.l.bf16 %v399
        %v528 = vunpack.c.l.bf16 %v400
        %v529 = vunpack.c.l.bf16 %v401
        %v530 = vunpack.c.l.bf16 %v402
        %v531 = vunpack.c.l.bf16 %v403
        %v532 = vunpack.c.l.bf16 %v404
        %v533 = vunpack.c.l.bf16 %v405
        %v534 = vunpack.c.l.bf16 %v406
        %v535 = vunpack.c.l.bf16 %v407
        %v536 = vunpack.c.l.bf16 %v408
        %v537 = vunpack.c.l.bf16 %v409
        %v538 = vunpack.c.l.bf16 %v410
        %v539 = vunpack.c.l.bf16 %v411
        %v540 = vunpack.c.l.bf16 %v412
        %v541 = vunpack.c.l.bf16 %v413
        %v542 = vunpack.c.l.bf16 %v414
        %v543 = vunpack.c.l.bf16 %v415
        %v544 = vunpack.c.l.bf16 %v416
        %v545 = vunpack.c.l.bf16 %v417
        %v546 = vunpack.c.l.bf16 %v418
        %v547 = vunpack.c.l.bf16 %v419
        %v548 = vunpack.c.l.bf16 %v420
        %v549 = vunpack.c.l.bf16 %v421
        %v550 = vunpack.c.l.bf16 %v422
        %v551 = vunpack.c.l.bf16 %v423
        %v552 = vunpack.c.l.bf16 %v424
        %v553 = vunpack.c.l.bf16 %v425
        %v554 = vunpack.c.l.bf16 %v426
        %v555 = vunpack.c.l.bf16 %v427
        %v556 = vunpack.c.l.bf16 %v428
        %v557 = vunpack.c.l.bf16 %v429
        %v558 = vunpack.c.l.bf16 %v430
        %v559 = vunpack.c.l.bf16 %v431
        %v560 = vunpack.c.l.bf16 %v432
        %v561 = vunpack.c.l.bf16 %v433
        %v562 = vunpack.c.l.bf16 %v434
        %v563 = vunpack.c.l.bf16 %v435
        %v564 = vunpack.c.l.bf16 %v436
        %v565 = vunpack.c.l.bf16 %v437
        %v566 = vunpack.c.l.bf16 %v438
        %v567 = vunpack.c.l.bf16 %v439
        %v568 = vunpack.c.l.bf16 %v440
        %v569 = vunpack.c.l.bf16 %v441
        %v570 = vunpack.c.l.bf16 %v442
        %v571 = vunpack.c.l.bf16 %v443
        %v572 = vunpack.c.l.bf16 %v444
        %v573 = vunpack.c.l.bf16 %v445
        %v574 = vunpack.c.l.bf16 %v446
        %v575 = vunpack.c.l.bf16 %v447
        %v576 = vunpack.c.l.bf16 %v448
        %v577 = vunpack.c.l.bf16 %v449
        %v578 = vunpack.c.l.bf16 %v450
        %v579 = vunpack.c.l.bf16 %v451
        %v580 = vunpack.c.l.bf16 %v452
        %v581 = vunpack.c.l.bf16 %v453
        %v582 = vunpack.c.l.bf16 %v454
        %v583 = vunpack.c.l.bf16 %v455
        %v584 = vunpack.c.l.bf16 %v456
        %v585 = vunpack.c.l.bf16 %v457
        %v586 = vunpack.c.l.bf16 %v458
        %v587 = vunpack.c.l.bf16 %v459
        %v588 = vunpack.c.l.bf16 %v460
        %v589 = vunpack.c.l.bf16 %v461
        %v590 = vunpack.c.l.bf16 %v462
        %v591 = vunpack.c.l.bf16 %v463
        %v592 = vunpack.c.l.bf16 %v464
        %v593 = vunpack.c.l.bf16 %v465
        %v594 = vunpack.c.l.bf16 %v466
        %v595 = vunpack.c.l.bf16 %v467
        %v596 = vunpack.c.l.bf16 %v468
        %v597 = vunpack.c.l.bf16 %v469
        %v598 = vunpack.c.l.bf16 %v470
        %v599 = vunpack.c.l.bf16 %v471
        %v600 = vunpack.c.l.bf16 %v472
        %v601 = vunpack.c.l.bf16 %v473
        %v602 = vunpack.c.l.bf16 %v474
        %v603 = vunpack.c.l.bf16 %v475
        %v604 = vunpack.c.l.bf16 %v476
        %v605 = vunpack.c.l.bf16 %v477
        %v606 = vunpack.c.l.bf16 %v478
        %v607 = vunpack.c.l.bf16 %v479
        %v608 = vunpack.c.l.bf16 %v480
        %v609 = vunpack.c.l.bf16 %v481
        %v610 = vunpack.c.l.bf16 %v482
        %v611 = vunpack.c.l.bf16 %v483
        %v612 = vunpack.c.l.bf16 %v484
        %v613 = vunpack.c.l.bf16 %v485
        %v614 = vunpack.c.l.bf16 %v486
        %v615 = vunpack.c.l.bf16 %v487
        %v616 = vunpack.c.l.bf16 %v488
        %v617 = vunpack.c.l.bf16 %v489
        %v618 = vunpack.c.l.bf16 %v490
        %v619 = vunpack.c.l.bf16 %v491
        %v620 = vunpack.c.l.bf16 %v492
        %v621 = vunpack.c.l.bf16 %v493
        %v622 = vunpack.c.l.bf16 %v494
        %v623 = vunpack.c.l.bf16 %v495
        %v624 = vunpack.c.l.bf16 %v496
        %v625 = vunpack.c.l.bf16 %v497
        %v626 = vunpack.c.l.bf16 %v498
        %v627 = vunpack.c.l.bf16 %v499
        %v628 = vunpack.c.l.bf16 %v500
        %v629 = vunpack.c.l.bf16 %v501
        %v630 = vunpack.c.l.bf16 %v502
        %v631 = vunpack.c.l.bf16 %v503
        %v632 = vunpack.c.l.bf16 %v504
        %v633 = vunpack.c.l.bf16 %v505
        %v634 = vunpack.c.l.bf16 %v506
        %v635 = vunpack.c.l.bf16 %v507
        %v636 = vunpack.c.l.bf16 %v508
        %v637 = vunpack.c.l.bf16 %v509
        %v638 = vld [vmem:[%s358] sm:$0xf]
        %v639 = vld [vmem:[%s358 + $0x4] sm:$0xf]
        %v640 = vld [vmem:[%s358 + $0x8] sm:$0xf]
        %v641 = vld [vmem:[%s358 + $0xc] sm:$0xf]
        %v642 = vld [vmem:[%s358 + $0x10] sm:$0xf]
        %v643 = vld [vmem:[%s358 + $0x14] sm:$0xf]
        %v644 = vld [vmem:[%s358 + $0x18] sm:$0xf]
        %v645 = vld [vmem:[%s358 + $0x1c] sm:$0xf]
        %v646 = vld [vmem:[%s358 + $0x20] sm:$0xf]
        %v647 = vld [vmem:[%s358 + $0x24] sm:$0xf]
        %v648 = vld [vmem:[%s358 + $0x28] sm:$0xf]
        %v649 = vld [vmem:[%s358 + $0x2c] sm:$0xf]
        %v650 = vld [vmem:[%s358 + $0x30] sm:$0xf]
        %v651 = vld [vmem:[%s358 + $0x34] sm:$0xf]
        %v652 = vld [vmem:[%s358 + $0x38] sm:$0xf]
        %v653 = vld [vmem:[%s358 + $0x3c] sm:$0xf]
        %v654 = vld [vmem:[%s358 + $0x40] sm:$0xf]
        %v655 = vld [vmem:[%s358 + $0x44] sm:$0xf]
        %v656 = vld [vmem:[%s358 + $0x48] sm:$0xf]
        %v657 = vld [vmem:[%s358 + $0x4c] sm:$0xf]
        %v658 = vld [vmem:[%s358 + $0x50] sm:$0xf]
        %v659 = vld [vmem:[%s358 + $0x54] sm:$0xf]
        %v660 = vld [vmem:[%s358 + $0x58] sm:$0xf]
        %v661 = vld [vmem:[%s358 + $0x5c] sm:$0xf]
        %v662 = vld [vmem:[%s358 + $0x60] sm:$0xf]
        %v663 = vld [vmem:[%s358 + $0x64] sm:$0xf]
        %v664 = vld [vmem:[%s358 + $0x68] sm:$0xf]
        %v665 = vld [vmem:[%s358 + $0x6c] sm:$0xf]
        %v666 = vld [vmem:[%s358 + $0x70] sm:$0xf]
        %v667 = vld [vmem:[%s358 + $0x74] sm:$0xf]
        %v668 = vld [vmem:[%s358 + $0x78] sm:$0xf]
        %v669 = vld [vmem:[%s358 + $0x7c] sm:$0xf]
        %v670 = vld [vmem:[%s358 + $0x80] sm:$0xf]
        %v671 = vld [vmem:[%s358 + $0x84] sm:$0xf]
        %v672 = vld [vmem:[%s358 + $0x88] sm:$0xf]
        %v673 = vld [vmem:[%s358 + $0x8c] sm:$0xf]
        %v674 = vld [vmem:[%s358 + $0x90] sm:$0xf]
        %v675 = vld [vmem:[%s358 + $0x94] sm:$0xf]
        %v676 = vld [vmem:[%s358 + $0x98] sm:$0xf]
        %v677 = vld [vmem:[%s358 + $0x9c] sm:$0xf]
        %v678 = vld [vmem:[%s358 + $0xa0] sm:$0xf]
        %v679 = vld [vmem:[%s358 + $0xa4] sm:$0xf]
        %v680 = vld [vmem:[%s358 + $0xa8] sm:$0xf]
        %v681 = vld [vmem:[%s358 + $0xac] sm:$0xf]
        %v682 = vld [vmem:[%s358 + $0xb0] sm:$0xf]
        %v683 = vld [vmem:[%s358 + $0xb4] sm:$0xf]
        %v684 = vld [vmem:[%s358 + $0xb8] sm:$0xf]
        %v685 = vld [vmem:[%s358 + $0xbc] sm:$0xf]
        %v686 = vld [vmem:[%s358 + $0xc0] sm:$0xf]
        %v687 = vld [vmem:[%s358 + $0xc4] sm:$0xf]
        %v688 = vld [vmem:[%s358 + $0xc8] sm:$0xf]
        %v689 = vld [vmem:[%s358 + $0xcc] sm:$0xf]
        %v690 = vld [vmem:[%s358 + $0xd0] sm:$0xf]
        %v691 = vld [vmem:[%s358 + $0xd4] sm:$0xf]
        %v692 = vld [vmem:[%s358 + $0xd8] sm:$0xf]
        %v693 = vld [vmem:[%s358 + $0xdc] sm:$0xf]
        %v694 = vld [vmem:[%s358 + $0xe0] sm:$0xf]
        %v695 = vld [vmem:[%s358 + $0xe4] sm:$0xf]
        %v696 = vld [vmem:[%s358 + $0xe8] sm:$0xf]
        %v697 = vld [vmem:[%s358 + $0xec] sm:$0xf]
        %v698 = vld [vmem:[%s358 + $0xf0] sm:$0xf]
        %v699 = vld [vmem:[%s358 + $0xf4] sm:$0xf]
        %v700 = vld [vmem:[%s358 + $0xf8] sm:$0xf]
        %v701 = vld [vmem:[%s358 + $0xfc] sm:$0xf]
        %v702 = vld [vmem:[%s358 + $0x100] sm:$0xf]
        %v703 = vld [vmem:[%s358 + $0x104] sm:$0xf]
        %v704 = vld [vmem:[%s358 + $0x108] sm:$0xf]
        %v705 = vld [vmem:[%s358 + $0x10c] sm:$0xf]
        %v706 = vld [vmem:[%s358 + $0x110] sm:$0xf]
        %v707 = vld [vmem:[%s358 + $0x114] sm:$0xf]
        %v708 = vld [vmem:[%s358 + $0x118] sm:$0xf]
        %v709 = vld [vmem:[%s358 + $0x11c] sm:$0xf]
        %v710 = vld [vmem:[%s358 + $0x120] sm:$0xf]
        %v711 = vld [vmem:[%s358 + $0x124] sm:$0xf]
        %v712 = vld [vmem:[%s358 + $0x128] sm:$0xf]
        %v713 = vld [vmem:[%s358 + $0x12c] sm:$0xf]
        %v714 = vld [vmem:[%s358 + $0x130] sm:$0xf]
        %v715 = vld [vmem:[%s358 + $0x134] sm:$0xf]
        %v716 = vld [vmem:[%s358 + $0x138] sm:$0xf]
        %v717 = vld [vmem:[%s358 + $0x13c] sm:$0xf]
        %v718 = vld [vmem:[%s358 + $0x140] sm:$0xf]
        %v719 = vld [vmem:[%s358 + $0x144] sm:$0xf]
        %v720 = vld [vmem:[%s358 + $0x148] sm:$0xf]
        %v721 = vld [vmem:[%s358 + $0x14c] sm:$0xf]
        %v722 = vld [vmem:[%s358 + $0x150] sm:$0xf]
        %v723 = vld [vmem:[%s358 + $0x154] sm:$0xf]
        %v724 = vld [vmem:[%s358 + $0x158] sm:$0xf]
        %v725 = vld [vmem:[%s358 + $0x15c] sm:$0xf]
        %v726 = vld [vmem:[%s358 + $0x160] sm:$0xf]
        %v727 = vld [vmem:[%s358 + $0x164] sm:$0xf]
        %v728 = vld [vmem:[%s358 + $0x168] sm:$0xf]
        %v729 = vld [vmem:[%s358 + $0x16c] sm:$0xf]
        %v730 = vld [vmem:[%s358 + $0x170] sm:$0xf]
        %v731 = vld [vmem:[%s358 + $0x174] sm:$0xf]
        %v732 = vld [vmem:[%s358 + $0x178] sm:$0xf]
        %v733 = vld [vmem:[%s358 + $0x17c] sm:$0xf]
        %v734 = vld [vmem:[%s358 + $0x180] sm:$0xf]
        %v735 = vld [vmem:[%s358 + $0x184] sm:$0xf]
        %v736 = vld [vmem:[%s358 + $0x188] sm:$0xf]
        %v737 = vld [vmem:[%s358 + $0x18c] sm:$0xf]
        %v738 = vld [vmem:[%s358 + $0x190] sm:$0xf]
        %v739 = vld [vmem:[%s358 + $0x194] sm:$0xf]
        %v740 = vld [vmem:[%s358 + $0x198] sm:$0xf]
        %v741 = vld [vmem:[%s358 + $0x19c] sm:$0xf]
        %v742 = vld [vmem:[%s358 + $0x1a0] sm:$0xf]
        %v743 = vld [vmem:[%s358 + $0x1a4] sm:$0xf]
        %v744 = vld [vmem:[%s358 + $0x1a8] sm:$0xf]
        %v745 = vld [vmem:[%s358 + $0x1ac] sm:$0xf]
        %v746 = vld [vmem:[%s358 + $0x1b0] sm:$0xf]
        %v747 = vld [vmem:[%s358 + $0x1b4] sm:$0xf]
        %v748 = vld [vmem:[%s358 + $0x1b8] sm:$0xf]
        %v749 = vld [vmem:[%s358 + $0x1bc] sm:$0xf]
        %v750 = vld [vmem:[%s358 + $0x1c0] sm:$0xf]
        %v751 = vld [vmem:[%s358 + $0x1c4] sm:$0xf]
        %v752 = vld [vmem:[%s358 + $0x1c8] sm:$0xf]
        %v753 = vld [vmem:[%s358 + $0x1cc] sm:$0xf]
        %v754 = vld [vmem:[%s358 + $0x1d0] sm:$0xf]
        %v755 = vld [vmem:[%s358 + $0x1d4] sm:$0xf]
        %v756 = vld [vmem:[%s358 + $0x1d8] sm:$0xf]
        %v757 = vld [vmem:[%s358 + $0x1dc] sm:$0xf]
        %v758 = vld [vmem:[%s358 + $0x1e0] sm:$0xf]
        %v759 = vld [vmem:[%s358 + $0x1e4] sm:$0xf]
        %v760 = vld [vmem:[%s358 + $0x1e8] sm:$0xf]
        %v761 = vld [vmem:[%s358 + $0x1ec] sm:$0xf]
        %v762 = vld [vmem:[%s358 + $0x1f0] sm:$0xf]
        %v763 = vld [vmem:[%s358 + $0x1f4] sm:$0xf]
        %v764 = vld [vmem:[%s358 + $0x1f8] sm:$0xf]
        %v765 = vld [vmem:[%s358 + $0x1fc] sm:$0xf]
        %v766 = vunpack.c.l.bf16 %v638
        %v767 = vunpack.c.l.bf16 %v639
        %v768 = vunpack.c.l.bf16 %v640
        %v769 = vunpack.c.l.bf16 %v641
        %v770 = vunpack.c.l.bf16 %v642
        %v771 = vunpack.c.l.bf16 %v643
        %v772 = vunpack.c.l.bf16 %v644
        %v773 = vunpack.c.l.bf16 %v645
        %v774 = vunpack.c.l.bf16 %v646
        %v775 = vunpack.c.l.bf16 %v647
        %v776 = vunpack.c.l.bf16 %v648
        %v777 = vunpack.c.l.bf16 %v649
        %v778 = vunpack.c.l.bf16 %v650
        %v779 = vunpack.c.l.bf16 %v651
        %v780 = vunpack.c.l.bf16 %v652
        %v781 = vunpack.c.l.bf16 %v653
        %v782 = vunpack.c.l.bf16 %v654
        %v783 = vunpack.c.l.bf16 %v655
        %v784 = vunpack.c.l.bf16 %v656
        %v785 = vunpack.c.l.bf16 %v657
        %v786 = vunpack.c.l.bf16 %v658
        %v787 = vunpack.c.l.bf16 %v659
        %v788 = vunpack.c.l.bf16 %v660
        %v789 = vunpack.c.l.bf16 %v661
        %v790 = vunpack.c.l.bf16 %v662
        %v791 = vunpack.c.l.bf16 %v663
        %v792 = vunpack.c.l.bf16 %v664
        %v793 = vunpack.c.l.bf16 %v665
        %v794 = vunpack.c.l.bf16 %v666
        %v795 = vunpack.c.l.bf16 %v667
        %v796 = vunpack.c.l.bf16 %v668
        %v797 = vunpack.c.l.bf16 %v669
        %v798 = vunpack.c.l.bf16 %v670
        %v799 = vunpack.c.l.bf16 %v671
        %v800 = vunpack.c.l.bf16 %v672
        %v801 = vunpack.c.l.bf16 %v673
        %v802 = vunpack.c.l.bf16 %v674
        %v803 = vunpack.c.l.bf16 %v675
        %v804 = vunpack.c.l.bf16 %v676
        %v805 = vunpack.c.l.bf16 %v677
        %v806 = vunpack.c.l.bf16 %v678
        %v807 = vunpack.c.l.bf16 %v679
        %v808 = vunpack.c.l.bf16 %v680
        %v809 = vunpack.c.l.bf16 %v681
        %v810 = vunpack.c.l.bf16 %v682
        %v811 = vunpack.c.l.bf16 %v683
        %v812 = vunpack.c.l.bf16 %v684
        %v813 = vunpack.c.l.bf16 %v685
        %v814 = vunpack.c.l.bf16 %v686
        %v815 = vunpack.c.l.bf16 %v687
        %v816 = vunpack.c.l.bf16 %v688
        %v817 = vunpack.c.l.bf16 %v689
        %v818 = vunpack.c.l.bf16 %v690
        %v819 = vunpack.c.l.bf16 %v691
        %v820 = vunpack.c.l.bf16 %v692
        %v821 = vunpack.c.l.bf16 %v693
        %v822 = vunpack.c.l.bf16 %v694
        %v823 = vunpack.c.l.bf16 %v695
        %v824 = vunpack.c.l.bf16 %v696
        %v825 = vunpack.c.l.bf16 %v697
        %v826 = vunpack.c.l.bf16 %v698
        %v827 = vunpack.c.l.bf16 %v699
        %v828 = vunpack.c.l.bf16 %v700
        %v829 = vunpack.c.l.bf16 %v701
        %v830 = vunpack.c.l.bf16 %v702
        %v831 = vunpack.c.l.bf16 %v703
        %v832 = vunpack.c.l.bf16 %v704
        %v833 = vunpack.c.l.bf16 %v705
        %v834 = vunpack.c.l.bf16 %v706
        %v835 = vunpack.c.l.bf16 %v707
        %v836 = vunpack.c.l.bf16 %v708
        %v837 = vunpack.c.l.bf16 %v709
        %v838 = vunpack.c.l.bf16 %v710
        %v839 = vunpack.c.l.bf16 %v711
        %v840 = vunpack.c.l.bf16 %v712
        %v841 = vunpack.c.l.bf16 %v713
        %v842 = vunpack.c.l.bf16 %v714
        %v843 = vunpack.c.l.bf16 %v715
        %v844 = vunpack.c.l.bf16 %v716
        %v845 = vunpack.c.l.bf16 %v717
        %v846 = vunpack.c.l.bf16 %v718
        %v847 = vunpack.c.l.bf16 %v719
        %v848 = vunpack.c.l.bf16 %v720
        %v849 = vunpack.c.l.bf16 %v721
        %v850 = vunpack.c.l.bf16 %v722
        %v851 = vunpack.c.l.bf16 %v723
        %v852 = vunpack.c.l.bf16 %v724
        %v853 = vunpack.c.l.bf16 %v725
        %v854 = vunpack.c.l.bf16 %v726
        %v855 = vunpack.c.l.bf16 %v727
        %v856 = vunpack.c.l.bf16 %v728
        %v857 = vunpack.c.l.bf16 %v729
        %v858 = vunpack.c.l.bf16 %v730
        %v859 = vunpack.c.l.bf16 %v731
        %v860 = vunpack.c.l.bf16 %v732
        %v861 = vunpack.c.l.bf16 %v733
        %v862 = vunpack.c.l.bf16 %v734
        %v863 = vunpack.c.l.bf16 %v735
        %v864 = vunpack.c.l.bf16 %v736
        %v865 = vunpack.c.l.bf16 %v737
        %v866 = vunpack.c.l.bf16 %v738
        %v867 = vunpack.c.l.bf16 %v739
        %v868 = vunpack.c.l.bf16 %v740
        %v869 = vunpack.c.l.bf16 %v741
        %v870 = vunpack.c.l.bf16 %v742
        %v871 = vunpack.c.l.bf16 %v743
        %v872 = vunpack.c.l.bf16 %v744
        %v873 = vunpack.c.l.bf16 %v745
        %v874 = vunpack.c.l.bf16 %v746
        %v875 = vunpack.c.l.bf16 %v747
        %v876 = vunpack.c.l.bf16 %v748
        %v877 = vunpack.c.l.bf16 %v749
        %v878 = vunpack.c.l.bf16 %v750
        %v879 = vunpack.c.l.bf16 %v751
        %v880 = vunpack.c.l.bf16 %v752
        %v881 = vunpack.c.l.bf16 %v753
        %v882 = vunpack.c.l.bf16 %v754
        %v883 = vunpack.c.l.bf16 %v755
        %v884 = vunpack.c.l.bf16 %v756
        %v885 = vunpack.c.l.bf16 %v757
        %v886 = vunpack.c.l.bf16 %v758
        %v887 = vunpack.c.l.bf16 %v759
        %v888 = vunpack.c.l.bf16 %v760
        %v889 = vunpack.c.l.bf16 %v761
        %v890 = vunpack.c.l.bf16 %v762
        %v891 = vunpack.c.l.bf16 %v763
        %v892 = vunpack.c.l.bf16 %v764
        %v893 = vunpack.c.l.bf16 %v765
        %v895 = vlaneseq
        %v896 = vshrl.u32 %v895, 7
        %v897 = vsub.s32 0, %v896
        %v898 = vrot.slane %v381, %v897
        %v900 = vmul.f32 %v766, %v898
        %v901 = vmul.f32 %v767, %v898
        %v902 = vmul.f32 %v768, %v898
        %v903 = vmul.f32 %v769, %v898
        %v904 = vmul.f32 %v770, %v898
        %v905 = vmul.f32 %v771, %v898
        %v906 = vmul.f32 %v772, %v898
        %v907 = vmul.f32 %v773, %v898
        %v908 = vmul.f32 %v774, %v898
        %v909 = vmul.f32 %v775, %v898
        %v910 = vmul.f32 %v776, %v898
        %v911 = vmul.f32 %v777, %v898
        %v912 = vmul.f32 %v778, %v898
        %v913 = vmul.f32 %v779, %v898
        %v914 = vmul.f32 %v780, %v898
        %v915 = vmul.f32 %v781, %v898
        %v916 = vmul.f32 %v782, %v898
        %v917 = vmul.f32 %v783, %v898
        %v918 = vmul.f32 %v784, %v898
        %v919 = vmul.f32 %v785, %v898
        %v920 = vmul.f32 %v786, %v898
        %v921 = vmul.f32 %v787, %v898
        %v922 = vmul.f32 %v788, %v898
        %v923 = vmul.f32 %v789, %v898
        %v924 = vmul.f32 %v790, %v898
        %v925 = vmul.f32 %v791, %v898
        %v926 = vmul.f32 %v792, %v898
        %v927 = vmul.f32 %v793, %v898
        %v928 = vmul.f32 %v794, %v898
        %v929 = vmul.f32 %v795, %v898
        %v930 = vmul.f32 %v796, %v898
        %v931 = vmul.f32 %v797, %v898
        %v932 = vmul.f32 %v798, %v898
        %v933 = vmul.f32 %v799, %v898
        %v934 = vmul.f32 %v800, %v898
        %v935 = vmul.f32 %v801, %v898
        %v936 = vmul.f32 %v802, %v898
        %v937 = vmul.f32 %v803, %v898
        %v938 = vmul.f32 %v804, %v898
        %v939 = vmul.f32 %v805, %v898
        %v940 = vmul.f32 %v806, %v898
        %v941 = vmul.f32 %v807, %v898
        %v942 = vmul.f32 %v808, %v898
        %v943 = vmul.f32 %v809, %v898
        %v944 = vmul.f32 %v810, %v898
        %v945 = vmul.f32 %v811, %v898
        %v946 = vmul.f32 %v812, %v898
        %v947 = vmul.f32 %v813, %v898
        %v948 = vmul.f32 %v814, %v898
        %v949 = vmul.f32 %v815, %v898
        %v950 = vmul.f32 %v816, %v898
        %v951 = vmul.f32 %v817, %v898
        %v952 = vmul.f32 %v818, %v898
        %v953 = vmul.f32 %v819, %v898
        %v954 = vmul.f32 %v820, %v898
        %v955 = vmul.f32 %v821, %v898
        %v956 = vmul.f32 %v822, %v898
        %v957 = vmul.f32 %v823, %v898
        %v958 = vmul.f32 %v824, %v898
        %v959 = vmul.f32 %v825, %v898
        %v960 = vmul.f32 %v826, %v898
        %v961 = vmul.f32 %v827, %v898
        %v962 = vmul.f32 %v828, %v898
        %v963 = vmul.f32 %v829, %v898
        %v964 = vmul.f32 %v830, %v898
        %v965 = vmul.f32 %v831, %v898
        %v966 = vmul.f32 %v832, %v898
        %v967 = vmul.f32 %v833, %v898
        %v968 = vmul.f32 %v834, %v898
        %v969 = vmul.f32 %v835, %v898
        %v970 = vmul.f32 %v836, %v898
        %v971 = vmul.f32 %v837, %v898
        %v972 = vmul.f32 %v838, %v898
        %v973 = vmul.f32 %v839, %v898
        %v974 = vmul.f32 %v840, %v898
        %v975 = vmul.f32 %v841, %v898
        %v976 = vmul.f32 %v842, %v898
        %v977 = vmul.f32 %v843, %v898
        %v978 = vmul.f32 %v844, %v898
        %v979 = vmul.f32 %v845, %v898
        %v980 = vmul.f32 %v846, %v898
        %v981 = vmul.f32 %v847, %v898
        %v982 = vmul.f32 %v848, %v898
        %v983 = vmul.f32 %v849, %v898
        %v984 = vmul.f32 %v850, %v898
        %v985 = vmul.f32 %v851, %v898
        %v986 = vmul.f32 %v852, %v898
        %v987 = vmul.f32 %v853, %v898
        %v988 = vmul.f32 %v854, %v898
        %v989 = vmul.f32 %v855, %v898
        %v990 = vmul.f32 %v856, %v898
        %v991 = vmul.f32 %v857, %v898
        %v992 = vmul.f32 %v858, %v898
        %v993 = vmul.f32 %v859, %v898
        %v994 = vmul.f32 %v860, %v898
        %v995 = vmul.f32 %v861, %v898
        %v996 = vmul.f32 %v862, %v898
        %v997 = vmul.f32 %v863, %v898
        %v998 = vmul.f32 %v864, %v898
        %v999 = vmul.f32 %v865, %v898
        %v1000 = vmul.f32 %v866, %v898
        %v1001 = vmul.f32 %v867, %v898
        %v1002 = vmul.f32 %v868, %v898
        %v1003 = vmul.f32 %v869, %v898
        %v1004 = vmul.f32 %v870, %v898
        %v1005 = vmul.f32 %v871, %v898
        %v1006 = vmul.f32 %v872, %v898
        %v1007 = vmul.f32 %v873, %v898
        %v1008 = vmul.f32 %v874, %v898
        %v1009 = vmul.f32 %v875, %v898
        %v1010 = vmul.f32 %v876, %v898
        %v1011 = vmul.f32 %v877, %v898
        %v1012 = vmul.f32 %v878, %v898
        %v1013 = vmul.f32 %v879, %v898
        %v1014 = vmul.f32 %v880, %v898
        %v1015 = vmul.f32 %v881, %v898
        %v1016 = vmul.f32 %v882, %v898
        %v1017 = vmul.f32 %v883, %v898
        %v1018 = vmul.f32 %v884, %v898
        %v1019 = vmul.f32 %v885, %v898
        %v1020 = vmul.f32 %v886, %v898
        %v1021 = vmul.f32 %v887, %v898
        %v1022 = vmul.f32 %v888, %v898
        %v1023 = vmul.f32 %v889, %v898
        %v1024 = vmul.f32 %v890, %v898
        %v1025 = vmul.f32 %v891, %v898
        %v1026 = vmul.f32 %v892, %v898
        %v1027 = vmul.f32 %v893, %v898
        %v1028 = vpack.c.bf16 %v901, %v900
        %v1029 = vpack.c.bf16 %v903, %v902
        %v1030 = vpack.c.bf16 %v905, %v904
        %v1031 = vpack.c.bf16 %v907, %v906
        %v1032 = vpack.c.bf16 %v909, %v908
        %v1033 = vpack.c.bf16 %v911, %v910
        %v1034 = vpack.c.bf16 %v913, %v912
        %v1035 = vpack.c.bf16 %v915, %v914
        %v1036 = vpack.c.bf16 %v917, %v916
        %v1037 = vpack.c.bf16 %v919, %v918
        %v1038 = vpack.c.bf16 %v921, %v920
        %v1039 = vpack.c.bf16 %v923, %v922
        %v1040 = vpack.c.bf16 %v925, %v924
        %v1041 = vpack.c.bf16 %v927, %v926
        %v1042 = vpack.c.bf16 %v929, %v928
        %v1043 = vpack.c.bf16 %v931, %v930
        %v1044 = vpack.c.bf16 %v933, %v932
        %v1045 = vpack.c.bf16 %v935, %v934
        %v1046 = vpack.c.bf16 %v937, %v936
        %v1047 = vpack.c.bf16 %v939, %v938
        %v1048 = vpack.c.bf16 %v941, %v940
        %v1049 = vpack.c.bf16 %v943, %v942
        %v1050 = vpack.c.bf16 %v945, %v944
        %v1051 = vpack.c.bf16 %v947, %v946
        %v1052 = vpack.c.bf16 %v949, %v948
        %v1053 = vpack.c.bf16 %v951, %v950
        %v1054 = vpack.c.bf16 %v953, %v952
        %v1055 = vpack.c.bf16 %v955, %v954
        %v1056 = vpack.c.bf16 %v957, %v956
        %v1057 = vpack.c.bf16 %v959, %v958
        %v1058 = vpack.c.bf16 %v961, %v960
        %v1059 = vpack.c.bf16 %v963, %v962
        %v1060 = vpack.c.bf16 %v965, %v964
        %v1061 = vpack.c.bf16 %v967, %v966
        %v1062 = vpack.c.bf16 %v969, %v968
        %v1063 = vpack.c.bf16 %v971, %v970
        %v1064 = vpack.c.bf16 %v973, %v972
        %v1065 = vpack.c.bf16 %v975, %v974
        %v1066 = vpack.c.bf16 %v977, %v976
        %v1067 = vpack.c.bf16 %v979, %v978
        %v1068 = vpack.c.bf16 %v981, %v980
        %v1069 = vpack.c.bf16 %v983, %v982
        %v1070 = vpack.c.bf16 %v985, %v984
        %v1071 = vpack.c.bf16 %v987, %v986
        %v1072 = vpack.c.bf16 %v989, %v988
        %v1073 = vpack.c.bf16 %v991, %v990
        %v1074 = vpack.c.bf16 %v993, %v992
        %v1075 = vpack.c.bf16 %v995, %v994
        %v1076 = vpack.c.bf16 %v997, %v996
        %v1077 = vpack.c.bf16 %v999, %v998
        %v1078 = vpack.c.bf16 %v1001, %v1000
        %v1079 = vpack.c.bf16 %v1003, %v1002
        %v1080 = vpack.c.bf16 %v1005, %v1004
        %v1081 = vpack.c.bf16 %v1007, %v1006
        %v1082 = vpack.c.bf16 %v1009, %v1008
        %v1083 = vpack.c.bf16 %v1011, %v1010
        %v1084 = vpack.c.bf16 %v1013, %v1012
        %v1085 = vpack.c.bf16 %v1015, %v1014
        %v1086 = vpack.c.bf16 %v1017, %v1016
        %v1087 = vpack.c.bf16 %v1019, %v1018
        %v1088 = vpack.c.bf16 %v1021, %v1020
        %v1089 = vpack.c.bf16 %v1023, %v1022
        %v1090 = vpack.c.bf16 %v1025, %v1024
        %v1091 = vpack.c.bf16 %v1027, %v1026
        %v1092 = vld [vmem:[%s372] sm:$0xf]
        %v1093 = vld [vmem:[%s372 + $0x4] sm:$0xf]
        %v1094 = vld [vmem:[%s372 + $0x8] sm:$0xf]
        %v1095 = vld [vmem:[%s372 + $0xc] sm:$0xf]
        %v1096 = vld [vmem:[%s372 + $0x10] sm:$0xf]
        %v1097 = vld [vmem:[%s372 + $0x14] sm:$0xf]
        %v1098 = vld [vmem:[%s372 + $0x18] sm:$0xf]
        %v1099 = vld [vmem:[%s372 + $0x1c] sm:$0xf]
        %v1100 = vld [vmem:[%s372 + $0x20] sm:$0xf]
        %v1101 = vld [vmem:[%s372 + $0x24] sm:$0xf]
        %v1102 = vld [vmem:[%s372 + $0x28] sm:$0xf]
        %v1103 = vld [vmem:[%s372 + $0x2c] sm:$0xf]
        %v1104 = vld [vmem:[%s372 + $0x30] sm:$0xf]
        %v1105 = vld [vmem:[%s372 + $0x34] sm:$0xf]
        %v1106 = vld [vmem:[%s372 + $0x38] sm:$0xf]
        %v1107 = vld [vmem:[%s372 + $0x3c] sm:$0xf]
        %v1108 = vld [vmem:[%s372 + $0x40] sm:$0xf]
        %v1109 = vld [vmem:[%s372 + $0x44] sm:$0xf]
        %v1110 = vld [vmem:[%s372 + $0x48] sm:$0xf]
        %v1111 = vld [vmem:[%s372 + $0x4c] sm:$0xf]
        %v1112 = vld [vmem:[%s372 + $0x50] sm:$0xf]
        %v1113 = vld [vmem:[%s372 + $0x54] sm:$0xf]
        %v1114 = vld [vmem:[%s372 + $0x58] sm:$0xf]
        %v1115 = vld [vmem:[%s372 + $0x5c] sm:$0xf]
        %v1116 = vld [vmem:[%s372 + $0x60] sm:$0xf]
        %v1117 = vld [vmem:[%s372 + $0x64] sm:$0xf]
        %v1118 = vld [vmem:[%s372 + $0x68] sm:$0xf]
        %v1119 = vld [vmem:[%s372 + $0x6c] sm:$0xf]
        %v1120 = vld [vmem:[%s372 + $0x70] sm:$0xf]
        %v1121 = vld [vmem:[%s372 + $0x74] sm:$0xf]
        %v1122 = vld [vmem:[%s372 + $0x78] sm:$0xf]
        %v1123 = vld [vmem:[%s372 + $0x7c] sm:$0xf]
        %v1124 = vld [vmem:[%s372 + $0x80] sm:$0xf]
        %v1125 = vld [vmem:[%s372 + $0x84] sm:$0xf]
        %v1126 = vld [vmem:[%s372 + $0x88] sm:$0xf]
        %v1127 = vld [vmem:[%s372 + $0x8c] sm:$0xf]
        %v1128 = vld [vmem:[%s372 + $0x90] sm:$0xf]
        %v1129 = vld [vmem:[%s372 + $0x94] sm:$0xf]
        %v1130 = vld [vmem:[%s372 + $0x98] sm:$0xf]
        %v1131 = vld [vmem:[%s372 + $0x9c] sm:$0xf]
        %v1132 = vld [vmem:[%s372 + $0xa0] sm:$0xf]
        %v1133 = vld [vmem:[%s372 + $0xa4] sm:$0xf]
        %v1134 = vld [vmem:[%s372 + $0xa8] sm:$0xf]
        %v1135 = vld [vmem:[%s372 + $0xac] sm:$0xf]
        %v1136 = vld [vmem:[%s372 + $0xb0] sm:$0xf]
        %v1137 = vld [vmem:[%s372 + $0xb4] sm:$0xf]
        %v1138 = vld [vmem:[%s372 + $0xb8] sm:$0xf]
        %v1139 = vld [vmem:[%s372 + $0xbc] sm:$0xf]
        %v1140 = vld [vmem:[%s372 + $0xc0] sm:$0xf]
        %v1141 = vld [vmem:[%s372 + $0xc4] sm:$0xf]
        %v1142 = vld [vmem:[%s372 + $0xc8] sm:$0xf]
        %v1143 = vld [vmem:[%s372 + $0xcc] sm:$0xf]
        %v1144 = vld [vmem:[%s372 + $0xd0] sm:$0xf]
        %v1145 = vld [vmem:[%s372 + $0xd4] sm:$0xf]
        %v1146 = vld [vmem:[%s372 + $0xd8] sm:$0xf]
        %v1147 = vld [vmem:[%s372 + $0xdc] sm:$0xf]
        %v1148 = vld [vmem:[%s372 + $0xe0] sm:$0xf]
        %v1149 = vld [vmem:[%s372 + $0xe4] sm:$0xf]
        %v1150 = vld [vmem:[%s372 + $0xe8] sm:$0xf]
        %v1151 = vld [vmem:[%s372 + $0xec] sm:$0xf]
        %v1152 = vld [vmem:[%s372 + $0xf0] sm:$0xf]
        %v1153 = vld [vmem:[%s372 + $0xf4] sm:$0xf]
        %v1154 = vld [vmem:[%s372 + $0xf8] sm:$0xf]
        %v1155 = vld [vmem:[%s372 + $0xfc] sm:$0xf]
        %v1156 = vld [vmem:[%s372 + $0x100] sm:$0xf]
        %v1157 = vld [vmem:[%s372 + $0x104] sm:$0xf]
        %v1158 = vld [vmem:[%s372 + $0x108] sm:$0xf]
        %v1159 = vld [vmem:[%s372 + $0x10c] sm:$0xf]
        %v1160 = vld [vmem:[%s372 + $0x110] sm:$0xf]
        %v1161 = vld [vmem:[%s372 + $0x114] sm:$0xf]
        %v1162 = vld [vmem:[%s372 + $0x118] sm:$0xf]
        %v1163 = vld [vmem:[%s372 + $0x11c] sm:$0xf]
        %v1164 = vld [vmem:[%s372 + $0x120] sm:$0xf]
        %v1165 = vld [vmem:[%s372 + $0x124] sm:$0xf]
        %v1166 = vld [vmem:[%s372 + $0x128] sm:$0xf]
        %v1167 = vld [vmem:[%s372 + $0x12c] sm:$0xf]
        %v1168 = vld [vmem:[%s372 + $0x130] sm:$0xf]
        %v1169 = vld [vmem:[%s372 + $0x134] sm:$0xf]
        %v1170 = vld [vmem:[%s372 + $0x138] sm:$0xf]
        %v1171 = vld [vmem:[%s372 + $0x13c] sm:$0xf]
        %v1172 = vld [vmem:[%s372 + $0x140] sm:$0xf]
        %v1173 = vld [vmem:[%s372 + $0x144] sm:$0xf]
        %v1174 = vld [vmem:[%s372 + $0x148] sm:$0xf]
        %v1175 = vld [vmem:[%s372 + $0x14c] sm:$0xf]
        %v1176 = vld [vmem:[%s372 + $0x150] sm:$0xf]
        %v1177 = vld [vmem:[%s372 + $0x154] sm:$0xf]
        %v1178 = vld [vmem:[%s372 + $0x158] sm:$0xf]
        %v1179 = vld [vmem:[%s372 + $0x15c] sm:$0xf]
        %v1180 = vld [vmem:[%s372 + $0x160] sm:$0xf]
        %v1181 = vld [vmem:[%s372 + $0x164] sm:$0xf]
        %v1182 = vld [vmem:[%s372 + $0x168] sm:$0xf]
        %v1183 = vld [vmem:[%s372 + $0x16c] sm:$0xf]
        %v1184 = vld [vmem:[%s372 + $0x170] sm:$0xf]
        %v1185 = vld [vmem:[%s372 + $0x174] sm:$0xf]
        %v1186 = vld [vmem:[%s372 + $0x178] sm:$0xf]
        %v1187 = vld [vmem:[%s372 + $0x17c] sm:$0xf]
        %v1188 = vld [vmem:[%s372 + $0x180] sm:$0xf]
        %v1189 = vld [vmem:[%s372 + $0x184] sm:$0xf]
        %v1190 = vld [vmem:[%s372 + $0x188] sm:$0xf]
        %v1191 = vld [vmem:[%s372 + $0x18c] sm:$0xf]
        %v1192 = vld [vmem:[%s372 + $0x190] sm:$0xf]
        %v1193 = vld [vmem:[%s372 + $0x194] sm:$0xf]
        %v1194 = vld [vmem:[%s372 + $0x198] sm:$0xf]
        %v1195 = vld [vmem:[%s372 + $0x19c] sm:$0xf]
        %v1196 = vld [vmem:[%s372 + $0x1a0] sm:$0xf]
        %v1197 = vld [vmem:[%s372 + $0x1a4] sm:$0xf]
        %v1198 = vld [vmem:[%s372 + $0x1a8] sm:$0xf]
        %v1199 = vld [vmem:[%s372 + $0x1ac] sm:$0xf]
        %v1200 = vld [vmem:[%s372 + $0x1b0] sm:$0xf]
        %v1201 = vld [vmem:[%s372 + $0x1b4] sm:$0xf]
        %v1202 = vld [vmem:[%s372 + $0x1b8] sm:$0xf]
        %v1203 = vld [vmem:[%s372 + $0x1bc] sm:$0xf]
        %v1204 = vld [vmem:[%s372 + $0x1c0] sm:$0xf]
        %v1205 = vld [vmem:[%s372 + $0x1c4] sm:$0xf]
        %v1206 = vld [vmem:[%s372 + $0x1c8] sm:$0xf]
        %v1207 = vld [vmem:[%s372 + $0x1cc] sm:$0xf]
        %v1208 = vld [vmem:[%s372 + $0x1d0] sm:$0xf]
        %v1209 = vld [vmem:[%s372 + $0x1d4] sm:$0xf]
        %v1210 = vld [vmem:[%s372 + $0x1d8] sm:$0xf]
        %v1211 = vld [vmem:[%s372 + $0x1dc] sm:$0xf]
        %v1212 = vld [vmem:[%s372 + $0x1e0] sm:$0xf]
        %v1213 = vld [vmem:[%s372 + $0x1e4] sm:$0xf]
        %v1214 = vld [vmem:[%s372 + $0x1e8] sm:$0xf]
        %v1215 = vld [vmem:[%s372 + $0x1ec] sm:$0xf]
        %v1216 = vld [vmem:[%s372 + $0x1f0] sm:$0xf]
        %v1217 = vld [vmem:[%s372 + $0x1f4] sm:$0xf]
        %v1218 = vld [vmem:[%s372 + $0x1f8] sm:$0xf]
        %v1219 = vld [vmem:[%s372 + $0x1fc] sm:$0xf]
        %v1220 = vunpack.c.l.bf16 %v1092
        %v1221 = vunpack.c.l.bf16 %v1093
        %v1222 = vunpack.c.l.bf16 %v1094
        %v1223 = vunpack.c.l.bf16 %v1095
        %v1224 = vunpack.c.l.bf16 %v1096
        %v1225 = vunpack.c.l.bf16 %v1097
        %v1226 = vunpack.c.l.bf16 %v1098
        %v1227 = vunpack.c.l.bf16 %v1099
        %v1228 = vunpack.c.l.bf16 %v1100
        %v1229 = vunpack.c.l.bf16 %v1101
        %v1230 = vunpack.c.l.bf16 %v1102
        %v1231 = vunpack.c.l.bf16 %v1103
        %v1232 = vunpack.c.l.bf16 %v1104
        %v1233 = vunpack.c.l.bf16 %v1105
        %v1234 = vunpack.c.l.bf16 %v1106
        %v1235 = vunpack.c.l.bf16 %v1107
        %v1236 = vunpack.c.l.bf16 %v1108
        %v1237 = vunpack.c.l.bf16 %v1109
        %v1238 = vunpack.c.l.bf16 %v1110
        %v1239 = vunpack.c.l.bf16 %v1111
        %v1240 = vunpack.c.l.bf16 %v1112
        %v1241 = vunpack.c.l.bf16 %v1113
        %v1242 = vunpack.c.l.bf16 %v1114
        %v1243 = vunpack.c.l.bf16 %v1115
        %v1244 = vunpack.c.l.bf16 %v1116
        %v1245 = vunpack.c.l.bf16 %v1117
        %v1246 = vunpack.c.l.bf16 %v1118
        %v1247 = vunpack.c.l.bf16 %v1119
        %v1248 = vunpack.c.l.bf16 %v1120
        %v1249 = vunpack.c.l.bf16 %v1121
        %v1250 = vunpack.c.l.bf16 %v1122
        %v1251 = vunpack.c.l.bf16 %v1123
        %v1252 = vunpack.c.l.bf16 %v1124
        %v1253 = vunpack.c.l.bf16 %v1125
        %v1254 = vunpack.c.l.bf16 %v1126
        %v1255 = vunpack.c.l.bf16 %v1127
        %v1256 = vunpack.c.l.bf16 %v1128
        %v1257 = vunpack.c.l.bf16 %v1129
        %v1258 = vunpack.c.l.bf16 %v1130
        %v1259 = vunpack.c.l.bf16 %v1131
        %v1260 = vunpack.c.l.bf16 %v1132
        %v1261 = vunpack.c.l.bf16 %v1133
        %v1262 = vunpack.c.l.bf16 %v1134
        %v1263 = vunpack.c.l.bf16 %v1135
        %v1264 = vunpack.c.l.bf16 %v1136
        %v1265 = vunpack.c.l.bf16 %v1137
        %v1266 = vunpack.c.l.bf16 %v1138
        %v1267 = vunpack.c.l.bf16 %v1139
        %v1268 = vunpack.c.l.bf16 %v1140
        %v1269 = vunpack.c.l.bf16 %v1141
        %v1270 = vunpack.c.l.bf16 %v1142
        %v1271 = vunpack.c.l.bf16 %v1143
        %v1272 = vunpack.c.l.bf16 %v1144
        %v1273 = vunpack.c.l.bf16 %v1145
        %v1274 = vunpack.c.l.bf16 %v1146
        %v1275 = vunpack.c.l.bf16 %v1147
        %v1276 = vunpack.c.l.bf16 %v1148
        %v1277 = vunpack.c.l.bf16 %v1149
        %v1278 = vunpack.c.l.bf16 %v1150
        %v1279 = vunpack.c.l.bf16 %v1151
        %v1280 = vunpack.c.l.bf16 %v1152
        %v1281 = vunpack.c.l.bf16 %v1153
        %v1282 = vunpack.c.l.bf16 %v1154
        %v1283 = vunpack.c.l.bf16 %v1155
        %v1284 = vunpack.c.l.bf16 %v1156
        %v1285 = vunpack.c.l.bf16 %v1157
        %v1286 = vunpack.c.l.bf16 %v1158
        %v1287 = vunpack.c.l.bf16 %v1159
        %v1288 = vunpack.c.l.bf16 %v1160
        %v1289 = vunpack.c.l.bf16 %v1161
        %v1290 = vunpack.c.l.bf16 %v1162
        %v1291 = vunpack.c.l.bf16 %v1163
        %v1292 = vunpack.c.l.bf16 %v1164
        %v1293 = vunpack.c.l.bf16 %v1165
        %v1294 = vunpack.c.l.bf16 %v1166
        %v1295 = vunpack.c.l.bf16 %v1167
        %v1296 = vunpack.c.l.bf16 %v1168
        %v1297 = vunpack.c.l.bf16 %v1169
        %v1298 = vunpack.c.l.bf16 %v1170
        %v1299 = vunpack.c.l.bf16 %v1171
        %v1300 = vunpack.c.l.bf16 %v1172
        %v1301 = vunpack.c.l.bf16 %v1173
        %v1302 = vunpack.c.l.bf16 %v1174
        %v1303 = vunpack.c.l.bf16 %v1175
        %v1304 = vunpack.c.l.bf16 %v1176
        %v1305 = vunpack.c.l.bf16 %v1177
        %v1306 = vunpack.c.l.bf16 %v1178
        %v1307 = vunpack.c.l.bf16 %v1179
        %v1308 = vunpack.c.l.bf16 %v1180
        %v1309 = vunpack.c.l.bf16 %v1181
        %v1310 = vunpack.c.l.bf16 %v1182
        %v1311 = vunpack.c.l.bf16 %v1183
        %v1312 = vunpack.c.l.bf16 %v1184
        %v1313 = vunpack.c.l.bf16 %v1185
        %v1314 = vunpack.c.l.bf16 %v1186
        %v1315 = vunpack.c.l.bf16 %v1187
        %v1316 = vunpack.c.l.bf16 %v1188
        %v1317 = vunpack.c.l.bf16 %v1189
        %v1318 = vunpack.c.l.bf16 %v1190
        %v1319 = vunpack.c.l.bf16 %v1191
        %v1320 = vunpack.c.l.bf16 %v1192
        %v1321 = vunpack.c.l.bf16 %v1193
        %v1322 = vunpack.c.l.bf16 %v1194
        %v1323 = vunpack.c.l.bf16 %v1195
        %v1324 = vunpack.c.l.bf16 %v1196
        %v1325 = vunpack.c.l.bf16 %v1197
        %v1326 = vunpack.c.l.bf16 %v1198
        %v1327 = vunpack.c.l.bf16 %v1199
        %v1328 = vunpack.c.l.bf16 %v1200
        %v1329 = vunpack.c.l.bf16 %v1201
        %v1330 = vunpack.c.l.bf16 %v1202
        %v1331 = vunpack.c.l.bf16 %v1203
        %v1332 = vunpack.c.l.bf16 %v1204
        %v1333 = vunpack.c.l.bf16 %v1205
        %v1334 = vunpack.c.l.bf16 %v1206
        %v1335 = vunpack.c.l.bf16 %v1207
        %v1336 = vunpack.c.l.bf16 %v1208
        %v1337 = vunpack.c.l.bf16 %v1209
        %v1338 = vunpack.c.l.bf16 %v1210
        %v1339 = vunpack.c.l.bf16 %v1211
        %v1340 = vunpack.c.l.bf16 %v1212
        %v1341 = vunpack.c.l.bf16 %v1213
        %v1342 = vunpack.c.l.bf16 %v1214
        %v1343 = vunpack.c.l.bf16 %v1215
        %v1344 = vunpack.c.l.bf16 %v1216
        %v1345 = vunpack.c.l.bf16 %v1217
        %v1346 = vunpack.c.l.bf16 %v1218
        %v1347 = vunpack.c.l.bf16 %v1219
        %v1348 = vmul.f32 %v1220, %v898
        %v1349 = vmul.f32 %v1221, %v898
        %v1350 = vmul.f32 %v1222, %v898
        %v1351 = vmul.f32 %v1223, %v898
        %v1352 = vmul.f32 %v1224, %v898
        %v1353 = vmul.f32 %v1225, %v898
        %v1354 = vmul.f32 %v1226, %v898
        %v1355 = vmul.f32 %v1227, %v898
        %v1356 = vmul.f32 %v1228, %v898
        %v1357 = vmul.f32 %v1229, %v898
        %v1358 = vmul.f32 %v1230, %v898
        %v1359 = vmul.f32 %v1231, %v898
        %v1360 = vmul.f32 %v1232, %v898
        %v1361 = vmul.f32 %v1233, %v898
        %v1362 = vmul.f32 %v1234, %v898
        %v1363 = vmul.f32 %v1235, %v898
        %v1364 = vmul.f32 %v1236, %v898
        %v1365 = vmul.f32 %v1237, %v898
        %v1366 = vmul.f32 %v1238, %v898
        %v1367 = vmul.f32 %v1239, %v898
        %v1368 = vmul.f32 %v1240, %v898
        %v1369 = vmul.f32 %v1241, %v898
        %v1370 = vmul.f32 %v1242, %v898
        %v1371 = vmul.f32 %v1243, %v898
        %v1372 = vmul.f32 %v1244, %v898
        %v1373 = vmul.f32 %v1245, %v898
        %v1374 = vmul.f32 %v1246, %v898
        %v1375 = vmul.f32 %v1247, %v898
        %v1376 = vmul.f32 %v1248, %v898
        %v1377 = vmul.f32 %v1249, %v898
        %v1378 = vmul.f32 %v1250, %v898
        %v1379 = vmul.f32 %v1251, %v898
        %v1380 = vmul.f32 %v1252, %v898
        %v1381 = vmul.f32 %v1253, %v898
        %v1382 = vmul.f32 %v1254, %v898
        %v1383 = vmul.f32 %v1255, %v898
        %v1384 = vmul.f32 %v1256, %v898
        %v1385 = vmul.f32 %v1257, %v898
        %v1386 = vmul.f32 %v1258, %v898
        %v1387 = vmul.f32 %v1259, %v898
        %v1388 = vmul.f32 %v1260, %v898
        %v1389 = vmul.f32 %v1261, %v898
        %v1390 = vmul.f32 %v1262, %v898
        %v1391 = vmul.f32 %v1263, %v898
        %v1392 = vmul.f32 %v1264, %v898
        %v1393 = vmul.f32 %v1265, %v898
        %v1394 = vmul.f32 %v1266, %v898
        %v1395 = vmul.f32 %v1267, %v898
        %v1396 = vmul.f32 %v1268, %v898
        %v1397 = vmul.f32 %v1269, %v898
        %v1398 = vmul.f32 %v1270, %v898
        %v1399 = vmul.f32 %v1271, %v898
        %v1400 = vmul.f32 %v1272, %v898
        %v1401 = vmul.f32 %v1273, %v898
        %v1402 = vmul.f32 %v1274, %v898
        %v1403 = vmul.f32 %v1275, %v898
        %v1404 = vmul.f32 %v1276, %v898
        %v1405 = vmul.f32 %v1277, %v898
        %v1406 = vmul.f32 %v1278, %v898
        %v1407 = vmul.f32 %v1279, %v898
        %v1408 = vmul.f32 %v1280, %v898
        %v1409 = vmul.f32 %v1281, %v898
        %v1410 = vmul.f32 %v1282, %v898
        %v1411 = vmul.f32 %v1283, %v898
        %v1412 = vmul.f32 %v1284, %v898
        %v1413 = vmul.f32 %v1285, %v898
        %v1414 = vmul.f32 %v1286, %v898
        %v1415 = vmul.f32 %v1287, %v898
        %v1416 = vmul.f32 %v1288, %v898
        %v1417 = vmul.f32 %v1289, %v898
        %v1418 = vmul.f32 %v1290, %v898
        %v1419 = vmul.f32 %v1291, %v898
        %v1420 = vmul.f32 %v1292, %v898
        %v1421 = vmul.f32 %v1293, %v898
        %v1422 = vmul.f32 %v1294, %v898
        %v1423 = vmul.f32 %v1295, %v898
        %v1424 = vmul.f32 %v1296, %v898
        %v1425 = vmul.f32 %v1297, %v898
        %v1426 = vmul.f32 %v1298, %v898
        %v1427 = vmul.f32 %v1299, %v898
        %v1428 = vmul.f32 %v1300, %v898
        %v1429 = vmul.f32 %v1301, %v898
        %v1430 = vmul.f32 %v1302, %v898
        %v1431 = vmul.f32 %v1303, %v898
        %v1432 = vmul.f32 %v1304, %v898
        %v1433 = vmul.f32 %v1305, %v898
        %v1434 = vmul.f32 %v1306, %v898
        %v1435 = vmul.f32 %v1307, %v898
        %v1436 = vmul.f32 %v1308, %v898
        %v1437 = vmul.f32 %v1309, %v898
        %v1438 = vmul.f32 %v1310, %v898
        %v1439 = vmul.f32 %v1311, %v898
        %v1440 = vmul.f32 %v1312, %v898
        %v1441 = vmul.f32 %v1313, %v898
        %v1442 = vmul.f32 %v1314, %v898
        %v1443 = vmul.f32 %v1315, %v898
        %v1444 = vmul.f32 %v1316, %v898
        %v1445 = vmul.f32 %v1317, %v898
        %v1446 = vmul.f32 %v1318, %v898
        %v1447 = vmul.f32 %v1319, %v898
        %v1448 = vmul.f32 %v1320, %v898
        %v1449 = vmul.f32 %v1321, %v898
        %v1450 = vmul.f32 %v1322, %v898
        %v1451 = vmul.f32 %v1323, %v898
        %v1452 = vmul.f32 %v1324, %v898
        %v1453 = vmul.f32 %v1325, %v898
        %v1454 = vmul.f32 %v1326, %v898
        %v1455 = vmul.f32 %v1327, %v898
        %v1456 = vmul.f32 %v1328, %v898
        %v1457 = vmul.f32 %v1329, %v898
        %v1458 = vmul.f32 %v1330, %v898
        %v1459 = vmul.f32 %v1331, %v898
        %v1460 = vmul.f32 %v1332, %v898
        %v1461 = vmul.f32 %v1333, %v898
        %v1462 = vmul.f32 %v1334, %v898
        %v1463 = vmul.f32 %v1335, %v898
        %v1464 = vmul.f32 %v1336, %v898
        %v1465 = vmul.f32 %v1337, %v898
        %v1466 = vmul.f32 %v1338, %v898
        %v1467 = vmul.f32 %v1339, %v898
        %v1468 = vmul.f32 %v1340, %v898
        %v1469 = vmul.f32 %v1341, %v898
        %v1470 = vmul.f32 %v1342, %v898
        %v1471 = vmul.f32 %v1343, %v898
        %v1472 = vmul.f32 %v1344, %v898
        %v1473 = vmul.f32 %v1345, %v898
        %v1474 = vmul.f32 %v1346, %v898
        %v1475 = vmul.f32 %v1347, %v898
        %v1476 = vpack.c.bf16 %v1349, %v1348
        %v1477 = vpack.c.bf16 %v1351, %v1350
        %v1478 = vpack.c.bf16 %v1353, %v1352
        %v1479 = vpack.c.bf16 %v1355, %v1354
        %v1480 = vpack.c.bf16 %v1357, %v1356
        %v1481 = vpack.c.bf16 %v1359, %v1358
        %v1482 = vpack.c.bf16 %v1361, %v1360
        %v1483 = vpack.c.bf16 %v1363, %v1362
        %v1484 = vpack.c.bf16 %v1365, %v1364
        %v1485 = vpack.c.bf16 %v1367, %v1366
        %v1486 = vpack.c.bf16 %v1369, %v1368
        %v1487 = vpack.c.bf16 %v1371, %v1370
        %v1488 = vpack.c.bf16 %v1373, %v1372
        %v1489 = vpack.c.bf16 %v1375, %v1374
        %v1490 = vpack.c.bf16 %v1377, %v1376
        %v1491 = vpack.c.bf16 %v1379, %v1378
        %v1492 = vpack.c.bf16 %v1381, %v1380
        %v1493 = vpack.c.bf16 %v1383, %v1382
        %v1494 = vpack.c.bf16 %v1385, %v1384
        %v1495 = vpack.c.bf16 %v1387, %v1386
        %v1496 = vpack.c.bf16 %v1389, %v1388
        %v1497 = vpack.c.bf16 %v1391, %v1390
        %v1498 = vpack.c.bf16 %v1393, %v1392
        %v1499 = vpack.c.bf16 %v1395, %v1394
        %v1500 = vpack.c.bf16 %v1397, %v1396
        %v1501 = vpack.c.bf16 %v1399, %v1398
        %v1502 = vpack.c.bf16 %v1401, %v1400
        %v1503 = vpack.c.bf16 %v1403, %v1402
        %v1504 = vpack.c.bf16 %v1405, %v1404
        %v1505 = vpack.c.bf16 %v1407, %v1406
        %v1506 = vpack.c.bf16 %v1409, %v1408
        %v1507 = vpack.c.bf16 %v1411, %v1410
        %v1508 = vpack.c.bf16 %v1413, %v1412
        %v1509 = vpack.c.bf16 %v1415, %v1414
        %v1510 = vpack.c.bf16 %v1417, %v1416
        %v1511 = vpack.c.bf16 %v1419, %v1418
        %v1512 = vpack.c.bf16 %v1421, %v1420
        %v1513 = vpack.c.bf16 %v1423, %v1422
        %v1514 = vpack.c.bf16 %v1425, %v1424
        %v1515 = vpack.c.bf16 %v1427, %v1426
        %v1516 = vpack.c.bf16 %v1429, %v1428
        %v1517 = vpack.c.bf16 %v1431, %v1430
        %v1518 = vpack.c.bf16 %v1433, %v1432
        %v1519 = vpack.c.bf16 %v1435, %v1434
        %v1520 = vpack.c.bf16 %v1437, %v1436
        %v1521 = vpack.c.bf16 %v1439, %v1438
        %v1522 = vpack.c.bf16 %v1441, %v1440
        %v1523 = vpack.c.bf16 %v1443, %v1442
        %v1524 = vpack.c.bf16 %v1445, %v1444
        %v1525 = vpack.c.bf16 %v1447, %v1446
        %v1526 = vpack.c.bf16 %v1449, %v1448
        %v1527 = vpack.c.bf16 %v1451, %v1450
        %v1528 = vpack.c.bf16 %v1453, %v1452
        %v1529 = vpack.c.bf16 %v1455, %v1454
        %v1530 = vpack.c.bf16 %v1457, %v1456
        %v1531 = vpack.c.bf16 %v1459, %v1458
        %v1532 = vpack.c.bf16 %v1461, %v1460
        %v1533 = vpack.c.bf16 %v1463, %v1462
        %v1534 = vpack.c.bf16 %v1465, %v1464
        %v1535 = vpack.c.bf16 %v1467, %v1466
        %v1536 = vpack.c.bf16 %v1469, %v1468
        %v1537 = vpack.c.bf16 %v1471, %v1470
        %v1538 = vpack.c.bf16 %v1473, %v1472
        %v1539 = vpack.c.bf16 %v1475, %v1474
        %v1540 = vld [vmem:[%s365] sm:$0xf]
        %v1541 = vld [vmem:[%s365 + $0x4] sm:$0xf]
        %v1542 = vld [vmem:[%s365 + $0x8] sm:$0xf]
        %v1543 = vld [vmem:[%s365 + $0xc] sm:$0xf]
        %v1544 = vld [vmem:[%s365 + $0x10] sm:$0xf]
        %v1545 = vld [vmem:[%s365 + $0x14] sm:$0xf]
        %v1546 = vld [vmem:[%s365 + $0x18] sm:$0xf]
        %v1547 = vld [vmem:[%s365 + $0x1c] sm:$0xf]
        %v1548 = vld [vmem:[%s365 + $0x20] sm:$0xf]
        %v1549 = vld [vmem:[%s365 + $0x24] sm:$0xf]
        %v1550 = vld [vmem:[%s365 + $0x28] sm:$0xf]
        %v1551 = vld [vmem:[%s365 + $0x2c] sm:$0xf]
        %v1552 = vld [vmem:[%s365 + $0x30] sm:$0xf]
        %v1553 = vld [vmem:[%s365 + $0x34] sm:$0xf]
        %v1554 = vld [vmem:[%s365 + $0x38] sm:$0xf]
        %v1555 = vld [vmem:[%s365 + $0x3c] sm:$0xf]
        %v1556 = vld [vmem:[%s365 + $0x40] sm:$0xf]
        %v1557 = vld [vmem:[%s365 + $0x44] sm:$0xf]
        %v1558 = vld [vmem:[%s365 + $0x48] sm:$0xf]
        %v1559 = vld [vmem:[%s365 + $0x4c] sm:$0xf]
        %v1560 = vld [vmem:[%s365 + $0x50] sm:$0xf]
        %v1561 = vld [vmem:[%s365 + $0x54] sm:$0xf]
        %v1562 = vld [vmem:[%s365 + $0x58] sm:$0xf]
        %v1563 = vld [vmem:[%s365 + $0x5c] sm:$0xf]
        %v1564 = vld [vmem:[%s365 + $0x60] sm:$0xf]
        %v1565 = vld [vmem:[%s365 + $0x64] sm:$0xf]
        %v1566 = vld [vmem:[%s365 + $0x68] sm:$0xf]
        %v1567 = vld [vmem:[%s365 + $0x6c] sm:$0xf]
        %v1568 = vld [vmem:[%s365 + $0x70] sm:$0xf]
        %v1569 = vld [vmem:[%s365 + $0x74] sm:$0xf]
        %v1570 = vld [vmem:[%s365 + $0x78] sm:$0xf]
        %v1571 = vld [vmem:[%s365 + $0x7c] sm:$0xf]
        %v1572 = vld [vmem:[%s365 + $0x80] sm:$0xf]
        %v1573 = vld [vmem:[%s365 + $0x84] sm:$0xf]
        %v1574 = vld [vmem:[%s365 + $0x88] sm:$0xf]
        %v1575 = vld [vmem:[%s365 + $0x8c] sm:$0xf]
        %v1576 = vld [vmem:[%s365 + $0x90] sm:$0xf]
        %v1577 = vld [vmem:[%s365 + $0x94] sm:$0xf]
        %v1578 = vld [vmem:[%s365 + $0x98] sm:$0xf]
        %v1579 = vld [vmem:[%s365 + $0x9c] sm:$0xf]
        %v1580 = vld [vmem:[%s365 + $0xa0] sm:$0xf]
        %v1581 = vld [vmem:[%s365 + $0xa4] sm:$0xf]
        %v1582 = vld [vmem:[%s365 + $0xa8] sm:$0xf]
        %v1583 = vld [vmem:[%s365 + $0xac] sm:$0xf]
        %v1584 = vld [vmem:[%s365 + $0xb0] sm:$0xf]
        %v1585 = vld [vmem:[%s365 + $0xb4] sm:$0xf]
        %v1586 = vld [vmem:[%s365 + $0xb8] sm:$0xf]
        %v1587 = vld [vmem:[%s365 + $0xbc] sm:$0xf]
        %v1588 = vld [vmem:[%s365 + $0xc0] sm:$0xf]
        %v1589 = vld [vmem:[%s365 + $0xc4] sm:$0xf]
        %v1590 = vld [vmem:[%s365 + $0xc8] sm:$0xf]
        %v1591 = vld [vmem:[%s365 + $0xcc] sm:$0xf]
        %v1592 = vld [vmem:[%s365 + $0xd0] sm:$0xf]
        %v1593 = vld [vmem:[%s365 + $0xd4] sm:$0xf]
        %v1594 = vld [vmem:[%s365 + $0xd8] sm:$0xf]
        %v1595 = vld [vmem:[%s365 + $0xdc] sm:$0xf]
        %v1596 = vld [vmem:[%s365 + $0xe0] sm:$0xf]
        %v1597 = vld [vmem:[%s365 + $0xe4] sm:$0xf]
        %v1598 = vld [vmem:[%s365 + $0xe8] sm:$0xf]
        %v1599 = vld [vmem:[%s365 + $0xec] sm:$0xf]
        %v1600 = vld [vmem:[%s365 + $0xf0] sm:$0xf]
        %v1601 = vld [vmem:[%s365 + $0xf4] sm:$0xf]
        %v1602 = vld [vmem:[%s365 + $0xf8] sm:$0xf]
        %v1603 = vld [vmem:[%s365 + $0xfc] sm:$0xf]
        %v1604 = vld [vmem:[%s365 + $0x100] sm:$0xf]
        %v1605 = vld [vmem:[%s365 + $0x104] sm:$0xf]
        %v1606 = vld [vmem:[%s365 + $0x108] sm:$0xf]
        %v1607 = vld [vmem:[%s365 + $0x10c] sm:$0xf]
        %v1608 = vld [vmem:[%s365 + $0x110] sm:$0xf]
        %v1609 = vld [vmem:[%s365 + $0x114] sm:$0xf]
        %v1610 = vld [vmem:[%s365 + $0x118] sm:$0xf]
        %v1611 = vld [vmem:[%s365 + $0x11c] sm:$0xf]
        %v1612 = vld [vmem:[%s365 + $0x120] sm:$0xf]
        %v1613 = vld [vmem:[%s365 + $0x124] sm:$0xf]
        %v1614 = vld [vmem:[%s365 + $0x128] sm:$0xf]
        %v1615 = vld [vmem:[%s365 + $0x12c] sm:$0xf]
        %v1616 = vld [vmem:[%s365 + $0x130] sm:$0xf]
        %v1617 = vld [vmem:[%s365 + $0x134] sm:$0xf]
        %v1618 = vld [vmem:[%s365 + $0x138] sm:$0xf]
        %v1619 = vld [vmem:[%s365 + $0x13c] sm:$0xf]
        %v1620 = vld [vmem:[%s365 + $0x140] sm:$0xf]
        %v1621 = vld [vmem:[%s365 + $0x144] sm:$0xf]
        %v1622 = vld [vmem:[%s365 + $0x148] sm:$0xf]
        %v1623 = vld [vmem:[%s365 + $0x14c] sm:$0xf]
        %v1624 = vld [vmem:[%s365 + $0x150] sm:$0xf]
        %v1625 = vld [vmem:[%s365 + $0x154] sm:$0xf]
        %v1626 = vld [vmem:[%s365 + $0x158] sm:$0xf]
        %v1627 = vld [vmem:[%s365 + $0x15c] sm:$0xf]
        %v1628 = vld [vmem:[%s365 + $0x160] sm:$0xf]
        %v1629 = vld [vmem:[%s365 + $0x164] sm:$0xf]
        %v1630 = vld [vmem:[%s365 + $0x168] sm:$0xf]
        %v1631 = vld [vmem:[%s365 + $0x16c] sm:$0xf]
        %v1632 = vld [vmem:[%s365 + $0x170] sm:$0xf]
        %v1633 = vld [vmem:[%s365 + $0x174] sm:$0xf]
        %v1634 = vld [vmem:[%s365 + $0x178] sm:$0xf]
        %v1635 = vld [vmem:[%s365 + $0x17c] sm:$0xf]
        %v1636 = vld [vmem:[%s365 + $0x180] sm:$0xf]
        %v1637 = vld [vmem:[%s365 + $0x184] sm:$0xf]
        %v1638 = vld [vmem:[%s365 + $0x188] sm:$0xf]
        %v1639 = vld [vmem:[%s365 + $0x18c] sm:$0xf]
        %v1640 = vld [vmem:[%s365 + $0x190] sm:$0xf]
        %v1641 = vld [vmem:[%s365 + $0x194] sm:$0xf]
        %v1642 = vld [vmem:[%s365 + $0x198] sm:$0xf]
        %v1643 = vld [vmem:[%s365 + $0x19c] sm:$0xf]
        %v1644 = vld [vmem:[%s365 + $0x1a0] sm:$0xf]
        %v1645 = vld [vmem:[%s365 + $0x1a4] sm:$0xf]
        %v1646 = vld [vmem:[%s365 + $0x1a8] sm:$0xf]
        %v1647 = vld [vmem:[%s365 + $0x1ac] sm:$0xf]
        %v1648 = vld [vmem:[%s365 + $0x1b0] sm:$0xf]
        %v1649 = vld [vmem:[%s365 + $0x1b4] sm:$0xf]
        %v1650 = vld [vmem:[%s365 + $0x1b8] sm:$0xf]
        %v1651 = vld [vmem:[%s365 + $0x1bc] sm:$0xf]
        %v1652 = vld [vmem:[%s365 + $0x1c0] sm:$0xf]
        %v1653 = vld [vmem:[%s365 + $0x1c4] sm:$0xf]
        %v1654 = vld [vmem:[%s365 + $0x1c8] sm:$0xf]
        %v1655 = vld [vmem:[%s365 + $0x1cc] sm:$0xf]
        %v1656 = vld [vmem:[%s365 + $0x1d0] sm:$0xf]
        %v1657 = vld [vmem:[%s365 + $0x1d4] sm:$0xf]
        %v1658 = vld [vmem:[%s365 + $0x1d8] sm:$0xf]
        %v1659 = vld [vmem:[%s365 + $0x1dc] sm:$0xf]
        %v1660 = vld [vmem:[%s365 + $0x1e0] sm:$0xf]
        %v1661 = vld [vmem:[%s365 + $0x1e4] sm:$0xf]
        %v1662 = vld [vmem:[%s365 + $0x1e8] sm:$0xf]
        %v1663 = vld [vmem:[%s365 + $0x1ec] sm:$0xf]
        %v1664 = vld [vmem:[%s365 + $0x1f0] sm:$0xf]
        %v1665 = vld [vmem:[%s365 + $0x1f4] sm:$0xf]
        %v1666 = vld [vmem:[%s365 + $0x1f8] sm:$0xf]
        %v1667 = vld [vmem:[%s365 + $0x1fc] sm:$0xf]
        %v1668 = vmul.f32 %v510, %v900
        %v1669 = vmul.f32 %v511, %v901
        %v1670 = vmul.f32 %v512, %v902
        %v1671 = vmul.f32 %v513, %v903
        %v1672 = vmul.f32 %v514, %v904
        %v1673 = vmul.f32 %v515, %v905
        %v1674 = vmul.f32 %v516, %v906
        %v1675 = vmul.f32 %v517, %v907
        %v1676 = vmul.f32 %v518, %v908
        %v1677 = vmul.f32 %v519, %v909
        %v1678 = vmul.f32 %v520, %v910
        %v1679 = vmul.f32 %v521, %v911
        %v1680 = vmul.f32 %v522, %v912
        %v1681 = vmul.f32 %v523, %v913
        %v1682 = vmul.f32 %v524, %v914
        %v1683 = vmul.f32 %v525, %v915
        %v1684 = vmul.f32 %v526, %v916
        %v1685 = vmul.f32 %v527, %v917
        %v1686 = vmul.f32 %v528, %v918
        %v1687 = vmul.f32 %v529, %v919
        %v1688 = vmul.f32 %v530, %v920
        %v1689 = vmul.f32 %v531, %v921
        %v1690 = vmul.f32 %v532, %v922
        %v1691 = vmul.f32 %v533, %v923
        %v1692 = vmul.f32 %v534, %v924
        %v1693 = vmul.f32 %v535, %v925
        %v1694 = vmul.f32 %v536, %v926
        %v1695 = vmul.f32 %v537, %v927
        %v1696 = vmul.f32 %v538, %v928
        %v1697 = vmul.f32 %v539, %v929
        %v1698 = vmul.f32 %v540, %v930
        %v1699 = vmul.f32 %v541, %v931
        %v1700 = vmul.f32 %v542, %v932
        %v1701 = vmul.f32 %v543, %v933
        %v1702 = vmul.f32 %v544, %v934
        %v1703 = vmul.f32 %v545, %v935
        %v1704 = vmul.f32 %v546, %v936
        %v1705 = vmul.f32 %v547, %v937
        %v1706 = vmul.f32 %v548, %v938
        %v1707 = vmul.f32 %v549, %v939
        %v1708 = vmul.f32 %v550, %v940
        %v1709 = vmul.f32 %v551, %v941
        %v1710 = vmul.f32 %v552, %v942
        %v1711 = vmul.f32 %v553, %v943
        %v1712 = vmul.f32 %v554, %v944
        %v1713 = vmul.f32 %v555, %v945
        %v1714 = vmul.f32 %v556, %v946
        %v1715 = vmul.f32 %v557, %v947
        %v1716 = vmul.f32 %v558, %v948
        %v1717 = vmul.f32 %v559, %v949
        %v1718 = vmul.f32 %v560, %v950
        %v1719 = vmul.f32 %v561, %v951
        %v1720 = vmul.f32 %v562, %v952
        %v1721 = vmul.f32 %v563, %v953
        %v1722 = vmul.f32 %v564, %v954
        %v1723 = vmul.f32 %v565, %v955
        %v1724 = vmul.f32 %v566, %v956
        %v1725 = vmul.f32 %v567, %v957
        %v1726 = vmul.f32 %v568, %v958
        %v1727 = vmul.f32 %v569, %v959
        %v1728 = vmul.f32 %v570, %v960
        %v1729 = vmul.f32 %v571, %v961
        %v1730 = vmul.f32 %v572, %v962
        %v1731 = vmul.f32 %v573, %v963
        %v1732 = vmul.f32 %v574, %v964
        %v1733 = vmul.f32 %v575, %v965
        %v1734 = vmul.f32 %v576, %v966
        %v1735 = vmul.f32 %v577, %v967
        %v1736 = vmul.f32 %v578, %v968
        %v1737 = vmul.f32 %v579, %v969
        %v1738 = vmul.f32 %v580, %v970
        %v1739 = vmul.f32 %v581, %v971
        %v1740 = vmul.f32 %v582, %v972
        %v1741 = vmul.f32 %v583, %v973
        %v1742 = vmul.f32 %v584, %v974
        %v1743 = vmul.f32 %v585, %v975
        %v1744 = vmul.f32 %v586, %v976
        %v1745 = vmul.f32 %v587, %v977
        %v1746 = vmul.f32 %v588, %v978
        %v1747 = vmul.f32 %v589, %v979
        %v1748 = vmul.f32 %v590, %v980
        %v1749 = vmul.f32 %v591, %v981
        %v1750 = vmul.f32 %v592, %v982
        %v1751 = vmul.f32 %v593, %v983
        %v1752 = vmul.f32 %v594, %v984
        %v1753 = vmul.f32 %v595, %v985
        %v1754 = vmul.f32 %v596, %v986
        %v1755 = vmul.f32 %v597, %v987
        %v1756 = vmul.f32 %v598, %v988
        %v1757 = vmul.f32 %v599, %v989
        %v1758 = vmul.f32 %v600, %v990
        %v1759 = vmul.f32 %v601, %v991
        %v1760 = vmul.f32 %v602, %v992
        %v1761 = vmul.f32 %v603, %v993
        %v1762 = vmul.f32 %v604, %v994
        %v1763 = vmul.f32 %v605, %v995
        %v1764 = vmul.f32 %v606, %v996
        %v1765 = vmul.f32 %v607, %v997
        %v1766 = vmul.f32 %v608, %v998
        %v1767 = vmul.f32 %v609, %v999
        %v1768 = vmul.f32 %v610, %v1000
        %v1769 = vmul.f32 %v611, %v1001
        %v1770 = vmul.f32 %v612, %v1002
        %v1771 = vmul.f32 %v613, %v1003
        %v1772 = vmul.f32 %v614, %v1004
        %v1773 = vmul.f32 %v615, %v1005
        %v1774 = vmul.f32 %v616, %v1006
        %v1775 = vmul.f32 %v617, %v1007
        %v1776 = vmul.f32 %v618, %v1008
        %v1777 = vmul.f32 %v619, %v1009
        %v1778 = vmul.f32 %v620, %v1010
        %v1779 = vmul.f32 %v621, %v1011
        %v1780 = vmul.f32 %v622, %v1012
        %v1781 = vmul.f32 %v623, %v1013
        %v1782 = vmul.f32 %v624, %v1014
        %v1783 = vmul.f32 %v625, %v1015
        %v1784 = vmul.f32 %v626, %v1016
        %v1785 = vmul.f32 %v627, %v1017
        %v1786 = vmul.f32 %v628, %v1018
        %v1787 = vmul.f32 %v629, %v1019
        %v1788 = vmul.f32 %v630, %v1020
        %v1789 = vmul.f32 %v631, %v1021
        %v1790 = vmul.f32 %v632, %v1022
        %v1791 = vmul.f32 %v633, %v1023
        %v1792 = vmul.f32 %v634, %v1024
        %v1793 = vmul.f32 %v635, %v1025
        %v1794 = vmul.f32 %v636, %v1026
        %v1795 = vmul.f32 %v637, %v1027
        %1796 = vadd.xlane.f32.xlu0 %v1668
        %v1797 = vpop.xlane.xlu0 %1796
        %1798 = vadd.xlane.f32.xlu0 %v1669
        %v1799 = vpop.xlane.xlu0 %1798
        %1800 = vadd.xlane.f32.xlu0 %v1670
        %v1801 = vpop.xlane.xlu0 %1800
        %1802 = vadd.xlane.f32.xlu0 %v1671
        %v1803 = vpop.xlane.xlu0 %1802
        %1804 = vadd.xlane.f32.xlu0 %v1672
        %v1805 = vpop.xlane.xlu0 %1804
        %1806 = vadd.xlane.f32.xlu0 %v1673
        %v1807 = vpop.xlane.xlu0 %1806
        %1808 = vadd.xlane.f32.xlu0 %v1674
        %v1809 = vpop.xlane.xlu0 %1808
        %1810 = vadd.xlane.f32.xlu0 %v1675
        %v1811 = vpop.xlane.xlu0 %1810
        %1812 = vadd.xlane.f32.xlu0 %v1676
        %v1813 = vpop.xlane.xlu0 %1812
        %1814 = vadd.xlane.f32.xlu0 %v1677
        %v1815 = vpop.xlane.xlu0 %1814
        %1816 = vadd.xlane.f32.xlu0 %v1678
        %v1817 = vpop.xlane.xlu0 %1816
        %1818 = vadd.xlane.f32.xlu0 %v1679
        %v1819 = vpop.xlane.xlu0 %1818
        %1820 = vadd.xlane.f32.xlu0 %v1680
        %v1821 = vpop.xlane.xlu0 %1820
        %1822 = vadd.xlane.f32.xlu0 %v1681
        %v1823 = vpop.xlane.xlu0 %1822
        %1824 = vadd.xlane.f32.xlu0 %v1682
        %v1825 = vpop.xlane.xlu0 %1824
        %1826 = vadd.xlane.f32.xlu0 %v1683
        %v1827 = vpop.xlane.xlu0 %1826
        %1828 = vadd.xlane.f32.xlu0 %v1684
        %v1829 = vpop.xlane.xlu0 %1828
        %1830 = vadd.xlane.f32.xlu0 %v1685
        %v1831 = vpop.xlane.xlu0 %1830
        %1832 = vadd.xlane.f32.xlu0 %v1686
        %v1833 = vpop.xlane.xlu0 %1832
        %1834 = vadd.xlane.f32.xlu0 %v1687
        %v1835 = vpop.xlane.xlu0 %1834
        %1836 = vadd.xlane.f32.xlu0 %v1688
        %v1837 = vpop.xlane.xlu0 %1836
        %1838 = vadd.xlane.f32.xlu0 %v1689
        %v1839 = vpop.xlane.xlu0 %1838
        %1840 = vadd.xlane.f32.xlu0 %v1690
        %v1841 = vpop.xlane.xlu0 %1840
        %1842 = vadd.xlane.f32.xlu0 %v1691
        %v1843 = vpop.xlane.xlu0 %1842
        %1844 = vadd.xlane.f32.xlu0 %v1692
        %v1845 = vpop.xlane.xlu0 %1844
        %1846 = vadd.xlane.f32.xlu0 %v1693
        %v1847 = vpop.xlane.xlu0 %1846
        %1848 = vadd.xlane.f32.xlu0 %v1694
        %v1849 = vpop.xlane.xlu0 %1848
        %1850 = vadd.xlane.f32.xlu0 %v1695
        %v1851 = vpop.xlane.xlu0 %1850
        %1852 = vadd.xlane.f32.xlu0 %v1696
        %v1853 = vpop.xlane.xlu0 %1852
        %1854 = vadd.xlane.f32.xlu0 %v1697
        %v1855 = vpop.xlane.xlu0 %1854
        %1856 = vadd.xlane.f32.xlu0 %v1698
        %v1857 = vpop.xlane.xlu0 %1856
        %1858 = vadd.xlane.f32.xlu0 %v1699
        %v1859 = vpop.xlane.xlu0 %1858
        %1860 = vadd.xlane.f32.xlu0 %v1700
        %v1861 = vpop.xlane.xlu0 %1860
        %1862 = vadd.xlane.f32.xlu0 %v1701
        %v1863 = vpop.xlane.xlu0 %1862
        %1864 = vadd.xlane.f32.xlu0 %v1702
        %v1865 = vpop.xlane.xlu0 %1864
        %1866 = vadd.xlane.f32.xlu0 %v1703
        %v1867 = vpop.xlane.xlu0 %1866
        %1868 = vadd.xlane.f32.xlu0 %v1704
        %v1869 = vpop.xlane.xlu0 %1868
        %1870 = vadd.xlane.f32.xlu0 %v1705
        %v1871 = vpop.xlane.xlu0 %1870
        %1872 = vadd.xlane.f32.xlu0 %v1706
        %v1873 = vpop.xlane.xlu0 %1872
        %1874 = vadd.xlane.f32.xlu0 %v1707
        %v1875 = vpop.xlane.xlu0 %1874
        %1876 = vadd.xlane.f32.xlu0 %v1708
        %v1877 = vpop.xlane.xlu0 %1876
        %1878 = vadd.xlane.f32.xlu0 %v1709
        %v1879 = vpop.xlane.xlu0 %1878
        %1880 = vadd.xlane.f32.xlu0 %v1710
        %v1881 = vpop.xlane.xlu0 %1880
        %1882 = vadd.xlane.f32.xlu0 %v1711
        %v1883 = vpop.xlane.xlu0 %1882
        %1884 = vadd.xlane.f32.xlu0 %v1712
        %v1885 = vpop.xlane.xlu0 %1884
        %1886 = vadd.xlane.f32.xlu0 %v1713
        %v1887 = vpop.xlane.xlu0 %1886
        %1888 = vadd.xlane.f32.xlu0 %v1714
        %v1889 = vpop.xlane.xlu0 %1888
        %1890 = vadd.xlane.f32.xlu0 %v1715
        %v1891 = vpop.xlane.xlu0 %1890
        %1892 = vadd.xlane.f32.xlu0 %v1716
        %v1893 = vpop.xlane.xlu0 %1892
        %1894 = vadd.xlane.f32.xlu0 %v1717
        %v1895 = vpop.xlane.xlu0 %1894
        %1896 = vadd.xlane.f32.xlu0 %v1718
        %v1897 = vpop.xlane.xlu0 %1896
        %1898 = vadd.xlane.f32.xlu0 %v1719
        %v1899 = vpop.xlane.xlu0 %1898
        %1900 = vadd.xlane.f32.xlu0 %v1720
        %v1901 = vpop.xlane.xlu0 %1900
        %1902 = vadd.xlane.f32.xlu0 %v1721
        %v1903 = vpop.xlane.xlu0 %1902
        %1904 = vadd.xlane.f32.xlu0 %v1722
        %v1905 = vpop.xlane.xlu0 %1904
        %1906 = vadd.xlane.f32.xlu0 %v1723
        %v1907 = vpop.xlane.xlu0 %1906
        %1908 = vadd.xlane.f32.xlu0 %v1724
        %v1909 = vpop.xlane.xlu0 %1908
        %1910 = vadd.xlane.f32.xlu0 %v1725
        %v1911 = vpop.xlane.xlu0 %1910
        %1912 = vadd.xlane.f32.xlu0 %v1726
        %v1913 = vpop.xlane.xlu0 %1912
        %1914 = vadd.xlane.f32.xlu0 %v1727
        %v1915 = vpop.xlane.xlu0 %1914
        %1916 = vadd.xlane.f32.xlu0 %v1728
        %v1917 = vpop.xlane.xlu0 %1916
        %1918 = vadd.xlane.f32.xlu0 %v1729
        %v1919 = vpop.xlane.xlu0 %1918
        %1920 = vadd.xlane.f32.xlu0 %v1730
        %v1921 = vpop.xlane.xlu0 %1920
        %1922 = vadd.xlane.f32.xlu0 %v1731
        %v1923 = vpop.xlane.xlu0 %1922
        %1924 = vadd.xlane.f32.xlu0 %v1732
        %v1925 = vpop.xlane.xlu0 %1924
        %1926 = vadd.xlane.f32.xlu0 %v1733
        %v1927 = vpop.xlane.xlu0 %1926
        %1928 = vadd.xlane.f32.xlu0 %v1734
        %v1929 = vpop.xlane.xlu0 %1928
        %1930 = vadd.xlane.f32.xlu0 %v1735
        %v1931 = vpop.xlane.xlu0 %1930
        %1932 = vadd.xlane.f32.xlu0 %v1736
        %v1933 = vpop.xlane.xlu0 %1932
        %1934 = vadd.xlane.f32.xlu0 %v1737
        %v1935 = vpop.xlane.xlu0 %1934
        %1936 = vadd.xlane.f32.xlu0 %v1738
        %v1937 = vpop.xlane.xlu0 %1936
        %1938 = vadd.xlane.f32.xlu0 %v1739
        %v1939 = vpop.xlane.xlu0 %1938
        %1940 = vadd.xlane.f32.xlu0 %v1740
        %v1941 = vpop.xlane.xlu0 %1940
        %1942 = vadd.xlane.f32.xlu0 %v1741
        %v1943 = vpop.xlane.xlu0 %1942
        %1944 = vadd.xlane.f32.xlu0 %v1742
        %v1945 = vpop.xlane.xlu0 %1944
        %1946 = vadd.xlane.f32.xlu0 %v1743
        %v1947 = vpop.xlane.xlu0 %1946
        %1948 = vadd.xlane.f32.xlu0 %v1744
        %v1949 = vpop.xlane.xlu0 %1948
        %1950 = vadd.xlane.f32.xlu0 %v1745
        %v1951 = vpop.xlane.xlu0 %1950
        %1952 = vadd.xlane.f32.xlu0 %v1746
        %v1953 = vpop.xlane.xlu0 %1952
        %1954 = vadd.xlane.f32.xlu0 %v1747
        %v1955 = vpop.xlane.xlu0 %1954
        %1956 = vadd.xlane.f32.xlu0 %v1748
        %v1957 = vpop.xlane.xlu0 %1956
        %1958 = vadd.xlane.f32.xlu0 %v1749
        %v1959 = vpop.xlane.xlu0 %1958
        %1960 = vadd.xlane.f32.xlu0 %v1750
        %v1961 = vpop.xlane.xlu0 %1960
        %1962 = vadd.xlane.f32.xlu0 %v1751
        %v1963 = vpop.xlane.xlu0 %1962
        %1964 = vadd.xlane.f32.xlu0 %v1752
        %v1965 = vpop.xlane.xlu0 %1964
        %1966 = vadd.xlane.f32.xlu0 %v1753
        %v1967 = vpop.xlane.xlu0 %1966
        %1968 = vadd.xlane.f32.xlu0 %v1754
        %v1969 = vpop.xlane.xlu0 %1968
        %1970 = vadd.xlane.f32.xlu0 %v1755
        %v1971 = vpop.xlane.xlu0 %1970
        %1972 = vadd.xlane.f32.xlu0 %v1756
        %v1973 = vpop.xlane.xlu0 %1972
        %1974 = vadd.xlane.f32.xlu0 %v1757
        %v1975 = vpop.xlane.xlu0 %1974
        %1976 = vadd.xlane.f32.xlu0 %v1758
        %v1977 = vpop.xlane.xlu0 %1976
        %1978 = vadd.xlane.f32.xlu0 %v1759
        %v1979 = vpop.xlane.xlu0 %1978
        %1980 = vadd.xlane.f32.xlu0 %v1760
        %v1981 = vpop.xlane.xlu0 %1980
        %1982 = vadd.xlane.f32.xlu0 %v1761
        %v1983 = vpop.xlane.xlu0 %1982
        %1984 = vadd.xlane.f32.xlu0 %v1762
        %v1985 = vpop.xlane.xlu0 %1984
        %1986 = vadd.xlane.f32.xlu0 %v1763
        %v1987 = vpop.xlane.xlu0 %1986
        %1988 = vadd.xlane.f32.xlu0 %v1764
        %v1989 = vpop.xlane.xlu0 %1988
        %1990 = vadd.xlane.f32.xlu0 %v1765
        %v1991 = vpop.xlane.xlu0 %1990
        %1992 = vadd.xlane.f32.xlu0 %v1766
        %v1993 = vpop.xlane.xlu0 %1992
        %1994 = vadd.xlane.f32.xlu0 %v1767
        %v1995 = vpop.xlane.xlu0 %1994
        %1996 = vadd.xlane.f32.xlu0 %v1768
        %v1997 = vpop.xlane.xlu0 %1996
        %1998 = vadd.xlane.f32.xlu0 %v1769
        %v1999 = vpop.xlane.xlu0 %1998
        %2000 = vadd.xlane.f32.xlu0 %v1770
        %v2001 = vpop.xlane.xlu0 %2000
        %2002 = vadd.xlane.f32.xlu0 %v1771
        %v2003 = vpop.xlane.xlu0 %2002
        %2004 = vadd.xlane.f32.xlu0 %v1772
        %v2005 = vpop.xlane.xlu0 %2004
        %2006 = vadd.xlane.f32.xlu0 %v1773
        %v2007 = vpop.xlane.xlu0 %2006
        %2008 = vadd.xlane.f32.xlu0 %v1774
        %v2009 = vpop.xlane.xlu0 %2008
        %2010 = vadd.xlane.f32.xlu0 %v1775
        %v2011 = vpop.xlane.xlu0 %2010
        %2012 = vadd.xlane.f32.xlu0 %v1776
        %v2013 = vpop.xlane.xlu0 %2012
        %2014 = vadd.xlane.f32.xlu0 %v1777
        %v2015 = vpop.xlane.xlu0 %2014
        %2016 = vadd.xlane.f32.xlu0 %v1778
        %v2017 = vpop.xlane.xlu0 %2016
        %2018 = vadd.xlane.f32.xlu0 %v1779
        %v2019 = vpop.xlane.xlu0 %2018
        %2020 = vadd.xlane.f32.xlu0 %v1780
        %v2021 = vpop.xlane.xlu0 %2020
        %2022 = vadd.xlane.f32.xlu0 %v1781
        %v2023 = vpop.xlane.xlu0 %2022
        %2024 = vadd.xlane.f32.xlu0 %v1782
        %v2025 = vpop.xlane.xlu0 %2024
        %2026 = vadd.xlane.f32.xlu0 %v1783
        %v2027 = vpop.xlane.xlu0 %2026
        %2028 = vadd.xlane.f32.xlu0 %v1784
        %v2029 = vpop.xlane.xlu0 %2028
        %2030 = vadd.xlane.f32.xlu0 %v1785
        %v2031 = vpop.xlane.xlu0 %2030
        %2032 = vadd.xlane.f32.xlu0 %v1786
        %v2033 = vpop.xlane.xlu0 %2032
        %2034 = vadd.xlane.f32.xlu0 %v1787
        %v2035 = vpop.xlane.xlu0 %2034
        %2036 = vadd.xlane.f32.xlu0 %v1788
        %v2037 = vpop.xlane.xlu0 %2036
        %2038 = vadd.xlane.f32.xlu0 %v1789
        %v2039 = vpop.xlane.xlu0 %2038
        %2040 = vadd.xlane.f32.xlu0 %v1790
        %v2041 = vpop.xlane.xlu0 %2040
        %2042 = vadd.xlane.f32.xlu0 %v1791
        %v2043 = vpop.xlane.xlu0 %2042
        %2044 = vadd.xlane.f32.xlu0 %v1792
        %v2045 = vpop.xlane.xlu0 %2044
        %2046 = vadd.xlane.f32.xlu0 %v1793
        %v2047 = vpop.xlane.xlu0 %2046
        %2048 = vadd.xlane.f32.xlu0 %v1794
        %v2049 = vpop.xlane.xlu0 %2048
        %2050 = vadd.xlane.f32.xlu0 %v1795
        %v2051 = vpop.xlane.xlu0 %2050
        %v2180 = vlaneseq
        %v2181 = vand.u32 %v2180, 127
        %v2182 = vlaneseq
        %v2183 = vshrl.u32 %v2182, 7
        %v2184 = vsub.s32 %v2181, %v2183
        %v2185 = vrot.slane %v1797, %v2184
        %v2186 = vadd.s32 %v2181, 4294967288
        %v2187 = vlaneseq
        %v2188 = vshrl.u32 %v2187, 7
        %v2189 = vsub.s32 %v2186, %v2188
        %v2190 = vrot.slane %v1799, %v2189
        %vm2191 = vcmask 130112
        %v2192 = vsel %vm2191, %v2190, %v2185
        %v2193 = vadd.s32 %v2181, 4294967280
        %v2194 = vlaneseq
        %v2195 = vshrl.u32 %v2194, 7
        %v2196 = vsub.s32 %v2193, %v2195
        %v2197 = vrot.slane %v1801, %v2196
        %vm2198 = vcmask 195712
        %v2199 = vsel %vm2198, %v2197, %v2192
        %v2200 = vadd.s32 %v2181, 4294967272
        %v2201 = vlaneseq
        %v2202 = vshrl.u32 %v2201, 7
        %v2203 = vsub.s32 %v2200, %v2202
        %v2204 = vrot.slane %v1803, %v2203
        %vm2205 = vcmask 261312
        %v2206 = vsel %vm2205, %v2204, %v2199
        %v2207 = vadd.s32 %v2181, 4294967264
        %v2208 = vlaneseq
        %v2209 = vshrl.u32 %v2208, 7
        %v2210 = vsub.s32 %v2207, %v2209
        %v2211 = vrot.slane %v1805, %v2210
        %vm2212 = vcmask 326912
        %v2213 = vsel %vm2212, %v2211, %v2206
        %v2214 = vadd.s32 %v2181, 4294967256
        %v2215 = vlaneseq
        %v2216 = vshrl.u32 %v2215, 7
        %v2217 = vsub.s32 %v2214, %v2216
        %v2218 = vrot.slane %v1807, %v2217
        %vm2219 = vcmask 392512
        %v2220 = vsel %vm2219, %v2218, %v2213
        %v2221 = vadd.s32 %v2181, 4294967248
        %v2222 = vlaneseq
        %v2223 = vshrl.u32 %v2222, 7
        %v2224 = vsub.s32 %v2221, %v2223
        %v2225 = vrot.slane %v1809, %v2224
        %vm2226 = vcmask 458112
        %v2227 = vsel %vm2226, %v2225, %v2220
        %v2228 = vadd.s32 %v2181, 4294967240
        %v2229 = vlaneseq
        %v2230 = vshrl.u32 %v2229, 7
        %v2231 = vsub.s32 %v2228, %v2230
        %v2232 = vrot.slane %v1811, %v2231
        %vm2233 = vcmask 523712
        %v2234 = vsel %vm2233, %v2232, %v2227
        %v2235 = vadd.s32 %v2181, 4294967232
        %v2236 = vlaneseq
        %v2237 = vshrl.u32 %v2236, 7
        %v2238 = vsub.s32 %v2235, %v2237
        %v2239 = vrot.slane %v1813, %v2238
        %vm2240 = vcmask 589312
        %v2241 = vsel %vm2240, %v2239, %v2234
        %v2242 = vadd.s32 %v2181, 4294967224
        %v2243 = vlaneseq
        %v2244 = vshrl.u32 %v2243, 7
        %v2245 = vsub.s32 %v2242, %v2244
        %v2246 = vrot.slane %v1815, %v2245
        %vm2247 = vcmask 654912
        %v2248 = vsel %vm2247, %v2246, %v2241
        %v2249 = vadd.s32 %v2181, 4294967216
        %v2250 = vlaneseq
        %v2251 = vshrl.u32 %v2250, 7
        %v2252 = vsub.s32 %v2249, %v2251
        %v2253 = vrot.slane %v1817, %v2252
        %vm2254 = vcmask 720512
        %v2255 = vsel %vm2254, %v2253, %v2248
        %v2256 = vadd.s32 %v2181, 4294967208
        %v2257 = vlaneseq
        %v2258 = vshrl.u32 %v2257, 7
        %v2259 = vsub.s32 %v2256, %v2258
        %v2260 = vrot.slane %v1819, %v2259
        %vm2261 = vcmask 786112
        %v2262 = vsel %vm2261, %v2260, %v2255
        %v2263 = vadd.s32 %v2181, 4294967200
        %v2264 = vlaneseq
        %v2265 = vshrl.u32 %v2264, 7
        %v2266 = vsub.s32 %v2263, %v2265
        %v2267 = vrot.slane %v1821, %v2266
        %vm2268 = vcmask 851712
        %v2269 = vsel %vm2268, %v2267, %v2262
        %v2270 = vadd.s32 %v2181, 4294967192
        %v2271 = vlaneseq
        %v2272 = vshrl.u32 %v2271, 7
        %v2273 = vsub.s32 %v2270, %v2272
        %v2274 = vrot.slane %v1823, %v2273
        %vm2275 = vcmask 917312
        %v2276 = vsel %vm2275, %v2274, %v2269
        %v2277 = vadd.s32 %v2181, 4294967184
        %v2278 = vlaneseq
        %v2279 = vshrl.u32 %v2278, 7
        %v2280 = vsub.s32 %v2277, %v2279
        %v2281 = vrot.slane %v1825, %v2280
        %vm2282 = vcmask 982912
        %v2283 = vsel %vm2282, %v2281, %v2276
        %v2284 = vadd.s32 %v2181, 4294967176
        %v2285 = vlaneseq
        %v2286 = vshrl.u32 %v2285, 7
        %v2287 = vsub.s32 %v2284, %v2286
        %v2288 = vrot.slane %v1827, %v2287
        %vm2289 = vcmask 1048512
        %v2290 = vsel %vm2289, %v2288, %v2283
        %v2291 = vlaneseq
        %v2292 = vshrl.u32 %v2291, 7
        %v2293 = vsub.s32 %v2181, %v2292
        %v2294 = vrot.slane %v1829, %v2293
        %v2295 = vlaneseq
        %v2296 = vshrl.u32 %v2295, 7
        %v2297 = vsub.s32 %v2186, %v2296
        %v2298 = vrot.slane %v1831, %v2297
        %v2299 = vsel %vm2191, %v2298, %v2294
        %v2300 = vlaneseq
        %v2301 = vshrl.u32 %v2300, 7
        %v2302 = vsub.s32 %v2193, %v2301
        %v2303 = vrot.slane %v1833, %v2302
        %v2304 = vsel %vm2198, %v2303, %v2299
        %v2305 = vlaneseq
        %v2306 = vshrl.u32 %v2305, 7
        %v2307 = vsub.s32 %v2200, %v2306
        %v2308 = vrot.slane %v1835, %v2307
        %v2309 = vsel %vm2205, %v2308, %v2304
        %v2310 = vlaneseq
        %v2311 = vshrl.u32 %v2310, 7
        %v2312 = vsub.s32 %v2207, %v2311
        %v2313 = vrot.slane %v1837, %v2312
        %v2314 = vsel %vm2212, %v2313, %v2309
        %v2315 = vlaneseq
        %v2316 = vshrl.u32 %v2315, 7
        %v2317 = vsub.s32 %v2214, %v2316
        %v2318 = vrot.slane %v1839, %v2317
        %v2319 = vsel %vm2219, %v2318, %v2314
        %v2320 = vlaneseq
        %v2321 = vshrl.u32 %v2320, 7
        %v2322 = vsub.s32 %v2221, %v2321
        %v2323 = vrot.slane %v1841, %v2322
        %v2324 = vsel %vm2226, %v2323, %v2319
        %v2325 = vlaneseq
        %v2326 = vshrl.u32 %v2325, 7
        %v2327 = vsub.s32 %v2228, %v2326
        %v2328 = vrot.slane %v1843, %v2327
        %v2329 = vsel %vm2233, %v2328, %v2324
        %v2330 = vlaneseq
        %v2331 = vshrl.u32 %v2330, 7
        %v2332 = vsub.s32 %v2235, %v2331
        %v2333 = vrot.slane %v1845, %v2332
        %v2334 = vsel %vm2240, %v2333, %v2329
        %v2335 = vlaneseq
        %v2336 = vshrl.u32 %v2335, 7
        %v2337 = vsub.s32 %v2242, %v2336
        %v2338 = vrot.slane %v1847, %v2337
        %v2339 = vsel %vm2247, %v2338, %v2334
        %v2340 = vlaneseq
        %v2341 = vshrl.u32 %v2340, 7
        %v2342 = vsub.s32 %v2249, %v2341
        %v2343 = vrot.slane %v1849, %v2342
        %v2344 = vsel %vm2254, %v2343, %v2339
        %v2345 = vlaneseq
        %v2346 = vshrl.u32 %v2345, 7
        %v2347 = vsub.s32 %v2256, %v2346
        %v2348 = vrot.slane %v1851, %v2347
        %v2349 = vsel %vm2261, %v2348, %v2344
        %v2350 = vlaneseq
        %v2351 = vshrl.u32 %v2350, 7
        %v2352 = vsub.s32 %v2263, %v2351
        %v2353 = vrot.slane %v1853, %v2352
        %v2354 = vsel %vm2268, %v2353, %v2349
        %v2355 = vlaneseq
        %v2356 = vshrl.u32 %v2355, 7
        %v2357 = vsub.s32 %v2270, %v2356
        %v2358 = vrot.slane %v1855, %v2357
        %v2359 = vsel %vm2275, %v2358, %v2354
        %v2360 = vlaneseq
        %v2361 = vshrl.u32 %v2360, 7
        %v2362 = vsub.s32 %v2277, %v2361
        %v2363 = vrot.slane %v1857, %v2362
        %v2364 = vsel %vm2282, %v2363, %v2359
        %v2365 = vlaneseq
        %v2366 = vshrl.u32 %v2365, 7
        %v2367 = vsub.s32 %v2284, %v2366
        %v2368 = vrot.slane %v1859, %v2367
        %v2369 = vsel %vm2289, %v2368, %v2364
        %v2370 = vlaneseq
        %v2371 = vshrl.u32 %v2370, 7
        %v2372 = vsub.s32 %v2181, %v2371
        %v2373 = vrot.slane %v1861, %v2372
        %v2374 = vlaneseq
        %v2375 = vshrl.u32 %v2374, 7
        %v2376 = vsub.s32 %v2186, %v2375
        %v2377 = vrot.slane %v1863, %v2376
        %v2378 = vsel %vm2191, %v2377, %v2373
        %v2379 = vlaneseq
        %v2380 = vshrl.u32 %v2379, 7
        %v2381 = vsub.s32 %v2193, %v2380
        %v2382 = vrot.slane %v1865, %v2381
        %v2383 = vsel %vm2198, %v2382, %v2378
        %v2384 = vlaneseq
        %v2385 = vshrl.u32 %v2384, 7
        %v2386 = vsub.s32 %v2200, %v2385
        %v2387 = vrot.slane %v1867, %v2386
        %v2388 = vsel %vm2205, %v2387, %v2383
        %v2389 = vlaneseq
        %v2390 = vshrl.u32 %v2389, 7
        %v2391 = vsub.s32 %v2207, %v2390
        %v2392 = vrot.slane %v1869, %v2391
        %v2393 = vsel %vm2212, %v2392, %v2388
        %v2394 = vlaneseq
        %v2395 = vshrl.u32 %v2394, 7
        %v2396 = vsub.s32 %v2214, %v2395
        %v2397 = vrot.slane %v1871, %v2396
        %v2398 = vsel %vm2219, %v2397, %v2393
        %v2399 = vlaneseq
        %v2400 = vshrl.u32 %v2399, 7
        %v2401 = vsub.s32 %v2221, %v2400
        %v2402 = vrot.slane %v1873, %v2401
        %v2403 = vsel %vm2226, %v2402, %v2398
        %v2404 = vlaneseq
        %v2405 = vshrl.u32 %v2404, 7
        %v2406 = vsub.s32 %v2228, %v2405
        %v2407 = vrot.slane %v1875, %v2406
        %v2408 = vsel %vm2233, %v2407, %v2403
        %v2409 = vlaneseq
        %v2410 = vshrl.u32 %v2409, 7
        %v2411 = vsub.s32 %v2235, %v2410
        %v2412 = vrot.slane %v1877, %v2411
        %v2413 = vsel %vm2240, %v2412, %v2408
        %v2414 = vlaneseq
        %v2415 = vshrl.u32 %v2414, 7
        %v2416 = vsub.s32 %v2242, %v2415
        %v2417 = vrot.slane %v1879, %v2416
        %v2418 = vsel %vm2247, %v2417, %v2413
        %v2419 = vlaneseq
        %v2420 = vshrl.u32 %v2419, 7
        %v2421 = vsub.s32 %v2249, %v2420
        %v2422 = vrot.slane %v1881, %v2421
        %v2423 = vsel %vm2254, %v2422, %v2418
        %v2424 = vlaneseq
        %v2425 = vshrl.u32 %v2424, 7
        %v2426 = vsub.s32 %v2256, %v2425
        %v2427 = vrot.slane %v1883, %v2426
        %v2428 = vsel %vm2261, %v2427, %v2423
        %v2429 = vlaneseq
        %v2430 = vshrl.u32 %v2429, 7
        %v2431 = vsub.s32 %v2263, %v2430
        %v2432 = vrot.slane %v1885, %v2431
        %v2433 = vsel %vm2268, %v2432, %v2428
        %v2434 = vlaneseq
        %v2435 = vshrl.u32 %v2434, 7
        %v2436 = vsub.s32 %v2270, %v2435
        %v2437 = vrot.slane %v1887, %v2436
        %v2438 = vsel %vm2275, %v2437, %v2433
        %v2439 = vlaneseq
        %v2440 = vshrl.u32 %v2439, 7
        %v2441 = vsub.s32 %v2277, %v2440
        %v2442 = vrot.slane %v1889, %v2441
        %v2443 = vsel %vm2282, %v2442, %v2438
        %v2444 = vlaneseq
        %v2445 = vshrl.u32 %v2444, 7
        %v2446 = vsub.s32 %v2284, %v2445
        %v2447 = vrot.slane %v1891, %v2446
        %v2448 = vsel %vm2289, %v2447, %v2443
        %v2449 = vlaneseq
        %v2450 = vshrl.u32 %v2449, 7
        %v2451 = vsub.s32 %v2181, %v2450
        %v2452 = vrot.slane %v1893, %v2451
        %v2453 = vlaneseq
        %v2454 = vshrl.u32 %v2453, 7
        %v2455 = vsub.s32 %v2186, %v2454
        %v2456 = vrot.slane %v1895, %v2455
        %v2457 = vsel %vm2191, %v2456, %v2452
        %v2458 = vlaneseq
        %v2459 = vshrl.u32 %v2458, 7
        %v2460 = vsub.s32 %v2193, %v2459
        %v2461 = vrot.slane %v1897, %v2460
        %v2462 = vsel %vm2198, %v2461, %v2457
        %v2463 = vlaneseq
        %v2464 = vshrl.u32 %v2463, 7
        %v2465 = vsub.s32 %v2200, %v2464
        %v2466 = vrot.slane %v1899, %v2465
        %v2467 = vsel %vm2205, %v2466, %v2462
        %v2468 = vlaneseq
        %v2469 = vshrl.u32 %v2468, 7
        %v2470 = vsub.s32 %v2207, %v2469
        %v2471 = vrot.slane %v1901, %v2470
        %v2472 = vsel %vm2212, %v2471, %v2467
        %v2473 = vlaneseq
        %v2474 = vshrl.u32 %v2473, 7
        %v2475 = vsub.s32 %v2214, %v2474
        %v2476 = vrot.slane %v1903, %v2475
        %v2477 = vsel %vm2219, %v2476, %v2472
        %v2478 = vlaneseq
        %v2479 = vshrl.u32 %v2478, 7
        %v2480 = vsub.s32 %v2221, %v2479
        %v2481 = vrot.slane %v1905, %v2480
        %v2482 = vsel %vm2226, %v2481, %v2477
        %v2483 = vlaneseq
        %v2484 = vshrl.u32 %v2483, 7
        %v2485 = vsub.s32 %v2228, %v2484
        %v2486 = vrot.slane %v1907, %v2485
        %v2487 = vsel %vm2233, %v2486, %v2482
        %v2488 = vlaneseq
        %v2489 = vshrl.u32 %v2488, 7
        %v2490 = vsub.s32 %v2235, %v2489
        %v2491 = vrot.slane %v1909, %v2490
        %v2492 = vsel %vm2240, %v2491, %v2487
        %v2493 = vlaneseq
        %v2494 = vshrl.u32 %v2493, 7
        %v2495 = vsub.s32 %v2242, %v2494
        %v2496 = vrot.slane %v1911, %v2495
        %v2497 = vsel %vm2247, %v2496, %v2492
        %v2498 = vlaneseq
        %v2499 = vshrl.u32 %v2498, 7
        %v2500 = vsub.s32 %v2249, %v2499
        %v2501 = vrot.slane %v1913, %v2500
        %v2502 = vsel %vm2254, %v2501, %v2497
        %v2503 = vlaneseq
        %v2504 = vshrl.u32 %v2503, 7
        %v2505 = vsub.s32 %v2256, %v2504
        %v2506 = vrot.slane %v1915, %v2505
        %v2507 = vsel %vm2261, %v2506, %v2502
        %v2508 = vlaneseq
        %v2509 = vshrl.u32 %v2508, 7
        %v2510 = vsub.s32 %v2263, %v2509
        %v2511 = vrot.slane %v1917, %v2510
        %v2512 = vsel %vm2268, %v2511, %v2507
        %v2513 = vlaneseq
        %v2514 = vshrl.u32 %v2513, 7
        %v2515 = vsub.s32 %v2270, %v2514
        %v2516 = vrot.slane %v1919, %v2515
        %v2517 = vsel %vm2275, %v2516, %v2512
        %v2518 = vlaneseq
        %v2519 = vshrl.u32 %v2518, 7
        %v2520 = vsub.s32 %v2277, %v2519
        %v2521 = vrot.slane %v1921, %v2520
        %v2522 = vsel %vm2282, %v2521, %v2517
        %v2523 = vlaneseq
        %v2524 = vshrl.u32 %v2523, 7
        %v2525 = vsub.s32 %v2284, %v2524
        %v2526 = vrot.slane %v1923, %v2525
        %v2527 = vsel %vm2289, %v2526, %v2522
        %v2528 = vlaneseq
        %v2529 = vshrl.u32 %v2528, 7
        %v2530 = vsub.s32 %v2181, %v2529
        %v2531 = vrot.slane %v1925, %v2530
        %v2532 = vlaneseq
        %v2533 = vshrl.u32 %v2532, 7
        %v2534 = vsub.s32 %v2186, %v2533
        %v2535 = vrot.slane %v1927, %v2534
        %v2536 = vsel %vm2191, %v2535, %v2531
        %v2537 = vlaneseq
        %v2538 = vshrl.u32 %v2537, 7
        %v2539 = vsub.s32 %v2193, %v2538
        %v2540 = vrot.slane %v1929, %v2539
        %v2541 = vsel %vm2198, %v2540, %v2536
        %v2542 = vlaneseq
        %v2543 = vshrl.u32 %v2542, 7
        %v2544 = vsub.s32 %v2200, %v2543
        %v2545 = vrot.slane %v1931, %v2544
        %v2546 = vsel %vm2205, %v2545, %v2541
        %v2547 = vlaneseq
        %v2548 = vshrl.u32 %v2547, 7
        %v2549 = vsub.s32 %v2207, %v2548
        %v2550 = vrot.slane %v1933, %v2549
        %v2551 = vsel %vm2212, %v2550, %v2546
        %v2552 = vlaneseq
        %v2553 = vshrl.u32 %v2552, 7
        %v2554 = vsub.s32 %v2214, %v2553
        %v2555 = vrot.slane %v1935, %v2554
        %v2556 = vsel %vm2219, %v2555, %v2551
        %v2557 = vlaneseq
        %v2558 = vshrl.u32 %v2557, 7
        %v2559 = vsub.s32 %v2221, %v2558
        %v2560 = vrot.slane %v1937, %v2559
        %v2561 = vsel %vm2226, %v2560, %v2556
        %v2562 = vlaneseq
        %v2563 = vshrl.u32 %v2562, 7
        %v2564 = vsub.s32 %v2228, %v2563
        %v2565 = vrot.slane %v1939, %v2564
        %v2566 = vsel %vm2233, %v2565, %v2561
        %v2567 = vlaneseq
        %v2568 = vshrl.u32 %v2567, 7
        %v2569 = vsub.s32 %v2235, %v2568
        %v2570 = vrot.slane %v1941, %v2569
        %v2571 = vsel %vm2240, %v2570, %v2566
        %v2572 = vlaneseq
        %v2573 = vshrl.u32 %v2572, 7
        %v2574 = vsub.s32 %v2242, %v2573
        %v2575 = vrot.slane %v1943, %v2574
        %v2576 = vsel %vm2247, %v2575, %v2571
        %v2577 = vlaneseq
        %v2578 = vshrl.u32 %v2577, 7
        %v2579 = vsub.s32 %v2249, %v2578
        %v2580 = vrot.slane %v1945, %v2579
        %v2581 = vsel %vm2254, %v2580, %v2576
        %v2582 = vlaneseq
        %v2583 = vshrl.u32 %v2582, 7
        %v2584 = vsub.s32 %v2256, %v2583
        %v2585 = vrot.slane %v1947, %v2584
        %v2586 = vsel %vm2261, %v2585, %v2581
        %v2587 = vlaneseq
        %v2588 = vshrl.u32 %v2587, 7
        %v2589 = vsub.s32 %v2263, %v2588
        %v2590 = vrot.slane %v1949, %v2589
        %v2591 = vsel %vm2268, %v2590, %v2586
        %v2592 = vlaneseq
        %v2593 = vshrl.u32 %v2592, 7
        %v2594 = vsub.s32 %v2270, %v2593
        %v2595 = vrot.slane %v1951, %v2594
        %v2596 = vsel %vm2275, %v2595, %v2591
        %v2597 = vlaneseq
        %v2598 = vshrl.u32 %v2597, 7
        %v2599 = vsub.s32 %v2277, %v2598
        %v2600 = vrot.slane %v1953, %v2599
        %v2601 = vsel %vm2282, %v2600, %v2596
        %v2602 = vlaneseq
        %v2603 = vshrl.u32 %v2602, 7
        %v2604 = vsub.s32 %v2284, %v2603
        %v2605 = vrot.slane %v1955, %v2604
        %v2606 = vsel %vm2289, %v2605, %v2601
        %v2607 = vlaneseq
        %v2608 = vshrl.u32 %v2607, 7
        %v2609 = vsub.s32 %v2181, %v2608
        %v2610 = vrot.slane %v1957, %v2609
        %v2611 = vlaneseq
        %v2612 = vshrl.u32 %v2611, 7
        %v2613 = vsub.s32 %v2186, %v2612
        %v2614 = vrot.slane %v1959, %v2613
        %v2615 = vsel %vm2191, %v2614, %v2610
        %v2616 = vlaneseq
        %v2617 = vshrl.u32 %v2616, 7
        %v2618 = vsub.s32 %v2193, %v2617
        %v2619 = vrot.slane %v1961, %v2618
        %v2620 = vsel %vm2198, %v2619, %v2615
        %v2621 = vlaneseq
        %v2622 = vshrl.u32 %v2621, 7
        %v2623 = vsub.s32 %v2200, %v2622
        %v2624 = vrot.slane %v1963, %v2623
        %v2625 = vsel %vm2205, %v2624, %v2620
        %v2626 = vlaneseq
        %v2627 = vshrl.u32 %v2626, 7
        %v2628 = vsub.s32 %v2207, %v2627
        %v2629 = vrot.slane %v1965, %v2628
        %v2630 = vsel %vm2212, %v2629, %v2625
        %v2631 = vlaneseq
        %v2632 = vshrl.u32 %v2631, 7
        %v2633 = vsub.s32 %v2214, %v2632
        %v2634 = vrot.slane %v1967, %v2633
        %v2635 = vsel %vm2219, %v2634, %v2630
        %v2636 = vlaneseq
        %v2637 = vshrl.u32 %v2636, 7
        %v2638 = vsub.s32 %v2221, %v2637
        %v2639 = vrot.slane %v1969, %v2638
        %v2640 = vsel %vm2226, %v2639, %v2635
        %v2641 = vlaneseq
        %v2642 = vshrl.u32 %v2641, 7
        %v2643 = vsub.s32 %v2228, %v2642
        %v2644 = vrot.slane %v1971, %v2643
        %v2645 = vsel %vm2233, %v2644, %v2640
        %v2646 = vlaneseq
        %v2647 = vshrl.u32 %v2646, 7
        %v2648 = vsub.s32 %v2235, %v2647
        %v2649 = vrot.slane %v1973, %v2648
        %v2650 = vsel %vm2240, %v2649, %v2645
        %v2651 = vlaneseq
        %v2652 = vshrl.u32 %v2651, 7
        %v2653 = vsub.s32 %v2242, %v2652
        %v2654 = vrot.slane %v1975, %v2653
        %v2655 = vsel %vm2247, %v2654, %v2650
        %v2656 = vlaneseq
        %v2657 = vshrl.u32 %v2656, 7
        %v2658 = vsub.s32 %v2249, %v2657
        %v2659 = vrot.slane %v1977, %v2658
        %v2660 = vsel %vm2254, %v2659, %v2655
        %v2661 = vlaneseq
        %v2662 = vshrl.u32 %v2661, 7
        %v2663 = vsub.s32 %v2256, %v2662
        %v2664 = vrot.slane %v1979, %v2663
        %v2665 = vsel %vm2261, %v2664, %v2660
        %v2666 = vlaneseq
        %v2667 = vshrl.u32 %v2666, 7
        %v2668 = vsub.s32 %v2263, %v2667
        %v2669 = vrot.slane %v1981, %v2668
        %v2670 = vsel %vm2268, %v2669, %v2665
        %v2671 = vlaneseq
        %v2672 = vshrl.u32 %v2671, 7
        %v2673 = vsub.s32 %v2270, %v2672
        %v2674 = vrot.slane %v1983, %v2673
        %v2675 = vsel %vm2275, %v2674, %v2670
        %v2676 = vlaneseq
        %v2677 = vshrl.u32 %v2676, 7
        %v2678 = vsub.s32 %v2277, %v2677
        %v2679 = vrot.slane %v1985, %v2678
        %v2680 = vsel %vm2282, %v2679, %v2675
        %v2681 = vlaneseq
        %v2682 = vshrl.u32 %v2681, 7
        %v2683 = vsub.s32 %v2284, %v2682
        %v2684 = vrot.slane %v1987, %v2683
        %v2685 = vsel %vm2289, %v2684, %v2680
        %v2686 = vlaneseq
        %v2687 = vshrl.u32 %v2686, 7
        %v2688 = vsub.s32 %v2181, %v2687
        %v2689 = vrot.slane %v1989, %v2688
        %v2690 = vlaneseq
        %v2691 = vshrl.u32 %v2690, 7
        %v2692 = vsub.s32 %v2186, %v2691
        %v2693 = vrot.slane %v1991, %v2692
        %v2694 = vsel %vm2191, %v2693, %v2689
        %v2695 = vlaneseq
        %v2696 = vshrl.u32 %v2695, 7
        %v2697 = vsub.s32 %v2193, %v2696
        %v2698 = vrot.slane %v1993, %v2697
        %v2699 = vsel %vm2198, %v2698, %v2694
        %v2700 = vlaneseq
        %v2701 = vshrl.u32 %v2700, 7
        %v2702 = vsub.s32 %v2200, %v2701
        %v2703 = vrot.slane %v1995, %v2702
        %v2704 = vsel %vm2205, %v2703, %v2699
        %v2705 = vlaneseq
        %v2706 = vshrl.u32 %v2705, 7
        %v2707 = vsub.s32 %v2207, %v2706
        %v2708 = vrot.slane %v1997, %v2707
        %v2709 = vsel %vm2212, %v2708, %v2704
        %v2710 = vlaneseq
        %v2711 = vshrl.u32 %v2710, 7
        %v2712 = vsub.s32 %v2214, %v2711
        %v2713 = vrot.slane %v1999, %v2712
        %v2714 = vsel %vm2219, %v2713, %v2709
        %v2715 = vlaneseq
        %v2716 = vshrl.u32 %v2715, 7
        %v2717 = vsub.s32 %v2221, %v2716
        %v2718 = vrot.slane %v2001, %v2717
        %v2719 = vsel %vm2226, %v2718, %v2714
        %v2720 = vlaneseq
        %v2721 = vshrl.u32 %v2720, 7
        %v2722 = vsub.s32 %v2228, %v2721
        %v2723 = vrot.slane %v2003, %v2722
        %v2724 = vsel %vm2233, %v2723, %v2719
        %v2725 = vlaneseq
        %v2726 = vshrl.u32 %v2725, 7
        %v2727 = vsub.s32 %v2235, %v2726
        %v2728 = vrot.slane %v2005, %v2727
        %v2729 = vsel %vm2240, %v2728, %v2724
        %v2730 = vlaneseq
        %v2731 = vshrl.u32 %v2730, 7
        %v2732 = vsub.s32 %v2242, %v2731
        %v2733 = vrot.slane %v2007, %v2732
        %v2734 = vsel %vm2247, %v2733, %v2729
        %v2735 = vlaneseq
        %v2736 = vshrl.u32 %v2735, 7
        %v2737 = vsub.s32 %v2249, %v2736
        %v2738 = vrot.slane %v2009, %v2737
        %v2739 = vsel %vm2254, %v2738, %v2734
        %v2740 = vlaneseq
        %v2741 = vshrl.u32 %v2740, 7
        %v2742 = vsub.s32 %v2256, %v2741
        %v2743 = vrot.slane %v2011, %v2742
        %v2744 = vsel %vm2261, %v2743, %v2739
        %v2745 = vlaneseq
        %v2746 = vshrl.u32 %v2745, 7
        %v2747 = vsub.s32 %v2263, %v2746
        %v2748 = vrot.slane %v2013, %v2747
        %v2749 = vsel %vm2268, %v2748, %v2744
        %v2750 = vlaneseq
        %v2751 = vshrl.u32 %v2750, 7
        %v2752 = vsub.s32 %v2270, %v2751
        %v2753 = vrot.slane %v2015, %v2752
        %v2754 = vsel %vm2275, %v2753, %v2749
        %v2755 = vlaneseq
        %v2756 = vshrl.u32 %v2755, 7
        %v2757 = vsub.s32 %v2277, %v2756
        %v2758 = vrot.slane %v2017, %v2757
        %v2759 = vsel %vm2282, %v2758, %v2754
        %v2760 = vlaneseq
        %v2761 = vshrl.u32 %v2760, 7
        %v2762 = vsub.s32 %v2284, %v2761
        %v2763 = vrot.slane %v2019, %v2762
        %v2764 = vsel %vm2289, %v2763, %v2759
        %v2765 = vlaneseq
        %v2766 = vshrl.u32 %v2765, 7
        %v2767 = vsub.s32 %v2181, %v2766
        %v2768 = vrot.slane %v2021, %v2767
        %v2769 = vlaneseq
        %v2770 = vshrl.u32 %v2769, 7
        %v2771 = vsub.s32 %v2186, %v2770
        %v2772 = vrot.slane %v2023, %v2771
        %v2773 = vsel %vm2191, %v2772, %v2768
        %v2774 = vlaneseq
        %v2775 = vshrl.u32 %v2774, 7
        %v2776 = vsub.s32 %v2193, %v2775
        %v2777 = vrot.slane %v2025, %v2776
        %v2778 = vsel %vm2198, %v2777, %v2773
        %v2779 = vlaneseq
        %v2780 = vshrl.u32 %v2779, 7
        %v2781 = vsub.s32 %v2200, %v2780
        %v2782 = vrot.slane %v2027, %v2781
        %v2783 = vsel %vm2205, %v2782, %v2778
        %v2784 = vlaneseq
        %v2785 = vshrl.u32 %v2784, 7
        %v2786 = vsub.s32 %v2207, %v2785
        %v2787 = vrot.slane %v2029, %v2786
        %v2788 = vsel %vm2212, %v2787, %v2783
        %v2789 = vlaneseq
        %v2790 = vshrl.u32 %v2789, 7
        %v2791 = vsub.s32 %v2214, %v2790
        %v2792 = vrot.slane %v2031, %v2791
        %v2793 = vsel %vm2219, %v2792, %v2788
        %v2794 = vlaneseq
        %v2795 = vshrl.u32 %v2794, 7
        %v2796 = vsub.s32 %v2221, %v2795
        %v2797 = vrot.slane %v2033, %v2796
        %v2798 = vsel %vm2226, %v2797, %v2793
        %v2799 = vlaneseq
        %v2800 = vshrl.u32 %v2799, 7
        %v2801 = vsub.s32 %v2228, %v2800
        %v2802 = vrot.slane %v2035, %v2801
        %v2803 = vsel %vm2233, %v2802, %v2798
        %v2804 = vlaneseq
        %v2805 = vshrl.u32 %v2804, 7
        %v2806 = vsub.s32 %v2235, %v2805
        %v2807 = vrot.slane %v2037, %v2806
        %v2808 = vsel %vm2240, %v2807, %v2803
        %v2809 = vlaneseq
        %v2810 = vshrl.u32 %v2809, 7
        %v2811 = vsub.s32 %v2242, %v2810
        %v2812 = vrot.slane %v2039, %v2811
        %v2813 = vsel %vm2247, %v2812, %v2808
        %v2814 = vlaneseq
        %v2815 = vshrl.u32 %v2814, 7
        %v2816 = vsub.s32 %v2249, %v2815
        %v2817 = vrot.slane %v2041, %v2816
        %v2818 = vsel %vm2254, %v2817, %v2813
        %v2819 = vlaneseq
        %v2820 = vshrl.u32 %v2819, 7
        %v2821 = vsub.s32 %v2256, %v2820
        %v2822 = vrot.slane %v2043, %v2821
        %v2823 = vsel %vm2261, %v2822, %v2818
        %v2824 = vlaneseq
        %v2825 = vshrl.u32 %v2824, 7
        %v2826 = vsub.s32 %v2263, %v2825
        %v2827 = vrot.slane %v2045, %v2826
        %v2828 = vsel %vm2268, %v2827, %v2823
        %v2829 = vlaneseq
        %v2830 = vshrl.u32 %v2829, 7
        %v2831 = vsub.s32 %v2270, %v2830
        %v2832 = vrot.slane %v2047, %v2831
        %v2833 = vsel %vm2275, %v2832, %v2828
        %v2834 = vlaneseq
        %v2835 = vshrl.u32 %v2834, 7
        %v2836 = vsub.s32 %v2277, %v2835
        %v2837 = vrot.slane %v2049, %v2836
        %v2838 = vsel %vm2282, %v2837, %v2833
        %v2839 = vlaneseq
        %v2840 = vshrl.u32 %v2839, 7
        %v2841 = vsub.s32 %v2284, %v2840
        %v2842 = vrot.slane %v2051, %v2841
        %v2843 = vsel %vm2289, %v2842, %v2838
        %vm2844 = vcmask 1041409
        %v2845 = vsel %vm2844, %v2369, %v2290
        %vm2846 = vcmask 1042434
        %v2847 = vsel %vm2846, %v2448, %v2845
        %vm2848 = vcmask 1043459
        %v2849 = vsel %vm2848, %v2527, %v2847
        %vm2850 = vcmask 1044484
        %v2851 = vsel %vm2850, %v2606, %v2849
        %vm2852 = vcmask 1045509
        %v2853 = vsel %vm2852, %v2685, %v2851
        %vm2854 = vcmask 1046534
        %v2855 = vsel %vm2854, %v2764, %v2853
        %vm2856 = vcmask 1047559
        %v2857 = vsel %vm2856, %v2843, %v2855
        %2859 = vst [vmem:[%s377] sm:$0xff] %v2857
        %v2876 = vunpack.c.l.b16 %v382
        %v2877 = vunpack.c.l.b16 %v383
        %v2878 = vunpack.c.l.b16 %v384
        %v2879 = vunpack.c.l.b16 %v385
        %v2880 = vunpack.c.l.b16 %v386
        %v2881 = vunpack.c.l.b16 %v387
        %v2882 = vunpack.c.l.b16 %v388
        %v2883 = vunpack.c.l.b16 %v389
        %v2884 = vunpack.c.l.b16 %v390
        %v2885 = vunpack.c.l.b16 %v391
        %v2886 = vunpack.c.l.b16 %v392
        %v2887 = vunpack.c.l.b16 %v393
        %v2888 = vunpack.c.l.b16 %v394
        %v2889 = vunpack.c.l.b16 %v395
        %v2890 = vunpack.c.l.b16 %v396
        %v2891 = vunpack.c.l.b16 %v397
        %v2892 = vpack.c.b16 %v2877, %v2876
        %v2893 = vpack.c.b16 %v2879, %v2878
        %v2894 = vpack.c.b16 %v2881, %v2880
        %v2895 = vpack.c.b16 %v2883, %v2882
        %v2896 = vpack.c.b16 %v2885, %v2884
        %v2897 = vpack.c.b16 %v2887, %v2886
        %v2898 = vpack.c.b16 %v2889, %v2888
        %v2899 = vpack.c.b16 %v2891, %v2890
        %2908 = vmatprep.subr.bf16.mxu0 0
        %2909 = vmatpush1.bf16.xpose.msra.mxu0 %v2892
        %2910 = vmatprep.subr.bf16.mxu0 0
        %2911 = vmatpush1.bf16.xpose.msra.mxu0 %v2893
        %2912 = vmatprep.subr.bf16.mxu0 0
        %2913 = vmatpush1.bf16.xpose.msra.mxu0 %v2894
        %2914 = vmatprep.subr.bf16.mxu0 0
        %2915 = vmatpush1.bf16.xpose.msra.mxu0 %v2895
        %2916 = vmatprep.subr.bf16.mxu0 0
        %2917 = vmatpush1.bf16.xpose.msra.mxu0 %v2896
        %2918 = vmatprep.subr.bf16.mxu0 0
        %2919 = vmatpush1.bf16.xpose.msra.mxu0 %v2897
        %2920 = vmatprep.subr.bf16.mxu0 0
        %2921 = vmatpush1.bf16.xpose.msra.mxu0 %v2898
        %2922 = vmatprep.subr.bf16.mxu0 0
        %2923 = vmatpush1.bf16.xpose.msra.mxu0 %v2899
        %2924 = vmatprep.subr.bf16.mxu0 0
        %2925 = vmatpush1.bf16.xpose.msra.mxu0 0
        %2926 = vmatprep.subr.bf16.mxu0 0
        %2927 = vmatpush1.bf16.xpose.msra.mxu0 0
        %2928 = vmatprep.subr.bf16.mxu0 0
        %2929 = vmatpush1.bf16.xpose.msra.mxu0 0
        %2930 = vmatprep.subr.bf16.mxu0 0
        %2931 = vmatpush1.bf16.xpose.msra.mxu0 0
        %2932 = vmatprep.subr.bf16.mxu0 0
        %2933 = vmatpush1.bf16.xpose.msra.mxu0 0
        %2934 = vmatprep.subr.bf16.mxu0 0
        %2935 = vmatpush1.bf16.xpose.msra.mxu0 0
        %2936 = vmatprep.subr.bf16.mxu0 0
        %2937 = vmatpush1.bf16.xpose.msra.mxu0 0
        %2938 = vmatprep.subr.bf16.mxu0 0
        %2939 = vmatpush1.bf16.xpose.msra.mxu0 0
        %2940 = vmatprep.mubr.bf16.mxu0 0
        %2941 = vmatmul.mubr.bf16.gmra.mrb[0].mxu0 %v1028
        %v2942 = vpop.f32.mrb[0].mxu0
        %v2943 = vadd.f32 0.0, %v2942
        %v2944 = vpop.f32.mrb[0].mxu0
        %v2945 = vpop.f32.mrb[0].mxu0
        %v2946 = vadd.f32 0.0, %v2945
        %v2947 = vpop.f32.mrb[0].mxu0
        %2948 = vmatprep.mubr.bf16.mxu0 0
        %2949 = vmatmul.mubr.bf16.gmra.mrb[0].mxu0 %v1029
        %v2950 = vpop.f32.mrb[0].mxu0
        %v2951 = vadd.f32 0.0, %v2950
        %v2952 = vpop.f32.mrb[0].mxu0
        %v2953 = vpop.f32.mrb[0].mxu0
        %v2954 = vadd.f32 0.0, %v2953
        %v2955 = vpop.f32.mrb[0].mxu0
        %2956 = vmatprep.mubr.bf16.mxu0 0
        %2957 = vmatmul.mubr.bf16.gmra.mrb[0].mxu0 %v1030
        %v2958 = vpop.f32.mrb[0].mxu0
        %v2959 = vadd.f32 0.0, %v2958
        %v2960 = vpop.f32.mrb[0].mxu0
        %v2961 = vpop.f32.mrb[0].mxu0
        %v2962 = vadd.f32 0.0, %v2961
        %v2963 = vpop.f32.mrb[0].mxu0
        %2964 = vmatprep.mubr.bf16.mxu0 0
        %2965 = vmatmul.mubr.bf16.gmra.mrb[0].mxu0 %v1031
        %v2966 = vpop.f32.mrb[0].mxu0
        %v2967 = vadd.f32 0.0, %v2966
        %v2968 = vpop.f32.mrb[0].mxu0
        %v2969 = vpop.f32.mrb[0].mxu0
        %v2970 = vadd.f32 0.0, %v2969
        %v2971 = vpop.f32.mrb[0].mxu0
        %2972 = vmatprep.mubr.bf16.mxu0 0
        %2973 = vmatmul.mubr.bf16.gmra.mrb[0].mxu0 %v1032
        %v2974 = vpop.f32.mrb[0].mxu0
        %v2975 = vadd.f32 0.0, %v2974
        %v2976 = vpop.f32.mrb[0].mxu0
        %v2977 = vpop.f32.mrb[0].mxu0
        %v2978 = vadd.f32 0.0, %v2977
        %v2979 = vpop.f32.mrb[0].mxu0
        %2980 = vmatprep.mubr.bf16.mxu0 0
        %2981 = vmatmul.mubr.bf16.gmra.mrb[0].mxu0 %v1033
        %v2982 = vpop.f32.mrb[0].mxu0
        %v2983 = vadd.f32 0.0, %v2982
        %v2984 = vpop.f32.mrb[0].mxu0
        %v2985 = vpop.f32.mrb[0].mxu0
        %v2986 = vadd.f32 0.0, %v2985
        %v2987 = vpop.f32.mrb[0].mxu0
        %2988 = vmatprep.mubr.bf16.mxu0 0
        %2989 = vmatmul.mubr.bf16.gmra.mrb[0].mxu0 %v1034
        %v2990 = vpop.f32.mrb[0].mxu0
        %v2991 = vadd.f32 0.0, %v2990
        %v2992 = vpop.f32.mrb[0].mxu0
        %v2993 = vpop.f32.mrb[0].mxu0
        %v2994 = vadd.f32 0.0, %v2993
        %v2995 = vpop.f32.mrb[0].mxu0
        %2996 = vmatprep.mubr.bf16.mxu0 0
        %2997 = vmatmul.mubr.bf16.gmra.mrb[0].mxu0 %v1035
        %v2998 = vpop.f32.mrb[0].mxu0
        %v2999 = vadd.f32 0.0, %v2998
        %v3000 = vpop.f32.mrb[0].mxu0
        %v3001 = vpop.f32.mrb[0].mxu0
        %v3002 = vadd.f32 0.0, %v3001
        %v3003 = vpop.f32.mrb[0].mxu0
        %3004 = vdwg.mxu0
        %v3021 = vunpack.c.l.b16 %v398
        %v3022 = vunpack.c.l.b16 %v399
        %v3023 = vunpack.c.l.b16 %v400
        %v3024 = vunpack.c.l.b16 %v401
        %v3025 = vunpack.c.l.b16 %v402
        %v3026 = vunpack.c.l.b16 %v403
        %v3027 = vunpack.c.l.b16 %v404
        %v3028 = vunpack.c.l.b16 %v405
        %v3029 = vunpack.c.l.b16 %v406
        %v3030 = vunpack.c.l.b16 %v407
        %v3031 = vunpack.c.l.b16 %v408
        %v3032 = vunpack.c.l.b16 %v409
        %v3033 = vunpack.c.l.b16 %v410
        %v3034 = vunpack.c.l.b16 %v411
        %v3035 = vunpack.c.l.b16 %v412
        %v3036 = vunpack.c.l.b16 %v413
        %v3037 = vpack.c.b16 %v3022, %v3021
        %v3038 = vpack.c.b16 %v3024, %v3023
        %v3039 = vpack.c.b16 %v3026, %v3025
        %v3040 = vpack.c.b16 %v3028, %v3027
        %v3041 = vpack.c.b16 %v3030, %v3029
        %v3042 = vpack.c.b16 %v3032, %v3031
        %v3043 = vpack.c.b16 %v3034, %v3033
        %v3044 = vpack.c.b16 %v3036, %v3035
        %3053 = vmatprep.subr.bf16.mxu0 0
        %3054 = vmatpush1.bf16.xpose.msra.mxu0 %v3037
        %3055 = vmatprep.subr.bf16.mxu0 0
        %3056 = vmatpush1.bf16.xpose.msra.mxu0 %v3038
        %3057 = vmatprep.subr.bf16.mxu0 0
        %3058 = vmatpush1.bf16.xpose.msra.mxu0 %v3039
        %3059 = vmatprep.subr.bf16.mxu0 0
        %3060 = vmatpush1.bf16.xpose.msra.mxu0 %v3040
        %3061 = vmatprep.subr.bf16.mxu0 0
        %3062 = vmatpush1.bf16.xpose.msra.mxu0 %v3041
        %3063 = vmatprep.subr.bf16.mxu0 0
        %3064 = vmatpush1.bf16.xpose.msra.mxu0 %v3042
        %3065 = vmatprep.subr.bf16.mxu0 0
        %3066 = vmatpush1.bf16.xpose.msra.mxu0 %v3043
        %3067 = vmatprep.subr.bf16.mxu0 0
        %3068 = vmatpush1.bf16.xpose.msra.mxu0 %v3044
        %3069 = vmatprep.subr.bf16.mxu0 0
        %3070 = vmatpush1.bf16.xpose.msra.mxu0 0
        %3071 = vmatprep.subr.bf16.mxu0 0
        %3072 = vmatpush1.bf16.xpose.msra.mxu0 0
        %3073 = vmatprep.subr.bf16.mxu0 0
        %3074 = vmatpush1.bf16.xpose.msra.mxu0 0
        %3075 = vmatprep.subr.bf16.mxu0 0
        %3076 = vmatpush1.bf16.xpose.msra.mxu0 0
        %3077 = vmatprep.subr.bf16.mxu0 0
        %3078 = vmatpush1.bf16.xpose.msra.mxu0 0
        %3079 = vmatprep.subr.bf16.mxu0 0
        %3080 = vmatpush1.bf16.xpose.msra.mxu0 0
        %3081 = vmatprep.subr.bf16.mxu0 0
        %3082 = vmatpush1.bf16.xpose.msra.mxu0 0
        %3083 = vmatprep.subr.bf16.mxu0 0
        %3084 = vmatpush1.bf16.xpose.msra.mxu0 0
        %3085 = vmatprep.mubr.bf16.mxu0 0
        %3086 = vmatmul.mubr.bf16.gmra.mrb[0].mxu0 %v1036
        %v3087 = vpop.f32.mrb[0].mxu0
        %v3088 = vadd.f32 0.0, %v3087
        %v3089 = vpop.f32.mrb[0].mxu0
        %v3090 = vpop.f32.mrb[0].mxu0
        %v3091 = vadd.f32 0.0, %v3090
        %v3092 = vpop.f32.mrb[0].mxu0
        %3093 = vmatprep.mubr.bf16.mxu0 0
        %3094 = vmatmul.mubr.bf16.gmra.mrb[0].mxu0 %v1037
        %v3095 = vpop.f32.mrb[0].mxu0
        %v3096 = vadd.f32 0.0, %v3095
        %v3097 = vpop.f32.mrb[0].mxu0
        %v3098 = vpop.f32.mrb[0].mxu0
        %v3099 = vadd.f32 0.0, %v3098
        %v3100 = vpop.f32.mrb[0].mxu0
        %3101 = vmatprep.mubr.bf16.mxu0 0
        %3102 = vmatmul.mubr.bf16.gmra.mrb[0].mxu0 %v1038
        %v3103 = vpop.f32.mrb[0].mxu0
        %v3104 = vadd.f32 0.0, %v3103
        %v3105 = vpop.f32.mrb[0].mxu0
        %v3106 = vpop.f32.mrb[0].mxu0
        %v3107 = vadd.f32 0.0, %v3106
        %v3108 = vpop.f32.mrb[0].mxu0
        %3109 = vmatprep.mubr.bf16.mxu0 0
        %3110 = vmatmul.mubr.bf16.gmra.mrb[0].mxu0 %v1039
        %v3111 = vpop.f32.mrb[0].mxu0
        %v3112 = vadd.f32 0.0, %v3111
        %v3113 = vpop.f32.mrb[0].mxu0
        %v3114 = vpop.f32.mrb[0].mxu0
        %v3115 = vadd.f32 0.0, %v3114
        %v3116 = vpop.f32.mrb[0].mxu0
        %3117 = vmatprep.mubr.bf16.mxu0 0
        %3118 = vmatmul.mubr.bf16.gmra.mrb[0].mxu0 %v1040
        %v3119 = vpop.f32.mrb[0].mxu0
        %v3120 = vadd.f32 0.0, %v3119
        %v3121 = vpop.f32.mrb[0].mxu0
        %v3122 = vpop.f32.mrb[0].mxu0
        %v3123 = vadd.f32 0.0, %v3122
        %v3124 = vpop.f32.mrb[0].mxu0
        %3125 = vmatprep.mubr.bf16.mxu0 0
        %3126 = vmatmul.mubr.bf16.gmra.mrb[0].mxu0 %v1041
        %v3127 = vpop.f32.mrb[0].mxu0
        %v3128 = vadd.f32 0.0, %v3127
        %v3129 = vpop.f32.mrb[0].mxu0
        %v3130 = vpop.f32.mrb[0].mxu0
        %v3131 = vadd.f32 0.0, %v3130
        %v3132 = vpop.f32.mrb[0].mxu0
        %3133 = vmatprep.mubr.bf16.mxu0 0
        %3134 = vmatmul.mubr.bf16.gmra.mrb[0].mxu0 %v1042
        %v3135 = vpop.f32.mrb[0].mxu0
        %v3136 = vadd.f32 0.0, %v3135
        %v3137 = vpop.f32.mrb[0].mxu0
        %v3138 = vpop.f32.mrb[0].mxu0
        %v3139 = vadd.f32 0.0, %v3138
        %v3140 = vpop.f32.mrb[0].mxu0
        %3141 = vmatprep.mubr.bf16.mxu0 0
        %3142 = vmatmul.mubr.bf16.gmra.mrb[0].mxu0 %v1043
        %v3143 = vpop.f32.mrb[0].mxu0
        %v3144 = vadd.f32 0.0, %v3143
        %v3145 = vpop.f32.mrb[0].mxu0
        %v3146 = vpop.f32.mrb[0].mxu0
        %v3147 = vadd.f32 0.0, %v3146
        %v3148 = vpop.f32.mrb[0].mxu0
        %3149 = vdwg.mxu0
        %v3166 = vunpack.c.l.b16 %v414
        %v3167 = vunpack.c.l.b16 %v415
        %v3168 = vunpack.c.l.b16 %v416
        %v3169 = vunpack.c.l.b16 %v417
        %v3170 = vunpack.c.l.b16 %v418
        %v3171 = vunpack.c.l.b16 %v419
        %v3172 = vunpack.c.l.b16 %v420
        %v3173 = vunpack.c.l.b16 %v421
        %v3174 = vunpack.c.l.b16 %v422
        %v3175 = vunpack.c.l.b16 %v423
        %v3176 = vunpack.c.l.b16 %v424
        %v3177 = vunpack.c.l.b16 %v425
        %v3178 = vunpack.c.l.b16 %v426
        %v3179 = vunpack.c.l.b16 %v427
        %v3180 = vunpack.c.l.b16 %v428
        %v3181 = vunpack.c.l.b16 %v429
        %v3182 = vpack.c.b16 %v3167, %v3166
        %v3183 = vpack.c.b16 %v3169, %v3168
        %v3184 = vpack.c.b16 %v3171, %v3170
        %v3185 = vpack.c.b16 %v3173, %v3172
        %v3186 = vpack.c.b16 %v3175, %v3174
        %v3187 = vpack.c.b16 %v3177, %v3176
        %v3188 = vpack.c.b16 %v3179, %v3178
        %v3189 = vpack.c.b16 %v3181, %v3180
        %3198 = vmatprep.subr.bf16.mxu0 0
        %3199 = vmatpush1.bf16.xpose.msra.mxu0 %v3182
        %3200 = vmatprep.subr.bf16.mxu0 0
        %3201 = vmatpush1.bf16.xpose.msra.mxu0 %v3183
        %3202 = vmatprep.subr.bf16.mxu0 0
        %3203 = vmatpush1.bf16.xpose.msra.mxu0 %v3184
        %3204 = vmatprep.subr.bf16.mxu0 0
        %3205 = vmatpush1.bf16.xpose.msra.mxu0 %v3185
        %3206 = vmatprep.subr.bf16.mxu0 0
        %3207 = vmatpush1.bf16.xpose.msra.mxu0 %v3186
        %3208 = vmatprep.subr.bf16.mxu0 0
        %3209 = vmatpush1.bf16.xpose.msra.mxu0 %v3187
        %3210 = vmatprep.subr.bf16.mxu0 0
        %3211 = vmatpush1.bf16.xpose.msra.mxu0 %v3188
        %3212 = vmatprep.subr.bf16.mxu0 0
        %3213 = vmatpush1.bf16.xpose.msra.mxu0 %v3189
        %3214 = vmatprep.subr.bf16.mxu0 0
        %3215 = vmatpush1.bf16.xpose.msra.mxu0 0
        %3216 = vmatprep.subr.bf16.mxu0 0
        %3217 = vmatpush1.bf16.xpose.msra.mxu0 0
        %3218 = vmatprep.subr.bf16.mxu0 0
        %3219 = vmatpush1.bf16.xpose.msra.mxu0 0
        %3220 = vmatprep.subr.bf16.mxu0 0
        %3221 = vmatpush1.bf16.xpose.msra.mxu0 0
        %3222 = vmatprep.subr.bf16.mxu0 0
        %3223 = vmatpush1.bf16.xpose.msra.mxu0 0
        %3224 = vmatprep.subr.bf16.mxu0 0
        %3225 = vmatpush1.bf16.xpose.msra.mxu0 0
        %3226 = vmatprep.subr.bf16.mxu0 0
        %3227 = vmatpush1.bf16.xpose.msra.mxu0 0
        %3228 = vmatprep.subr.bf16.mxu0 0
        %3229 = vmatpush1.bf16.xpose.msra.mxu0 0
        %3230 = vmatprep.mubr.bf16.mxu0 0
        %3231 = vmatmul.mubr.bf16.gmra.mrb[0].mxu0 %v1044
        %v3232 = vpop.f32.mrb[0].mxu0
        %v3233 = vadd.f32 0.0, %v3232
        %v3234 = vpop.f32.mrb[0].mxu0
        %v3235 = vpop.f32.mrb[0].mxu0
        %v3236 = vadd.f32 0.0, %v3235
        %v3237 = vpop.f32.mrb[0].mxu0
        %3238 = vmatprep.mubr.bf16.mxu0 0
        %3239 = vmatmul.mubr.bf16.gmra.mrb[0].mxu0 %v1045
        %v3240 = vpop.f32.mrb[0].mxu0
        %v3241 = vadd.f32 0.0, %v3240
        %v3242 = vpop.f32.mrb[0].mxu0
        %v3243 = vpop.f32.mrb[0].mxu0
        %v3244 = vadd.f32 0.0, %v3243
        %v3245 = vpop.f32.mrb[0].mxu0
        %3246 = vmatprep.mubr.bf16.mxu0 0
        %3247 = vmatmul.mubr.bf16.gmra.mrb[0].mxu0 %v1046
        %v3248 = vpop.f32.mrb[0].mxu0
        %v3249 = vadd.f32 0.0, %v3248
        %v3250 = vpop.f32.mrb[0].mxu0
        %v3251 = vpop.f32.mrb[0].mxu0
        %v3252 = vadd.f32 0.0, %v3251
        %v3253 = vpop.f32.mrb[0].mxu0
        %3254 = vmatprep.mubr.bf16.mxu0 0
        %3255 = vmatmul.mubr.bf16.gmra.mrb[0].mxu0 %v1047
        %v3256 = vpop.f32.mrb[0].mxu0
        %v3257 = vadd.f32 0.0, %v3256
        %v3258 = vpop.f32.mrb[0].mxu0
        %v3259 = vpop.f32.mrb[0].mxu0
        %v3260 = vadd.f32 0.0, %v3259
        %v3261 = vpop.f32.mrb[0].mxu0
        %3262 = vmatprep.mubr.bf16.mxu0 0
        %3263 = vmatmul.mubr.bf16.gmra.mrb[0].mxu0 %v1048
        %v3264 = vpop.f32.mrb[0].mxu0
        %v3265 = vadd.f32 0.0, %v3264
        %v3266 = vpop.f32.mrb[0].mxu0
        %v3267 = vpop.f32.mrb[0].mxu0
        %v3268 = vadd.f32 0.0, %v3267
        %v3269 = vpop.f32.mrb[0].mxu0
        %3270 = vmatprep.mubr.bf16.mxu0 0
        %3271 = vmatmul.mubr.bf16.gmra.mrb[0].mxu0 %v1049
        %v3272 = vpop.f32.mrb[0].mxu0
        %v3273 = vadd.f32 0.0, %v3272
        %v3274 = vpop.f32.mrb[0].mxu0
        %v3275 = vpop.f32.mrb[0].mxu0
        %v3276 = vadd.f32 0.0, %v3275
        %v3277 = vpop.f32.mrb[0].mxu0
        %3278 = vmatprep.mubr.bf16.mxu0 0
        %3279 = vmatmul.mubr.bf16.gmra.mrb[0].mxu0 %v1050
        %v3280 = vpop.f32.mrb[0].mxu0
        %v3281 = vadd.f32 0.0, %v3280
        %v3282 = vpop.f32.mrb[0].mxu0
        %v3283 = vpop.f32.mrb[0].mxu0
        %v3284 = vadd.f32 0.0, %v3283
        %v3285 = vpop.f32.mrb[0].mxu0
        %3286 = vmatprep.mubr.bf16.mxu0 0
        %3287 = vmatmul.mubr.bf16.gmra.mrb[0].mxu0 %v1051
        %v3288 = vpop.f32.mrb[0].mxu0
        %v3289 = vadd.f32 0.0, %v3288
        %v3290 = vpop.f32.mrb[0].mxu0
        %v3291 = vpop.f32.mrb[0].mxu0
        %v3292 = vadd.f32 0.0, %v3291
        %v3293 = vpop.f32.mrb[0].mxu0
        %3294 = vdwg.mxu0
        %v3311 = vunpack.c.l.b16 %v430
        %v3312 = vunpack.c.l.b16 %v431
        %v3313 = vunpack.c.l.b16 %v432
        %v3314 = vunpack.c.l.b16 %v433
        %v3315 = vunpack.c.l.b16 %v434
        %v3316 = vunpack.c.l.b16 %v435
        %v3317 = vunpack.c.l.b16 %v436
        %v3318 = vunpack.c.l.b16 %v437
        %v3319 = vunpack.c.l.b16 %v438
        %v3320 = vunpack.c.l.b16 %v439
        %v3321 = vunpack.c.l.b16 %v440
        %v3322 = vunpack.c.l.b16 %v441
        %v3323 = vunpack.c.l.b16 %v442
        %v3324 = vunpack.c.l.b16 %v443
        %v3325 = vunpack.c.l.b16 %v444
        %v3326 = vunpack.c.l.b16 %v445
        %v3327 = vpack.c.b16 %v3312, %v3311
        %v3328 = vpack.c.b16 %v3314, %v3313
        %v3329 = vpack.c.b16 %v3316, %v3315
        %v3330 = vpack.c.b16 %v3318, %v3317
        %v3331 = vpack.c.b16 %v3320, %v3319
        %v3332 = vpack.c.b16 %v3322, %v3321
        %v3333 = vpack.c.b16 %v3324, %v3323
        %v3334 = vpack.c.b16 %v3326, %v3325
        %3343 = vmatprep.subr.bf16.mxu0 0
        %3344 = vmatpush1.bf16.xpose.msra.mxu0 %v3327
        %3345 = vmatprep.subr.bf16.mxu0 0
        %3346 = vmatpush1.bf16.xpose.msra.mxu0 %v3328
        %3347 = vmatprep.subr.bf16.mxu0 0
        %3348 = vmatpush1.bf16.xpose.msra.mxu0 %v3329
        %3349 = vmatprep.subr.bf16.mxu0 0
        %3350 = vmatpush1.bf16.xpose.msra.mxu0 %v3330
        %3351 = vmatprep.subr.bf16.mxu0 0
        %3352 = vmatpush1.bf16.xpose.msra.mxu0 %v3331
        %3353 = vmatprep.subr.bf16.mxu0 0
        %3354 = vmatpush1.bf16.xpose.msra.mxu0 %v3332
        %3355 = vmatprep.subr.bf16.mxu0 0
        %3356 = vmatpush1.bf16.xpose.msra.mxu0 %v3333
        %3357 = vmatprep.subr.bf16.mxu0 0
        %3358 = vmatpush1.bf16.xpose.msra.mxu0 %v3334
        %3359 = vmatprep.subr.bf16.mxu0 0
        %3360 = vmatpush1.bf16.xpose.msra.mxu0 0
        %3361 = vmatprep.subr.bf16.mxu0 0
        %3362 = vmatpush1.bf16.xpose.msra.mxu0 0
        %3363 = vmatprep.subr.bf16.mxu0 0
        %3364 = vmatpush1.bf16.xpose.msra.mxu0 0
        %3365 = vmatprep.subr.bf16.mxu0 0
        %3366 = vmatpush1.bf16.xpose.msra.mxu0 0
        %3367 = vmatprep.subr.bf16.mxu0 0
        %3368 = vmatpush1.bf16.xpose.msra.mxu0 0
        %3369 = vmatprep.subr.bf16.mxu0 0
        %3370 = vmatpush1.bf16.xpose.msra.mxu0 0
        %3371 = vmatprep.subr.bf16.mxu0 0
        %3372 = vmatpush1.bf16.xpose.msra.mxu0 0
        %3373 = vmatprep.subr.bf16.mxu0 0
        %3374 = vmatpush1.bf16.xpose.msra.mxu0 0
        %3375 = vmatprep.mubr.bf16.mxu0 0
        %3376 = vmatmul.mubr.bf16.gmra.mrb[0].mxu0 %v1052
        %v3377 = vpop.f32.mrb[0].mxu0
        %v3378 = vadd.f32 0.0, %v3377
        %v3379 = vpop.f32.mrb[0].mxu0
        %v3380 = vpop.f32.mrb[0].mxu0
        %v3381 = vadd.f32 0.0, %v3380
        %v3382 = vpop.f32.mrb[0].mxu0
        %3383 = vmatprep.mubr.bf16.mxu0 0
        %3384 = vmatmul.mubr.bf16.gmra.mrb[0].mxu0 %v1053
        %v3385 = vpop.f32.mrb[0].mxu0
        %v3386 = vadd.f32 0.0, %v3385
        %v3387 = vpop.f32.mrb[0].mxu0
        %v3388 = vpop.f32.mrb[0].mxu0
        %v3389 = vadd.f32 0.0, %v3388
        %v3390 = vpop.f32.mrb[0].mxu0
        %3391 = vmatprep.mubr.bf16.mxu0 0
        %3392 = vmatmul.mubr.bf16.gmra.mrb[0].mxu0 %v1054
        %v3393 = vpop.f32.mrb[0].mxu0
        %v3394 = vadd.f32 0.0, %v3393
        %v3395 = vpop.f32.mrb[0].mxu0
        %v3396 = vpop.f32.mrb[0].mxu0
        %v3397 = vadd.f32 0.0, %v3396
        %v3398 = vpop.f32.mrb[0].mxu0
        %3399 = vmatprep.mubr.bf16.mxu0 0
        %3400 = vmatmul.mubr.bf16.gmra.mrb[0].mxu0 %v1055
        %v3401 = vpop.f32.mrb[0].mxu0
        %v3402 = vadd.f32 0.0, %v3401
        %v3403 = vpop.f32.mrb[0].mxu0
        %v3404 = vpop.f32.mrb[0].mxu0
        %v3405 = vadd.f32 0.0, %v3404
        %v3406 = vpop.f32.mrb[0].mxu0
        %3407 = vmatprep.mubr.bf16.mxu0 0
        %3408 = vmatmul.mubr.bf16.gmra.mrb[0].mxu0 %v1056
        %v3409 = vpop.f32.mrb[0].mxu0
        %v3410 = vadd.f32 0.0, %v3409
        %v3411 = vpop.f32.mrb[0].mxu0
        %v3412 = vpop.f32.mrb[0].mxu0
        %v3413 = vadd.f32 0.0, %v3412
        %v3414 = vpop.f32.mrb[0].mxu0
        %3415 = vmatprep.mubr.bf16.mxu0 0
        %3416 = vmatmul.mubr.bf16.gmra.mrb[0].mxu0 %v1057
        %v3417 = vpop.f32.mrb[0].mxu0
        %v3418 = vadd.f32 0.0, %v3417
        %v3419 = vpop.f32.mrb[0].mxu0
        %v3420 = vpop.f32.mrb[0].mxu0
        %v3421 = vadd.f32 0.0, %v3420
        %v3422 = vpop.f32.mrb[0].mxu0
        %3423 = vmatprep.mubr.bf16.mxu0 0
        %3424 = vmatmul.mubr.bf16.gmra.mrb[0].mxu0 %v1058
        %v3425 = vpop.f32.mrb[0].mxu0
        %v3426 = vadd.f32 0.0, %v3425
        %v3427 = vpop.f32.mrb[0].mxu0
        %v3428 = vpop.f32.mrb[0].mxu0
        %v3429 = vadd.f32 0.0, %v3428
        %v3430 = vpop.f32.mrb[0].mxu0
        %3431 = vmatprep.mubr.bf16.mxu0 0
        %3432 = vmatmul.mubr.bf16.gmra.mrb[0].mxu0 %v1059
        %v3433 = vpop.f32.mrb[0].mxu0
        %v3434 = vadd.f32 0.0, %v3433
        %v3435 = vpop.f32.mrb[0].mxu0
        %v3436 = vpop.f32.mrb[0].mxu0
        %v3437 = vadd.f32 0.0, %v3436
        %v3438 = vpop.f32.mrb[0].mxu0
        %3439 = vdwg.mxu0
        %v3456 = vunpack.c.l.b16 %v446
        %v3457 = vunpack.c.l.b16 %v447
        %v3458 = vunpack.c.l.b16 %v448
        %v3459 = vunpack.c.l.b16 %v449
        %v3460 = vunpack.c.l.b16 %v450
        %v3461 = vunpack.c.l.b16 %v451
        %v3462 = vunpack.c.l.b16 %v452
        %v3463 = vunpack.c.l.b16 %v453
        %v3464 = vunpack.c.l.b16 %v454
        %v3465 = vunpack.c.l.b16 %v455
        %v3466 = vunpack.c.l.b16 %v456
        %v3467 = vunpack.c.l.b16 %v457
        %v3468 = vunpack.c.l.b16 %v458
        %v3469 = vunpack.c.l.b16 %v459
        %v3470 = vunpack.c.l.b16 %v460
        %v3471 = vunpack.c.l.b16 %v461
        %v3472 = vpack.c.b16 %v3457, %v3456
        %v3473 = vpack.c.b16 %v3459, %v3458
        %v3474 = vpack.c.b16 %v3461, %v3460
        %v3475 = vpack.c.b16 %v3463, %v3462
        %v3476 = vpack.c.b16 %v3465, %v3464
        %v3477 = vpack.c.b16 %v3467, %v3466
        %v3478 = vpack.c.b16 %v3469, %v3468
        %v3479 = vpack.c.b16 %v3471, %v3470
        %3488 = vmatprep.subr.bf16.mxu0 0
        %3489 = vmatpush1.bf16.xpose.msra.mxu0 %v3472
        %3490 = vmatprep.subr.bf16.mxu0 0
        %3491 = vmatpush1.bf16.xpose.msra.mxu0 %v3473
        %3492 = vmatprep.subr.bf16.mxu0 0
        %3493 = vmatpush1.bf16.xpose.msra.mxu0 %v3474
        %3494 = vmatprep.subr.bf16.mxu0 0
        %3495 = vmatpush1.bf16.xpose.msra.mxu0 %v3475
        %3496 = vmatprep.subr.bf16.mxu0 0
        %3497 = vmatpush1.bf16.xpose.msra.mxu0 %v3476
        %3498 = vmatprep.subr.bf16.mxu0 0
        %3499 = vmatpush1.bf16.xpose.msra.mxu0 %v3477
        %3500 = vmatprep.subr.bf16.mxu0 0
        %3501 = vmatpush1.bf16.xpose.msra.mxu0 %v3478
        %3502 = vmatprep.subr.bf16.mxu0 0
        %3503 = vmatpush1.bf16.xpose.msra.mxu0 %v3479
        %3504 = vmatprep.subr.bf16.mxu0 0
        %3505 = vmatpush1.bf16.xpose.msra.mxu0 0
        %3506 = vmatprep.subr.bf16.mxu0 0
        %3507 = vmatpush1.bf16.xpose.msra.mxu0 0
        %3508 = vmatprep.subr.bf16.mxu0 0
        %3509 = vmatpush1.bf16.xpose.msra.mxu0 0
        %3510 = vmatprep.subr.bf16.mxu0 0
        %3511 = vmatpush1.bf16.xpose.msra.mxu0 0
        %3512 = vmatprep.subr.bf16.mxu0 0
        %3513 = vmatpush1.bf16.xpose.msra.mxu0 0
        %3514 = vmatprep.subr.bf16.mxu0 0
        %3515 = vmatpush1.bf16.xpose.msra.mxu0 0
        %3516 = vmatprep.subr.bf16.mxu0 0
        %3517 = vmatpush1.bf16.xpose.msra.mxu0 0
        %3518 = vmatprep.subr.bf16.mxu0 0
        %3519 = vmatpush1.bf16.xpose.msra.mxu0 0
        %3520 = vmatprep.mubr.bf16.mxu0 0
        %3521 = vmatmul.mubr.bf16.gmra.mrb[0].mxu0 %v1060
        %v3522 = vpop.f32.mrb[0].mxu0
        %v3523 = vadd.f32 0.0, %v3522
        %v3524 = vpop.f32.mrb[0].mxu0
        %v3525 = vpop.f32.mrb[0].mxu0
        %v3526 = vadd.f32 0.0, %v3525
        %v3527 = vpop.f32.mrb[0].mxu0
        %3528 = vmatprep.mubr.bf16.mxu0 0
        %3529 = vmatmul.mubr.bf16.gmra.mrb[0].mxu0 %v1061
        %v3530 = vpop.f32.mrb[0].mxu0
        %v3531 = vadd.f32 0.0, %v3530
        %v3532 = vpop.f32.mrb[0].mxu0
        %v3533 = vpop.f32.mrb[0].mxu0
        %v3534 = vadd.f32 0.0, %v3533
        %v3535 = vpop.f32.mrb[0].mxu0
        %3536 = vmatprep.mubr.bf16.mxu0 0
        %3537 = vmatmul.mubr.bf16.gmra.mrb[0].mxu0 %v1062
        %v3538 = vpop.f32.mrb[0].mxu0
        %v3539 = vadd.f32 0.0, %v3538
        %v3540 = vpop.f32.mrb[0].mxu0
        %v3541 = vpop.f32.mrb[0].mxu0
        %v3542 = vadd.f32 0.0, %v3541
        %v3543 = vpop.f32.mrb[0].mxu0
        %3544 = vmatprep.mubr.bf16.mxu0 0
        %3545 = vmatmul.mubr.bf16.gmra.mrb[0].mxu0 %v1063
        %v3546 = vpop.f32.mrb[0].mxu0
        %v3547 = vadd.f32 0.0, %v3546
        %v3548 = vpop.f32.mrb[0].mxu0
        %v3549 = vpop.f32.mrb[0].mxu0
        %v3550 = vadd.f32 0.0, %v3549
        %v3551 = vpop.f32.mrb[0].mxu0
        %3552 = vmatprep.mubr.bf16.mxu0 0
        %3553 = vmatmul.mubr.bf16.gmra.mrb[0].mxu0 %v1064
        %v3554 = vpop.f32.mrb[0].mxu0
        %v3555 = vadd.f32 0.0, %v3554
        %v3556 = vpop.f32.mrb[0].mxu0
        %v3557 = vpop.f32.mrb[0].mxu0
        %v3558 = vadd.f32 0.0, %v3557
        %v3559 = vpop.f32.mrb[0].mxu0
        %3560 = vmatprep.mubr.bf16.mxu0 0
        %3561 = vmatmul.mubr.bf16.gmra.mrb[0].mxu0 %v1065
        %v3562 = vpop.f32.mrb[0].mxu0
        %v3563 = vadd.f32 0.0, %v3562
        %v3564 = vpop.f32.mrb[0].mxu0
        %v3565 = vpop.f32.mrb[0].mxu0
        %v3566 = vadd.f32 0.0, %v3565
        %v3567 = vpop.f32.mrb[0].mxu0
        %3568 = vmatprep.mubr.bf16.mxu0 0
        %3569 = vmatmul.mubr.bf16.gmra.mrb[0].mxu0 %v1066
        %v3570 = vpop.f32.mrb[0].mxu0
        %v3571 = vadd.f32 0.0, %v3570
        %v3572 = vpop.f32.mrb[0].mxu0
        %v3573 = vpop.f32.mrb[0].mxu0
        %v3574 = vadd.f32 0.0, %v3573
        %v3575 = vpop.f32.mrb[0].mxu0
        %3576 = vmatprep.mubr.bf16.mxu0 0
        %3577 = vmatmul.mubr.bf16.gmra.mrb[0].mxu0 %v1067
        %v3578 = vpop.f32.mrb[0].mxu0
        %v3579 = vadd.f32 0.0, %v3578
        %v3580 = vpop.f32.mrb[0].mxu0
        %v3581 = vpop.f32.mrb[0].mxu0
        %v3582 = vadd.f32 0.0, %v3581
        %v3583 = vpop.f32.mrb[0].mxu0
        %3584 = vdwg.mxu0
        %v3601 = vunpack.c.l.b16 %v462
        %v3602 = vunpack.c.l.b16 %v463
        %v3603 = vunpack.c.l.b16 %v464
        %v3604 = vunpack.c.l.b16 %v465
        %v3605 = vunpack.c.l.b16 %v466
        %v3606 = vunpack.c.l.b16 %v467
        %v3607 = vunpack.c.l.b16 %v468
        %v3608 = vunpack.c.l.b16 %v469
        %v3609 = vunpack.c.l.b16 %v470
        %v3610 = vunpack.c.l.b16 %v471
        %v3611 = vunpack.c.l.b16 %v472
        %v3612 = vunpack.c.l.b16 %v473
        %v3613 = vunpack.c.l.b16 %v474
        %v3614 = vunpack.c.l.b16 %v475
        %v3615 = vunpack.c.l.b16 %v476
        %v3616 = vunpack.c.l.b16 %v477
        %v3617 = vpack.c.b16 %v3602, %v3601
        %v3618 = vpack.c.b16 %v3604, %v3603
        %v3619 = vpack.c.b16 %v3606, %v3605
        %v3620 = vpack.c.b16 %v3608, %v3607
        %v3621 = vpack.c.b16 %v3610, %v3609
        %v3622 = vpack.c.b16 %v3612, %v3611
        %v3623 = vpack.c.b16 %v3614, %v3613
        %v3624 = vpack.c.b16 %v3616, %v3615
        %3633 = vmatprep.subr.bf16.mxu0 0
        %3634 = vmatpush1.bf16.xpose.msra.mxu0 %v3617
        %3635 = vmatprep.subr.bf16.mxu0 0
        %3636 = vmatpush1.bf16.xpose.msra.mxu0 %v3618
        %3637 = vmatprep.subr.bf16.mxu0 0
        %3638 = vmatpush1.bf16.xpose.msra.mxu0 %v3619
        %3639 = vmatprep.subr.bf16.mxu0 0
        %3640 = vmatpush1.bf16.xpose.msra.mxu0 %v3620
        %3641 = vmatprep.subr.bf16.mxu0 0
        %3642 = vmatpush1.bf16.xpose.msra.mxu0 %v3621
        %3643 = vmatprep.subr.bf16.mxu0 0
        %3644 = vmatpush1.bf16.xpose.msra.mxu0 %v3622
        %3645 = vmatprep.subr.bf16.mxu0 0
        %3646 = vmatpush1.bf16.xpose.msra.mxu0 %v3623
        %3647 = vmatprep.subr.bf16.mxu0 0
        %3648 = vmatpush1.bf16.xpose.msra.mxu0 %v3624
        %3649 = vmatprep.subr.bf16.mxu0 0
        %3650 = vmatpush1.bf16.xpose.msra.mxu0 0
        %3651 = vmatprep.subr.bf16.mxu0 0
        %3652 = vmatpush1.bf16.xpose.msra.mxu0 0
        %3653 = vmatprep.subr.bf16.mxu0 0
        %3654 = vmatpush1.bf16.xpose.msra.mxu0 0
        %3655 = vmatprep.subr.bf16.mxu0 0
        %3656 = vmatpush1.bf16.xpose.msra.mxu0 0
        %3657 = vmatprep.subr.bf16.mxu0 0
        %3658 = vmatpush1.bf16.xpose.msra.mxu0 0
        %3659 = vmatprep.subr.bf16.mxu0 0
        %3660 = vmatpush1.bf16.xpose.msra.mxu0 0
        %3661 = vmatprep.subr.bf16.mxu0 0
        %3662 = vmatpush1.bf16.xpose.msra.mxu0 0
        %3663 = vmatprep.subr.bf16.mxu0 0
        %3664 = vmatpush1.bf16.xpose.msra.mxu0 0
        %3665 = vmatprep.mubr.bf16.mxu0 0
        %3666 = vmatmul.mubr.bf16.gmra.mrb[0].mxu0 %v1068
        %v3667 = vpop.f32.mrb[0].mxu0
        %v3668 = vadd.f32 0.0, %v3667
        %v3669 = vpop.f32.mrb[0].mxu0
        %v3670 = vpop.f32.mrb[0].mxu0
        %v3671 = vadd.f32 0.0, %v3670
        %v3672 = vpop.f32.mrb[0].mxu0
        %3673 = vmatprep.mubr.bf16.mxu0 0
        %3674 = vmatmul.mubr.bf16.gmra.mrb[0].mxu0 %v1069
        %v3675 = vpop.f32.mrb[0].mxu0
        %v3676 = vadd.f32 0.0, %v3675
        %v3677 = vpop.f32.mrb[0].mxu0
        %v3678 = vpop.f32.mrb[0].mxu0
        %v3679 = vadd.f32 0.0, %v3678
        %v3680 = vpop.f32.mrb[0].mxu0
        %3681 = vmatprep.mubr.bf16.mxu0 0
        %3682 = vmatmul.mubr.bf16.gmra.mrb[0].mxu0 %v1070
        %v3683 = vpop.f32.mrb[0].mxu0
        %v3684 = vadd.f32 0.0, %v3683
        %v3685 = vpop.f32.mrb[0].mxu0
        %v3686 = vpop.f32.mrb[0].mxu0
        %v3687 = vadd.f32 0.0, %v3686
        %v3688 = vpop.f32.mrb[0].mxu0
        %3689 = vmatprep.mubr.bf16.mxu0 0
        %3690 = vmatmul.mubr.bf16.gmra.mrb[0].mxu0 %v1071
        %v3691 = vpop.f32.mrb[0].mxu0
        %v3692 = vadd.f32 0.0, %v3691
        %v3693 = vpop.f32.mrb[0].mxu0
        %v3694 = vpop.f32.mrb[0].mxu0
        %v3695 = vadd.f32 0.0, %v3694
        %v3696 = vpop.f32.mrb[0].mxu0
        %3697 = vmatprep.mubr.bf16.mxu0 0
        %3698 = vmatmul.mubr.bf16.gmra.mrb[0].mxu0 %v1072
        %v3699 = vpop.f32.mrb[0].mxu0
        %v3700 = vadd.f32 0.0, %v3699
        %v3701 = vpop.f32.mrb[0].mxu0
        %v3702 = vpop.f32.mrb[0].mxu0
        %v3703 = vadd.f32 0.0, %v3702
        %v3704 = vpop.f32.mrb[0].mxu0
        %3705 = vmatprep.mubr.bf16.mxu0 0
        %3706 = vmatmul.mubr.bf16.gmra.mrb[0].mxu0 %v1073
        %v3707 = vpop.f32.mrb[0].mxu0
        %v3708 = vadd.f32 0.0, %v3707
        %v3709 = vpop.f32.mrb[0].mxu0
        %v3710 = vpop.f32.mrb[0].mxu0
        %v3711 = vadd.f32 0.0, %v3710
        %v3712 = vpop.f32.mrb[0].mxu0
        %3713 = vmatprep.mubr.bf16.mxu0 0
        %3714 = vmatmul.mubr.bf16.gmra.mrb[0].mxu0 %v1074
        %v3715 = vpop.f32.mrb[0].mxu0
        %v3716 = vadd.f32 0.0, %v3715
        %v3717 = vpop.f32.mrb[0].mxu0
        %v3718 = vpop.f32.mrb[0].mxu0
        %v3719 = vadd.f32 0.0, %v3718
        %v3720 = vpop.f32.mrb[0].mxu0
        %3721 = vmatprep.mubr.bf16.mxu0 0
        %3722 = vmatmul.mubr.bf16.gmra.mrb[0].mxu0 %v1075
        %v3723 = vpop.f32.mrb[0].mxu0
        %v3724 = vadd.f32 0.0, %v3723
        %v3725 = vpop.f32.mrb[0].mxu0
        %v3726 = vpop.f32.mrb[0].mxu0
        %v3727 = vadd.f32 0.0, %v3726
        %v3728 = vpop.f32.mrb[0].mxu0
        %3729 = vdwg.mxu0
        %v3746 = vunpack.c.l.b16 %v478
        %v3747 = vunpack.c.l.b16 %v479
        %v3748 = vunpack.c.l.b16 %v480
        %v3749 = vunpack.c.l.b16 %v481
        %v3750 = vunpack.c.l.b16 %v482
        %v3751 = vunpack.c.l.b16 %v483
        %v3752 = vunpack.c.l.b16 %v484
        %v3753 = vunpack.c.l.b16 %v485
        %v3754 = vunpack.c.l.b16 %v486
        %v3755 = vunpack.c.l.b16 %v487
        %v3756 = vunpack.c.l.b16 %v488
        %v3757 = vunpack.c.l.b16 %v489
        %v3758 = vunpack.c.l.b16 %v490
        %v3759 = vunpack.c.l.b16 %v491
        %v3760 = vunpack.c.l.b16 %v492
        %v3761 = vunpack.c.l.b16 %v493
        %v3762 = vpack.c.b16 %v3747, %v3746
        %v3763 = vpack.c.b16 %v3749, %v3748
        %v3764 = vpack.c.b16 %v3751, %v3750
        %v3765 = vpack.c.b16 %v3753, %v3752
        %v3766 = vpack.c.b16 %v3755, %v3754
        %v3767 = vpack.c.b16 %v3757, %v3756
        %v3768 = vpack.c.b16 %v3759, %v3758
        %v3769 = vpack.c.b16 %v3761, %v3760
        %3778 = vmatprep.subr.bf16.mxu0 0
        %3779 = vmatpush1.bf16.xpose.msra.mxu0 %v3762
        %3780 = vmatprep.subr.bf16.mxu0 0
        %3781 = vmatpush1.bf16.xpose.msra.mxu0 %v3763
        %3782 = vmatprep.subr.bf16.mxu0 0
        %3783 = vmatpush1.bf16.xpose.msra.mxu0 %v3764
        %3784 = vmatprep.subr.bf16.mxu0 0
        %3785 = vmatpush1.bf16.xpose.msra.mxu0 %v3765
        %3786 = vmatprep.subr.bf16.mxu0 0
        %3787 = vmatpush1.bf16.xpose.msra.mxu0 %v3766
        %3788 = vmatprep.subr.bf16.mxu0 0
        %3789 = vmatpush1.bf16.xpose.msra.mxu0 %v3767
        %3790 = vmatprep.subr.bf16.mxu0 0
        %3791 = vmatpush1.bf16.xpose.msra.mxu0 %v3768
        %3792 = vmatprep.subr.bf16.mxu0 0
        %3793 = vmatpush1.bf16.xpose.msra.mxu0 %v3769
        %3794 = vmatprep.subr.bf16.mxu0 0
        %3795 = vmatpush1.bf16.xpose.msra.mxu0 0
        %3796 = vmatprep.subr.bf16.mxu0 0
        %3797 = vmatpush1.bf16.xpose.msra.mxu0 0
        %3798 = vmatprep.subr.bf16.mxu0 0
        %3799 = vmatpush1.bf16.xpose.msra.mxu0 0
        %3800 = vmatprep.subr.bf16.mxu0 0
        %3801 = vmatpush1.bf16.xpose.msra.mxu0 0
        %3802 = vmatprep.subr.bf16.mxu0 0
        %3803 = vmatpush1.bf16.xpose.msra.mxu0 0
        %3804 = vmatprep.subr.bf16.mxu0 0
        %3805 = vmatpush1.bf16.xpose.msra.mxu0 0
        %3806 = vmatprep.subr.bf16.mxu0 0
        %3807 = vmatpush1.bf16.xpose.msra.mxu0 0
        %3808 = vmatprep.subr.bf16.mxu0 0
        %3809 = vmatpush1.bf16.xpose.msra.mxu0 0
        %3810 = vmatprep.mubr.bf16.mxu0 0
        %3811 = vmatmul.mubr.bf16.gmra.mrb[0].mxu0 %v1076
        %v3812 = vpop.f32.mrb[0].mxu0
        %v3813 = vadd.f32 0.0, %v3812
        %v3814 = vpop.f32.mrb[0].mxu0
        %v3815 = vpop.f32.mrb[0].mxu0
        %v3816 = vadd.f32 0.0, %v3815
        %v3817 = vpop.f32.mrb[0].mxu0
        %3818 = vmatprep.mubr.bf16.mxu0 0
        %3819 = vmatmul.mubr.bf16.gmra.mrb[0].mxu0 %v1077
        %v3820 = vpop.f32.mrb[0].mxu0
        %v3821 = vadd.f32 0.0, %v3820
        %v3822 = vpop.f32.mrb[0].mxu0
        %v3823 = vpop.f32.mrb[0].mxu0
        %v3824 = vadd.f32 0.0, %v3823
        %v3825 = vpop.f32.mrb[0].mxu0
        %3826 = vmatprep.mubr.bf16.mxu0 0
        %3827 = vmatmul.mubr.bf16.gmra.mrb[0].mxu0 %v1078
        %v3828 = vpop.f32.mrb[0].mxu0
        %v3829 = vadd.f32 0.0, %v3828
        %v3830 = vpop.f32.mrb[0].mxu0
        %v3831 = vpop.f32.mrb[0].mxu0
        %v3832 = vadd.f32 0.0, %v3831
        %v3833 = vpop.f32.mrb[0].mxu0
        %3834 = vmatprep.mubr.bf16.mxu0 0
        %3835 = vmatmul.mubr.bf16.gmra.mrb[0].mxu0 %v1079
        %v3836 = vpop.f32.mrb[0].mxu0
        %v3837 = vadd.f32 0.0, %v3836
        %v3838 = vpop.f32.mrb[0].mxu0
        %v3839 = vpop.f32.mrb[0].mxu0
        %v3840 = vadd.f32 0.0, %v3839
        %v3841 = vpop.f32.mrb[0].mxu0
        %3842 = vmatprep.mubr.bf16.mxu0 0
        %3843 = vmatmul.mubr.bf16.gmra.mrb[0].mxu0 %v1080
        %v3844 = vpop.f32.mrb[0].mxu0
        %v3845 = vadd.f32 0.0, %v3844
        %v3846 = vpop.f32.mrb[0].mxu0
        %v3847 = vpop.f32.mrb[0].mxu0
        %v3848 = vadd.f32 0.0, %v3847
        %v3849 = vpop.f32.mrb[0].mxu0
        %3850 = vmatprep.mubr.bf16.mxu0 0
        %3851 = vmatmul.mubr.bf16.gmra.mrb[0].mxu0 %v1081
        %v3852 = vpop.f32.mrb[0].mxu0
        %v3853 = vadd.f32 0.0, %v3852
        %v3854 = vpop.f32.mrb[0].mxu0
        %v3855 = vpop.f32.mrb[0].mxu0
        %v3856 = vadd.f32 0.0, %v3855
        %v3857 = vpop.f32.mrb[0].mxu0
        %3858 = vmatprep.mubr.bf16.mxu0 0
        %3859 = vmatmul.mubr.bf16.gmra.mrb[0].mxu0 %v1082
        %v3860 = vpop.f32.mrb[0].mxu0
        %v3861 = vadd.f32 0.0, %v3860
        %v3862 = vpop.f32.mrb[0].mxu0
        %v3863 = vpop.f32.mrb[0].mxu0
        %v3864 = vadd.f32 0.0, %v3863
        %v3865 = vpop.f32.mrb[0].mxu0
        %3866 = vmatprep.mubr.bf16.mxu0 0
        %3867 = vmatmul.mubr.bf16.gmra.mrb[0].mxu0 %v1083
        %v3868 = vpop.f32.mrb[0].mxu0
        %v3869 = vadd.f32 0.0, %v3868
        %v3870 = vpop.f32.mrb[0].mxu0
        %v3871 = vpop.f32.mrb[0].mxu0
        %v3872 = vadd.f32 0.0, %v3871
        %v3873 = vpop.f32.mrb[0].mxu0
        %3874 = vdwg.mxu0
        %v3891 = vunpack.c.l.b16 %v494
        %v3892 = vunpack.c.l.b16 %v495
        %v3893 = vunpack.c.l.b16 %v496
        %v3894 = vunpack.c.l.b16 %v497
        %v3895 = vunpack.c.l.b16 %v498
        %v3896 = vunpack.c.l.b16 %v499
        %v3897 = vunpack.c.l.b16 %v500
        %v3898 = vunpack.c.l.b16 %v501
        %v3899 = vunpack.c.l.b16 %v502
        %v3900 = vunpack.c.l.b16 %v503
        %v3901 = vunpack.c.l.b16 %v504
        %v3902 = vunpack.c.l.b16 %v505
        %v3903 = vunpack.c.l.b16 %v506
        %v3904 = vunpack.c.l.b16 %v507
        %v3905 = vunpack.c.l.b16 %v508
        %v3906 = vunpack.c.l.b16 %v509
        %v3907 = vpack.c.b16 %v3892, %v3891
        %v3908 = vpack.c.b16 %v3894, %v3893
        %v3909 = vpack.c.b16 %v3896, %v3895
        %v3910 = vpack.c.b16 %v3898, %v3897
        %v3911 = vpack.c.b16 %v3900, %v3899
        %v3912 = vpack.c.b16 %v3902, %v3901
        %v3913 = vpack.c.b16 %v3904, %v3903
        %v3914 = vpack.c.b16 %v3906, %v3905
        %3923 = vmatprep.subr.bf16.mxu0 0
        %3924 = vmatpush1.bf16.xpose.msra.mxu0 %v3907
        %3925 = vmatprep.subr.bf16.mxu0 0
        %3926 = vmatpush1.bf16.xpose.msra.mxu0 %v3908
        %3927 = vmatprep.subr.bf16.mxu0 0
        %3928 = vmatpush1.bf16.xpose.msra.mxu0 %v3909
        %3929 = vmatprep.subr.bf16.mxu0 0
        %3930 = vmatpush1.bf16.xpose.msra.mxu0 %v3910
        %3931 = vmatprep.subr.bf16.mxu0 0
        %3932 = vmatpush1.bf16.xpose.msra.mxu0 %v3911
        %3933 = vmatprep.subr.bf16.mxu0 0
        %3934 = vmatpush1.bf16.xpose.msra.mxu0 %v3912
        %3935 = vmatprep.subr.bf16.mxu0 0
        %3936 = vmatpush1.bf16.xpose.msra.mxu0 %v3913
        %3937 = vmatprep.subr.bf16.mxu0 0
        %3938 = vmatpush1.bf16.xpose.msra.mxu0 %v3914
        %3939 = vmatprep.subr.bf16.mxu0 0
        %3940 = vmatpush1.bf16.xpose.msra.mxu0 0
        %3941 = vmatprep.subr.bf16.mxu0 0
        %3942 = vmatpush1.bf16.xpose.msra.mxu0 0
        %3943 = vmatprep.subr.bf16.mxu0 0
        %3944 = vmatpush1.bf16.xpose.msra.mxu0 0
        %3945 = vmatprep.subr.bf16.mxu0 0
        %3946 = vmatpush1.bf16.xpose.msra.mxu0 0
        %3947 = vmatprep.subr.bf16.mxu0 0
        %3948 = vmatpush1.bf16.xpose.msra.mxu0 0
        %3949 = vmatprep.subr.bf16.mxu0 0
        %3950 = vmatpush1.bf16.xpose.msra.mxu0 0
        %3951 = vmatprep.subr.bf16.mxu0 0
        %3952 = vmatpush1.bf16.xpose.msra.mxu0 0
        %3953 = vmatprep.subr.bf16.mxu0 0
        %3954 = vmatpush1.bf16.xpose.msra.mxu0 0
        %3955 = vmatprep.mubr.bf16.mxu0 0
        %3956 = vmatmul.mubr.bf16.gmra.mrb[0].mxu0 %v1084
        %v3957 = vpop.f32.mrb[0].mxu0
        %v3958 = vadd.f32 0.0, %v3957
        %v3959 = vpop.f32.mrb[0].mxu0
        %v3960 = vpop.f32.mrb[0].mxu0
        %v3961 = vadd.f32 0.0, %v3960
        %v3962 = vpop.f32.mrb[0].mxu0
        %3963 = vmatprep.mubr.bf16.mxu0 0
        %3964 = vmatmul.mubr.bf16.gmra.mrb[0].mxu0 %v1085
        %v3965 = vpop.f32.mrb[0].mxu0
        %v3966 = vadd.f32 0.0, %v3965
        %v3967 = vpop.f32.mrb[0].mxu0
        %v3968 = vpop.f32.mrb[0].mxu0
        %v3969 = vadd.f32 0.0, %v3968
        %v3970 = vpop.f32.mrb[0].mxu0
        %3971 = vmatprep.mubr.bf16.mxu0 0
        %3972 = vmatmul.mubr.bf16.gmra.mrb[0].mxu0 %v1086
        %v3973 = vpop.f32.mrb[0].mxu0
        %v3974 = vadd.f32 0.0, %v3973
        %v3975 = vpop.f32.mrb[0].mxu0
        %v3976 = vpop.f32.mrb[0].mxu0
        %v3977 = vadd.f32 0.0, %v3976
        %v3978 = vpop.f32.mrb[0].mxu0
        %3979 = vmatprep.mubr.bf16.mxu0 0
        %3980 = vmatmul.mubr.bf16.gmra.mrb[0].mxu0 %v1087
        %v3981 = vpop.f32.mrb[0].mxu0
        %v3982 = vadd.f32 0.0, %v3981
        %v3983 = vpop.f32.mrb[0].mxu0
        %v3984 = vpop.f32.mrb[0].mxu0
        %v3985 = vadd.f32 0.0, %v3984
        %v3986 = vpop.f32.mrb[0].mxu0
        %3987 = vmatprep.mubr.bf16.mxu0 0
        %3988 = vmatmul.mubr.bf16.gmra.mrb[0].mxu0 %v1088
        %v3989 = vpop.f32.mrb[0].mxu0
        %v3990 = vadd.f32 0.0, %v3989
        %v3991 = vpop.f32.mrb[0].mxu0
        %v3992 = vpop.f32.mrb[0].mxu0
        %v3993 = vadd.f32 0.0, %v3992
        %v3994 = vpop.f32.mrb[0].mxu0
        %3995 = vmatprep.mubr.bf16.mxu0 0
        %3996 = vmatmul.mubr.bf16.gmra.mrb[0].mxu0 %v1089
        %v3997 = vpop.f32.mrb[0].mxu0
        %v3998 = vadd.f32 0.0, %v3997
        %v3999 = vpop.f32.mrb[0].mxu0
        %v4000 = vpop.f32.mrb[0].mxu0
        %v4001 = vadd.f32 0.0, %v4000
        %v4002 = vpop.f32.mrb[0].mxu0
        %4003 = vmatprep.mubr.bf16.mxu0 0
        %4004 = vmatmul.mubr.bf16.gmra.mrb[0].mxu0 %v1090
        %v4005 = vpop.f32.mrb[0].mxu0
        %v4006 = vadd.f32 0.0, %v4005
        %v4007 = vpop.f32.mrb[0].mxu0
        %v4008 = vpop.f32.mrb[0].mxu0
        %v4009 = vadd.f32 0.0, %v4008
        %v4010 = vpop.f32.mrb[0].mxu0
        %4011 = vmatprep.mubr.bf16.mxu0 0
        %4012 = vmatmul.mubr.bf16.gmra.mrb[0].mxu0 %v1091
        %v4013 = vpop.f32.mrb[0].mxu0
        %v4014 = vadd.f32 0.0, %v4013
        %v4015 = vpop.f32.mrb[0].mxu0
        %v4016 = vpop.f32.mrb[0].mxu0
        %v4017 = vadd.f32 0.0, %v4016
        %v4018 = vpop.f32.mrb[0].mxu0
        %4019 = vdwg.mxu0
        %v4036 = vunpack.c.l.b16 %v1540
        %v4037 = vunpack.c.l.b16 %v1541
        %v4038 = vunpack.c.l.b16 %v1542
        %v4039 = vunpack.c.l.b16 %v1543
        %v4040 = vunpack.c.l.b16 %v1544
        %v4041 = vunpack.c.l.b16 %v1545
        %v4042 = vunpack.c.l.b16 %v1546
        %v4043 = vunpack.c.l.b16 %v1547
        %v4044 = vunpack.c.l.b16 %v1548
        %v4045 = vunpack.c.l.b16 %v1549
        %v4046 = vunpack.c.l.b16 %v1550
        %v4047 = vunpack.c.l.b16 %v1551
        %v4048 = vunpack.c.l.b16 %v1552
        %v4049 = vunpack.c.l.b16 %v1553
        %v4050 = vunpack.c.l.b16 %v1554
        %v4051 = vunpack.c.l.b16 %v1555
        %v4052 = vpack.c.b16 %v4037, %v4036
        %v4053 = vpack.c.b16 %v4039, %v4038
        %v4054 = vpack.c.b16 %v4041, %v4040
        %v4055 = vpack.c.b16 %v4043, %v4042
        %v4056 = vpack.c.b16 %v4045, %v4044
        %v4057 = vpack.c.b16 %v4047, %v4046
        %v4058 = vpack.c.b16 %v4049, %v4048
        %v4059 = vpack.c.b16 %v4051, %v4050
        %4068 = vmatprep.subr.bf16.mxu0 0
        %4069 = vmatpush1.bf16.xpose.msra.mxu0 %v4052
        %4070 = vmatprep.subr.bf16.mxu0 0
        %4071 = vmatpush1.bf16.xpose.msra.mxu0 %v4053
        %4072 = vmatprep.subr.bf16.mxu0 0
        %4073 = vmatpush1.bf16.xpose.msra.mxu0 %v4054
        %4074 = vmatprep.subr.bf16.mxu0 0
        %4075 = vmatpush1.bf16.xpose.msra.mxu0 %v4055
        %4076 = vmatprep.subr.bf16.mxu0 0
        %4077 = vmatpush1.bf16.xpose.msra.mxu0 %v4056
        %4078 = vmatprep.subr.bf16.mxu0 0
        %4079 = vmatpush1.bf16.xpose.msra.mxu0 %v4057
        %4080 = vmatprep.subr.bf16.mxu0 0
        %4081 = vmatpush1.bf16.xpose.msra.mxu0 %v4058
        %4082 = vmatprep.subr.bf16.mxu0 0
        %4083 = vmatpush1.bf16.xpose.msra.mxu0 %v4059
        %4084 = vmatprep.subr.bf16.mxu0 0
        %4085 = vmatpush1.bf16.xpose.msra.mxu0 0
        %4086 = vmatprep.subr.bf16.mxu0 0
        %4087 = vmatpush1.bf16.xpose.msra.mxu0 0
        %4088 = vmatprep.subr.bf16.mxu0 0
        %4089 = vmatpush1.bf16.xpose.msra.mxu0 0
        %4090 = vmatprep.subr.bf16.mxu0 0
        %4091 = vmatpush1.bf16.xpose.msra.mxu0 0
        %4092 = vmatprep.subr.bf16.mxu0 0
        %4093 = vmatpush1.bf16.xpose.msra.mxu0 0
        %4094 = vmatprep.subr.bf16.mxu0 0
        %4095 = vmatpush1.bf16.xpose.msra.mxu0 0
        %4096 = vmatprep.subr.bf16.mxu0 0
        %4097 = vmatpush1.bf16.xpose.msra.mxu0 0
        %4098 = vmatprep.subr.bf16.mxu0 0
        %4099 = vmatpush1.bf16.xpose.msra.mxu0 0
        %4100 = vmatprep.mubr.bf16.mxu0 0
        %4101 = vmatmul.mubr.bf16.gmra.mrb[0].mxu0 %v1028
        %v4102 = vpop.f32.mrb[0].mxu0
        %v4103 = vadd.f32 0.0, %v4102
        %v4104 = vpop.f32.mrb[0].mxu0
        %v4105 = vpop.f32.mrb[0].mxu0
        %v4106 = vadd.f32 0.0, %v4105
        %v4107 = vpop.f32.mrb[0].mxu0
        %4108 = vmatprep.mubr.bf16.mxu0 0
        %4109 = vmatmul.mubr.bf16.gmra.mrb[0].mxu0 %v1029
        %v4110 = vpop.f32.mrb[0].mxu0
        %v4111 = vadd.f32 0.0, %v4110
        %v4112 = vpop.f32.mrb[0].mxu0
        %v4113 = vpop.f32.mrb[0].mxu0
        %v4114 = vadd.f32 0.0, %v4113
        %v4115 = vpop.f32.mrb[0].mxu0
        %4116 = vmatprep.mubr.bf16.mxu0 0
        %4117 = vmatmul.mubr.bf16.gmra.mrb[0].mxu0 %v1030
        %v4118 = vpop.f32.mrb[0].mxu0
        %v4119 = vadd.f32 0.0, %v4118
        %v4120 = vpop.f32.mrb[0].mxu0
        %v4121 = vpop.f32.mrb[0].mxu0
        %v4122 = vadd.f32 0.0, %v4121
        %v4123 = vpop.f32.mrb[0].mxu0
        %4124 = vmatprep.mubr.bf16.mxu0 0
        %4125 = vmatmul.mubr.bf16.gmra.mrb[0].mxu0 %v1031
        %v4126 = vpop.f32.mrb[0].mxu0
        %v4127 = vadd.f32 0.0, %v4126
        %v4128 = vpop.f32.mrb[0].mxu0
        %v4129 = vpop.f32.mrb[0].mxu0
        %v4130 = vadd.f32 0.0, %v4129
        %v4131 = vpop.f32.mrb[0].mxu0
        %4132 = vmatprep.mubr.bf16.mxu0 0
        %4133 = vmatmul.mubr.bf16.gmra.mrb[0].mxu0 %v1032
        %v4134 = vpop.f32.mrb[0].mxu0
        %v4135 = vadd.f32 0.0, %v4134
        %v4136 = vpop.f32.mrb[0].mxu0
        %v4137 = vpop.f32.mrb[0].mxu0
        %v4138 = vadd.f32 0.0, %v4137
        %v4139 = vpop.f32.mrb[0].mxu0
        %4140 = vmatprep.mubr.bf16.mxu0 0
        %4141 = vmatmul.mubr.bf16.gmra.mrb[0].mxu0 %v1033
        %v4142 = vpop.f32.mrb[0].mxu0
        %v4143 = vadd.f32 0.0, %v4142
        %v4144 = vpop.f32.mrb[0].mxu0
        %v4145 = vpop.f32.mrb[0].mxu0
        %v4146 = vadd.f32 0.0, %v4145
        %v4147 = vpop.f32.mrb[0].mxu0
        %4148 = vmatprep.mubr.bf16.mxu0 0
        %4149 = vmatmul.mubr.bf16.gmra.mrb[0].mxu0 %v1034
        %v4150 = vpop.f32.mrb[0].mxu0
        %v4151 = vadd.f32 0.0, %v4150
        %v4152 = vpop.f32.mrb[0].mxu0
        %v4153 = vpop.f32.mrb[0].mxu0
        %v4154 = vadd.f32 0.0, %v4153
        %v4155 = vpop.f32.mrb[0].mxu0
        %4156 = vmatprep.mubr.bf16.mxu0 0
        %4157 = vmatmul.mubr.bf16.gmra.mrb[0].mxu0 %v1035
        %v4158 = vpop.f32.mrb[0].mxu0
        %v4159 = vadd.f32 0.0, %v4158
        %v4160 = vpop.f32.mrb[0].mxu0
        %v4161 = vpop.f32.mrb[0].mxu0
        %v4162 = vadd.f32 0.0, %v4161
        %v4163 = vpop.f32.mrb[0].mxu0
        %4164 = vdwg.mxu0
        %v4181 = vunpack.c.l.b16 %v1556
        %v4182 = vunpack.c.l.b16 %v1557
        %v4183 = vunpack.c.l.b16 %v1558
        %v4184 = vunpack.c.l.b16 %v1559
        %v4185 = vunpack.c.l.b16 %v1560
        %v4186 = vunpack.c.l.b16 %v1561
        %v4187 = vunpack.c.l.b16 %v1562
        %v4188 = vunpack.c.l.b16 %v1563
        %v4189 = vunpack.c.l.b16 %v1564
        %v4190 = vunpack.c.l.b16 %v1565
        %v4191 = vunpack.c.l.b16 %v1566
        %v4192 = vunpack.c.l.b16 %v1567
        %v4193 = vunpack.c.l.b16 %v1568
        %v4194 = vunpack.c.l.b16 %v1569
        %v4195 = vunpack.c.l.b16 %v1570
        %v4196 = vunpack.c.l.b16 %v1571
        %v4197 = vpack.c.b16 %v4182, %v4181
        %v4198 = vpack.c.b16 %v4184, %v4183
        %v4199 = vpack.c.b16 %v4186, %v4185
        %v4200 = vpack.c.b16 %v4188, %v4187
        %v4201 = vpack.c.b16 %v4190, %v4189
        %v4202 = vpack.c.b16 %v4192, %v4191
        %v4203 = vpack.c.b16 %v4194, %v4193
        %v4204 = vpack.c.b16 %v4196, %v4195
        %4213 = vmatprep.subr.bf16.mxu0 0
        %4214 = vmatpush1.bf16.xpose.msra.mxu0 %v4197
        %4215 = vmatprep.subr.bf16.mxu0 0
        %4216 = vmatpush1.bf16.xpose.msra.mxu0 %v4198
        %4217 = vmatprep.subr.bf16.mxu0 0
        %4218 = vmatpush1.bf16.xpose.msra.mxu0 %v4199
        %4219 = vmatprep.subr.bf16.mxu0 0
        %4220 = vmatpush1.bf16.xpose.msra.mxu0 %v4200
        %4221 = vmatprep.subr.bf16.mxu0 0
        %4222 = vmatpush1.bf16.xpose.msra.mxu0 %v4201
        %4223 = vmatprep.subr.bf16.mxu0 0
        %4224 = vmatpush1.bf16.xpose.msra.mxu0 %v4202
        %4225 = vmatprep.subr.bf16.mxu0 0
        %4226 = vmatpush1.bf16.xpose.msra.mxu0 %v4203
        %4227 = vmatprep.subr.bf16.mxu0 0
        %4228 = vmatpush1.bf16.xpose.msra.mxu0 %v4204
        %4229 = vmatprep.subr.bf16.mxu0 0
        %4230 = vmatpush1.bf16.xpose.msra.mxu0 0
        %4231 = vmatprep.subr.bf16.mxu0 0
        %4232 = vmatpush1.bf16.xpose.msra.mxu0 0
        %4233 = vmatprep.subr.bf16.mxu0 0
        %4234 = vmatpush1.bf16.xpose.msra.mxu0 0
        %4235 = vmatprep.subr.bf16.mxu0 0
        %4236 = vmatpush1.bf16.xpose.msra.mxu0 0
        %4237 = vmatprep.subr.bf16.mxu0 0
        %4238 = vmatpush1.bf16.xpose.msra.mxu0 0
        %4239 = vmatprep.subr.bf16.mxu0 0
        %4240 = vmatpush1.bf16.xpose.msra.mxu0 0
        %4241 = vmatprep.subr.bf16.mxu0 0
        %4242 = vmatpush1.bf16.xpose.msra.mxu0 0
        %4243 = vmatprep.subr.bf16.mxu0 0
        %4244 = vmatpush1.bf16.xpose.msra.mxu0 0
        %4245 = vmatprep.mubr.bf16.mxu0 0
        %4246 = vmatmul.mubr.bf16.gmra.mrb[0].mxu0 %v1036
        %v4247 = vpop.f32.mrb[0].mxu0
        %v4248 = vadd.f32 0.0, %v4247
        %v4249 = vpop.f32.mrb[0].mxu0
        %v4250 = vpop.f32.mrb[0].mxu0
        %v4251 = vadd.f32 0.0, %v4250
        %v4252 = vpop.f32.mrb[0].mxu0
        %4253 = vmatprep.mubr.bf16.mxu0 0
        %4254 = vmatmul.mubr.bf16.gmra.mrb[0].mxu0 %v1037
        %v4255 = vpop.f32.mrb[0].mxu0
        %v4256 = vadd.f32 0.0, %v4255
        %v4257 = vpop.f32.mrb[0].mxu0
        %v4258 = vpop.f32.mrb[0].mxu0
        %v4259 = vadd.f32 0.0, %v4258
        %v4260 = vpop.f32.mrb[0].mxu0
        %4261 = vmatprep.mubr.bf16.mxu0 0
        %4262 = vmatmul.mubr.bf16.gmra.mrb[0].mxu0 %v1038
        %v4263 = vpop.f32.mrb[0].mxu0
        %v4264 = vadd.f32 0.0, %v4263
        %v4265 = vpop.f32.mrb[0].mxu0
        %v4266 = vpop.f32.mrb[0].mxu0
        %v4267 = vadd.f32 0.0, %v4266
        %v4268 = vpop.f32.mrb[0].mxu0
        %4269 = vmatprep.mubr.bf16.mxu0 0
        %4270 = vmatmul.mubr.bf16.gmra.mrb[0].mxu0 %v1039
        %v4271 = vpop.f32.mrb[0].mxu0
        %v4272 = vadd.f32 0.0, %v4271
        %v4273 = vpop.f32.mrb[0].mxu0
        %v4274 = vpop.f32.mrb[0].mxu0
        %v4275 = vadd.f32 0.0, %v4274
        %v4276 = vpop.f32.mrb[0].mxu0
        %4277 = vmatprep.mubr.bf16.mxu0 0
        %4278 = vmatmul.mubr.bf16.gmra.mrb[0].mxu0 %v1040
        %v4279 = vpop.f32.mrb[0].mxu0
        %v4280 = vadd.f32 0.0, %v4279
        %v4281 = vpop.f32.mrb[0].mxu0
        %v4282 = vpop.f32.mrb[0].mxu0
        %v4283 = vadd.f32 0.0, %v4282
        %v4284 = vpop.f32.mrb[0].mxu0
        %4285 = vmatprep.mubr.bf16.mxu0 0
        %4286 = vmatmul.mubr.bf16.gmra.mrb[0].mxu0 %v1041
        %v4287 = vpop.f32.mrb[0].mxu0
        %v4288 = vadd.f32 0.0, %v4287
        %v4289 = vpop.f32.mrb[0].mxu0
        %v4290 = vpop.f32.mrb[0].mxu0
        %v4291 = vadd.f32 0.0, %v4290
        %v4292 = vpop.f32.mrb[0].mxu0
        %4293 = vmatprep.mubr.bf16.mxu0 0
        %4294 = vmatmul.mubr.bf16.gmra.mrb[0].mxu0 %v1042
        %v4295 = vpop.f32.mrb[0].mxu0
        %v4296 = vadd.f32 0.0, %v4295
        %v4297 = vpop.f32.mrb[0].mxu0
        %v4298 = vpop.f32.mrb[0].mxu0
        %v4299 = vadd.f32 0.0, %v4298
        %v4300 = vpop.f32.mrb[0].mxu0
        %4301 = vmatprep.mubr.bf16.mxu0 0
        %4302 = vmatmul.mubr.bf16.gmra.mrb[0].mxu0 %v1043
        %v4303 = vpop.f32.mrb[0].mxu0
        %v4304 = vadd.f32 0.0, %v4303
        %v4305 = vpop.f32.mrb[0].mxu0
        %v4306 = vpop.f32.mrb[0].mxu0
        %v4307 = vadd.f32 0.0, %v4306
        %v4308 = vpop.f32.mrb[0].mxu0
        %4309 = vdwg.mxu0
        %v4326 = vunpack.c.l.b16 %v1572
        %v4327 = vunpack.c.l.b16 %v1573
        %v4328 = vunpack.c.l.b16 %v1574
        %v4329 = vunpack.c.l.b16 %v1575
        %v4330 = vunpack.c.l.b16 %v1576
        %v4331 = vunpack.c.l.b16 %v1577
        %v4332 = vunpack.c.l.b16 %v1578
        %v4333 = vunpack.c.l.b16 %v1579
        %v4334 = vunpack.c.l.b16 %v1580
        %v4335 = vunpack.c.l.b16 %v1581
        %v4336 = vunpack.c.l.b16 %v1582
        %v4337 = vunpack.c.l.b16 %v1583
        %v4338 = vunpack.c.l.b16 %v1584
        %v4339 = vunpack.c.l.b16 %v1585
        %v4340 = vunpack.c.l.b16 %v1586
        %v4341 = vunpack.c.l.b16 %v1587
        %v4342 = vpack.c.b16 %v4327, %v4326
        %v4343 = vpack.c.b16 %v4329, %v4328
        %v4344 = vpack.c.b16 %v4331, %v4330
        %v4345 = vpack.c.b16 %v4333, %v4332
        %v4346 = vpack.c.b16 %v4335, %v4334
        %v4347 = vpack.c.b16 %v4337, %v4336
        %v4348 = vpack.c.b16 %v4339, %v4338
        %v4349 = vpack.c.b16 %v4341, %v4340
        %4358 = vmatprep.subr.bf16.mxu0 0
        %4359 = vmatpush1.bf16.xpose.msra.mxu0 %v4342
        %4360 = vmatprep.subr.bf16.mxu0 0
        %4361 = vmatpush1.bf16.xpose.msra.mxu0 %v4343
        %4362 = vmatprep.subr.bf16.mxu0 0
        %4363 = vmatpush1.bf16.xpose.msra.mxu0 %v4344
        %4364 = vmatprep.subr.bf16.mxu0 0
        %4365 = vmatpush1.bf16.xpose.msra.mxu0 %v4345
        %4366 = vmatprep.subr.bf16.mxu0 0
        %4367 = vmatpush1.bf16.xpose.msra.mxu0 %v4346
        %4368 = vmatprep.subr.bf16.mxu0 0
        %4369 = vmatpush1.bf16.xpose.msra.mxu0 %v4347
        %4370 = vmatprep.subr.bf16.mxu0 0
        %4371 = vmatpush1.bf16.xpose.msra.mxu0 %v4348
        %4372 = vmatprep.subr.bf16.mxu0 0
        %4373 = vmatpush1.bf16.xpose.msra.mxu0 %v4349
        %4374 = vmatprep.subr.bf16.mxu0 0
        %4375 = vmatpush1.bf16.xpose.msra.mxu0 0
        %4376 = vmatprep.subr.bf16.mxu0 0
        %4377 = vmatpush1.bf16.xpose.msra.mxu0 0
        %4378 = vmatprep.subr.bf16.mxu0 0
        %4379 = vmatpush1.bf16.xpose.msra.mxu0 0
        %4380 = vmatprep.subr.bf16.mxu0 0
        %4381 = vmatpush1.bf16.xpose.msra.mxu0 0
        %4382 = vmatprep.subr.bf16.mxu0 0
        %4383 = vmatpush1.bf16.xpose.msra.mxu0 0
        %4384 = vmatprep.subr.bf16.mxu0 0
        %4385 = vmatpush1.bf16.xpose.msra.mxu0 0
        %4386 = vmatprep.subr.bf16.mxu0 0
        %4387 = vmatpush1.bf16.xpose.msra.mxu0 0
        %4388 = vmatprep.subr.bf16.mxu0 0
        %4389 = vmatpush1.bf16.xpose.msra.mxu0 0
        %4390 = vmatprep.mubr.bf16.mxu0 0
        %4391 = vmatmul.mubr.bf16.gmra.mrb[0].mxu0 %v1044
        %v4392 = vpop.f32.mrb[0].mxu0
        %v4393 = vadd.f32 0.0, %v4392
        %v4394 = vpop.f32.mrb[0].mxu0
        %v4395 = vpop.f32.mrb[0].mxu0
        %v4396 = vadd.f32 0.0, %v4395
        %v4397 = vpop.f32.mrb[0].mxu0
        %4398 = vmatprep.mubr.bf16.mxu0 0
        %4399 = vmatmul.mubr.bf16.gmra.mrb[0].mxu0 %v1045
        %v4400 = vpop.f32.mrb[0].mxu0
        %v4401 = vadd.f32 0.0, %v4400
        %v4402 = vpop.f32.mrb[0].mxu0
        %v4403 = vpop.f32.mrb[0].mxu0
        %v4404 = vadd.f32 0.0, %v4403
        %v4405 = vpop.f32.mrb[0].mxu0
        %4406 = vmatprep.mubr.bf16.mxu0 0
        %4407 = vmatmul.mubr.bf16.gmra.mrb[0].mxu0 %v1046
        %v4408 = vpop.f32.mrb[0].mxu0
        %v4409 = vadd.f32 0.0, %v4408
        %v4410 = vpop.f32.mrb[0].mxu0
        %v4411 = vpop.f32.mrb[0].mxu0
        %v4412 = vadd.f32 0.0, %v4411
        %v4413 = vpop.f32.mrb[0].mxu0
        %4414 = vmatprep.mubr.bf16.mxu0 0
        %4415 = vmatmul.mubr.bf16.gmra.mrb[0].mxu0 %v1047
        %v4416 = vpop.f32.mrb[0].mxu0
        %v4417 = vadd.f32 0.0, %v4416
        %v4418 = vpop.f32.mrb[0].mxu0
        %v4419 = vpop.f32.mrb[0].mxu0
        %v4420 = vadd.f32 0.0, %v4419
        %v4421 = vpop.f32.mrb[0].mxu0
        %4422 = vmatprep.mubr.bf16.mxu0 0
        %4423 = vmatmul.mubr.bf16.gmra.mrb[0].mxu0 %v1048
        %v4424 = vpop.f32.mrb[0].mxu0
        %v4425 = vadd.f32 0.0, %v4424
        %v4426 = vpop.f32.mrb[0].mxu0
        %v4427 = vpop.f32.mrb[0].mxu0
        %v4428 = vadd.f32 0.0, %v4427
        %v4429 = vpop.f32.mrb[0].mxu0
        %4430 = vmatprep.mubr.bf16.mxu0 0
        %4431 = vmatmul.mubr.bf16.gmra.mrb[0].mxu0 %v1049
        %v4432 = vpop.f32.mrb[0].mxu0
        %v4433 = vadd.f32 0.0, %v4432
        %v4434 = vpop.f32.mrb[0].mxu0
        %v4435 = vpop.f32.mrb[0].mxu0
        %v4436 = vadd.f32 0.0, %v4435
        %v4437 = vpop.f32.mrb[0].mxu0
        %4438 = vmatprep.mubr.bf16.mxu0 0
        %4439 = vmatmul.mubr.bf16.gmra.mrb[0].mxu0 %v1050
        %v4440 = vpop.f32.mrb[0].mxu0
        %v4441 = vadd.f32 0.0, %v4440
        %v4442 = vpop.f32.mrb[0].mxu0
        %v4443 = vpop.f32.mrb[0].mxu0
        %v4444 = vadd.f32 0.0, %v4443
        %v4445 = vpop.f32.mrb[0].mxu0
        %4446 = vmatprep.mubr.bf16.mxu0 0
        %4447 = vmatmul.mubr.bf16.gmra.mrb[0].mxu0 %v1051
        %v4448 = vpop.f32.mrb[0].mxu0
        %v4449 = vadd.f32 0.0, %v4448
        %v4450 = vpop.f32.mrb[0].mxu0
        %v4451 = vpop.f32.mrb[0].mxu0
        %v4452 = vadd.f32 0.0, %v4451
        %v4453 = vpop.f32.mrb[0].mxu0
        %4454 = vdwg.mxu0
        %v4471 = vunpack.c.l.b16 %v1588
        %v4472 = vunpack.c.l.b16 %v1589
        %v4473 = vunpack.c.l.b16 %v1590
        %v4474 = vunpack.c.l.b16 %v1591
        %v4475 = vunpack.c.l.b16 %v1592
        %v4476 = vunpack.c.l.b16 %v1593
        %v4477 = vunpack.c.l.b16 %v1594
        %v4478 = vunpack.c.l.b16 %v1595
        %v4479 = vunpack.c.l.b16 %v1596
        %v4480 = vunpack.c.l.b16 %v1597
        %v4481 = vunpack.c.l.b16 %v1598
        %v4482 = vunpack.c.l.b16 %v1599
        %v4483 = vunpack.c.l.b16 %v1600
        %v4484 = vunpack.c.l.b16 %v1601
        %v4485 = vunpack.c.l.b16 %v1602
        %v4486 = vunpack.c.l.b16 %v1603
        %v4487 = vpack.c.b16 %v4472, %v4471
        %v4488 = vpack.c.b16 %v4474, %v4473
        %v4489 = vpack.c.b16 %v4476, %v4475
        %v4490 = vpack.c.b16 %v4478, %v4477
        %v4491 = vpack.c.b16 %v4480, %v4479
        %v4492 = vpack.c.b16 %v4482, %v4481
        %v4493 = vpack.c.b16 %v4484, %v4483
        %v4494 = vpack.c.b16 %v4486, %v4485
        %4503 = vmatprep.subr.bf16.mxu0 0
        %4504 = vmatpush1.bf16.xpose.msra.mxu0 %v4487
        %4505 = vmatprep.subr.bf16.mxu0 0
        %4506 = vmatpush1.bf16.xpose.msra.mxu0 %v4488
        %4507 = vmatprep.subr.bf16.mxu0 0
        %4508 = vmatpush1.bf16.xpose.msra.mxu0 %v4489
        %4509 = vmatprep.subr.bf16.mxu0 0
        %4510 = vmatpush1.bf16.xpose.msra.mxu0 %v4490
        %4511 = vmatprep.subr.bf16.mxu0 0
        %4512 = vmatpush1.bf16.xpose.msra.mxu0 %v4491
        %4513 = vmatprep.subr.bf16.mxu0 0
        %4514 = vmatpush1.bf16.xpose.msra.mxu0 %v4492
        %4515 = vmatprep.subr.bf16.mxu0 0
        %4516 = vmatpush1.bf16.xpose.msra.mxu0 %v4493
        %4517 = vmatprep.subr.bf16.mxu0 0
        %4518 = vmatpush1.bf16.xpose.msra.mxu0 %v4494
        %4519 = vmatprep.subr.bf16.mxu0 0
        %4520 = vmatpush1.bf16.xpose.msra.mxu0 0
        %4521 = vmatprep.subr.bf16.mxu0 0
        %4522 = vmatpush1.bf16.xpose.msra.mxu0 0
        %4523 = vmatprep.subr.bf16.mxu0 0
        %4524 = vmatpush1.bf16.xpose.msra.mxu0 0
        %4525 = vmatprep.subr.bf16.mxu0 0
        %4526 = vmatpush1.bf16.xpose.msra.mxu0 0
        %4527 = vmatprep.subr.bf16.mxu0 0
        %4528 = vmatpush1.bf16.xpose.msra.mxu0 0
        %4529 = vmatprep.subr.bf16.mxu0 0
        %4530 = vmatpush1.bf16.xpose.msra.mxu0 0
        %4531 = vmatprep.subr.bf16.mxu0 0
        %4532 = vmatpush1.bf16.xpose.msra.mxu0 0
        %4533 = vmatprep.subr.bf16.mxu0 0
        %4534 = vmatpush1.bf16.xpose.msra.mxu0 0
        %4535 = vmatprep.mubr.bf16.mxu0 0
        %4536 = vmatmul.mubr.bf16.gmra.mrb[0].mxu0 %v1052
        %v4537 = vpop.f32.mrb[0].mxu0
        %v4538 = vadd.f32 0.0, %v4537
        %v4539 = vpop.f32.mrb[0].mxu0
        %v4540 = vpop.f32.mrb[0].mxu0
        %v4541 = vadd.f32 0.0, %v4540
        %v4542 = vpop.f32.mrb[0].mxu0
        %4543 = vmatprep.mubr.bf16.mxu0 0
        %4544 = vmatmul.mubr.bf16.gmra.mrb[0].mxu0 %v1053
        %v4545 = vpop.f32.mrb[0].mxu0
        %v4546 = vadd.f32 0.0, %v4545
        %v4547 = vpop.f32.mrb[0].mxu0
        %v4548 = vpop.f32.mrb[0].mxu0
        %v4549 = vadd.f32 0.0, %v4548
        %v4550 = vpop.f32.mrb[0].mxu0
        %4551 = vmatprep.mubr.bf16.mxu0 0
        %4552 = vmatmul.mubr.bf16.gmra.mrb[0].mxu0 %v1054
        %v4553 = vpop.f32.mrb[0].mxu0
        %v4554 = vadd.f32 0.0, %v4553
        %v4555 = vpop.f32.mrb[0].mxu0
        %v4556 = vpop.f32.mrb[0].mxu0
        %v4557 = vadd.f32 0.0, %v4556
        %v4558 = vpop.f32.mrb[0].mxu0
        %4559 = vmatprep.mubr.bf16.mxu0 0
        %4560 = vmatmul.mubr.bf16.gmra.mrb[0].mxu0 %v1055
        %v4561 = vpop.f32.mrb[0].mxu0
        %v4562 = vadd.f32 0.0, %v4561
        %v4563 = vpop.f32.mrb[0].mxu0
        %v4564 = vpop.f32.mrb[0].mxu0
        %v4565 = vadd.f32 0.0, %v4564
        %v4566 = vpop.f32.mrb[0].mxu0
        %4567 = vmatprep.mubr.bf16.mxu0 0
        %4568 = vmatmul.mubr.bf16.gmra.mrb[0].mxu0 %v1056
        %v4569 = vpop.f32.mrb[0].mxu0
        %v4570 = vadd.f32 0.0, %v4569
        %v4571 = vpop.f32.mrb[0].mxu0
        %v4572 = vpop.f32.mrb[0].mxu0
        %v4573 = vadd.f32 0.0, %v4572
        %v4574 = vpop.f32.mrb[0].mxu0
        %4575 = vmatprep.mubr.bf16.mxu0 0
        %4576 = vmatmul.mubr.bf16.gmra.mrb[0].mxu0 %v1057
        %v4577 = vpop.f32.mrb[0].mxu0
        %v4578 = vadd.f32 0.0, %v4577
        %v4579 = vpop.f32.mrb[0].mxu0
        %v4580 = vpop.f32.mrb[0].mxu0
        %v4581 = vadd.f32 0.0, %v4580
        %v4582 = vpop.f32.mrb[0].mxu0
        %4583 = vmatprep.mubr.bf16.mxu0 0
        %4584 = vmatmul.mubr.bf16.gmra.mrb[0].mxu0 %v1058
        %v4585 = vpop.f32.mrb[0].mxu0
        %v4586 = vadd.f32 0.0, %v4585
        %v4587 = vpop.f32.mrb[0].mxu0
        %v4588 = vpop.f32.mrb[0].mxu0
        %v4589 = vadd.f32 0.0, %v4588
        %v4590 = vpop.f32.mrb[0].mxu0
        %4591 = vmatprep.mubr.bf16.mxu0 0
        %4592 = vmatmul.mubr.bf16.gmra.mrb[0].mxu0 %v1059
        %v4593 = vpop.f32.mrb[0].mxu0
        %v4594 = vadd.f32 0.0, %v4593
        %v4595 = vpop.f32.mrb[0].mxu0
        %v4596 = vpop.f32.mrb[0].mxu0
        %v4597 = vadd.f32 0.0, %v4596
        %v4598 = vpop.f32.mrb[0].mxu0
        %4599 = vdwg.mxu0
        %v4616 = vunpack.c.l.b16 %v1604
        %v4617 = vunpack.c.l.b16 %v1605
        %v4618 = vunpack.c.l.b16 %v1606
        %v4619 = vunpack.c.l.b16 %v1607
        %v4620 = vunpack.c.l.b16 %v1608
        %v4621 = vunpack.c.l.b16 %v1609
        %v4622 = vunpack.c.l.b16 %v1610
        %v4623 = vunpack.c.l.b16 %v1611
        %v4624 = vunpack.c.l.b16 %v1612
        %v4625 = vunpack.c.l.b16 %v1613
        %v4626 = vunpack.c.l.b16 %v1614
        %v4627 = vunpack.c.l.b16 %v1615
        %v4628 = vunpack.c.l.b16 %v1616
        %v4629 = vunpack.c.l.b16 %v1617
        %v4630 = vunpack.c.l.b16 %v1618
        %v4631 = vunpack.c.l.b16 %v1619
        %v4632 = vpack.c.b16 %v4617, %v4616
        %v4633 = vpack.c.b16 %v4619, %v4618
        %v4634 = vpack.c.b16 %v4621, %v4620
        %v4635 = vpack.c.b16 %v4623, %v4622
        %v4636 = vpack.c.b16 %v4625, %v4624
        %v4637 = vpack.c.b16 %v4627, %v4626
        %v4638 = vpack.c.b16 %v4629, %v4628
        %v4639 = vpack.c.b16 %v4631, %v4630
        %4648 = vmatprep.subr.bf16.mxu0 0
        %4649 = vmatpush1.bf16.xpose.msra.mxu0 %v4632
        %4650 = vmatprep.subr.bf16.mxu0 0
        %4651 = vmatpush1.bf16.xpose.msra.mxu0 %v4633
        %4652 = vmatprep.subr.bf16.mxu0 0
        %4653 = vmatpush1.bf16.xpose.msra.mxu0 %v4634
        %4654 = vmatprep.subr.bf16.mxu0 0
        %4655 = vmatpush1.bf16.xpose.msra.mxu0 %v4635
        %4656 = vmatprep.subr.bf16.mxu0 0
        %4657 = vmatpush1.bf16.xpose.msra.mxu0 %v4636
        %4658 = vmatprep.subr.bf16.mxu0 0
        %4659 = vmatpush1.bf16.xpose.msra.mxu0 %v4637
        %4660 = vmatprep.subr.bf16.mxu0 0
        %4661 = vmatpush1.bf16.xpose.msra.mxu0 %v4638
        %4662 = vmatprep.subr.bf16.mxu0 0
        %4663 = vmatpush1.bf16.xpose.msra.mxu0 %v4639
        %4664 = vmatprep.subr.bf16.mxu0 0
        %4665 = vmatpush1.bf16.xpose.msra.mxu0 0
        %4666 = vmatprep.subr.bf16.mxu0 0
        %4667 = vmatpush1.bf16.xpose.msra.mxu0 0
        %4668 = vmatprep.subr.bf16.mxu0 0
        %4669 = vmatpush1.bf16.xpose.msra.mxu0 0
        %4670 = vmatprep.subr.bf16.mxu0 0
        %4671 = vmatpush1.bf16.xpose.msra.mxu0 0
        %4672 = vmatprep.subr.bf16.mxu0 0
        %4673 = vmatpush1.bf16.xpose.msra.mxu0 0
        %4674 = vmatprep.subr.bf16.mxu0 0
        %4675 = vmatpush1.bf16.xpose.msra.mxu0 0
        %4676 = vmatprep.subr.bf16.mxu0 0
        %4677 = vmatpush1.bf16.xpose.msra.mxu0 0
        %4678 = vmatprep.subr.bf16.mxu0 0
        %4679 = vmatpush1.bf16.xpose.msra.mxu0 0
        %4680 = vmatprep.mubr.bf16.mxu0 0
        %4681 = vmatmul.mubr.bf16.gmra.mrb[0].mxu0 %v1060
        %v4682 = vpop.f32.mrb[0].mxu0
        %v4683 = vadd.f32 0.0, %v4682
        %v4684 = vpop.f32.mrb[0].mxu0
        %v4685 = vpop.f32.mrb[0].mxu0
        %v4686 = vadd.f32 0.0, %v4685
        %v4687 = vpop.f32.mrb[0].mxu0
        %4688 = vmatprep.mubr.bf16.mxu0 0
        %4689 = vmatmul.mubr.bf16.gmra.mrb[0].mxu0 %v1061
        %v4690 = vpop.f32.mrb[0].mxu0
        %v4691 = vadd.f32 0.0, %v4690
        %v4692 = vpop.f32.mrb[0].mxu0
        %v4693 = vpop.f32.mrb[0].mxu0
        %v4694 = vadd.f32 0.0, %v4693
        %v4695 = vpop.f32.mrb[0].mxu0
        %4696 = vmatprep.mubr.bf16.mxu0 0
        %4697 = vmatmul.mubr.bf16.gmra.mrb[0].mxu0 %v1062
        %v4698 = vpop.f32.mrb[0].mxu0
        %v4699 = vadd.f32 0.0, %v4698
        %v4700 = vpop.f32.mrb[0].mxu0
        %v4701 = vpop.f32.mrb[0].mxu0
        %v4702 = vadd.f32 0.0, %v4701
        %v4703 = vpop.f32.mrb[0].mxu0
        %4704 = vmatprep.mubr.bf16.mxu0 0
        %4705 = vmatmul.mubr.bf16.gmra.mrb[0].mxu0 %v1063
        %v4706 = vpop.f32.mrb[0].mxu0
        %v4707 = vadd.f32 0.0, %v4706
        %v4708 = vpop.f32.mrb[0].mxu0
        %v4709 = vpop.f32.mrb[0].mxu0
        %v4710 = vadd.f32 0.0, %v4709
        %v4711 = vpop.f32.mrb[0].mxu0
        %4712 = vmatprep.mubr.bf16.mxu0 0
        %4713 = vmatmul.mubr.bf16.gmra.mrb[0].mxu0 %v1064
        %v4714 = vpop.f32.mrb[0].mxu0
        %v4715 = vadd.f32 0.0, %v4714
        %v4716 = vpop.f32.mrb[0].mxu0
        %v4717 = vpop.f32.mrb[0].mxu0
        %v4718 = vadd.f32 0.0, %v4717
        %v4719 = vpop.f32.mrb[0].mxu0
        %4720 = vmatprep.mubr.bf16.mxu0 0
        %4721 = vmatmul.mubr.bf16.gmra.mrb[0].mxu0 %v1065
        %v4722 = vpop.f32.mrb[0].mxu0
        %v4723 = vadd.f32 0.0, %v4722
        %v4724 = vpop.f32.mrb[0].mxu0
        %v4725 = vpop.f32.mrb[0].mxu0
        %v4726 = vadd.f32 0.0, %v4725
        %v4727 = vpop.f32.mrb[0].mxu0
        %4728 = vmatprep.mubr.bf16.mxu0 0
        %4729 = vmatmul.mubr.bf16.gmra.mrb[0].mxu0 %v1066
        %v4730 = vpop.f32.mrb[0].mxu0
        %v4731 = vadd.f32 0.0, %v4730
        %v4732 = vpop.f32.mrb[0].mxu0
        %v4733 = vpop.f32.mrb[0].mxu0
        %v4734 = vadd.f32 0.0, %v4733
        %v4735 = vpop.f32.mrb[0].mxu0
        %4736 = vmatprep.mubr.bf16.mxu0 0
        %4737 = vmatmul.mubr.bf16.gmra.mrb[0].mxu0 %v1067
        %v4738 = vpop.f32.mrb[0].mxu0
        %v4739 = vadd.f32 0.0, %v4738
        %v4740 = vpop.f32.mrb[0].mxu0
        %v4741 = vpop.f32.mrb[0].mxu0
        %v4742 = vadd.f32 0.0, %v4741
        %v4743 = vpop.f32.mrb[0].mxu0
        %4744 = vdwg.mxu0
        %v4761 = vunpack.c.l.b16 %v1620
        %v4762 = vunpack.c.l.b16 %v1621
        %v4763 = vunpack.c.l.b16 %v1622
        %v4764 = vunpack.c.l.b16 %v1623
        %v4765 = vunpack.c.l.b16 %v1624
        %v4766 = vunpack.c.l.b16 %v1625
        %v4767 = vunpack.c.l.b16 %v1626
        %v4768 = vunpack.c.l.b16 %v1627
        %v4769 = vunpack.c.l.b16 %v1628
        %v4770 = vunpack.c.l.b16 %v1629
        %v4771 = vunpack.c.l.b16 %v1630
        %v4772 = vunpack.c.l.b16 %v1631
        %v4773 = vunpack.c.l.b16 %v1632
        %v4774 = vunpack.c.l.b16 %v1633
        %v4775 = vunpack.c.l.b16 %v1634
        %v4776 = vunpack.c.l.b16 %v1635
        %v4777 = vpack.c.b16 %v4762, %v4761
        %v4778 = vpack.c.b16 %v4764, %v4763
        %v4779 = vpack.c.b16 %v4766, %v4765
        %v4780 = vpack.c.b16 %v4768, %v4767
        %v4781 = vpack.c.b16 %v4770, %v4769
        %v4782 = vpack.c.b16 %v4772, %v4771
        %v4783 = vpack.c.b16 %v4774, %v4773
        %v4784 = vpack.c.b16 %v4776, %v4775
        %4793 = vmatprep.subr.bf16.mxu0 0
        %4794 = vmatpush1.bf16.xpose.msra.mxu0 %v4777
        %4795 = vmatprep.subr.bf16.mxu0 0
        %4796 = vmatpush1.bf16.xpose.msra.mxu0 %v4778
        %4797 = vmatprep.subr.bf16.mxu0 0
        %4798 = vmatpush1.bf16.xpose.msra.mxu0 %v4779
        %4799 = vmatprep.subr.bf16.mxu0 0
        %4800 = vmatpush1.bf16.xpose.msra.mxu0 %v4780
        %4801 = vmatprep.subr.bf16.mxu0 0
        %4802 = vmatpush1.bf16.xpose.msra.mxu0 %v4781
        %4803 = vmatprep.subr.bf16.mxu0 0
        %4804 = vmatpush1.bf16.xpose.msra.mxu0 %v4782
        %4805 = vmatprep.subr.bf16.mxu0 0
        %4806 = vmatpush1.bf16.xpose.msra.mxu0 %v4783
        %4807 = vmatprep.subr.bf16.mxu0 0
        %4808 = vmatpush1.bf16.xpose.msra.mxu0 %v4784
        %4809 = vmatprep.subr.bf16.mxu0 0
        %4810 = vmatpush1.bf16.xpose.msra.mxu0 0
        %4811 = vmatprep.subr.bf16.mxu0 0
        %4812 = vmatpush1.bf16.xpose.msra.mxu0 0
        %4813 = vmatprep.subr.bf16.mxu0 0
        %4814 = vmatpush1.bf16.xpose.msra.mxu0 0
        %4815 = vmatprep.subr.bf16.mxu0 0
        %4816 = vmatpush1.bf16.xpose.msra.mxu0 0
        %4817 = vmatprep.subr.bf16.mxu0 0
        %4818 = vmatpush1.bf16.xpose.msra.mxu0 0
        %4819 = vmatprep.subr.bf16.mxu0 0
        %4820 = vmatpush1.bf16.xpose.msra.mxu0 0
        %4821 = vmatprep.subr.bf16.mxu0 0
        %4822 = vmatpush1.bf16.xpose.msra.mxu0 0
        %4823 = vmatprep.subr.bf16.mxu0 0
        %4824 = vmatpush1.bf16.xpose.msra.mxu0 0
        %4825 = vmatprep.mubr.bf16.mxu0 0
        %4826 = vmatmul.mubr.bf16.gmra.mrb[0].mxu0 %v1068
        %v4827 = vpop.f32.mrb[0].mxu0
        %v4828 = vadd.f32 0.0, %v4827
        %v4829 = vpop.f32.mrb[0].mxu0
        %v4830 = vpop.f32.mrb[0].mxu0
        %v4831 = vadd.f32 0.0, %v4830
        %v4832 = vpop.f32.mrb[0].mxu0
        %4833 = vmatprep.mubr.bf16.mxu0 0
        %4834 = vmatmul.mubr.bf16.gmra.mrb[0].mxu0 %v1069
        %v4835 = vpop.f32.mrb[0].mxu0
        %v4836 = vadd.f32 0.0, %v4835
        %v4837 = vpop.f32.mrb[0].mxu0
        %v4838 = vpop.f32.mrb[0].mxu0
        %v4839 = vadd.f32 0.0, %v4838
        %v4840 = vpop.f32.mrb[0].mxu0
        %4841 = vmatprep.mubr.bf16.mxu0 0
        %4842 = vmatmul.mubr.bf16.gmra.mrb[0].mxu0 %v1070
        %v4843 = vpop.f32.mrb[0].mxu0
        %v4844 = vadd.f32 0.0, %v4843
        %v4845 = vpop.f32.mrb[0].mxu0
        %v4846 = vpop.f32.mrb[0].mxu0
        %v4847 = vadd.f32 0.0, %v4846
        %v4848 = vpop.f32.mrb[0].mxu0
        %4849 = vmatprep.mubr.bf16.mxu0 0
        %4850 = vmatmul.mubr.bf16.gmra.mrb[0].mxu0 %v1071
        %v4851 = vpop.f32.mrb[0].mxu0
        %v4852 = vadd.f32 0.0, %v4851
        %v4853 = vpop.f32.mrb[0].mxu0
        %v4854 = vpop.f32.mrb[0].mxu0
        %v4855 = vadd.f32 0.0, %v4854
        %v4856 = vpop.f32.mrb[0].mxu0
        %4857 = vmatprep.mubr.bf16.mxu0 0
        %4858 = vmatmul.mubr.bf16.gmra.mrb[0].mxu0 %v1072
        %v4859 = vpop.f32.mrb[0].mxu0
        %v4860 = vadd.f32 0.0, %v4859
        %v4861 = vpop.f32.mrb[0].mxu0
        %v4862 = vpop.f32.mrb[0].mxu0
        %v4863 = vadd.f32 0.0, %v4862
        %v4864 = vpop.f32.mrb[0].mxu0
        %4865 = vmatprep.mubr.bf16.mxu0 0
        %4866 = vmatmul.mubr.bf16.gmra.mrb[0].mxu0 %v1073
        %v4867 = vpop.f32.mrb[0].mxu0
        %v4868 = vadd.f32 0.0, %v4867
        %v4869 = vpop.f32.mrb[0].mxu0
        %v4870 = vpop.f32.mrb[0].mxu0
        %v4871 = vadd.f32 0.0, %v4870
        %v4872 = vpop.f32.mrb[0].mxu0
        %4873 = vmatprep.mubr.bf16.mxu0 0
        %4874 = vmatmul.mubr.bf16.gmra.mrb[0].mxu0 %v1074
        %v4875 = vpop.f32.mrb[0].mxu0
        %v4876 = vadd.f32 0.0, %v4875
        %v4877 = vpop.f32.mrb[0].mxu0
        %v4878 = vpop.f32.mrb[0].mxu0
        %v4879 = vadd.f32 0.0, %v4878
        %v4880 = vpop.f32.mrb[0].mxu0
        %4881 = vmatprep.mubr.bf16.mxu0 0
        %4882 = vmatmul.mubr.bf16.gmra.mrb[0].mxu0 %v1075
        %v4883 = vpop.f32.mrb[0].mxu0
        %v4884 = vadd.f32 0.0, %v4883
        %v4885 = vpop.f32.mrb[0].mxu0
        %v4886 = vpop.f32.mrb[0].mxu0
        %v4887 = vadd.f32 0.0, %v4886
        %v4888 = vpop.f32.mrb[0].mxu0
        %4889 = vdwg.mxu0
        %v4906 = vunpack.c.l.b16 %v1636
        %v4907 = vunpack.c.l.b16 %v1637
        %v4908 = vunpack.c.l.b16 %v1638
        %v4909 = vunpack.c.l.b16 %v1639
        %v4910 = vunpack.c.l.b16 %v1640
        %v4911 = vunpack.c.l.b16 %v1641
        %v4912 = vunpack.c.l.b16 %v1642
        %v4913 = vunpack.c.l.b16 %v1643
        %v4914 = vunpack.c.l.b16 %v1644
        %v4915 = vunpack.c.l.b16 %v1645
        %v4916 = vunpack.c.l.b16 %v1646
        %v4917 = vunpack.c.l.b16 %v1647
        %v4918 = vunpack.c.l.b16 %v1648
        %v4919 = vunpack.c.l.b16 %v1649
        %v4920 = vunpack.c.l.b16 %v1650
        %v4921 = vunpack.c.l.b16 %v1651
        %v4922 = vpack.c.b16 %v4907, %v4906
        %v4923 = vpack.c.b16 %v4909, %v4908
        %v4924 = vpack.c.b16 %v4911, %v4910
        %v4925 = vpack.c.b16 %v4913, %v4912
        %v4926 = vpack.c.b16 %v4915, %v4914
        %v4927 = vpack.c.b16 %v4917, %v4916
        %v4928 = vpack.c.b16 %v4919, %v4918
        %v4929 = vpack.c.b16 %v4921, %v4920
        %4938 = vmatprep.subr.bf16.mxu0 0
        %4939 = vmatpush1.bf16.xpose.msra.mxu0 %v4922
        %4940 = vmatprep.subr.bf16.mxu0 0
        %4941 = vmatpush1.bf16.xpose.msra.mxu0 %v4923
        %4942 = vmatprep.subr.bf16.mxu0 0
        %4943 = vmatpush1.bf16.xpose.msra.mxu0 %v4924
        %4944 = vmatprep.subr.bf16.mxu0 0
        %4945 = vmatpush1.bf16.xpose.msra.mxu0 %v4925
        %4946 = vmatprep.subr.bf16.mxu0 0
        %4947 = vmatpush1.bf16.xpose.msra.mxu0 %v4926
        %4948 = vmatprep.subr.bf16.mxu0 0
        %4949 = vmatpush1.bf16.xpose.msra.mxu0 %v4927
        %4950 = vmatprep.subr.bf16.mxu0 0
        %4951 = vmatpush1.bf16.xpose.msra.mxu0 %v4928
        %4952 = vmatprep.subr.bf16.mxu0 0
        %4953 = vmatpush1.bf16.xpose.msra.mxu0 %v4929
        %4954 = vmatprep.subr.bf16.mxu0 0
        %4955 = vmatpush1.bf16.xpose.msra.mxu0 0
        %4956 = vmatprep.subr.bf16.mxu0 0
        %4957 = vmatpush1.bf16.xpose.msra.mxu0 0
        %4958 = vmatprep.subr.bf16.mxu0 0
        %4959 = vmatpush1.bf16.xpose.msra.mxu0 0
        %4960 = vmatprep.subr.bf16.mxu0 0
        %4961 = vmatpush1.bf16.xpose.msra.mxu0 0
        %4962 = vmatprep.subr.bf16.mxu0 0
        %4963 = vmatpush1.bf16.xpose.msra.mxu0 0
        %4964 = vmatprep.subr.bf16.mxu0 0
        %4965 = vmatpush1.bf16.xpose.msra.mxu0 0
        %4966 = vmatprep.subr.bf16.mxu0 0
        %4967 = vmatpush1.bf16.xpose.msra.mxu0 0
        %4968 = vmatprep.subr.bf16.mxu0 0
        %4969 = vmatpush1.bf16.xpose.msra.mxu0 0
        %4970 = vmatprep.mubr.bf16.mxu0 0
        %4971 = vmatmul.mubr.bf16.gmra.mrb[0].mxu0 %v1076
        %v4972 = vpop.f32.mrb[0].mxu0
        %v4973 = vadd.f32 0.0, %v4972
        %v4974 = vpop.f32.mrb[0].mxu0
        %v4975 = vpop.f32.mrb[0].mxu0
        %v4976 = vadd.f32 0.0, %v4975
        %v4977 = vpop.f32.mrb[0].mxu0
        %4978 = vmatprep.mubr.bf16.mxu0 0
        %4979 = vmatmul.mubr.bf16.gmra.mrb[0].mxu0 %v1077
        %v4980 = vpop.f32.mrb[0].mxu0
        %v4981 = vadd.f32 0.0, %v4980
        %v4982 = vpop.f32.mrb[0].mxu0
        %v4983 = vpop.f32.mrb[0].mxu0
        %v4984 = vadd.f32 0.0, %v4983
        %v4985 = vpop.f32.mrb[0].mxu0
        %4986 = vmatprep.mubr.bf16.mxu0 0
        %4987 = vmatmul.mubr.bf16.gmra.mrb[0].mxu0 %v1078
        %v4988 = vpop.f32.mrb[0].mxu0
        %v4989 = vadd.f32 0.0, %v4988
        %v4990 = vpop.f32.mrb[0].mxu0
        %v4991 = vpop.f32.mrb[0].mxu0
        %v4992 = vadd.f32 0.0, %v4991
        %v4993 = vpop.f32.mrb[0].mxu0
        %4994 = vmatprep.mubr.bf16.mxu0 0
        %4995 = vmatmul.mubr.bf16.gmra.mrb[0].mxu0 %v1079
        %v4996 = vpop.f32.mrb[0].mxu0
        %v4997 = vadd.f32 0.0, %v4996
        %v4998 = vpop.f32.mrb[0].mxu0
        %v4999 = vpop.f32.mrb[0].mxu0
        %v5000 = vadd.f32 0.0, %v4999
        %v5001 = vpop.f32.mrb[0].mxu0
        %5002 = vmatprep.mubr.bf16.mxu0 0
        %5003 = vmatmul.mubr.bf16.gmra.mrb[0].mxu0 %v1080
        %v5004 = vpop.f32.mrb[0].mxu0
        %v5005 = vadd.f32 0.0, %v5004
        %v5006 = vpop.f32.mrb[0].mxu0
        %v5007 = vpop.f32.mrb[0].mxu0
        %v5008 = vadd.f32 0.0, %v5007
        %v5009 = vpop.f32.mrb[0].mxu0
        %5010 = vmatprep.mubr.bf16.mxu0 0
        %5011 = vmatmul.mubr.bf16.gmra.mrb[0].mxu0 %v1081
        %v5012 = vpop.f32.mrb[0].mxu0
        %v5013 = vadd.f32 0.0, %v5012
        %v5014 = vpop.f32.mrb[0].mxu0
        %v5015 = vpop.f32.mrb[0].mxu0
        %v5016 = vadd.f32 0.0, %v5015
        %v5017 = vpop.f32.mrb[0].mxu0
        %5018 = vmatprep.mubr.bf16.mxu0 0
        %5019 = vmatmul.mubr.bf16.gmra.mrb[0].mxu0 %v1082
        %v5020 = vpop.f32.mrb[0].mxu0
        %v5021 = vadd.f32 0.0, %v5020
        %v5022 = vpop.f32.mrb[0].mxu0
        %v5023 = vpop.f32.mrb[0].mxu0
        %v5024 = vadd.f32 0.0, %v5023
        %v5025 = vpop.f32.mrb[0].mxu0
        %5026 = vmatprep.mubr.bf16.mxu0 0
        %5027 = vmatmul.mubr.bf16.gmra.mrb[0].mxu0 %v1083
        %v5028 = vpop.f32.mrb[0].mxu0
        %v5029 = vadd.f32 0.0, %v5028
        %v5030 = vpop.f32.mrb[0].mxu0
        %v5031 = vpop.f32.mrb[0].mxu0
        %v5032 = vadd.f32 0.0, %v5031
        %v5033 = vpop.f32.mrb[0].mxu0
        %5034 = vdwg.mxu0
        %v5051 = vunpack.c.l.b16 %v1652
        %v5052 = vunpack.c.l.b16 %v1653
        %v5053 = vunpack.c.l.b16 %v1654
        %v5054 = vunpack.c.l.b16 %v1655
        %v5055 = vunpack.c.l.b16 %v1656
        %v5056 = vunpack.c.l.b16 %v1657
        %v5057 = vunpack.c.l.b16 %v1658
        %v5058 = vunpack.c.l.b16 %v1659
        %v5059 = vunpack.c.l.b16 %v1660
        %v5060 = vunpack.c.l.b16 %v1661
        %v5061 = vunpack.c.l.b16 %v1662
        %v5062 = vunpack.c.l.b16 %v1663
        %v5063 = vunpack.c.l.b16 %v1664
        %v5064 = vunpack.c.l.b16 %v1665
        %v5065 = vunpack.c.l.b16 %v1666
        %v5066 = vunpack.c.l.b16 %v1667
        %v5067 = vpack.c.b16 %v5052, %v5051
        %v5068 = vpack.c.b16 %v5054, %v5053
        %v5069 = vpack.c.b16 %v5056, %v5055
        %v5070 = vpack.c.b16 %v5058, %v5057
        %v5071 = vpack.c.b16 %v5060, %v5059
        %v5072 = vpack.c.b16 %v5062, %v5061
        %v5073 = vpack.c.b16 %v5064, %v5063
        %v5074 = vpack.c.b16 %v5066, %v5065
        %5083 = vmatprep.subr.bf16.mxu0 0
        %5084 = vmatpush1.bf16.xpose.msra.mxu0 %v5067
        %5085 = vmatprep.subr.bf16.mxu0 0
        %5086 = vmatpush1.bf16.xpose.msra.mxu0 %v5068
        %5087 = vmatprep.subr.bf16.mxu0 0
        %5088 = vmatpush1.bf16.xpose.msra.mxu0 %v5069
        %5089 = vmatprep.subr.bf16.mxu0 0
        %5090 = vmatpush1.bf16.xpose.msra.mxu0 %v5070
        %5091 = vmatprep.subr.bf16.mxu0 0
        %5092 = vmatpush1.bf16.xpose.msra.mxu0 %v5071
        %5093 = vmatprep.subr.bf16.mxu0 0
        %5094 = vmatpush1.bf16.xpose.msra.mxu0 %v5072
        %5095 = vmatprep.subr.bf16.mxu0 0
        %5096 = vmatpush1.bf16.xpose.msra.mxu0 %v5073
        %5097 = vmatprep.subr.bf16.mxu0 0
        %5098 = vmatpush1.bf16.xpose.msra.mxu0 %v5074
        %5099 = vmatprep.subr.bf16.mxu0 0
        %5100 = vmatpush1.bf16.xpose.msra.mxu0 0
        %5101 = vmatprep.subr.bf16.mxu0 0
        %5102 = vmatpush1.bf16.xpose.msra.mxu0 0
        %5103 = vmatprep.subr.bf16.mxu0 0
        %5104 = vmatpush1.bf16.xpose.msra.mxu0 0
        %5105 = vmatprep.subr.bf16.mxu0 0
        %5106 = vmatpush1.bf16.xpose.msra.mxu0 0
        %5107 = vmatprep.subr.bf16.mxu0 0
        %5108 = vmatpush1.bf16.xpose.msra.mxu0 0
        %5109 = vmatprep.subr.bf16.mxu0 0
        %5110 = vmatpush1.bf16.xpose.msra.mxu0 0
        %5111 = vmatprep.subr.bf16.mxu0 0
        %5112 = vmatpush1.bf16.xpose.msra.mxu0 0
        %5113 = vmatprep.subr.bf16.mxu0 0
        %5114 = vmatpush1.bf16.xpose.msra.mxu0 0
        %5115 = vmatprep.mubr.bf16.mxu0 0
        %5116 = vmatmul.mubr.bf16.gmra.mrb[0].mxu0 %v1084
        %v5117 = vpop.f32.mrb[0].mxu0
        %v5118 = vadd.f32 0.0, %v5117
        %v5119 = vpop.f32.mrb[0].mxu0
        %v5120 = vpop.f32.mrb[0].mxu0
        %v5121 = vadd.f32 0.0, %v5120
        %v5122 = vpop.f32.mrb[0].mxu0
        %5123 = vmatprep.mubr.bf16.mxu0 0
        %5124 = vmatmul.mubr.bf16.gmra.mrb[0].mxu0 %v1085
        %v5125 = vpop.f32.mrb[0].mxu0
        %v5126 = vadd.f32 0.0, %v5125
        %v5127 = vpop.f32.mrb[0].mxu0
        %v5128 = vpop.f32.mrb[0].mxu0
        %v5129 = vadd.f32 0.0, %v5128
        %v5130 = vpop.f32.mrb[0].mxu0
        %5131 = vmatprep.mubr.bf16.mxu0 0
        %5132 = vmatmul.mubr.bf16.gmra.mrb[0].mxu0 %v1086
        %v5133 = vpop.f32.mrb[0].mxu0
        %v5134 = vadd.f32 0.0, %v5133
        %v5135 = vpop.f32.mrb[0].mxu0
        %v5136 = vpop.f32.mrb[0].mxu0
        %v5137 = vadd.f32 0.0, %v5136
        %v5138 = vpop.f32.mrb[0].mxu0
        %5139 = vmatprep.mubr.bf16.mxu0 0
        %5140 = vmatmul.mubr.bf16.gmra.mrb[0].mxu0 %v1087
        %v5141 = vpop.f32.mrb[0].mxu0
        %v5142 = vadd.f32 0.0, %v5141
        %v5143 = vpop.f32.mrb[0].mxu0
        %v5144 = vpop.f32.mrb[0].mxu0
        %v5145 = vadd.f32 0.0, %v5144
        %v5146 = vpop.f32.mrb[0].mxu0
        %5147 = vmatprep.mubr.bf16.mxu0 0
        %5148 = vmatmul.mubr.bf16.gmra.mrb[0].mxu0 %v1088
        %v5149 = vpop.f32.mrb[0].mxu0
        %v5150 = vadd.f32 0.0, %v5149
        %v5151 = vpop.f32.mrb[0].mxu0
        %v5152 = vpop.f32.mrb[0].mxu0
        %v5153 = vadd.f32 0.0, %v5152
        %v5154 = vpop.f32.mrb[0].mxu0
        %5155 = vmatprep.mubr.bf16.mxu0 0
        %5156 = vmatmul.mubr.bf16.gmra.mrb[0].mxu0 %v1089
        %v5157 = vpop.f32.mrb[0].mxu0
        %v5158 = vadd.f32 0.0, %v5157
        %v5159 = vpop.f32.mrb[0].mxu0
        %v5160 = vpop.f32.mrb[0].mxu0
        %v5161 = vadd.f32 0.0, %v5160
        %v5162 = vpop.f32.mrb[0].mxu0
        %5163 = vmatprep.mubr.bf16.mxu0 0
        %5164 = vmatmul.mubr.bf16.gmra.mrb[0].mxu0 %v1090
        %v5165 = vpop.f32.mrb[0].mxu0
        %v5166 = vadd.f32 0.0, %v5165
        %v5167 = vpop.f32.mrb[0].mxu0
        %v5168 = vpop.f32.mrb[0].mxu0
        %v5169 = vadd.f32 0.0, %v5168
        %v5170 = vpop.f32.mrb[0].mxu0
        %5171 = vmatprep.mubr.bf16.mxu0 0
        %5172 = vmatmul.mubr.bf16.gmra.mrb[0].mxu0 %v1091
        %v5173 = vpop.f32.mrb[0].mxu0
        %v5174 = vadd.f32 0.0, %v5173
        %v5175 = vpop.f32.mrb[0].mxu0
        %v5176 = vpop.f32.mrb[0].mxu0
        %v5177 = vadd.f32 0.0, %v5176
        %v5178 = vpop.f32.mrb[0].mxu0
        %5179 = vdwg.mxu0
        %5180 = vmatprep.subr.bf16.mxu0 0
        %5181 = vmatpush1.bf16.xpose.msra.mxu0 %v1476
        %5182 = vmatprep.subr.bf16.mxu0 0
        %5183 = vmatpush1.bf16.xpose.msra.mxu0 %v1477
        %5184 = vmatprep.subr.bf16.mxu0 0
        %5185 = vmatpush1.bf16.xpose.msra.mxu0 %v1478
        %5186 = vmatprep.subr.bf16.mxu0 0
        %5187 = vmatpush1.bf16.xpose.msra.mxu0 %v1479
        %5188 = vmatprep.subr.bf16.mxu0 0
        %5189 = vmatpush1.bf16.xpose.msra.mxu0 %v1480
        %5190 = vmatprep.subr.bf16.mxu0 0
        %5191 = vmatpush1.bf16.xpose.msra.mxu0 %v1481
        %5192 = vmatprep.subr.bf16.mxu0 0
        %5193 = vmatpush1.bf16.xpose.msra.mxu0 %v1482
        %5194 = vmatprep.subr.bf16.mxu0 0
        %5195 = vmatpush1.bf16.xpose.msra.mxu0 %v1483
        %5196 = vmatprep.subr.bf16.mxu0 0
        %5197 = vmatpush1.bf16.xpose.msra.mxu0 0
        %5198 = vmatprep.subr.bf16.mxu0 0
        %5199 = vmatpush1.bf16.xpose.msra.mxu0 0
        %5200 = vmatprep.subr.bf16.mxu0 0
        %5201 = vmatpush1.bf16.xpose.msra.mxu0 0
        %5202 = vmatprep.subr.bf16.mxu0 0
        %5203 = vmatpush1.bf16.xpose.msra.mxu0 0
        %5204 = vmatprep.subr.bf16.mxu0 0
        %5205 = vmatpush1.bf16.xpose.msra.mxu0 0
        %5206 = vmatprep.subr.bf16.mxu0 0
        %5207 = vmatpush1.bf16.xpose.msra.mxu0 0
        %5208 = vmatprep.subr.bf16.mxu0 0
        %5209 = vmatpush1.bf16.xpose.msra.mxu0 0
        %5210 = vmatprep.subr.bf16.mxu0 0
        %5211 = vmatpush1.bf16.xpose.msra.mxu0 0
        %5212 = vmatprep.mubr.bf16.mxu0 0
        %5213 = vmatmul.mubr.bf16.gmra.mrb[0].mxu0 %v2892
        %v5214 = vpop.f32.mrb[0].mxu0
        %v5215 = vadd.f32 0.0, %v5214
        %v5216 = vpop.f32.mrb[0].mxu0
        %v5217 = vpop.f32.mrb[0].mxu0
        %v5218 = vadd.f32 0.0, %v5217
        %v5219 = vpop.f32.mrb[0].mxu0
        %5220 = vmatprep.mubr.bf16.mxu0 0
        %5221 = vmatmul.mubr.bf16.gmra.mrb[0].mxu0 %v2893
        %v5222 = vpop.f32.mrb[0].mxu0
        %v5223 = vadd.f32 0.0, %v5222
        %v5224 = vpop.f32.mrb[0].mxu0
        %v5225 = vpop.f32.mrb[0].mxu0
        %v5226 = vadd.f32 0.0, %v5225
        %v5227 = vpop.f32.mrb[0].mxu0
        %5228 = vmatprep.mubr.bf16.mxu0 0
        %5229 = vmatmul.mubr.bf16.gmra.mrb[0].mxu0 %v2894
        %v5230 = vpop.f32.mrb[0].mxu0
        %v5231 = vadd.f32 0.0, %v5230
        %v5232 = vpop.f32.mrb[0].mxu0
        %v5233 = vpop.f32.mrb[0].mxu0
        %v5234 = vadd.f32 0.0, %v5233
        %v5235 = vpop.f32.mrb[0].mxu0
        %5236 = vmatprep.mubr.bf16.mxu0 0
        %5237 = vmatmul.mubr.bf16.gmra.mrb[0].mxu0 %v2895
        %v5238 = vpop.f32.mrb[0].mxu0
        %v5239 = vadd.f32 0.0, %v5238
        %v5240 = vpop.f32.mrb[0].mxu0
        %v5241 = vpop.f32.mrb[0].mxu0
        %v5242 = vadd.f32 0.0, %v5241
        %v5243 = vpop.f32.mrb[0].mxu0
        %5244 = vmatprep.mubr.bf16.mxu0 0
        %5245 = vmatmul.mubr.bf16.gmra.mrb[0].mxu0 %v2896
        %v5246 = vpop.f32.mrb[0].mxu0
        %v5247 = vadd.f32 0.0, %v5246
        %v5248 = vpop.f32.mrb[0].mxu0
        %v5249 = vpop.f32.mrb[0].mxu0
        %v5250 = vadd.f32 0.0, %v5249
        %v5251 = vpop.f32.mrb[0].mxu0
        %5252 = vmatprep.mubr.bf16.mxu0 0
        %5253 = vmatmul.mubr.bf16.gmra.mrb[0].mxu0 %v2897
        %v5254 = vpop.f32.mrb[0].mxu0
        %v5255 = vadd.f32 0.0, %v5254
        %v5256 = vpop.f32.mrb[0].mxu0
        %v5257 = vpop.f32.mrb[0].mxu0
        %v5258 = vadd.f32 0.0, %v5257
        %v5259 = vpop.f32.mrb[0].mxu0
        %5260 = vmatprep.mubr.bf16.mxu0 0
        %5261 = vmatmul.mubr.bf16.gmra.mrb[0].mxu0 %v2898
        %v5262 = vpop.f32.mrb[0].mxu0
        %v5263 = vadd.f32 0.0, %v5262
        %v5264 = vpop.f32.mrb[0].mxu0
        %v5265 = vpop.f32.mrb[0].mxu0
        %v5266 = vadd.f32 0.0, %v5265
        %v5267 = vpop.f32.mrb[0].mxu0
        %5268 = vmatprep.mubr.bf16.mxu0 0
        %5269 = vmatmul.mubr.bf16.gmra.mrb[0].mxu0 %v2899
        %v5270 = vpop.f32.mrb[0].mxu0
        %v5271 = vadd.f32 0.0, %v5270
        %v5272 = vpop.f32.mrb[0].mxu0
        %v5273 = vpop.f32.mrb[0].mxu0
        %v5274 = vadd.f32 0.0, %v5273
        %v5275 = vpop.f32.mrb[0].mxu0
        %5276 = vdwg.mxu0
        %5277 = vmatprep.subr.bf16.mxu0 0
        %5278 = vmatpush1.bf16.xpose.msra.mxu0 %v1484
        %5279 = vmatprep.subr.bf16.mxu0 0
        %5280 = vmatpush1.bf16.xpose.msra.mxu0 %v1485
        %5281 = vmatprep.subr.bf16.mxu0 0
        %5282 = vmatpush1.bf16.xpose.msra.mxu0 %v1486
        %5283 = vmatprep.subr.bf16.mxu0 0
        %5284 = vmatpush1.bf16.xpose.msra.mxu0 %v1487
        %5285 = vmatprep.subr.bf16.mxu0 0
        %5286 = vmatpush1.bf16.xpose.msra.mxu0 %v1488
        %5287 = vmatprep.subr.bf16.mxu0 0
        %5288 = vmatpush1.bf16.xpose.msra.mxu0 %v1489
        %5289 = vmatprep.subr.bf16.mxu0 0
        %5290 = vmatpush1.bf16.xpose.msra.mxu0 %v1490
        %5291 = vmatprep.subr.bf16.mxu0 0
        %5292 = vmatpush1.bf16.xpose.msra.mxu0 %v1491
        %5293 = vmatprep.subr.bf16.mxu0 0
        %5294 = vmatpush1.bf16.xpose.msra.mxu0 0
        %5295 = vmatprep.subr.bf16.mxu0 0
        %5296 = vmatpush1.bf16.xpose.msra.mxu0 0
        %5297 = vmatprep.subr.bf16.mxu0 0
        %5298 = vmatpush1.bf16.xpose.msra.mxu0 0
        %5299 = vmatprep.subr.bf16.mxu0 0
        %5300 = vmatpush1.bf16.xpose.msra.mxu0 0
        %5301 = vmatprep.subr.bf16.mxu0 0
        %5302 = vmatpush1.bf16.xpose.msra.mxu0 0
        %5303 = vmatprep.subr.bf16.mxu0 0
        %5304 = vmatpush1.bf16.xpose.msra.mxu0 0
        %5305 = vmatprep.subr.bf16.mxu0 0
        %5306 = vmatpush1.bf16.xpose.msra.mxu0 0
        %5307 = vmatprep.subr.bf16.mxu0 0
        %5308 = vmatpush1.bf16.xpose.msra.mxu0 0
        %5309 = vmatprep.mubr.bf16.mxu0 0
        %5310 = vmatmul.mubr.bf16.gmra.mrb[0].mxu0 %v3037
        %v5311 = vpop.f32.mrb[0].mxu0
        %v5312 = vadd.f32 0.0, %v5311
        %v5313 = vpop.f32.mrb[0].mxu0
        %v5314 = vpop.f32.mrb[0].mxu0
        %v5315 = vadd.f32 0.0, %v5314
        %v5316 = vpop.f32.mrb[0].mxu0
        %5317 = vmatprep.mubr.bf16.mxu0 0
        %5318 = vmatmul.mubr.bf16.gmra.mrb[0].mxu0 %v3038
        %v5319 = vpop.f32.mrb[0].mxu0
        %v5320 = vadd.f32 0.0, %v5319
        %v5321 = vpop.f32.mrb[0].mxu0
        %v5322 = vpop.f32.mrb[0].mxu0
        %v5323 = vadd.f32 0.0, %v5322
        %v5324 = vpop.f32.mrb[0].mxu0
        %5325 = vmatprep.mubr.bf16.mxu0 0
        %5326 = vmatmul.mubr.bf16.gmra.mrb[0].mxu0 %v3039
        %v5327 = vpop.f32.mrb[0].mxu0
        %v5328 = vadd.f32 0.0, %v5327
        %v5329 = vpop.f32.mrb[0].mxu0
        %v5330 = vpop.f32.mrb[0].mxu0
        %v5331 = vadd.f32 0.0, %v5330
        %v5332 = vpop.f32.mrb[0].mxu0
        %5333 = vmatprep.mubr.bf16.mxu0 0
        %5334 = vmatmul.mubr.bf16.gmra.mrb[0].mxu0 %v3040
        %v5335 = vpop.f32.mrb[0].mxu0
        %v5336 = vadd.f32 0.0, %v5335
        %v5337 = vpop.f32.mrb[0].mxu0
        %v5338 = vpop.f32.mrb[0].mxu0
        %v5339 = vadd.f32 0.0, %v5338
        %v5340 = vpop.f32.mrb[0].mxu0
        %5341 = vmatprep.mubr.bf16.mxu0 0
        %5342 = vmatmul.mubr.bf16.gmra.mrb[0].mxu0 %v3041
        %v5343 = vpop.f32.mrb[0].mxu0
        %v5344 = vadd.f32 0.0, %v5343
        %v5345 = vpop.f32.mrb[0].mxu0
        %v5346 = vpop.f32.mrb[0].mxu0
        %v5347 = vadd.f32 0.0, %v5346
        %v5348 = vpop.f32.mrb[0].mxu0
        %5349 = vmatprep.mubr.bf16.mxu0 0
        %5350 = vmatmul.mubr.bf16.gmra.mrb[0].mxu0 %v3042
        %v5351 = vpop.f32.mrb[0].mxu0
        %v5352 = vadd.f32 0.0, %v5351
        %v5353 = vpop.f32.mrb[0].mxu0
        %v5354 = vpop.f32.mrb[0].mxu0
        %v5355 = vadd.f32 0.0, %v5354
        %v5356 = vpop.f32.mrb[0].mxu0
        %5357 = vmatprep.mubr.bf16.mxu0 0
        %5358 = vmatmul.mubr.bf16.gmra.mrb[0].mxu0 %v3043
        %v5359 = vpop.f32.mrb[0].mxu0
        %v5360 = vadd.f32 0.0, %v5359
        %v5361 = vpop.f32.mrb[0].mxu0
        %v5362 = vpop.f32.mrb[0].mxu0
        %v5363 = vadd.f32 0.0, %v5362
        %v5364 = vpop.f32.mrb[0].mxu0
        %5365 = vmatprep.mubr.bf16.mxu0 0
        %5366 = vmatmul.mubr.bf16.gmra.mrb[0].mxu0 %v3044
        %v5367 = vpop.f32.mrb[0].mxu0
        %v5368 = vadd.f32 0.0, %v5367
        %v5369 = vpop.f32.mrb[0].mxu0
        %v5370 = vpop.f32.mrb[0].mxu0
        %v5371 = vadd.f32 0.0, %v5370
        %v5372 = vpop.f32.mrb[0].mxu0
        %5373 = vdwg.mxu0
        %5374 = vmatprep.subr.bf16.mxu0 0
        %5375 = vmatpush1.bf16.xpose.msra.mxu0 %v1492
        %5376 = vmatprep.subr.bf16.mxu0 0
        %5377 = vmatpush1.bf16.xpose.msra.mxu0 %v1493
        %5378 = vmatprep.subr.bf16.mxu0 0
        %5379 = vmatpush1.bf16.xpose.msra.mxu0 %v1494
        %5380 = vmatprep.subr.bf16.mxu0 0
        %5381 = vmatpush1.bf16.xpose.msra.mxu0 %v1495
        %5382 = vmatprep.subr.bf16.mxu0 0
        %5383 = vmatpush1.bf16.xpose.msra.mxu0 %v1496
        %5384 = vmatprep.subr.bf16.mxu0 0
        %5385 = vmatpush1.bf16.xpose.msra.mxu0 %v1497
        %5386 = vmatprep.subr.bf16.mxu0 0
        %5387 = vmatpush1.bf16.xpose.msra.mxu0 %v1498
        %5388 = vmatprep.subr.bf16.mxu0 0
        %5389 = vmatpush1.bf16.xpose.msra.mxu0 %v1499
        %5390 = vmatprep.subr.bf16.mxu0 0
        %5391 = vmatpush1.bf16.xpose.msra.mxu0 0
        %5392 = vmatprep.subr.bf16.mxu0 0
        %5393 = vmatpush1.bf16.xpose.msra.mxu0 0
        %5394 = vmatprep.subr.bf16.mxu0 0
        %5395 = vmatpush1.bf16.xpose.msra.mxu0 0
        %5396 = vmatprep.subr.bf16.mxu0 0
        %5397 = vmatpush1.bf16.xpose.msra.mxu0 0
        %5398 = vmatprep.subr.bf16.mxu0 0
        %5399 = vmatpush1.bf16.xpose.msra.mxu0 0
        %5400 = vmatprep.subr.bf16.mxu0 0
        %5401 = vmatpush1.bf16.xpose.msra.mxu0 0
        %5402 = vmatprep.subr.bf16.mxu0 0
        %5403 = vmatpush1.bf16.xpose.msra.mxu0 0
        %5404 = vmatprep.subr.bf16.mxu0 0
        %5405 = vmatpush1.bf16.xpose.msra.mxu0 0
        %5406 = vmatprep.mubr.bf16.mxu0 0
        %5407 = vmatmul.mubr.bf16.gmra.mrb[0].mxu0 %v3182
        %v5408 = vpop.f32.mrb[0].mxu0
        %v5409 = vadd.f32 0.0, %v5408
        %v5410 = vpop.f32.mrb[0].mxu0
        %v5411 = vpop.f32.mrb[0].mxu0
        %v5412 = vadd.f32 0.0, %v5411
        %v5413 = vpop.f32.mrb[0].mxu0
        %5414 = vmatprep.mubr.bf16.mxu0 0
        %5415 = vmatmul.mubr.bf16.gmra.mrb[0].mxu0 %v3183
        %v5416 = vpop.f32.mrb[0].mxu0
        %v5417 = vadd.f32 0.0, %v5416
        %v5418 = vpop.f32.mrb[0].mxu0
        %v5419 = vpop.f32.mrb[0].mxu0
        %v5420 = vadd.f32 0.0, %v5419
        %v5421 = vpop.f32.mrb[0].mxu0
        %5422 = vmatprep.mubr.bf16.mxu0 0
        %5423 = vmatmul.mubr.bf16.gmra.mrb[0].mxu0 %v3184
        %v5424 = vpop.f32.mrb[0].mxu0
        %v5425 = vadd.f32 0.0, %v5424
        %v5426 = vpop.f32.mrb[0].mxu0
        %v5427 = vpop.f32.mrb[0].mxu0
        %v5428 = vadd.f32 0.0, %v5427
        %v5429 = vpop.f32.mrb[0].mxu0
        %5430 = vmatprep.mubr.bf16.mxu0 0
        %5431 = vmatmul.mubr.bf16.gmra.mrb[0].mxu0 %v3185
        %v5432 = vpop.f32.mrb[0].mxu0
        %v5433 = vadd.f32 0.0, %v5432
        %v5434 = vpop.f32.mrb[0].mxu0
        %v5435 = vpop.f32.mrb[0].mxu0
        %v5436 = vadd.f32 0.0, %v5435
        %v5437 = vpop.f32.mrb[0].mxu0
        %5438 = vmatprep.mubr.bf16.mxu0 0
        %5439 = vmatmul.mubr.bf16.gmra.mrb[0].mxu0 %v3186
        %v5440 = vpop.f32.mrb[0].mxu0
        %v5441 = vadd.f32 0.0, %v5440
        %v5442 = vpop.f32.mrb[0].mxu0
        %v5443 = vpop.f32.mrb[0].mxu0
        %v5444 = vadd.f32 0.0, %v5443
        %v5445 = vpop.f32.mrb[0].mxu0
        %5446 = vmatprep.mubr.bf16.mxu0 0
        %5447 = vmatmul.mubr.bf16.gmra.mrb[0].mxu0 %v3187
        %v5448 = vpop.f32.mrb[0].mxu0
        %v5449 = vadd.f32 0.0, %v5448
        %v5450 = vpop.f32.mrb[0].mxu0
        %v5451 = vpop.f32.mrb[0].mxu0
        %v5452 = vadd.f32 0.0, %v5451
        %v5453 = vpop.f32.mrb[0].mxu0
        %5454 = vmatprep.mubr.bf16.mxu0 0
        %5455 = vmatmul.mubr.bf16.gmra.mrb[0].mxu0 %v3188
        %v5456 = vpop.f32.mrb[0].mxu0
        %v5457 = vadd.f32 0.0, %v5456
        %v5458 = vpop.f32.mrb[0].mxu0
        %v5459 = vpop.f32.mrb[0].mxu0
        %v5460 = vadd.f32 0.0, %v5459
        %v5461 = vpop.f32.mrb[0].mxu0
        %5462 = vmatprep.mubr.bf16.mxu0 0
        %5463 = vmatmul.mubr.bf16.gmra.mrb[0].mxu0 %v3189
        %v5464 = vpop.f32.mrb[0].mxu0
        %v5465 = vadd.f32 0.0, %v5464
        %v5466 = vpop.f32.mrb[0].mxu0
        %v5467 = vpop.f32.mrb[0].mxu0
        %v5468 = vadd.f32 0.0, %v5467
        %v5469 = vpop.f32.mrb[0].mxu0
        %5470 = vdwg.mxu0
        %5471 = vmatprep.subr.bf16.mxu0 0
        %5472 = vmatpush1.bf16.xpose.msra.mxu0 %v1500
        %5473 = vmatprep.subr.bf16.mxu0 0
        %5474 = vmatpush1.bf16.xpose.msra.mxu0 %v1501
        %5475 = vmatprep.subr.bf16.mxu0 0
        %5476 = vmatpush1.bf16.xpose.msra.mxu0 %v1502
        %5477 = vmatprep.subr.bf16.mxu0 0
        %5478 = vmatpush1.bf16.xpose.msra.mxu0 %v1503
        %5479 = vmatprep.subr.bf16.mxu0 0
        %5480 = vmatpush1.bf16.xpose.msra.mxu0 %v1504
        %5481 = vmatprep.subr.bf16.mxu0 0
        %5482 = vmatpush1.bf16.xpose.msra.mxu0 %v1505
        %5483 = vmatprep.subr.bf16.mxu0 0
        %5484 = vmatpush1.bf16.xpose.msra.mxu0 %v1506
        %5485 = vmatprep.subr.bf16.mxu0 0
        %5486 = vmatpush1.bf16.xpose.msra.mxu0 %v1507
        %5487 = vmatprep.subr.bf16.mxu0 0
        %5488 = vmatpush1.bf16.xpose.msra.mxu0 0
        %5489 = vmatprep.subr.bf16.mxu0 0
        %5490 = vmatpush1.bf16.xpose.msra.mxu0 0
        %5491 = vmatprep.subr.bf16.mxu0 0
        %5492 = vmatpush1.bf16.xpose.msra.mxu0 0
        %5493 = vmatprep.subr.bf16.mxu0 0
        %5494 = vmatpush1.bf16.xpose.msra.mxu0 0
        %5495 = vmatprep.subr.bf16.mxu0 0
        %5496 = vmatpush1.bf16.xpose.msra.mxu0 0
        %5497 = vmatprep.subr.bf16.mxu0 0
        %5498 = vmatpush1.bf16.xpose.msra.mxu0 0
        %5499 = vmatprep.subr.bf16.mxu0 0
        %5500 = vmatpush1.bf16.xpose.msra.mxu0 0
        %5501 = vmatprep.subr.bf16.mxu0 0
        %5502 = vmatpush1.bf16.xpose.msra.mxu0 0
        %5503 = vmatprep.mubr.bf16.mxu0 0
        %5504 = vmatmul.mubr.bf16.gmra.mrb[0].mxu0 %v3327
        %v5505 = vpop.f32.mrb[0].mxu0
        %v5506 = vadd.f32 0.0, %v5505
        %v5507 = vpop.f32.mrb[0].mxu0
        %v5508 = vpop.f32.mrb[0].mxu0
        %v5509 = vadd.f32 0.0, %v5508
        %v5510 = vpop.f32.mrb[0].mxu0
        %5511 = vmatprep.mubr.bf16.mxu0 0
        %5512 = vmatmul.mubr.bf16.gmra.mrb[0].mxu0 %v3328
        %v5513 = vpop.f32.mrb[0].mxu0
        %v5514 = vadd.f32 0.0, %v5513
        %v5515 = vpop.f32.mrb[0].mxu0
        %v5516 = vpop.f32.mrb[0].mxu0
        %v5517 = vadd.f32 0.0, %v5516
        %v5518 = vpop.f32.mrb[0].mxu0
        %5519 = vmatprep.mubr.bf16.mxu0 0
        %5520 = vmatmul.mubr.bf16.gmra.mrb[0].mxu0 %v3329
        %v5521 = vpop.f32.mrb[0].mxu0
        %v5522 = vadd.f32 0.0, %v5521
        %v5523 = vpop.f32.mrb[0].mxu0
        %v5524 = vpop.f32.mrb[0].mxu0
        %v5525 = vadd.f32 0.0, %v5524
        %v5526 = vpop.f32.mrb[0].mxu0
        %5527 = vmatprep.mubr.bf16.mxu0 0
        %5528 = vmatmul.mubr.bf16.gmra.mrb[0].mxu0 %v3330
        %v5529 = vpop.f32.mrb[0].mxu0
        %v5530 = vadd.f32 0.0, %v5529
        %v5531 = vpop.f32.mrb[0].mxu0
        %v5532 = vpop.f32.mrb[0].mxu0
        %v5533 = vadd.f32 0.0, %v5532
        %v5534 = vpop.f32.mrb[0].mxu0
        %5535 = vmatprep.mubr.bf16.mxu0 0
        %5536 = vmatmul.mubr.bf16.gmra.mrb[0].mxu0 %v3331
        %v5537 = vpop.f32.mrb[0].mxu0
        %v5538 = vadd.f32 0.0, %v5537
        %v5539 = vpop.f32.mrb[0].mxu0
        %v5540 = vpop.f32.mrb[0].mxu0
        %v5541 = vadd.f32 0.0, %v5540
        %v5542 = vpop.f32.mrb[0].mxu0
        %5543 = vmatprep.mubr.bf16.mxu0 0
        %5544 = vmatmul.mubr.bf16.gmra.mrb[0].mxu0 %v3332
        %v5545 = vpop.f32.mrb[0].mxu0
        %v5546 = vadd.f32 0.0, %v5545
        %v5547 = vpop.f32.mrb[0].mxu0
        %v5548 = vpop.f32.mrb[0].mxu0
        %v5549 = vadd.f32 0.0, %v5548
        %v5550 = vpop.f32.mrb[0].mxu0
        %5551 = vmatprep.mubr.bf16.mxu0 0
        %5552 = vmatmul.mubr.bf16.gmra.mrb[0].mxu0 %v3333
        %v5553 = vpop.f32.mrb[0].mxu0
        %v5554 = vadd.f32 0.0, %v5553
        %v5555 = vpop.f32.mrb[0].mxu0
        %v5556 = vpop.f32.mrb[0].mxu0
        %v5557 = vadd.f32 0.0, %v5556
        %v5558 = vpop.f32.mrb[0].mxu0
        %5559 = vmatprep.mubr.bf16.mxu0 0
        %5560 = vmatmul.mubr.bf16.gmra.mrb[0].mxu0 %v3334
        %v5561 = vpop.f32.mrb[0].mxu0
        %v5562 = vadd.f32 0.0, %v5561
        %v5563 = vpop.f32.mrb[0].mxu0
        %v5564 = vpop.f32.mrb[0].mxu0
        %v5565 = vadd.f32 0.0, %v5564
        %v5566 = vpop.f32.mrb[0].mxu0
        %5567 = vdwg.mxu0
        %5568 = vmatprep.subr.bf16.mxu0 0
        %5569 = vmatpush1.bf16.xpose.msra.mxu0 %v1508
        %5570 = vmatprep.subr.bf16.mxu0 0
        %5571 = vmatpush1.bf16.xpose.msra.mxu0 %v1509
        %5572 = vmatprep.subr.bf16.mxu0 0
        %5573 = vmatpush1.bf16.xpose.msra.mxu0 %v1510
        %5574 = vmatprep.subr.bf16.mxu0 0
        %5575 = vmatpush1.bf16.xpose.msra.mxu0 %v1511
        %5576 = vmatprep.subr.bf16.mxu0 0
        %5577 = vmatpush1.bf16.xpose.msra.mxu0 %v1512
        %5578 = vmatprep.subr.bf16.mxu0 0
        %5579 = vmatpush1.bf16.xpose.msra.mxu0 %v1513
        %5580 = vmatprep.subr.bf16.mxu0 0
        %5581 = vmatpush1.bf16.xpose.msra.mxu0 %v1514
        %5582 = vmatprep.subr.bf16.mxu0 0
        %5583 = vmatpush1.bf16.xpose.msra.mxu0 %v1515
        %5584 = vmatprep.subr.bf16.mxu0 0
        %5585 = vmatpush1.bf16.xpose.msra.mxu0 0
        %5586 = vmatprep.subr.bf16.mxu0 0
        %5587 = vmatpush1.bf16.xpose.msra.mxu0 0
        %5588 = vmatprep.subr.bf16.mxu0 0
        %5589 = vmatpush1.bf16.xpose.msra.mxu0 0
        %5590 = vmatprep.subr.bf16.mxu0 0
        %5591 = vmatpush1.bf16.xpose.msra.mxu0 0
        %5592 = vmatprep.subr.bf16.mxu0 0
        %5593 = vmatpush1.bf16.xpose.msra.mxu0 0
        %5594 = vmatprep.subr.bf16.mxu0 0
        %5595 = vmatpush1.bf16.xpose.msra.mxu0 0
        %5596 = vmatprep.subr.bf16.mxu0 0
        %5597 = vmatpush1.bf16.xpose.msra.mxu0 0
        %5598 = vmatprep.subr.bf16.mxu0 0
        %5599 = vmatpush1.bf16.xpose.msra.mxu0 0
        %5600 = vmatprep.mubr.bf16.mxu0 0
        %5601 = vmatmul.mubr.bf16.gmra.mrb[0].mxu0 %v3472
        %v5602 = vpop.f32.mrb[0].mxu0
        %v5603 = vadd.f32 0.0, %v5602
        %v5604 = vpop.f32.mrb[0].mxu0
        %v5605 = vpop.f32.mrb[0].mxu0
        %v5606 = vadd.f32 0.0, %v5605
        %v5607 = vpop.f32.mrb[0].mxu0
        %5608 = vmatprep.mubr.bf16.mxu0 0
        %5609 = vmatmul.mubr.bf16.gmra.mrb[0].mxu0 %v3473
        %v5610 = vpop.f32.mrb[0].mxu0
        %v5611 = vadd.f32 0.0, %v5610
        %v5612 = vpop.f32.mrb[0].mxu0
        %v5613 = vpop.f32.mrb[0].mxu0
        %v5614 = vadd.f32 0.0, %v5613
        %v5615 = vpop.f32.mrb[0].mxu0
        %5616 = vmatprep.mubr.bf16.mxu0 0
        %5617 = vmatmul.mubr.bf16.gmra.mrb[0].mxu0 %v3474
        %v5618 = vpop.f32.mrb[0].mxu0
        %v5619 = vadd.f32 0.0, %v5618
        %v5620 = vpop.f32.mrb[0].mxu0
        %v5621 = vpop.f32.mrb[0].mxu0
        %v5622 = vadd.f32 0.0, %v5621
        %v5623 = vpop.f32.mrb[0].mxu0
        %5624 = vmatprep.mubr.bf16.mxu0 0
        %5625 = vmatmul.mubr.bf16.gmra.mrb[0].mxu0 %v3475
        %v5626 = vpop.f32.mrb[0].mxu0
        %v5627 = vadd.f32 0.0, %v5626
        %v5628 = vpop.f32.mrb[0].mxu0
        %v5629 = vpop.f32.mrb[0].mxu0
        %v5630 = vadd.f32 0.0, %v5629
        %v5631 = vpop.f32.mrb[0].mxu0
        %5632 = vmatprep.mubr.bf16.mxu0 0
        %5633 = vmatmul.mubr.bf16.gmra.mrb[0].mxu0 %v3476
        %v5634 = vpop.f32.mrb[0].mxu0
        %v5635 = vadd.f32 0.0, %v5634
        %v5636 = vpop.f32.mrb[0].mxu0
        %v5637 = vpop.f32.mrb[0].mxu0
        %v5638 = vadd.f32 0.0, %v5637
        %v5639 = vpop.f32.mrb[0].mxu0
        %5640 = vmatprep.mubr.bf16.mxu0 0
        %5641 = vmatmul.mubr.bf16.gmra.mrb[0].mxu0 %v3477
        %v5642 = vpop.f32.mrb[0].mxu0
        %v5643 = vadd.f32 0.0, %v5642
        %v5644 = vpop.f32.mrb[0].mxu0
        %v5645 = vpop.f32.mrb[0].mxu0
        %v5646 = vadd.f32 0.0, %v5645
        %v5647 = vpop.f32.mrb[0].mxu0
        %5648 = vmatprep.mubr.bf16.mxu0 0
        %5649 = vmatmul.mubr.bf16.gmra.mrb[0].mxu0 %v3478
        %v5650 = vpop.f32.mrb[0].mxu0
        %v5651 = vadd.f32 0.0, %v5650
        %v5652 = vpop.f32.mrb[0].mxu0
        %v5653 = vpop.f32.mrb[0].mxu0
        %v5654 = vadd.f32 0.0, %v5653
        %v5655 = vpop.f32.mrb[0].mxu0
        %5656 = vmatprep.mubr.bf16.mxu0 0
        %5657 = vmatmul.mubr.bf16.gmra.mrb[0].mxu0 %v3479
        %v5658 = vpop.f32.mrb[0].mxu0
        %v5659 = vadd.f32 0.0, %v5658
        %v5660 = vpop.f32.mrb[0].mxu0
        %v5661 = vpop.f32.mrb[0].mxu0
        %v5662 = vadd.f32 0.0, %v5661
        %v5663 = vpop.f32.mrb[0].mxu0
        %5664 = vdwg.mxu0
        %5665 = vmatprep.subr.bf16.mxu0 0
        %5666 = vmatpush1.bf16.xpose.msra.mxu0 %v1516
        %5667 = vmatprep.subr.bf16.mxu0 0
        %5668 = vmatpush1.bf16.xpose.msra.mxu0 %v1517
        %5669 = vmatprep.subr.bf16.mxu0 0
        %5670 = vmatpush1.bf16.xpose.msra.mxu0 %v1518
        %5671 = vmatprep.subr.bf16.mxu0 0
        %5672 = vmatpush1.bf16.xpose.msra.mxu0 %v1519
        %5673 = vmatprep.subr.bf16.mxu0 0
        %5674 = vmatpush1.bf16.xpose.msra.mxu0 %v1520
        %5675 = vmatprep.subr.bf16.mxu0 0
        %5676 = vmatpush1.bf16.xpose.msra.mxu0 %v1521
        %5677 = vmatprep.subr.bf16.mxu0 0
        %5678 = vmatpush1.bf16.xpose.msra.mxu0 %v1522
        %5679 = vmatprep.subr.bf16.mxu0 0
        %5680 = vmatpush1.bf16.xpose.msra.mxu0 %v1523
        %5681 = vmatprep.subr.bf16.mxu0 0
        %5682 = vmatpush1.bf16.xpose.msra.mxu0 0
        %5683 = vmatprep.subr.bf16.mxu0 0
        %5684 = vmatpush1.bf16.xpose.msra.mxu0 0
        %5685 = vmatprep.subr.bf16.mxu0 0
        %5686 = vmatpush1.bf16.xpose.msra.mxu0 0
        %5687 = vmatprep.subr.bf16.mxu0 0
        %5688 = vmatpush1.bf16.xpose.msra.mxu0 0
        %5689 = vmatprep.subr.bf16.mxu0 0
        %5690 = vmatpush1.bf16.xpose.msra.mxu0 0
        %5691 = vmatprep.subr.bf16.mxu0 0
        %5692 = vmatpush1.bf16.xpose.msra.mxu0 0
        %5693 = vmatprep.subr.bf16.mxu0 0
        %5694 = vmatpush1.bf16.xpose.msra.mxu0 0
        %5695 = vmatprep.subr.bf16.mxu0 0
        %5696 = vmatpush1.bf16.xpose.msra.mxu0 0
        %5697 = vmatprep.mubr.bf16.mxu0 0
        %5698 = vmatmul.mubr.bf16.gmra.mrb[0].mxu0 %v3617
        %v5699 = vpop.f32.mrb[0].mxu0
        %v5700 = vadd.f32 0.0, %v5699
        %v5701 = vpop.f32.mrb[0].mxu0
        %v5702 = vpop.f32.mrb[0].mxu0
        %v5703 = vadd.f32 0.0, %v5702
        %v5704 = vpop.f32.mrb[0].mxu0
        %5705 = vmatprep.mubr.bf16.mxu0 0
        %5706 = vmatmul.mubr.bf16.gmra.mrb[0].mxu0 %v3618
        %v5707 = vpop.f32.mrb[0].mxu0
        %v5708 = vadd.f32 0.0, %v5707
        %v5709 = vpop.f32.mrb[0].mxu0
        %v5710 = vpop.f32.mrb[0].mxu0
        %v5711 = vadd.f32 0.0, %v5710
        %v5712 = vpop.f32.mrb[0].mxu0
        %5713 = vmatprep.mubr.bf16.mxu0 0
        %5714 = vmatmul.mubr.bf16.gmra.mrb[0].mxu0 %v3619
        %v5715 = vpop.f32.mrb[0].mxu0
        %v5716 = vadd.f32 0.0, %v5715
        %v5717 = vpop.f32.mrb[0].mxu0
        %v5718 = vpop.f32.mrb[0].mxu0
        %v5719 = vadd.f32 0.0, %v5718
        %v5720 = vpop.f32.mrb[0].mxu0
        %5721 = vmatprep.mubr.bf16.mxu0 0
        %5722 = vmatmul.mubr.bf16.gmra.mrb[0].mxu0 %v3620
        %v5723 = vpop.f32.mrb[0].mxu0
        %v5724 = vadd.f32 0.0, %v5723
        %v5725 = vpop.f32.mrb[0].mxu0
        %v5726 = vpop.f32.mrb[0].mxu0
        %v5727 = vadd.f32 0.0, %v5726
        %v5728 = vpop.f32.mrb[0].mxu0
        %5729 = vmatprep.mubr.bf16.mxu0 0
        %5730 = vmatmul.mubr.bf16.gmra.mrb[0].mxu0 %v3621
        %v5731 = vpop.f32.mrb[0].mxu0
        %v5732 = vadd.f32 0.0, %v5731
        %v5733 = vpop.f32.mrb[0].mxu0
        %v5734 = vpop.f32.mrb[0].mxu0
        %v5735 = vadd.f32 0.0, %v5734
        %v5736 = vpop.f32.mrb[0].mxu0
        %5737 = vmatprep.mubr.bf16.mxu0 0
        %5738 = vmatmul.mubr.bf16.gmra.mrb[0].mxu0 %v3622
        %v5739 = vpop.f32.mrb[0].mxu0
        %v5740 = vadd.f32 0.0, %v5739
        %v5741 = vpop.f32.mrb[0].mxu0
        %v5742 = vpop.f32.mrb[0].mxu0
        %v5743 = vadd.f32 0.0, %v5742
        %v5744 = vpop.f32.mrb[0].mxu0
        %5745 = vmatprep.mubr.bf16.mxu0 0
        %5746 = vmatmul.mubr.bf16.gmra.mrb[0].mxu0 %v3623
        %v5747 = vpop.f32.mrb[0].mxu0
        %v5748 = vadd.f32 0.0, %v5747
        %v5749 = vpop.f32.mrb[0].mxu0
        %v5750 = vpop.f32.mrb[0].mxu0
        %v5751 = vadd.f32 0.0, %v5750
        %v5752 = vpop.f32.mrb[0].mxu0
        %5753 = vmatprep.mubr.bf16.mxu0 0
        %5754 = vmatmul.mubr.bf16.gmra.mrb[0].mxu0 %v3624
        %v5755 = vpop.f32.mrb[0].mxu0
        %v5756 = vadd.f32 0.0, %v5755
        %v5757 = vpop.f32.mrb[0].mxu0
        %v5758 = vpop.f32.mrb[0].mxu0
        %v5759 = vadd.f32 0.0, %v5758
        %v5760 = vpop.f32.mrb[0].mxu0
        %5761 = vdwg.mxu0
        %5762 = vmatprep.subr.bf16.mxu0 0
        %5763 = vmatpush1.bf16.xpose.msra.mxu0 %v1524
        %5764 = vmatprep.subr.bf16.mxu0 0
        %5765 = vmatpush1.bf16.xpose.msra.mxu0 %v1525
        %5766 = vmatprep.subr.bf16.mxu0 0
        %5767 = vmatpush1.bf16.xpose.msra.mxu0 %v1526
        %5768 = vmatprep.subr.bf16.mxu0 0
        %5769 = vmatpush1.bf16.xpose.msra.mxu0 %v1527
        %5770 = vmatprep.subr.bf16.mxu0 0
        %5771 = vmatpush1.bf16.xpose.msra.mxu0 %v1528
        %5772 = vmatprep.subr.bf16.mxu0 0
        %5773 = vmatpush1.bf16.xpose.msra.mxu0 %v1529
        %5774 = vmatprep.subr.bf16.mxu0 0
        %5775 = vmatpush1.bf16.xpose.msra.mxu0 %v1530
        %5776 = vmatprep.subr.bf16.mxu0 0
        %5777 = vmatpush1.bf16.xpose.msra.mxu0 %v1531
        %5778 = vmatprep.subr.bf16.mxu0 0
        %5779 = vmatpush1.bf16.xpose.msra.mxu0 0
        %5780 = vmatprep.subr.bf16.mxu0 0
        %5781 = vmatpush1.bf16.xpose.msra.mxu0 0
        %5782 = vmatprep.subr.bf16.mxu0 0
        %5783 = vmatpush1.bf16.xpose.msra.mxu0 0
        %5784 = vmatprep.subr.bf16.mxu0 0
        %5785 = vmatpush1.bf16.xpose.msra.mxu0 0
        %5786 = vmatprep.subr.bf16.mxu0 0
        %5787 = vmatpush1.bf16.xpose.msra.mxu0 0
        %5788 = vmatprep.subr.bf16.mxu0 0
        %5789 = vmatpush1.bf16.xpose.msra.mxu0 0
        %5790 = vmatprep.subr.bf16.mxu0 0
        %5791 = vmatpush1.bf16.xpose.msra.mxu0 0
        %5792 = vmatprep.subr.bf16.mxu0 0
        %5793 = vmatpush1.bf16.xpose.msra.mxu0 0
        %5794 = vmatprep.mubr.bf16.mxu0 0
        %5795 = vmatmul.mubr.bf16.gmra.mrb[0].mxu0 %v3762
        %v5796 = vpop.f32.mrb[0].mxu0
        %v5797 = vadd.f32 0.0, %v5796
        %v5798 = vpop.f32.mrb[0].mxu0
        %v5799 = vpop.f32.mrb[0].mxu0
        %v5800 = vadd.f32 0.0, %v5799
        %v5801 = vpop.f32.mrb[0].mxu0
        %5802 = vmatprep.mubr.bf16.mxu0 0
        %5803 = vmatmul.mubr.bf16.gmra.mrb[0].mxu0 %v3763
        %v5804 = vpop.f32.mrb[0].mxu0
        %v5805 = vadd.f32 0.0, %v5804
        %v5806 = vpop.f32.mrb[0].mxu0
        %v5807 = vpop.f32.mrb[0].mxu0
        %v5808 = vadd.f32 0.0, %v5807
        %v5809 = vpop.f32.mrb[0].mxu0
        %5810 = vmatprep.mubr.bf16.mxu0 0
        %5811 = vmatmul.mubr.bf16.gmra.mrb[0].mxu0 %v3764
        %v5812 = vpop.f32.mrb[0].mxu0
        %v5813 = vadd.f32 0.0, %v5812
        %v5814 = vpop.f32.mrb[0].mxu0
        %v5815 = vpop.f32.mrb[0].mxu0
        %v5816 = vadd.f32 0.0, %v5815
        %v5817 = vpop.f32.mrb[0].mxu0
        %5818 = vmatprep.mubr.bf16.mxu0 0
        %5819 = vmatmul.mubr.bf16.gmra.mrb[0].mxu0 %v3765
        %v5820 = vpop.f32.mrb[0].mxu0
        %v5821 = vadd.f32 0.0, %v5820
        %v5822 = vpop.f32.mrb[0].mxu0
        %v5823 = vpop.f32.mrb[0].mxu0
        %v5824 = vadd.f32 0.0, %v5823
        %v5825 = vpop.f32.mrb[0].mxu0
        %5826 = vmatprep.mubr.bf16.mxu0 0
        %5827 = vmatmul.mubr.bf16.gmra.mrb[0].mxu0 %v3766
        %v5828 = vpop.f32.mrb[0].mxu0
        %v5829 = vadd.f32 0.0, %v5828
        %v5830 = vpop.f32.mrb[0].mxu0
        %v5831 = vpop.f32.mrb[0].mxu0
        %v5832 = vadd.f32 0.0, %v5831
        %v5833 = vpop.f32.mrb[0].mxu0
        %5834 = vmatprep.mubr.bf16.mxu0 0
        %5835 = vmatmul.mubr.bf16.gmra.mrb[0].mxu0 %v3767
        %v5836 = vpop.f32.mrb[0].mxu0
        %v5837 = vadd.f32 0.0, %v5836
        %v5838 = vpop.f32.mrb[0].mxu0
        %v5839 = vpop.f32.mrb[0].mxu0
        %v5840 = vadd.f32 0.0, %v5839
        %v5841 = vpop.f32.mrb[0].mxu0
        %5842 = vmatprep.mubr.bf16.mxu0 0
        %5843 = vmatmul.mubr.bf16.gmra.mrb[0].mxu0 %v3768
        %v5844 = vpop.f32.mrb[0].mxu0
        %v5845 = vadd.f32 0.0, %v5844
        %v5846 = vpop.f32.mrb[0].mxu0
        %v5847 = vpop.f32.mrb[0].mxu0
        %v5848 = vadd.f32 0.0, %v5847
        %v5849 = vpop.f32.mrb[0].mxu0
        %5850 = vmatprep.mubr.bf16.mxu0 0
        %5851 = vmatmul.mubr.bf16.gmra.mrb[0].mxu0 %v3769
        %v5852 = vpop.f32.mrb[0].mxu0
        %v5853 = vadd.f32 0.0, %v5852
        %v5854 = vpop.f32.mrb[0].mxu0
        %v5855 = vpop.f32.mrb[0].mxu0
        %v5856 = vadd.f32 0.0, %v5855
        %v5857 = vpop.f32.mrb[0].mxu0
        %5858 = vdwg.mxu0
        %5859 = vmatprep.subr.bf16.mxu0 0
        %5860 = vmatpush1.bf16.xpose.msra.mxu0 %v1532
        %5861 = vmatprep.subr.bf16.mxu0 0
        %5862 = vmatpush1.bf16.xpose.msra.mxu0 %v1533
        %5863 = vmatprep.subr.bf16.mxu0 0
        %5864 = vmatpush1.bf16.xpose.msra.mxu0 %v1534
        %5865 = vmatprep.subr.bf16.mxu0 0
        %5866 = vmatpush1.bf16.xpose.msra.mxu0 %v1535
        %5867 = vmatprep.subr.bf16.mxu0 0
        %5868 = vmatpush1.bf16.xpose.msra.mxu0 %v1536
        %5869 = vmatprep.subr.bf16.mxu0 0
        %5870 = vmatpush1.bf16.xpose.msra.mxu0 %v1537
        %5871 = vmatprep.subr.bf16.mxu0 0
        %5872 = vmatpush1.bf16.xpose.msra.mxu0 %v1538
        %5873 = vmatprep.subr.bf16.mxu0 0
        %5874 = vmatpush1.bf16.xpose.msra.mxu0 %v1539
        %5875 = vmatprep.subr.bf16.mxu0 0
        %5876 = vmatpush1.bf16.xpose.msra.mxu0 0
        %5877 = vmatprep.subr.bf16.mxu0 0
        %5878 = vmatpush1.bf16.xpose.msra.mxu0 0
        %5879 = vmatprep.subr.bf16.mxu0 0
        %5880 = vmatpush1.bf16.xpose.msra.mxu0 0
        %5881 = vmatprep.subr.bf16.mxu0 0
        %5882 = vmatpush1.bf16.xpose.msra.mxu0 0
        %5883 = vmatprep.subr.bf16.mxu0 0
        %5884 = vmatpush1.bf16.xpose.msra.mxu0 0
        %5885 = vmatprep.subr.bf16.mxu0 0
        %5886 = vmatpush1.bf16.xpose.msra.mxu0 0
        %5887 = vmatprep.subr.bf16.mxu0 0
        %5888 = vmatpush1.bf16.xpose.msra.mxu0 0
        %5889 = vmatprep.subr.bf16.mxu0 0
        %5890 = vmatpush1.bf16.xpose.msra.mxu0 0
        %5891 = vmatprep.mubr.bf16.mxu0 0
        %5892 = vmatmul.mubr.bf16.gmra.mrb[0].mxu0 %v3907
        %v5893 = vpop.f32.mrb[0].mxu0
        %v5894 = vadd.f32 0.0, %v5893
        %v5895 = vpop.f32.mrb[0].mxu0
        %v5896 = vpop.f32.mrb[0].mxu0
        %v5897 = vadd.f32 0.0, %v5896
        %v5898 = vpop.f32.mrb[0].mxu0
        %5899 = vmatprep.mubr.bf16.mxu0 0
        %5900 = vmatmul.mubr.bf16.gmra.mrb[0].mxu0 %v3908
        %v5901 = vpop.f32.mrb[0].mxu0
        %v5902 = vadd.f32 0.0, %v5901
        %v5903 = vpop.f32.mrb[0].mxu0
        %v5904 = vpop.f32.mrb[0].mxu0
        %v5905 = vadd.f32 0.0, %v5904
        %v5906 = vpop.f32.mrb[0].mxu0
        %5907 = vmatprep.mubr.bf16.mxu0 0
        %5908 = vmatmul.mubr.bf16.gmra.mrb[0].mxu0 %v3909
        %v5909 = vpop.f32.mrb[0].mxu0
        %v5910 = vadd.f32 0.0, %v5909
        %v5911 = vpop.f32.mrb[0].mxu0
        %v5912 = vpop.f32.mrb[0].mxu0
        %v5913 = vadd.f32 0.0, %v5912
        %v5914 = vpop.f32.mrb[0].mxu0
        %5915 = vmatprep.mubr.bf16.mxu0 0
        %5916 = vmatmul.mubr.bf16.gmra.mrb[0].mxu0 %v3910
        %v5917 = vpop.f32.mrb[0].mxu0
        %v5918 = vadd.f32 0.0, %v5917
        %v5919 = vpop.f32.mrb[0].mxu0
        %v5920 = vpop.f32.mrb[0].mxu0
        %v5921 = vadd.f32 0.0, %v5920
        %v5922 = vpop.f32.mrb[0].mxu0
        %5923 = vmatprep.mubr.bf16.mxu0 0
        %5924 = vmatmul.mubr.bf16.gmra.mrb[0].mxu0 %v3911
        %v5925 = vpop.f32.mrb[0].mxu0
        %v5926 = vadd.f32 0.0, %v5925
        %v5927 = vpop.f32.mrb[0].mxu0
        %v5928 = vpop.f32.mrb[0].mxu0
        %v5929 = vadd.f32 0.0, %v5928
        %v5930 = vpop.f32.mrb[0].mxu0
        %5931 = vmatprep.mubr.bf16.mxu0 0
        %5932 = vmatmul.mubr.bf16.gmra.mrb[0].mxu0 %v3912
        %v5933 = vpop.f32.mrb[0].mxu0
        %v5934 = vadd.f32 0.0, %v5933
        %v5935 = vpop.f32.mrb[0].mxu0
        %v5936 = vpop.f32.mrb[0].mxu0
        %v5937 = vadd.f32 0.0, %v5936
        %v5938 = vpop.f32.mrb[0].mxu0
        %5939 = vmatprep.mubr.bf16.mxu0 0
        %5940 = vmatmul.mubr.bf16.gmra.mrb[0].mxu0 %v3913
        %v5941 = vpop.f32.mrb[0].mxu0
        %v5942 = vadd.f32 0.0, %v5941
        %v5943 = vpop.f32.mrb[0].mxu0
        %v5944 = vpop.f32.mrb[0].mxu0
        %v5945 = vadd.f32 0.0, %v5944
        %v5946 = vpop.f32.mrb[0].mxu0
        %5947 = vmatprep.mubr.bf16.mxu0 0
        %5948 = vmatmul.mubr.bf16.gmra.mrb[0].mxu0 %v3914
        %v5949 = vpop.f32.mrb[0].mxu0
        %v5950 = vadd.f32 0.0, %v5949
        %v5951 = vpop.f32.mrb[0].mxu0
        %v5952 = vpop.f32.mrb[0].mxu0
        %v5953 = vadd.f32 0.0, %v5952
        %v5954 = vpop.f32.mrb[0].mxu0
        %5955 = vdwg.mxu0
        %v5956 = vlaneseq
        %v5957 = vshrl.u32 %v5956, 7
        %v5958 = vadd.s32 %v5957, 8
        %v5959 = vadd.s32 %v5957, 16
        %v5960 = vadd.s32 %v5957, 24
        %v5961 = vadd.s32 %v5957, 32
        %v5962 = vadd.s32 %v5957, 40
        %v5963 = vadd.s32 %v5957, 48
        %v5964 = vadd.s32 %v5957, 56
        %v5965 = vadd.s32 %v5957, 64
        %v5966 = vadd.s32 %v5957, 72
        %v5967 = vadd.s32 %v5957, 80
        %v5968 = vadd.s32 %v5957, 88
        %v5969 = vadd.s32 %v5957, 96
        %v5970 = vadd.s32 %v5957, 104
        %v5971 = vadd.s32 %v5957, 112
        %v5972 = vadd.s32 %v5957, 120
        %vm5973 = vcmp.eq.s32.totalorder %v5957, %v2181
        %vm5974 = vcmp.eq.s32.totalorder %v5958, %v2181
        %vm5975 = vcmp.eq.s32.totalorder %v5959, %v2181
        %vm5976 = vcmp.eq.s32.totalorder %v5960, %v2181
        %vm5977 = vcmp.eq.s32.totalorder %v5961, %v2181
        %vm5978 = vcmp.eq.s32.totalorder %v5962, %v2181
        %vm5979 = vcmp.eq.s32.totalorder %v5963, %v2181
        %vm5980 = vcmp.eq.s32.totalorder %v5964, %v2181
        %vm5981 = vcmp.eq.s32.totalorder %v5965, %v2181
        %vm5982 = vcmp.eq.s32.totalorder %v5966, %v2181
        %vm5983 = vcmp.eq.s32.totalorder %v5967, %v2181
        %vm5984 = vcmp.eq.s32.totalorder %v5968, %v2181
        %vm5985 = vcmp.eq.s32.totalorder %v5969, %v2181
        %vm5986 = vcmp.eq.s32.totalorder %v5970, %v2181
        %vm5987 = vcmp.eq.s32.totalorder %v5971, %v2181
        %vm5988 = vcmp.eq.s32.totalorder %v5972, %v2181
        %v5989 = vsel %vm5973, 1, 0
        %v5990 = vsel %vm5974, 1, 0
        %v5991 = vsel %vm5975, 1, 0
        %v5992 = vsel %vm5976, 1, 0
        %v5993 = vsel %vm5977, 1, 0
        %v5994 = vsel %vm5978, 1, 0
        %v5995 = vsel %vm5979, 1, 0
        %v5996 = vsel %vm5980, 1, 0
        %v5997 = vsel %vm5981, 1, 0
        %v5998 = vsel %vm5982, 1, 0
        %v5999 = vsel %vm5983, 1, 0
        %v6000 = vsel %vm5984, 1, 0
        %v6001 = vsel %vm5985, 1, 0
        %v6002 = vsel %vm5986, 1, 0
        %v6003 = vsel %vm5987, 1, 0
        %v6004 = vsel %vm5988, 1, 0
        %vm6005 = vcmp.eq.s32.totalorder %v5989, 1
        %vm6006 = vcmp.eq.s32.totalorder %v5990, 1
        %vm6007 = vcmp.eq.s32.totalorder %v5991, 1
        %vm6008 = vcmp.eq.s32.totalorder %v5992, 1
        %vm6009 = vcmp.eq.s32.totalorder %v5993, 1
        %vm6010 = vcmp.eq.s32.totalorder %v5994, 1
        %vm6011 = vcmp.eq.s32.totalorder %v5995, 1
        %vm6012 = vcmp.eq.s32.totalorder %v5996, 1
        %vm6013 = vcmp.eq.s32.totalorder %v5997, 1
        %vm6014 = vcmp.eq.s32.totalorder %v5998, 1
        %vm6015 = vcmp.eq.s32.totalorder %v5999, 1
        %vm6016 = vcmp.eq.s32.totalorder %v6000, 1
        %vm6017 = vcmp.eq.s32.totalorder %v6001, 1
        %vm6018 = vcmp.eq.s32.totalorder %v6002, 1
        %vm6019 = vcmp.eq.s32.totalorder %v6003, 1
        %vm6020 = vcmp.eq.s32.totalorder %v6004, 1
        %v6021 = vsel %vm6005, -1e+09, %v2943
        %v6022 = vsel %vm6006, -1e+09, %v2946
        %v6023 = vsel %vm6007, -1e+09, %v2951
        %v6024 = vsel %vm6008, -1e+09, %v2954
        %v6025 = vsel %vm6009, -1e+09, %v2959
        %v6026 = vsel %vm6010, -1e+09, %v2962
        %v6027 = vsel %vm6011, -1e+09, %v2967
        %v6028 = vsel %vm6012, -1e+09, %v2970
        %v6029 = vsel %vm6013, -1e+09, %v2975
        %v6030 = vsel %vm6014, -1e+09, %v2978
        %v6031 = vsel %vm6015, -1e+09, %v2983
        %v6032 = vsel %vm6016, -1e+09, %v2986
        %v6033 = vsel %vm6017, -1e+09, %v2991
        %v6034 = vsel %vm6018, -1e+09, %v2994
        %v6035 = vsel %vm6019, -1e+09, %v2999
        %v6036 = vsel %vm6020, -1e+09, %v3002
        %v6037 = vsel %vm6005, -1e+09, %v3088
        %v6038 = vsel %vm6006, -1e+09, %v3091
        %v6039 = vsel %vm6007, -1e+09, %v3096
        %v6040 = vsel %vm6008, -1e+09, %v3099
        %v6041 = vsel %vm6009, -1e+09, %v3104
        %v6042 = vsel %vm6010, -1e+09, %v3107
        %v6043 = vsel %vm6011, -1e+09, %v3112
        %v6044 = vsel %vm6012, -1e+09, %v3115
        %v6045 = vsel %vm6013, -1e+09, %v3120
        %v6046 = vsel %vm6014, -1e+09, %v3123
        %v6047 = vsel %vm6015, -1e+09, %v3128
        %v6048 = vsel %vm6016, -1e+09, %v3131
        %v6049 = vsel %vm6017, -1e+09, %v3136
        %v6050 = vsel %vm6018, -1e+09, %v3139
        %v6051 = vsel %vm6019, -1e+09, %v3144
        %v6052 = vsel %vm6020, -1e+09, %v3147
        %v6053 = vsel %vm6005, -1e+09, %v3233
        %v6054 = vsel %vm6006, -1e+09, %v3236
        %v6055 = vsel %vm6007, -1e+09, %v3241
        %v6056 = vsel %vm6008, -1e+09, %v3244
        %v6057 = vsel %vm6009, -1e+09, %v3249
        %v6058 = vsel %vm6010, -1e+09, %v3252
        %v6059 = vsel %vm6011, -1e+09, %v3257
        %v6060 = vsel %vm6012, -1e+09, %v3260
        %v6061 = vsel %vm6013, -1e+09, %v3265
        %v6062 = vsel %vm6014, -1e+09, %v3268
        %v6063 = vsel %vm6015, -1e+09, %v3273
        %v6064 = vsel %vm6016, -1e+09, %v3276
        %v6065 = vsel %vm6017, -1e+09, %v3281
        %v6066 = vsel %vm6018, -1e+09, %v3284
        %v6067 = vsel %vm6019, -1e+09, %v3289
        %v6068 = vsel %vm6020, -1e+09, %v3292
        %v6069 = vsel %vm6005, -1e+09, %v3378
        %v6070 = vsel %vm6006, -1e+09, %v3381
        %v6071 = vsel %vm6007, -1e+09, %v3386
        %v6072 = vsel %vm6008, -1e+09, %v3389
        %v6073 = vsel %vm6009, -1e+09, %v3394
        %v6074 = vsel %vm6010, -1e+09, %v3397
        %v6075 = vsel %vm6011, -1e+09, %v3402
        %v6076 = vsel %vm6012, -1e+09, %v3405
        %v6077 = vsel %vm6013, -1e+09, %v3410
        %v6078 = vsel %vm6014, -1e+09, %v3413
        %v6079 = vsel %vm6015, -1e+09, %v3418
        %v6080 = vsel %vm6016, -1e+09, %v3421
        %v6081 = vsel %vm6017, -1e+09, %v3426
        %v6082 = vsel %vm6018, -1e+09, %v3429
        %v6083 = vsel %vm6019, -1e+09, %v3434
        %v6084 = vsel %vm6020, -1e+09, %v3437
        %v6085 = vsel %vm6005, -1e+09, %v3523
        %v6086 = vsel %vm6006, -1e+09, %v3526
        %v6087 = vsel %vm6007, -1e+09, %v3531
        %v6088 = vsel %vm6008, -1e+09, %v3534
        %v6089 = vsel %vm6009, -1e+09, %v3539
        %v6090 = vsel %vm6010, -1e+09, %v3542
        %v6091 = vsel %vm6011, -1e+09, %v3547
        %v6092 = vsel %vm6012, -1e+09, %v3550
        %v6093 = vsel %vm6013, -1e+09, %v3555
        %v6094 = vsel %vm6014, -1e+09, %v3558
        %v6095 = vsel %vm6015, -1e+09, %v3563
        %v6096 = vsel %vm6016, -1e+09, %v3566
        %v6097 = vsel %vm6017, -1e+09, %v3571
        %v6098 = vsel %vm6018, -1e+09, %v3574
        %v6099 = vsel %vm6019, -1e+09, %v3579
        %v6100 = vsel %vm6020, -1e+09, %v3582
        %v6101 = vsel %vm6005, -1e+09, %v3668
        %v6102 = vsel %vm6006, -1e+09, %v3671
        %v6103 = vsel %vm6007, -1e+09, %v3676
        %v6104 = vsel %vm6008, -1e+09, %v3679
        %v6105 = vsel %vm6009, -1e+09, %v3684
        %v6106 = vsel %vm6010, -1e+09, %v3687
        %v6107 = vsel %vm6011, -1e+09, %v3692
        %v6108 = vsel %vm6012, -1e+09, %v3695
        %v6109 = vsel %vm6013, -1e+09, %v3700
        %v6110 = vsel %vm6014, -1e+09, %v3703
        %v6111 = vsel %vm6015, -1e+09, %v3708
        %v6112 = vsel %vm6016, -1e+09, %v3711
        %v6113 = vsel %vm6017, -1e+09, %v3716
        %v6114 = vsel %vm6018, -1e+09, %v3719
        %v6115 = vsel %vm6019, -1e+09, %v3724
        %v6116 = vsel %vm6020, -1e+09, %v3727
        %v6117 = vsel %vm6005, -1e+09, %v3813
        %v6118 = vsel %vm6006, -1e+09, %v3816
        %v6119 = vsel %vm6007, -1e+09, %v3821
        %v6120 = vsel %vm6008, -1e+09, %v3824
        %v6121 = vsel %vm6009, -1e+09, %v3829
        %v6122 = vsel %vm6010, -1e+09, %v3832
        %v6123 = vsel %vm6011, -1e+09, %v3837
        %v6124 = vsel %vm6012, -1e+09, %v3840
        %v6125 = vsel %vm6013, -1e+09, %v3845
        %v6126 = vsel %vm6014, -1e+09, %v3848
        %v6127 = vsel %vm6015, -1e+09, %v3853
        %v6128 = vsel %vm6016, -1e+09, %v3856
        %v6129 = vsel %vm6017, -1e+09, %v3861
        %v6130 = vsel %vm6018, -1e+09, %v3864
        %v6131 = vsel %vm6019, -1e+09, %v3869
        %v6132 = vsel %vm6020, -1e+09, %v3872
        %v6133 = vsel %vm6005, -1e+09, %v3958
        %v6134 = vsel %vm6006, -1e+09, %v3961
        %v6135 = vsel %vm6007, -1e+09, %v3966
        %v6136 = vsel %vm6008, -1e+09, %v3969
        %v6137 = vsel %vm6009, -1e+09, %v3974
        %v6138 = vsel %vm6010, -1e+09, %v3977
        %v6139 = vsel %vm6011, -1e+09, %v3982
        %v6140 = vsel %vm6012, -1e+09, %v3985
        %v6141 = vsel %vm6013, -1e+09, %v3990
        %v6142 = vsel %vm6014, -1e+09, %v3993
        %v6143 = vsel %vm6015, -1e+09, %v3998
        %v6144 = vsel %vm6016, -1e+09, %v4001
        %v6145 = vsel %vm6017, -1e+09, %v4006
        %v6146 = vsel %vm6018, -1e+09, %v4009
        %v6147 = vsel %vm6019, -1e+09, %v4014
        %v6148 = vsel %vm6020, -1e+09, %v4017
        %6149 = vst [vmem:[%s338] sm:$0xff] %v6021
        %6150 = vst [vmem:[%s338 + $0x10] sm:$0xff] %v6022
        %6151 = vst [vmem:[%s338 + $0x20] sm:$0xff] %v6023
        %6152 = vst [vmem:[%s338 + $0x30] sm:$0xff] %v6024
        %6153 = vst [vmem:[%s338 + $0x40] sm:$0xff] %v6025
        %6154 = vst [vmem:[%s338 + $0x50] sm:$0xff] %v6026
        %6155 = vst [vmem:[%s338 + $0x60] sm:$0xff] %v6027
        %6156 = vst [vmem:[%s338 + $0x70] sm:$0xff] %v6028
        %6157 = vst [vmem:[%s338 + $0x80] sm:$0xff] %v6029
        %6158 = vst [vmem:[%s338 + $0x90] sm:$0xff] %v6030
        %6159 = vst [vmem:[%s338 + $0xa0] sm:$0xff] %v6031
        %6160 = vst [vmem:[%s338 + $0xb0] sm:$0xff] %v6032
        %6161 = vst [vmem:[%s338 + $0xc0] sm:$0xff] %v6033
        %6162 = vst [vmem:[%s338 + $0xd0] sm:$0xff] %v6034
        %6163 = vst [vmem:[%s338 + $0xe0] sm:$0xff] %v6035
        %6164 = vst [vmem:[%s338 + $0xf0] sm:$0xff] %v6036
        %6165 = vst [vmem:[%s338 + $0x100] sm:$0xff] %v6037
        %6166 = vst [vmem:[%s338 + $0x110] sm:$0xff] %v6038
        %6167 = vst [vmem:[%s338 + $0x120] sm:$0xff] %v6039
        %6168 = vst [vmem:[%s338 + $0x130] sm:$0xff] %v6040
        %6169 = vst [vmem:[%s338 + $0x140] sm:$0xff] %v6041
        %6170 = vst [vmem:[%s338 + $0x150] sm:$0xff] %v6042
        %6171 = vst [vmem:[%s338 + $0x160] sm:$0xff] %v6043
        %6172 = vst [vmem:[%s338 + $0x170] sm:$0xff] %v6044
        %6173 = vst [vmem:[%s338 + $0x180] sm:$0xff] %v6045
        %6174 = vst [vmem:[%s338 + $0x190] sm:$0xff] %v6046
        %6175 = vst [vmem:[%s338 + $0x1a0] sm:$0xff] %v6047
        %6176 = vst [vmem:[%s338 + $0x1b0] sm:$0xff] %v6048
        %6177 = vst [vmem:[%s338 + $0x1c0] sm:$0xff] %v6049
        %6178 = vst [vmem:[%s338 + $0x1d0] sm:$0xff] %v6050
        %6179 = vst [vmem:[%s338 + $0x1e0] sm:$0xff] %v6051
        %6180 = vst [vmem:[%s338 + $0x1f0] sm:$0xff] %v6052
        %6181 = vst [vmem:[%s338 + $0x200] sm:$0xff] %v6053
        %6182 = vst [vmem:[%s338 + $0x210] sm:$0xff] %v6054
        %6183 = vst [vmem:[%s338 + $0x220] sm:$0xff] %v6055
        %6184 = vst [vmem:[%s338 + $0x230] sm:$0xff] %v6056
        %6185 = vst [vmem:[%s338 + $0x240] sm:$0xff] %v6057
        %6186 = vst [vmem:[%s338 + $0x250] sm:$0xff] %v6058
        %6187 = vst [vmem:[%s338 + $0x260] sm:$0xff] %v6059
        %6188 = vst [vmem:[%s338 + $0x270] sm:$0xff] %v6060
        %6189 = vst [vmem:[%s338 + $0x280] sm:$0xff] %v6061
        %6190 = vst [vmem:[%s338 + $0x290] sm:$0xff] %v6062
        %6191 = vst [vmem:[%s338 + $0x2a0] sm:$0xff] %v6063
        %6192 = vst [vmem:[%s338 + $0x2b0] sm:$0xff] %v6064
        %6193 = vst [vmem:[%s338 + $0x2c0] sm:$0xff] %v6065
        %6194 = vst [vmem:[%s338 + $0x2d0] sm:$0xff] %v6066
        %6195 = vst [vmem:[%s338 + $0x2e0] sm:$0xff] %v6067
        %6196 = vst [vmem:[%s338 + $0x2f0] sm:$0xff] %v6068
        %6197 = vst [vmem:[%s338 + $0x300] sm:$0xff] %v6069
        %6198 = vst [vmem:[%s338 + $0x310] sm:$0xff] %v6070
        %6199 = vst [vmem:[%s338 + $0x320] sm:$0xff] %v6071
        %6200 = vst [vmem:[%s338 + $0x330] sm:$0xff] %v6072
        %6201 = vst [vmem:[%s338 + $0x340] sm:$0xff] %v6073
        %6202 = vst [vmem:[%s338 + $0x350] sm:$0xff] %v6074
        %6203 = vst [vmem:[%s338 + $0x360] sm:$0xff] %v6075
        %6204 = vst [vmem:[%s338 + $0x370] sm:$0xff] %v6076
        %6205 = vst [vmem:[%s338 + $0x380] sm:$0xff] %v6077
        %6206 = vst [vmem:[%s338 + $0x390] sm:$0xff] %v6078
        %6207 = vst [vmem:[%s338 + $0x3a0] sm:$0xff] %v6079
        %6208 = vst [vmem:[%s338 + $0x3b0] sm:$0xff] %v6080
        %6209 = vst [vmem:[%s338 + $0x3c0] sm:$0xff] %v6081
        %6210 = vst [vmem:[%s338 + $0x3d0] sm:$0xff] %v6082
        %6211 = vst [vmem:[%s338 + $0x3e0] sm:$0xff] %v6083
        %6212 = vst [vmem:[%s338 + $0x3f0] sm:$0xff] %v6084
        %6213 = vst [vmem:[%s338 + $0x400] sm:$0xff] %v6085
        %6214 = vst [vmem:[%s338 + $0x410] sm:$0xff] %v6086
        %6215 = vst [vmem:[%s338 + $0x420] sm:$0xff] %v6087
        %6216 = vst [vmem:[%s338 + $0x430] sm:$0xff] %v6088
        %6217 = vst [vmem:[%s338 + $0x440] sm:$0xff] %v6089
        %6218 = vst [vmem:[%s338 + $0x450] sm:$0xff] %v6090
        %6219 = vst [vmem:[%s338 + $0x460] sm:$0xff] %v6091
        %6220 = vst [vmem:[%s338 + $0x470] sm:$0xff] %v6092
        %6221 = vst [vmem:[%s338 + $0x480] sm:$0xff] %v6093
        %6222 = vst [vmem:[%s338 + $0x490] sm:$0xff] %v6094
        %6223 = vst [vmem:[%s338 + $0x4a0] sm:$0xff] %v6095
        %6224 = vst [vmem:[%s338 + $0x4b0] sm:$0xff] %v6096
        %6225 = vst [vmem:[%s338 + $0x4c0] sm:$0xff] %v6097
        %6226 = vst [vmem:[%s338 + $0x4d0] sm:$0xff] %v6098
        %6227 = vst [vmem:[%s338 + $0x4e0] sm:$0xff] %v6099
        %6228 = vst [vmem:[%s338 + $0x4f0] sm:$0xff] %v6100
        %6229 = vst [vmem:[%s338 + $0x500] sm:$0xff] %v6101
        %6230 = vst [vmem:[%s338 + $0x510] sm:$0xff] %v6102
        %6231 = vst [vmem:[%s338 + $0x520] sm:$0xff] %v6103
        %6232 = vst [vmem:[%s338 + $0x530] sm:$0xff] %v6104
        %6233 = vst [vmem:[%s338 + $0x540] sm:$0xff] %v6105
        %6234 = vst [vmem:[%s338 + $0x550] sm:$0xff] %v6106
        %6235 = vst [vmem:[%s338 + $0x560] sm:$0xff] %v6107
        %6236 = vst [vmem:[%s338 + $0x570] sm:$0xff] %v6108
        %6237 = vst [vmem:[%s338 + $0x580] sm:$0xff] %v6109
        %6238 = vst [vmem:[%s338 + $0x590] sm:$0xff] %v6110
        %6239 = vst [vmem:[%s338 + $0x5a0] sm:$0xff] %v6111
        %6240 = vst [vmem:[%s338 + $0x5b0] sm:$0xff] %v6112
        %6241 = vst [vmem:[%s338 + $0x5c0] sm:$0xff] %v6113
        %6242 = vst [vmem:[%s338 + $0x5d0] sm:$0xff] %v6114
        %6243 = vst [vmem:[%s338 + $0x5e0] sm:$0xff] %v6115
        %6244 = vst [vmem:[%s338 + $0x5f0] sm:$0xff] %v6116
        %6245 = vst [vmem:[%s338 + $0x600] sm:$0xff] %v6117
        %6246 = vst [vmem:[%s338 + $0x610] sm:$0xff] %v6118
        %6247 = vst [vmem:[%s338 + $0x620] sm:$0xff] %v6119
        %6248 = vst [vmem:[%s338 + $0x630] sm:$0xff] %v6120
        %6249 = vst [vmem:[%s338 + $0x640] sm:$0xff] %v6121
        %6250 = vst [vmem:[%s338 + $0x650] sm:$0xff] %v6122
        %6251 = vst [vmem:[%s338 + $0x660] sm:$0xff] %v6123
        %6252 = vst [vmem:[%s338 + $0x670] sm:$0xff] %v6124
        %6253 = vst [vmem:[%s338 + $0x680] sm:$0xff] %v6125
        %6254 = vst [vmem:[%s338 + $0x690] sm:$0xff] %v6126
        %6255 = vst [vmem:[%s338 + $0x6a0] sm:$0xff] %v6127
        %6256 = vst [vmem:[%s338 + $0x6b0] sm:$0xff] %v6128
        %6257 = vst [vmem:[%s338 + $0x6c0] sm:$0xff] %v6129
        %6258 = vst [vmem:[%s338 + $0x6d0] sm:$0xff] %v6130
        %6259 = vst [vmem:[%s338 + $0x6e0] sm:$0xff] %v6131
        %6260 = vst [vmem:[%s338 + $0x6f0] sm:$0xff] %v6132
        %6261 = vst [vmem:[%s338 + $0x700] sm:$0xff] %v6133
        %6262 = vst [vmem:[%s338 + $0x710] sm:$0xff] %v6134
        %6263 = vst [vmem:[%s338 + $0x720] sm:$0xff] %v6135
        %6264 = vst [vmem:[%s338 + $0x730] sm:$0xff] %v6136
        %6265 = vst [vmem:[%s338 + $0x740] sm:$0xff] %v6137
        %6266 = vst [vmem:[%s338 + $0x750] sm:$0xff] %v6138
        %6267 = vst [vmem:[%s338 + $0x760] sm:$0xff] %v6139
        %6268 = vst [vmem:[%s338 + $0x770] sm:$0xff] %v6140
        %6269 = vst [vmem:[%s338 + $0x780] sm:$0xff] %v6141
        %6270 = vst [vmem:[%s338 + $0x790] sm:$0xff] %v6142
        %6271 = vst [vmem:[%s338 + $0x7a0] sm:$0xff] %v6143
        %6272 = vst [vmem:[%s338 + $0x7b0] sm:$0xff] %v6144
        %6273 = vst [vmem:[%s338 + $0x7c0] sm:$0xff] %v6145
        %6274 = vst [vmem:[%s338 + $0x7d0] sm:$0xff] %v6146
        %6275 = vst [vmem:[%s338 + $0x7e0] sm:$0xff] %v6147
        %6276 = vst [vmem:[%s338 + $0x7f0] sm:$0xff] %v6148
        %6277 = vst [vmem:[%s338 + $0x8] sm:$0xff] %v4103
        %6278 = vst [vmem:[%s338 + $0x18] sm:$0xff] %v4106
        %6279 = vst [vmem:[%s338 + $0x28] sm:$0xff] %v4111
        %6280 = vst [vmem:[%s338 + $0x38] sm:$0xff] %v4114
        %6281 = vst [vmem:[%s338 + $0x48] sm:$0xff] %v4119
        %6282 = vst [vmem:[%s338 + $0x58] sm:$0xff] %v4122
        %6283 = vst [vmem:[%s338 + $0x68] sm:$0xff] %v4127
        %6284 = vst [vmem:[%s338 + $0x78] sm:$0xff] %v4130
        %6285 = vst [vmem:[%s338 + $0x88] sm:$0xff] %v4135
        %6286 = vst [vmem:[%s338 + $0x98] sm:$0xff] %v4138
        %6287 = vst [vmem:[%s338 + $0xa8] sm:$0xff] %v4143
        %6288 = vst [vmem:[%s338 + $0xb8] sm:$0xff] %v4146
        %6289 = vst [vmem:[%s338 + $0xc8] sm:$0xff] %v4151
        %6290 = vst [vmem:[%s338 + $0xd8] sm:$0xff] %v4154
        %6291 = vst [vmem:[%s338 + $0xe8] sm:$0xff] %v4159
        %6292 = vst [vmem:[%s338 + $0xf8] sm:$0xff] %v4162
        %6293 = vst [vmem:[%s338 + $0x108] sm:$0xff] %v4248
        %6294 = vst [vmem:[%s338 + $0x118] sm:$0xff] %v4251
        %6295 = vst [vmem:[%s338 + $0x128] sm:$0xff] %v4256
        %6296 = vst [vmem:[%s338 + $0x138] sm:$0xff] %v4259
        %6297 = vst [vmem:[%s338 + $0x148] sm:$0xff] %v4264
        %6298 = vst [vmem:[%s338 + $0x158] sm:$0xff] %v4267
        %6299 = vst [vmem:[%s338 + $0x168] sm:$0xff] %v4272
        %6300 = vst [vmem:[%s338 + $0x178] sm:$0xff] %v4275
        %6301 = vst [vmem:[%s338 + $0x188] sm:$0xff] %v4280
        %6302 = vst [vmem:[%s338 + $0x198] sm:$0xff] %v4283
        %6303 = vst [vmem:[%s338 + $0x1a8] sm:$0xff] %v4288
        %6304 = vst [vmem:[%s338 + $0x1b8] sm:$0xff] %v4291
        %6305 = vst [vmem:[%s338 + $0x1c8] sm:$0xff] %v4296
        %6306 = vst [vmem:[%s338 + $0x1d8] sm:$0xff] %v4299
        %6307 = vst [vmem:[%s338 + $0x1e8] sm:$0xff] %v4304
        %6308 = vst [vmem:[%s338 + $0x1f8] sm:$0xff] %v4307
        %6309 = vst [vmem:[%s338 + $0x208] sm:$0xff] %v4393
        %6310 = vst [vmem:[%s338 + $0x218] sm:$0xff] %v4396
        %6311 = vst [vmem:[%s338 + $0x228] sm:$0xff] %v4401
        %6312 = vst [vmem:[%s338 + $0x238] sm:$0xff] %v4404
        %6313 = vst [vmem:[%s338 + $0x248] sm:$0xff] %v4409
        %6314 = vst [vmem:[%s338 + $0x258] sm:$0xff] %v4412
        %6315 = vst [vmem:[%s338 + $0x268] sm:$0xff] %v4417
        %6316 = vst [vmem:[%s338 + $0x278] sm:$0xff] %v4420
        %6317 = vst [vmem:[%s338 + $0x288] sm:$0xff] %v4425
        %6318 = vst [vmem:[%s338 + $0x298] sm:$0xff] %v4428
        %6319 = vst [vmem:[%s338 + $0x2a8] sm:$0xff] %v4433
        %6320 = vst [vmem:[%s338 + $0x2b8] sm:$0xff] %v4436
        %6321 = vst [vmem:[%s338 + $0x2c8] sm:$0xff] %v4441
        %6322 = vst [vmem:[%s338 + $0x2d8] sm:$0xff] %v4444
        %6323 = vst [vmem:[%s338 + $0x2e8] sm:$0xff] %v4449
        %6324 = vst [vmem:[%s338 + $0x2f8] sm:$0xff] %v4452
        %6325 = vst [vmem:[%s338 + $0x308] sm:$0xff] %v4538
        %6326 = vst [vmem:[%s338 + $0x318] sm:$0xff] %v4541
        %6327 = vst [vmem:[%s338 + $0x328] sm:$0xff] %v4546
        %6328 = vst [vmem:[%s338 + $0x338] sm:$0xff] %v4549
        %6329 = vst [vmem:[%s338 + $0x348] sm:$0xff] %v4554
        %6330 = vst [vmem:[%s338 + $0x358] sm:$0xff] %v4557
        %6331 = vst [vmem:[%s338 + $0x368] sm:$0xff] %v4562
        %6332 = vst [vmem:[%s338 + $0x378] sm:$0xff] %v4565
        %6333 = vst [vmem:[%s338 + $0x388] sm:$0xff] %v4570
        %6334 = vst [vmem:[%s338 + $0x398] sm:$0xff] %v4573
        %6335 = vst [vmem:[%s338 + $0x3a8] sm:$0xff] %v4578
        %6336 = vst [vmem:[%s338 + $0x3b8] sm:$0xff] %v4581
        %6337 = vst [vmem:[%s338 + $0x3c8] sm:$0xff] %v4586
        %6338 = vst [vmem:[%s338 + $0x3d8] sm:$0xff] %v4589
        %6339 = vst [vmem:[%s338 + $0x3e8] sm:$0xff] %v4594
        %6340 = vst [vmem:[%s338 + $0x3f8] sm:$0xff] %v4597
        %6341 = vst [vmem:[%s338 + $0x408] sm:$0xff] %v4683
        %6342 = vst [vmem:[%s338 + $0x418] sm:$0xff] %v4686
        %6343 = vst [vmem:[%s338 + $0x428] sm:$0xff] %v4691
        %6344 = vst [vmem:[%s338 + $0x438] sm:$0xff] %v4694
        %6345 = vst [vmem:[%s338 + $0x448] sm:$0xff] %v4699
        %6346 = vst [vmem:[%s338 + $0x458] sm:$0xff] %v4702
        %6347 = vst [vmem:[%s338 + $0x468] sm:$0xff] %v4707
        %6348 = vst [vmem:[%s338 + $0x478] sm:$0xff] %v4710
        %6349 = vst [vmem:[%s338 + $0x488] sm:$0xff] %v4715
        %6350 = vst [vmem:[%s338 + $0x498] sm:$0xff] %v4718
        %6351 = vst [vmem:[%s338 + $0x4a8] sm:$0xff] %v4723
        %6352 = vst [vmem:[%s338 + $0x4b8] sm:$0xff] %v4726
        %6353 = vst [vmem:[%s338 + $0x4c8] sm:$0xff] %v4731
        %6354 = vst [vmem:[%s338 + $0x4d8] sm:$0xff] %v4734
        %6355 = vst [vmem:[%s338 + $0x4e8] sm:$0xff] %v4739
        %6356 = vst [vmem:[%s338 + $0x4f8] sm:$0xff] %v4742
        %6357 = vst [vmem:[%s338 + $0x508] sm:$0xff] %v4828
        %6358 = vst [vmem:[%s338 + $0x518] sm:$0xff] %v4831
        %6359 = vst [vmem:[%s338 + $0x528] sm:$0xff] %v4836
        %6360 = vst [vmem:[%s338 + $0x538] sm:$0xff] %v4839
        %6361 = vst [vmem:[%s338 + $0x548] sm:$0xff] %v4844
        %6362 = vst [vmem:[%s338 + $0x558] sm:$0xff] %v4847
        %6363 = vst [vmem:[%s338 + $0x568] sm:$0xff] %v4852
        %6364 = vst [vmem:[%s338 + $0x578] sm:$0xff] %v4855
        %6365 = vst [vmem:[%s338 + $0x588] sm:$0xff] %v4860
        %6366 = vst [vmem:[%s338 + $0x598] sm:$0xff] %v4863
        %6367 = vst [vmem:[%s338 + $0x5a8] sm:$0xff] %v4868
        %6368 = vst [vmem:[%s338 + $0x5b8] sm:$0xff] %v4871
        %6369 = vst [vmem:[%s338 + $0x5c8] sm:$0xff] %v4876
        %6370 = vst [vmem:[%s338 + $0x5d8] sm:$0xff] %v4879
        %6371 = vst [vmem:[%s338 + $0x5e8] sm:$0xff] %v4884
        %6372 = vst [vmem:[%s338 + $0x5f8] sm:$0xff] %v4887
        %6373 = vst [vmem:[%s338 + $0x608] sm:$0xff] %v4973
        %6374 = vst [vmem:[%s338 + $0x618] sm:$0xff] %v4976
        %6375 = vst [vmem:[%s338 + $0x628] sm:$0xff] %v4981
        %6376 = vst [vmem:[%s338 + $0x638] sm:$0xff] %v4984
        %6377 = vst [vmem:[%s338 + $0x648] sm:$0xff] %v4989
        %6378 = vst [vmem:[%s338 + $0x658] sm:$0xff] %v4992
        %6379 = vst [vmem:[%s338 + $0x668] sm:$0xff] %v4997
        %6380 = vst [vmem:[%s338 + $0x678] sm:$0xff] %v5000
        %6381 = vst [vmem:[%s338 + $0x688] sm:$0xff] %v5005
        %6382 = vst [vmem:[%s338 + $0x698] sm:$0xff] %v5008
        %6383 = vst [vmem:[%s338 + $0x6a8] sm:$0xff] %v5013
        %6384 = vst [vmem:[%s338 + $0x6b8] sm:$0xff] %v5016
        %6385 = vst [vmem:[%s338 + $0x6c8] sm:$0xff] %v5021
        %6386 = vst [vmem:[%s338 + $0x6d8] sm:$0xff] %v5024
        %6387 = vst [vmem:[%s338 + $0x6e8] sm:$0xff] %v5029
        %6388 = vst [vmem:[%s338 + $0x6f8] sm:$0xff] %v5032
        %6389 = vst [vmem:[%s338 + $0x708] sm:$0xff] %v5118
        %6390 = vst [vmem:[%s338 + $0x718] sm:$0xff] %v5121
        %6391 = vst [vmem:[%s338 + $0x728] sm:$0xff] %v5126
        %6392 = vst [vmem:[%s338 + $0x738] sm:$0xff] %v5129
        %6393 = vst [vmem:[%s338 + $0x748] sm:$0xff] %v5134
        %6394 = vst [vmem:[%s338 + $0x758] sm:$0xff] %v5137
        %6395 = vst [vmem:[%s338 + $0x768] sm:$0xff] %v5142
        %6396 = vst [vmem:[%s338 + $0x778] sm:$0xff] %v5145
        %6397 = vst [vmem:[%s338 + $0x788] sm:$0xff] %v5150
        %6398 = vst [vmem:[%s338 + $0x798] sm:$0xff] %v5153
        %6399 = vst [vmem:[%s338 + $0x7a8] sm:$0xff] %v5158
        %6400 = vst [vmem:[%s338 + $0x7b8] sm:$0xff] %v5161
        %6401 = vst [vmem:[%s338 + $0x7c8] sm:$0xff] %v5166
        %6402 = vst [vmem:[%s338 + $0x7d8] sm:$0xff] %v5169
        %6403 = vst [vmem:[%s338 + $0x7e8] sm:$0xff] %v5174
        %6404 = vst [vmem:[%s338 + $0x7f8] sm:$0xff] %v5177
        %6405 = vxpose.xlu0.b32.start [1/16] %v6021, 128
        %6406 = vxpose.xlu0.b32.cont [2/16] %v6022, 128
        %6407 = vxpose.xlu0.b32.cont [3/16] %v6023, 128
        %6408 = vxpose.xlu0.b32.cont [4/16] %v6024, 128
        %6409 = vxpose.xlu0.b32.cont [5/16] %v6025, 128
        %6410 = vxpose.xlu0.b32.cont [6/16] %v6026, 128
        %6411 = vxpose.xlu0.b32.cont [7/16] %v6027, 128
        %6412 = vxpose.xlu0.b32.cont [8/16] %v6028, 128
        %6413 = vxpose.xlu0.b32.cont [9/16] %v6029, 128
        %6414 = vxpose.xlu0.b32.cont [10/16] %v6030, 128
        %6415 = vxpose.xlu0.b32.cont [11/16] %v6031, 128
        %6416 = vxpose.xlu0.b32.cont [12/16] %v6032, 128
        %6417 = vxpose.xlu0.b32.cont [13/16] %v6033, 128
        %6418 = vxpose.xlu0.b32.cont [14/16] %v6034, 128
        %6419 = vxpose.xlu0.b32.cont [15/16] %v6035, 128
        %6420 = vxpose.xlu0.b32.end [16/16] %v6036, 128
        %v6421 = vpop.trf.xlu0
        %v6422 = vpop.trf.xlu0
        %v6423 = vpop.trf.xlu0
        %v6424 = vpop.trf.xlu0
        %v6425 = vpop.trf.xlu0
        %v6426 = vpop.trf.xlu0
        %v6427 = vpop.trf.xlu0
        %v6428 = vpop.trf.xlu0
        %v6429 = vpop.trf.xlu0
        %v6430 = vpop.trf.xlu0
        %v6431 = vpop.trf.xlu0
        %v6432 = vpop.trf.xlu0
        %v6433 = vpop.trf.xlu0
        %v6434 = vpop.trf.xlu0
        %v6435 = vpop.trf.xlu0
        %v6436 = vpop.trf.xlu0
        %6437 = vxpose.xlu0.b32.start [1/16] %v6037, 128
        %6438 = vxpose.xlu0.b32.cont [2/16] %v6038, 128
        %6439 = vxpose.xlu0.b32.cont [3/16] %v6039, 128
        %6440 = vxpose.xlu0.b32.cont [4/16] %v6040, 128
        %6441 = vxpose.xlu0.b32.cont [5/16] %v6041, 128
        %6442 = vxpose.xlu0.b32.cont [6/16] %v6042, 128
        %6443 = vxpose.xlu0.b32.cont [7/16] %v6043, 128
        %6444 = vxpose.xlu0.b32.cont [8/16] %v6044, 128
        %6445 = vxpose.xlu0.b32.cont [9/16] %v6045, 128
        %6446 = vxpose.xlu0.b32.cont [10/16] %v6046, 128
        %6447 = vxpose.xlu0.b32.cont [11/16] %v6047, 128
        %6448 = vxpose.xlu0.b32.cont [12/16] %v6048, 128
        %6449 = vxpose.xlu0.b32.cont [13/16] %v6049, 128
        %6450 = vxpose.xlu0.b32.cont [14/16] %v6050, 128
        %6451 = vxpose.xlu0.b32.cont [15/16] %v6051, 128
        %6452 = vxpose.xlu0.b32.end [16/16] %v6052, 128
        %v6453 = vpop.trf.xlu0
        %v6454 = vpop.trf.xlu0
        %v6455 = vpop.trf.xlu0
        %v6456 = vpop.trf.xlu0
        %v6457 = vpop.trf.xlu0
        %v6458 = vpop.trf.xlu0
        %v6459 = vpop.trf.xlu0
        %v6460 = vpop.trf.xlu0
        %v6461 = vpop.trf.xlu0
        %v6462 = vpop.trf.xlu0
        %v6463 = vpop.trf.xlu0
        %v6464 = vpop.trf.xlu0
        %v6465 = vpop.trf.xlu0
        %v6466 = vpop.trf.xlu0
        %v6467 = vpop.trf.xlu0
        %v6468 = vpop.trf.xlu0
        %6469 = vxpose.xlu0.b32.start [1/16] %v6053, 128
        %6470 = vxpose.xlu0.b32.cont [2/16] %v6054, 128
        %6471 = vxpose.xlu0.b32.cont [3/16] %v6055, 128
        %6472 = vxpose.xlu0.b32.cont [4/16] %v6056, 128
        %6473 = vxpose.xlu0.b32.cont [5/16] %v6057, 128
        %6474 = vxpose.xlu0.b32.cont [6/16] %v6058, 128
        %6475 = vxpose.xlu0.b32.cont [7/16] %v6059, 128
        %6476 = vxpose.xlu0.b32.cont [8/16] %v6060, 128
        %6477 = vxpose.xlu0.b32.cont [9/16] %v6061, 128
        %6478 = vxpose.xlu0.b32.cont [10/16] %v6062, 128
        %6479 = vxpose.xlu0.b32.cont [11/16] %v6063, 128
        %6480 = vxpose.xlu0.b32.cont [12/16] %v6064, 128
        %6481 = vxpose.xlu0.b32.cont [13/16] %v6065, 128
        %6482 = vxpose.xlu0.b32.cont [14/16] %v6066, 128
        %6483 = vxpose.xlu0.b32.cont [15/16] %v6067, 128
        %6484 = vxpose.xlu0.b32.end [16/16] %v6068, 128
        %v6485 = vpop.trf.xlu0
        %v6486 = vpop.trf.xlu0
        %v6487 = vpop.trf.xlu0
        %v6488 = vpop.trf.xlu0
        %v6489 = vpop.trf.xlu0
        %v6490 = vpop.trf.xlu0
        %v6491 = vpop.trf.xlu0
        %v6492 = vpop.trf.xlu0
        %v6493 = vpop.trf.xlu0
        %v6494 = vpop.trf.xlu0
        %v6495 = vpop.trf.xlu0
        %v6496 = vpop.trf.xlu0
        %v6497 = vpop.trf.xlu0
        %v6498 = vpop.trf.xlu0
        %v6499 = vpop.trf.xlu0
        %v6500 = vpop.trf.xlu0
        %6501 = vxpose.xlu0.b32.start [1/16] %v6069, 128
        %6502 = vxpose.xlu0.b32.cont [2/16] %v6070, 128
        %6503 = vxpose.xlu0.b32.cont [3/16] %v6071, 128
        %6504 = vxpose.xlu0.b32.cont [4/16] %v6072, 128
        %6505 = vxpose.xlu0.b32.cont [5/16] %v6073, 128
        %6506 = vxpose.xlu0.b32.cont [6/16] %v6074, 128
        %6507 = vxpose.xlu0.b32.cont [7/16] %v6075, 128
        %6508 = vxpose.xlu0.b32.cont [8/16] %v6076, 128
        %6509 = vxpose.xlu0.b32.cont [9/16] %v6077, 128
        %6510 = vxpose.xlu0.b32.cont [10/16] %v6078, 128
        %6511 = vxpose.xlu0.b32.cont [11/16] %v6079, 128
        %6512 = vxpose.xlu0.b32.cont [12/16] %v6080, 128
        %6513 = vxpose.xlu0.b32.cont [13/16] %v6081, 128
        %6514 = vxpose.xlu0.b32.cont [14/16] %v6082, 128
        %6515 = vxpose.xlu0.b32.cont [15/16] %v6083, 128
        %6516 = vxpose.xlu0.b32.end [16/16] %v6084, 128
        %v6517 = vpop.trf.xlu0
        %v6518 = vpop.trf.xlu0
        %v6519 = vpop.trf.xlu0
        %v6520 = vpop.trf.xlu0
        %v6521 = vpop.trf.xlu0
        %v6522 = vpop.trf.xlu0
        %v6523 = vpop.trf.xlu0
        %v6524 = vpop.trf.xlu0
        %v6525 = vpop.trf.xlu0
        %v6526 = vpop.trf.xlu0
        %v6527 = vpop.trf.xlu0
        %v6528 = vpop.trf.xlu0
        %v6529 = vpop.trf.xlu0
        %v6530 = vpop.trf.xlu0
        %v6531 = vpop.trf.xlu0
        %v6532 = vpop.trf.xlu0
        %6533 = vxpose.xlu0.b32.start [1/16] %v6085, 128
        %6534 = vxpose.xlu0.b32.cont [2/16] %v6086, 128
        %6535 = vxpose.xlu0.b32.cont [3/16] %v6087, 128
        %6536 = vxpose.xlu0.b32.cont [4/16] %v6088, 128
        %6537 = vxpose.xlu0.b32.cont [5/16] %v6089, 128
        %6538 = vxpose.xlu0.b32.cont [6/16] %v6090, 128
        %6539 = vxpose.xlu0.b32.cont [7/16] %v6091, 128
        %6540 = vxpose.xlu0.b32.cont [8/16] %v6092, 128
        %6541 = vxpose.xlu0.b32.cont [9/16] %v6093, 128
        %6542 = vxpose.xlu0.b32.cont [10/16] %v6094, 128
        %6543 = vxpose.xlu0.b32.cont [11/16] %v6095, 128
        %6544 = vxpose.xlu0.b32.cont [12/16] %v6096, 128
        %6545 = vxpose.xlu0.b32.cont [13/16] %v6097, 128
        %6546 = vxpose.xlu0.b32.cont [14/16] %v6098, 128
        %6547 = vxpose.xlu0.b32.cont [15/16] %v6099, 128
        %6548 = vxpose.xlu0.b32.end [16/16] %v6100, 128
        %v6549 = vpop.trf.xlu0
        %v6550 = vpop.trf.xlu0
        %v6551 = vpop.trf.xlu0
        %v6552 = vpop.trf.xlu0
        %v6553 = vpop.trf.xlu0
        %v6554 = vpop.trf.xlu0
        %v6555 = vpop.trf.xlu0
        %v6556 = vpop.trf.xlu0
        %v6557 = vpop.trf.xlu0
        %v6558 = vpop.trf.xlu0
        %v6559 = vpop.trf.xlu0
        %v6560 = vpop.trf.xlu0
        %v6561 = vpop.trf.xlu0
        %v6562 = vpop.trf.xlu0
        %v6563 = vpop.trf.xlu0
        %v6564 = vpop.trf.xlu0
        %6565 = vxpose.xlu0.b32.start [1/16] %v6101, 128
        %6566 = vxpose.xlu0.b32.cont [2/16] %v6102, 128
        %6567 = vxpose.xlu0.b32.cont [3/16] %v6103, 128
        %6568 = vxpose.xlu0.b32.cont [4/16] %v6104, 128
        %6569 = vxpose.xlu0.b32.cont [5/16] %v6105, 128
        %6570 = vxpose.xlu0.b32.cont [6/16] %v6106, 128
        %6571 = vxpose.xlu0.b32.cont [7/16] %v6107, 128
        %6572 = vxpose.xlu0.b32.cont [8/16] %v6108, 128
        %6573 = vxpose.xlu0.b32.cont [9/16] %v6109, 128
        %6574 = vxpose.xlu0.b32.cont [10/16] %v6110, 128
        %6575 = vxpose.xlu0.b32.cont [11/16] %v6111, 128
        %6576 = vxpose.xlu0.b32.cont [12/16] %v6112, 128
        %6577 = vxpose.xlu0.b32.cont [13/16] %v6113, 128
        %6578 = vxpose.xlu0.b32.cont [14/16] %v6114, 128
        %6579 = vxpose.xlu0.b32.cont [15/16] %v6115, 128
        %6580 = vxpose.xlu0.b32.end [16/16] %v6116, 128
        %v6581 = vpop.trf.xlu0
        %v6582 = vpop.trf.xlu0
        %v6583 = vpop.trf.xlu0
        %v6584 = vpop.trf.xlu0
        %v6585 = vpop.trf.xlu0
        %v6586 = vpop.trf.xlu0
        %v6587 = vpop.trf.xlu0
        %v6588 = vpop.trf.xlu0
        %v6589 = vpop.trf.xlu0
        %v6590 = vpop.trf.xlu0
        %v6591 = vpop.trf.xlu0
        %v6592 = vpop.trf.xlu0
        %v6593 = vpop.trf.xlu0
        %v6594 = vpop.trf.xlu0
        %v6595 = vpop.trf.xlu0
        %v6596 = vpop.trf.xlu0
        %6597 = vxpose.xlu0.b32.start [1/16] %v6117, 128
        %6598 = vxpose.xlu0.b32.cont [2/16] %v6118, 128
        %6599 = vxpose.xlu0.b32.cont [3/16] %v6119, 128
        %6600 = vxpose.xlu0.b32.cont [4/16] %v6120, 128
        %6601 = vxpose.xlu0.b32.cont [5/16] %v6121, 128
        %6602 = vxpose.xlu0.b32.cont [6/16] %v6122, 128
        %6603 = vxpose.xlu0.b32.cont [7/16] %v6123, 128
        %6604 = vxpose.xlu0.b32.cont [8/16] %v6124, 128
        %6605 = vxpose.xlu0.b32.cont [9/16] %v6125, 128
        %6606 = vxpose.xlu0.b32.cont [10/16] %v6126, 128
        %6607 = vxpose.xlu0.b32.cont [11/16] %v6127, 128
        %6608 = vxpose.xlu0.b32.cont [12/16] %v6128, 128
        %6609 = vxpose.xlu0.b32.cont [13/16] %v6129, 128
        %6610 = vxpose.xlu0.b32.cont [14/16] %v6130, 128
        %6611 = vxpose.xlu0.b32.cont [15/16] %v6131, 128
        %6612 = vxpose.xlu0.b32.end [16/16] %v6132, 128
        %v6613 = vpop.trf.xlu0
        %v6614 = vpop.trf.xlu0
        %v6615 = vpop.trf.xlu0
        %v6616 = vpop.trf.xlu0
        %v6617 = vpop.trf.xlu0
        %v6618 = vpop.trf.xlu0
        %v6619 = vpop.trf.xlu0
        %v6620 = vpop.trf.xlu0
        %v6621 = vpop.trf.xlu0
        %v6622 = vpop.trf.xlu0
        %v6623 = vpop.trf.xlu0
        %v6624 = vpop.trf.xlu0
        %v6625 = vpop.trf.xlu0
        %v6626 = vpop.trf.xlu0
        %v6627 = vpop.trf.xlu0
        %v6628 = vpop.trf.xlu0
        %6629 = vxpose.xlu0.b32.start [1/16] %v6133, 128
        %6630 = vxpose.xlu0.b32.cont [2/16] %v6134, 128
        %6631 = vxpose.xlu0.b32.cont [3/16] %v6135, 128
        %6632 = vxpose.xlu0.b32.cont [4/16] %v6136, 128
        %6633 = vxpose.xlu0.b32.cont [5/16] %v6137, 128
        %6634 = vxpose.xlu0.b32.cont [6/16] %v6138, 128
        %6635 = vxpose.xlu0.b32.cont [7/16] %v6139, 128
        %6636 = vxpose.xlu0.b32.cont [8/16] %v6140, 128
        %6637 = vxpose.xlu0.b32.cont [9/16] %v6141, 128
        %6638 = vxpose.xlu0.b32.cont [10/16] %v6142, 128
        %6639 = vxpose.xlu0.b32.cont [11/16] %v6143, 128
        %6640 = vxpose.xlu0.b32.cont [12/16] %v6144, 128
        %6641 = vxpose.xlu0.b32.cont [13/16] %v6145, 128
        %6642 = vxpose.xlu0.b32.cont [14/16] %v6146, 128
        %6643 = vxpose.xlu0.b32.cont [15/16] %v6147, 128
        %6644 = vxpose.xlu0.b32.end [16/16] %v6148, 128
        %v6645 = vpop.trf.xlu0
        %v6646 = vpop.trf.xlu0
        %v6647 = vpop.trf.xlu0
        %v6648 = vpop.trf.xlu0
        %v6649 = vpop.trf.xlu0
        %v6650 = vpop.trf.xlu0
        %v6651 = vpop.trf.xlu0
        %v6652 = vpop.trf.xlu0
        %v6653 = vpop.trf.xlu0
        %v6654 = vpop.trf.xlu0
        %v6655 = vpop.trf.xlu0
        %v6656 = vpop.trf.xlu0
        %v6657 = vpop.trf.xlu0
        %v6658 = vpop.trf.xlu0
        %v6659 = vpop.trf.xlu0
        %v6660 = vpop.trf.xlu0
        %6661 = vst [vmem:[%s345] sm:$0xff] %v6421
        %6662 = vst [vmem:[%s345 + $0x10] sm:$0xff] %v6422
        %6663 = vst [vmem:[%s345 + $0x20] sm:$0xff] %v6423
        %6664 = vst [vmem:[%s345 + $0x30] sm:$0xff] %v6424
        %6665 = vst [vmem:[%s345 + $0x40] sm:$0xff] %v6425
        %6666 = vst [vmem:[%s345 + $0x50] sm:$0xff] %v6426
        %6667 = vst [vmem:[%s345 + $0x60] sm:$0xff] %v6427
        %6668 = vst [vmem:[%s345 + $0x70] sm:$0xff] %v6428
        %6669 = vst [vmem:[%s345 + $0x80] sm:$0xff] %v6429
        %6670 = vst [vmem:[%s345 + $0x90] sm:$0xff] %v6430
        %6671 = vst [vmem:[%s345 + $0xa0] sm:$0xff] %v6431
        %6672 = vst [vmem:[%s345 + $0xb0] sm:$0xff] %v6432
        %6673 = vst [vmem:[%s345 + $0xc0] sm:$0xff] %v6433
        %6674 = vst [vmem:[%s345 + $0xd0] sm:$0xff] %v6434
        %6675 = vst [vmem:[%s345 + $0xe0] sm:$0xff] %v6435
        %6676 = vst [vmem:[%s345 + $0xf0] sm:$0xff] %v6436
        %6677 = vst [vmem:[%s345 + $0x100] sm:$0xff] %v6453
        %6678 = vst [vmem:[%s345 + $0x110] sm:$0xff] %v6454
        %6679 = vst [vmem:[%s345 + $0x120] sm:$0xff] %v6455
        %6680 = vst [vmem:[%s345 + $0x130] sm:$0xff] %v6456
        %6681 = vst [vmem:[%s345 + $0x140] sm:$0xff] %v6457
        %6682 = vst [vmem:[%s345 + $0x150] sm:$0xff] %v6458
        %6683 = vst [vmem:[%s345 + $0x160] sm:$0xff] %v6459
        %6684 = vst [vmem:[%s345 + $0x170] sm:$0xff] %v6460
        %6685 = vst [vmem:[%s345 + $0x180] sm:$0xff] %v6461
        %6686 = vst [vmem:[%s345 + $0x190] sm:$0xff] %v6462
        %6687 = vst [vmem:[%s345 + $0x1a0] sm:$0xff] %v6463
        %6688 = vst [vmem:[%s345 + $0x1b0] sm:$0xff] %v6464
        %6689 = vst [vmem:[%s345 + $0x1c0] sm:$0xff] %v6465
        %6690 = vst [vmem:[%s345 + $0x1d0] sm:$0xff] %v6466
        %6691 = vst [vmem:[%s345 + $0x1e0] sm:$0xff] %v6467
        %6692 = vst [vmem:[%s345 + $0x1f0] sm:$0xff] %v6468
        %6693 = vst [vmem:[%s345 + $0x200] sm:$0xff] %v6485
        %6694 = vst [vmem:[%s345 + $0x210] sm:$0xff] %v6486
        %6695 = vst [vmem:[%s345 + $0x220] sm:$0xff] %v6487
        %6696 = vst [vmem:[%s345 + $0x230] sm:$0xff] %v6488
        %6697 = vst [vmem:[%s345 + $0x240] sm:$0xff] %v6489
        %6698 = vst [vmem:[%s345 + $0x250] sm:$0xff] %v6490
        %6699 = vst [vmem:[%s345 + $0x260] sm:$0xff] %v6491
        %6700 = vst [vmem:[%s345 + $0x270] sm:$0xff] %v6492
        %6701 = vst [vmem:[%s345 + $0x280] sm:$0xff] %v6493
        %6702 = vst [vmem:[%s345 + $0x290] sm:$0xff] %v6494
        %6703 = vst [vmem:[%s345 + $0x2a0] sm:$0xff] %v6495
        %6704 = vst [vmem:[%s345 + $0x2b0] sm:$0xff] %v6496
        %6705 = vst [vmem:[%s345 + $0x2c0] sm:$0xff] %v6497
        %6706 = vst [vmem:[%s345 + $0x2d0] sm:$0xff] %v6498
        %6707 = vst [vmem:[%s345 + $0x2e0] sm:$0xff] %v6499
        %6708 = vst [vmem:[%s345 + $0x2f0] sm:$0xff] %v6500
        %6709 = vst [vmem:[%s345 + $0x300] sm:$0xff] %v6517
        %6710 = vst [vmem:[%s345 + $0x310] sm:$0xff] %v6518
        %6711 = vst [vmem:[%s345 + $0x320] sm:$0xff] %v6519
        %6712 = vst [vmem:[%s345 + $0x330] sm:$0xff] %v6520
        %6713 = vst [vmem:[%s345 + $0x340] sm:$0xff] %v6521
        %6714 = vst [vmem:[%s345 + $0x350] sm:$0xff] %v6522
        %6715 = vst [vmem:[%s345 + $0x360] sm:$0xff] %v6523
        %6716 = vst [vmem:[%s345 + $0x370] sm:$0xff] %v6524
        %6717 = vst [vmem:[%s345 + $0x380] sm:$0xff] %v6525
        %6718 = vst [vmem:[%s345 + $0x390] sm:$0xff] %v6526
        %6719 = vst [vmem:[%s345 + $0x3a0] sm:$0xff] %v6527
        %6720 = vst [vmem:[%s345 + $0x3b0] sm:$0xff] %v6528
        %6721 = vst [vmem:[%s345 + $0x3c0] sm:$0xff] %v6529
        %6722 = vst [vmem:[%s345 + $0x3d0] sm:$0xff] %v6530
        %6723 = vst [vmem:[%s345 + $0x3e0] sm:$0xff] %v6531
        %6724 = vst [vmem:[%s345 + $0x3f0] sm:$0xff] %v6532
        %6725 = vst [vmem:[%s345 + $0x400] sm:$0xff] %v6549
        %6726 = vst [vmem:[%s345 + $0x410] sm:$0xff] %v6550
        %6727 = vst [vmem:[%s345 + $0x420] sm:$0xff] %v6551
        %6728 = vst [vmem:[%s345 + $0x430] sm:$0xff] %v6552
        %6729 = vst [vmem:[%s345 + $0x440] sm:$0xff] %v6553
        %6730 = vst [vmem:[%s345 + $0x450] sm:$0xff] %v6554
        %6731 = vst [vmem:[%s345 + $0x460] sm:$0xff] %v6555
        %6732 = vst [vmem:[%s345 + $0x470] sm:$0xff] %v6556
        %6733 = vst [vmem:[%s345 + $0x480] sm:$0xff] %v6557
        %6734 = vst [vmem:[%s345 + $0x490] sm:$0xff] %v6558
        %6735 = vst [vmem:[%s345 + $0x4a0] sm:$0xff] %v6559
        %6736 = vst [vmem:[%s345 + $0x4b0] sm:$0xff] %v6560
        %6737 = vst [vmem:[%s345 + $0x4c0] sm:$0xff] %v6561
        %6738 = vst [vmem:[%s345 + $0x4d0] sm:$0xff] %v6562
        %6739 = vst [vmem:[%s345 + $0x4e0] sm:$0xff] %v6563
        %6740 = vst [vmem:[%s345 + $0x4f0] sm:$0xff] %v6564
        %6741 = vst [vmem:[%s345 + $0x500] sm:$0xff] %v6581
        %6742 = vst [vmem:[%s345 + $0x510] sm:$0xff] %v6582
        %6743 = vst [vmem:[%s345 + $0x520] sm:$0xff] %v6583
        %6744 = vst [vmem:[%s345 + $0x530] sm:$0xff] %v6584
        %6745 = vst [vmem:[%s345 + $0x540] sm:$0xff] %v6585
        %6746 = vst [vmem:[%s345 + $0x550] sm:$0xff] %v6586
        %6747 = vst [vmem:[%s345 + $0x560] sm:$0xff] %v6587
        %6748 = vst [vmem:[%s345 + $0x570] sm:$0xff] %v6588
        %6749 = vst [vmem:[%s345 + $0x580] sm:$0xff] %v6589
        %6750 = vst [vmem:[%s345 + $0x590] sm:$0xff] %v6590
        %6751 = vst [vmem:[%s345 + $0x5a0] sm:$0xff] %v6591
        %6752 = vst [vmem:[%s345 + $0x5b0] sm:$0xff] %v6592
        %6753 = vst [vmem:[%s345 + $0x5c0] sm:$0xff] %v6593
        %6754 = vst [vmem:[%s345 + $0x5d0] sm:$0xff] %v6594
        %6755 = vst [vmem:[%s345 + $0x5e0] sm:$0xff] %v6595
        %6756 = vst [vmem:[%s345 + $0x5f0] sm:$0xff] %v6596
        %6757 = vst [vmem:[%s345 + $0x600] sm:$0xff] %v6613
        %6758 = vst [vmem:[%s345 + $0x610] sm:$0xff] %v6614
        %6759 = vst [vmem:[%s345 + $0x620] sm:$0xff] %v6615
        %6760 = vst [vmem:[%s345 + $0x630] sm:$0xff] %v6616
        %6761 = vst [vmem:[%s345 + $0x640] sm:$0xff] %v6617
        %6762 = vst [vmem:[%s345 + $0x650] sm:$0xff] %v6618
        %6763 = vst [vmem:[%s345 + $0x660] sm:$0xff] %v6619
        %6764 = vst [vmem:[%s345 + $0x670] sm:$0xff] %v6620
        %6765 = vst [vmem:[%s345 + $0x680] sm:$0xff] %v6621
        %6766 = vst [vmem:[%s345 + $0x690] sm:$0xff] %v6622
        %6767 = vst [vmem:[%s345 + $0x6a0] sm:$0xff] %v6623
        %6768 = vst [vmem:[%s345 + $0x6b0] sm:$0xff] %v6624
        %6769 = vst [vmem:[%s345 + $0x6c0] sm:$0xff] %v6625
        %6770 = vst [vmem:[%s345 + $0x6d0] sm:$0xff] %v6626
        %6771 = vst [vmem:[%s345 + $0x6e0] sm:$0xff] %v6627
        %6772 = vst [vmem:[%s345 + $0x6f0] sm:$0xff] %v6628
        %6773 = vst [vmem:[%s345 + $0x700] sm:$0xff] %v6645
        %6774 = vst [vmem:[%s345 + $0x710] sm:$0xff] %v6646
        %6775 = vst [vmem:[%s345 + $0x720] sm:$0xff] %v6647
        %6776 = vst [vmem:[%s345 + $0x730] sm:$0xff] %v6648
        %6777 = vst [vmem:[%s345 + $0x740] sm:$0xff] %v6649
        %6778 = vst [vmem:[%s345 + $0x750] sm:$0xff] %v6650
        %6779 = vst [vmem:[%s345 + $0x760] sm:$0xff] %v6651
        %6780 = vst [vmem:[%s345 + $0x770] sm:$0xff] %v6652
        %6781 = vst [vmem:[%s345 + $0x780] sm:$0xff] %v6653
        %6782 = vst [vmem:[%s345 + $0x790] sm:$0xff] %v6654
        %6783 = vst [vmem:[%s345 + $0x7a0] sm:$0xff] %v6655
        %6784 = vst [vmem:[%s345 + $0x7b0] sm:$0xff] %v6656
        %6785 = vst [vmem:[%s345 + $0x7c0] sm:$0xff] %v6657
        %6786 = vst [vmem:[%s345 + $0x7d0] sm:$0xff] %v6658
        %6787 = vst [vmem:[%s345 + $0x7e0] sm:$0xff] %v6659
        %6788 = vst [vmem:[%s345 + $0x7f0] sm:$0xff] %v6660
        %6789 = vst [vmem:[%s345 + $0x8] sm:$0xff] %v5215
        %6790 = vst [vmem:[%s345 + $0x18] sm:$0xff] %v5218
        %6791 = vst [vmem:[%s345 + $0x28] sm:$0xff] %v5223
        %6792 = vst [vmem:[%s345 + $0x38] sm:$0xff] %v5226
        %6793 = vst [vmem:[%s345 + $0x48] sm:$0xff] %v5231
        %6794 = vst [vmem:[%s345 + $0x58] sm:$0xff] %v5234
        %6795 = vst [vmem:[%s345 + $0x68] sm:$0xff] %v5239
        %6796 = vst [vmem:[%s345 + $0x78] sm:$0xff] %v5242
        %6797 = vst [vmem:[%s345 + $0x88] sm:$0xff] %v5247
        %6798 = vst [vmem:[%s345 + $0x98] sm:$0xff] %v5250
        %6799 = vst [vmem:[%s345 + $0xa8] sm:$0xff] %v5255
        %6800 = vst [vmem:[%s345 + $0xb8] sm:$0xff] %v5258
        %6801 = vst [vmem:[%s345 + $0xc8] sm:$0xff] %v5263
        %6802 = vst [vmem:[%s345 + $0xd8] sm:$0xff] %v5266
        %6803 = vst [vmem:[%s345 + $0xe8] sm:$0xff] %v5271
        %6804 = vst [vmem:[%s345 + $0xf8] sm:$0xff] %v5274
        %6805 = vst [vmem:[%s345 + $0x108] sm:$0xff] %v5312
        %6806 = vst [vmem:[%s345 + $0x118] sm:$0xff] %v5315
        %6807 = vst [vmem:[%s345 + $0x128] sm:$0xff] %v5320
        %6808 = vst [vmem:[%s345 + $0x138] sm:$0xff] %v5323
        %6809 = vst [vmem:[%s345 + $0x148] sm:$0xff] %v5328
        %6810 = vst [vmem:[%s345 + $0x158] sm:$0xff] %v5331
        %6811 = vst [vmem:[%s345 + $0x168] sm:$0xff] %v5336
        %6812 = vst [vmem:[%s345 + $0x178] sm:$0xff] %v5339
        %6813 = vst [vmem:[%s345 + $0x188] sm:$0xff] %v5344
        %6814 = vst [vmem:[%s345 + $0x198] sm:$0xff] %v5347
        %6815 = vst [vmem:[%s345 + $0x1a8] sm:$0xff] %v5352
        %6816 = vst [vmem:[%s345 + $0x1b8] sm:$0xff] %v5355
        %6817 = vst [vmem:[%s345 + $0x1c8] sm:$0xff] %v5360
        %6818 = vst [vmem:[%s345 + $0x1d8] sm:$0xff] %v5363
        %6819 = vst [vmem:[%s345 + $0x1e8] sm:$0xff] %v5368
        %6820 = vst [vmem:[%s345 + $0x1f8] sm:$0xff] %v5371
        %6821 = vst [vmem:[%s345 + $0x208] sm:$0xff] %v5409
        %6822 = vst [vmem:[%s345 + $0x218] sm:$0xff] %v5412
        %6823 = vst [vmem:[%s345 + $0x228] sm:$0xff] %v5417
        %6824 = vst [vmem:[%s345 + $0x238] sm:$0xff] %v5420
        %6825 = vst [vmem:[%s345 + $0x248] sm:$0xff] %v5425
        %6826 = vst [vmem:[%s345 + $0x258] sm:$0xff] %v5428
        %6827 = vst [vmem:[%s345 + $0x268] sm:$0xff] %v5433
        %6828 = vst [vmem:[%s345 + $0x278] sm:$0xff] %v5436
        %6829 = vst [vmem:[%s345 + $0x288] sm:$0xff] %v5441
        %6830 = vst [vmem:[%s345 + $0x298] sm:$0xff] %v5444
        %6831 = vst [vmem:[%s345 + $0x2a8] sm:$0xff] %v5449
        %6832 = vst [vmem:[%s345 + $0x2b8] sm:$0xff] %v5452
        %6833 = vst [vmem:[%s345 + $0x2c8] sm:$0xff] %v5457
        %6834 = vst [vmem:[%s345 + $0x2d8] sm:$0xff] %v5460
        %6835 = vst [vmem:[%s345 + $0x2e8] sm:$0xff] %v5465
        %6836 = vst [vmem:[%s345 + $0x2f8] sm:$0xff] %v5468
        %6837 = vst [vmem:[%s345 + $0x308] sm:$0xff] %v5506
        %6838 = vst [vmem:[%s345 + $0x318] sm:$0xff] %v5509
        %6839 = vst [vmem:[%s345 + $0x328] sm:$0xff] %v5514
        %6840 = vst [vmem:[%s345 + $0x338] sm:$0xff] %v5517
        %6841 = vst [vmem:[%s345 + $0x348] sm:$0xff] %v5522
        %6842 = vst [vmem:[%s345 + $0x358] sm:$0xff] %v5525
        %6843 = vst [vmem:[%s345 + $0x368] sm:$0xff] %v5530
        %6844 = vst [vmem:[%s345 + $0x378] sm:$0xff] %v5533
        %6845 = vst [vmem:[%s345 + $0x388] sm:$0xff] %v5538
        %6846 = vst [vmem:[%s345 + $0x398] sm:$0xff] %v5541
        %6847 = vst [vmem:[%s345 + $0x3a8] sm:$0xff] %v5546
        %6848 = vst [vmem:[%s345 + $0x3b8] sm:$0xff] %v5549
        %6849 = vst [vmem:[%s345 + $0x3c8] sm:$0xff] %v5554
        %6850 = vst [vmem:[%s345 + $0x3d8] sm:$0xff] %v5557
        %6851 = vst [vmem:[%s345 + $0x3e8] sm:$0xff] %v5562
        %6852 = vst [vmem:[%s345 + $0x3f8] sm:$0xff] %v5565
        %6853 = vst [vmem:[%s345 + $0x408] sm:$0xff] %v5603
        %6854 = vst [vmem:[%s345 + $0x418] sm:$0xff] %v5606
        %6855 = vst [vmem:[%s345 + $0x428] sm:$0xff] %v5611
        %6856 = vst [vmem:[%s345 + $0x438] sm:$0xff] %v5614
        %6857 = vst [vmem:[%s345 + $0x448] sm:$0xff] %v5619
        %6858 = vst [vmem:[%s345 + $0x458] sm:$0xff] %v5622
        %6859 = vst [vmem:[%s345 + $0x468] sm:$0xff] %v5627
        %6860 = vst [vmem:[%s345 + $0x478] sm:$0xff] %v5630
        %6861 = vst [vmem:[%s345 + $0x488] sm:$0xff] %v5635
        %6862 = vst [vmem:[%s345 + $0x498] sm:$0xff] %v5638
        %6863 = vst [vmem:[%s345 + $0x4a8] sm:$0xff] %v5643
        %6864 = vst [vmem:[%s345 + $0x4b8] sm:$0xff] %v5646
        %6865 = vst [vmem:[%s345 + $0x4c8] sm:$0xff] %v5651
        %6866 = vst [vmem:[%s345 + $0x4d8] sm:$0xff] %v5654
        %6867 = vst [vmem:[%s345 + $0x4e8] sm:$0xff] %v5659
        %6868 = vst [vmem:[%s345 + $0x4f8] sm:$0xff] %v5662
        %6869 = vst [vmem:[%s345 + $0x508] sm:$0xff] %v5700
        %6870 = vst [vmem:[%s345 + $0x518] sm:$0xff] %v5703
        %6871 = vst [vmem:[%s345 + $0x528] sm:$0xff] %v5708
        %6872 = vst [vmem:[%s345 + $0x538] sm:$0xff] %v5711
        %6873 = vst [vmem:[%s345 + $0x548] sm:$0xff] %v5716
        %6874 = vst [vmem:[%s345 + $0x558] sm:$0xff] %v5719
        %6875 = vst [vmem:[%s345 + $0x568] sm:$0xff] %v5724
        %6876 = vst [vmem:[%s345 + $0x578] sm:$0xff] %v5727
        %6877 = vst [vmem:[%s345 + $0x588] sm:$0xff] %v5732
        %6878 = vst [vmem:[%s345 + $0x598] sm:$0xff] %v5735
        %6879 = vst [vmem:[%s345 + $0x5a8] sm:$0xff] %v5740
        %6880 = vst [vmem:[%s345 + $0x5b8] sm:$0xff] %v5743
        %6881 = vst [vmem:[%s345 + $0x5c8] sm:$0xff] %v5748
        %6882 = vst [vmem:[%s345 + $0x5d8] sm:$0xff] %v5751
        %6883 = vst [vmem:[%s345 + $0x5e8] sm:$0xff] %v5756
        %6884 = vst [vmem:[%s345 + $0x5f8] sm:$0xff] %v5759
        %6885 = vst [vmem:[%s345 + $0x608] sm:$0xff] %v5797
        %6886 = vst [vmem:[%s345 + $0x618] sm:$0xff] %v5800
        %6887 = vst [vmem:[%s345 + $0x628] sm:$0xff] %v5805
        %6888 = vst [vmem:[%s345 + $0x638] sm:$0xff] %v5808
        %6889 = vst [vmem:[%s345 + $0x648] sm:$0xff] %v5813
        %6890 = vst [vmem:[%s345 + $0x658] sm:$0xff] %v5816
        %6891 = vst [vmem:[%s345 + $0x668] sm:$0xff] %v5821
        %6892 = vst [vmem:[%s345 + $0x678] sm:$0xff] %v5824
        %6893 = vst [vmem:[%s345 + $0x688] sm:$0xff] %v5829
        %6894 = vst [vmem:[%s345 + $0x698] sm:$0xff] %v5832
        %6895 = vst [vmem:[%s345 + $0x6a8] sm:$0xff] %v5837
        %6896 = vst [vmem:[%s345 + $0x6b8] sm:$0xff] %v5840
        %6897 = vst [vmem:[%s345 + $0x6c8] sm:$0xff] %v5845
        %6898 = vst [vmem:[%s345 + $0x6d8] sm:$0xff] %v5848
        %6899 = vst [vmem:[%s345 + $0x6e8] sm:$0xff] %v5853
        %6900 = vst [vmem:[%s345 + $0x6f8] sm:$0xff] %v5856
        %6901 = vst [vmem:[%s345 + $0x708] sm:$0xff] %v5894
        %6902 = vst [vmem:[%s345 + $0x718] sm:$0xff] %v5897
        %6903 = vst [vmem:[%s345 + $0x728] sm:$0xff] %v5902
        %6904 = vst [vmem:[%s345 + $0x738] sm:$0xff] %v5905
        %6905 = vst [vmem:[%s345 + $0x748] sm:$0xff] %v5910
        %6906 = vst [vmem:[%s345 + $0x758] sm:$0xff] %v5913
        %6907 = vst [vmem:[%s345 + $0x768] sm:$0xff] %v5918
        %6908 = vst [vmem:[%s345 + $0x778] sm:$0xff] %v5921
        %6909 = vst [vmem:[%s345 + $0x788] sm:$0xff] %v5926
        %6910 = vst [vmem:[%s345 + $0x798] sm:$0xff] %v5929
        %6911 = vst [vmem:[%s345 + $0x7a8] sm:$0xff] %v5934
        %6912 = vst [vmem:[%s345 + $0x7b8] sm:$0xff] %v5937
        %6913 = vst [vmem:[%s345 + $0x7c8] sm:$0xff] %v5942
        %6914 = vst [vmem:[%s345 + $0x7d8] sm:$0xff] %v5945
        %6915 = vst [vmem:[%s345 + $0x7e8] sm:$0xff] %v5950
        %6916 = vst [vmem:[%s345 + $0x7f8] sm:$0xff] %v5953
        %p6917 = scmp.lt.s32.totalorder %s25, 3
        %s6918 = scalar_select %p6917, %s25, 3
        %s6919 = smul.addr %s6918, 8
        %s6920 = scalar_lea.vmem %s5, %s6919
        %s6921 = sand.u32 %s184, 1
        %s6922 = scalar_lea.sflag [#allocation3], %s6921
        %s6923 = sand.u32 %s184, 1
        %s6924 = smul.addr %s6923, 2048
        %s6925 = scalar_lea.vmem [#allocation2], %s6924
        %s6926 = sand.u32 %s210, 1
        %s6927 = scalar_lea.sflag [#allocation5], %s6926
        %s6928 = sand.u32 %s210, 1
        %s6929 = smul.addr %s6928, 2048
        %s6930 = scalar_lea.vmem [#allocation4], %s6929
        // Predicated region
        $region41: #{multi_relation_embedder_forward.1} parent=39 // pred_check
          %p6931 = pneg %p168
        $region42: #{multi_relation_embedder_forward.1} parent=39 // pred_check_branch
          %6933 = sbr.rel (%p6931) target = $region44
        $region43: #{multi_relation_embedder_forward.1} parent=39 // pred_region
          _
        $region44: #{multi_relation_embedder_forward.1} parent=39 // pred_fallthru
          _
        // Predicated region
        $region45: #{multi_relation_embedder_forward.1} parent=39 // pred_check
          %p6934 = pneg %p194
        $region46: #{multi_relation_embedder_forward.1} parent=39 // pred_check_branch
          %6936 = sbr.rel (%p6934) target = $region48
        $region47: #{multi_relation_embedder_forward.1} parent=39 // pred_region
          %s6937 = smul.u32 8, %s25
          %s6939 = ssub.s32 32768, 32768
          %6940 = vsyncadd %s6922, %s6939
          %s6941 = smul.addr %s6937, 32
          %s6942 = smul.addr %s6941, 128
          %s6943 = scalar_lea.hbm %s6, %s6942
          %s6944 = sshll.u32 %s6925, 4
          %s6945 = int_to_ptr.vmem [resolvable:$true] %s6944
          %6950 = dma.vmem_to_hbm [thread:$0]  %s6945, 32768, %s6943, %s6922, 256, 256, 16
        $region48: #{multi_relation_embedder_forward.1} parent=39 // pred_fallthru
          _
        // Predicated region
        $region49: #{multi_relation_embedder_forward.1} parent=39 // pred_check
          %p6951 = pneg %p220
        $region50: #{multi_relation_embedder_forward.1} parent=39 // pred_check_branch
          %6953 = sbr.rel (%p6951) target = $region52
        $region51: #{multi_relation_embedder_forward.1} parent=39 // pred_region
          %s6954 = smul.u32 8, %s25
          %s6956 = ssub.s32 32768, 32768
          %6957 = vsyncadd %s6927, %s6956
          %s6958 = smul.addr %s6954, 32
          %s6959 = smul.addr %s6958, 128
          %s6960 = scalar_lea.hbm %s7, %s6959
          %s6961 = sshll.u32 %s6930, 4
          %s6962 = int_to_ptr.vmem [resolvable:$true] %s6961
          %6967 = dma.vmem_to_hbm [thread:$0]  %s6962, 32768, %s6960, %s6927, 256, 256, 16
        $region52: #{multi_relation_embedder_forward.1} parent=39 // pred_fallthru
          _
      $region40: #{multi_relation_embedder_forward.1} parent=5 // pred_fallthru
        _
      %p6968 = scmp.le.s32.totalorder 2, %s20
      // Predicated region
      $region53: #{multi_relation_embedder_forward.1} parent=5 // pred_check
        %p6969 = pneg %p6968
      $region54: #{multi_relation_embedder_forward.1} parent=5 // pred_check_branch
        %6971 = sbr.rel (%p6969) target = $region56
      $region55: #{multi_relation_embedder_forward.1} parent=5 // pred_region
        %s6972 = ssub.s32 %s20, 2
        // Predicated region
        $region57: #{multi_relation_embedder_forward.1} parent=55 // pred_check
          %p6973 = pneg %p174
        $region58: #{multi_relation_embedder_forward.1} parent=55 // pred_check_branch
          %6975 = sbr.rel (%p6973) target = $region60
        $region59: #{multi_relation_embedder_forward.1} parent=55 // pred_region
          %p6976 = scmp.lt.s32.totalorder %s26, 3
          %s6977 = scalar_select %p6976, %s26, 3
          %s6978 = smul.addr %s6977, 8
          %s6979 = scalar_lea.vmem %s5, %s6978
        $region60: #{multi_relation_embedder_forward.1} parent=55 // pred_fallthru
          _
        // Predicated region
        $region61: #{multi_relation_embedder_forward.1} parent=55 // pred_check
          %p6980 = pneg %p200
        $region62: #{multi_relation_embedder_forward.1} parent=55 // pred_check_branch
          %6982 = sbr.rel (%p6980) target = $region64
        $region63: #{multi_relation_embedder_forward.1} parent=55 // pred_region
          %s6983 = sand.u32 %s185, 1
          %s6984 = scalar_lea.sflag [#allocation3], %s6983
          %s6985 = sand.u32 %s185, 1
          %s6986 = smul.addr %s6985, 2048
          %s6987 = scalar_lea.vmem [#allocation2], %s6986
          %6988 = dma.done %s6984, 32768
        $region64: #{multi_relation_embedder_forward.1} parent=55 // pred_fallthru
          _
        // Predicated region
        $region65: #{multi_relation_embedder_forward.1} parent=55 // pred_check
          %p6989 = pneg %p226
        $region66: #{multi_relation_embedder_forward.1} parent=55 // pred_check_branch
          %6991 = sbr.rel (%p6989) target = $region68
        $region67: #{multi_relation_embedder_forward.1} parent=55 // pred_region
          %s6992 = sand.u32 %s211, 1
          %s6993 = scalar_lea.sflag [#allocation5], %s6992
          %s6994 = sand.u32 %s211, 1
          %s6995 = smul.addr %s6994, 2048
          %s6996 = scalar_lea.vmem [#allocation4], %s6995
          %6997 = dma.done %s6993, 32768
        $region68: #{multi_relation_embedder_forward.1} parent=55 // pred_fallthru
          _
      $region56: #{multi_relation_embedder_forward.1} parent=5 // pred_fallthru
        _
    $region6: #{multi_relation_embedder_forward.1} parent=1 // loop_footer
      %s24 = sadd.s32 1, %s20
    $region7: #{multi_relation_embedder_forward.1} parent=1 // loop_footer_branch
      %19 = sbr.rel target = $region3
    $region8: #{multi_relation_embedder_forward.1} parent=1 // loop_exit
      _
    %6998 = vsyncpa [#allocation3], 1
    %s6999 = scalar_lea.sflag [#allocation3], 1
    %7000 = vsyncpa %s6999, 1
    %7001 = vsyncpa [#allocation5], 1
    %s7002 = scalar_lea.sflag [#allocation5], 1
    %7003 = vsyncpa %s7002, 1

</llo_original>
